<compile_context>
chip_gen: v6e
topology: v6e:2x2x1
jax: 0.10.0
libtpu: 0.0.40
codegen_flags: <defaults>
</compile_context>

<pallas_src>
import functools

import numpy as np
import jax
import jax.numpy as jnp
from jax.experimental import pallas as pl
from jax.experimental.pallas import tpu as pltpu


# ----------------------------------------------------------------------------
# Fused DoubleConv kernel
# ----------------------------------------------------------------------------
def _double_conv_kernel(xp_ref, w1_ref, b1_ref, w2_ref, b2_ref, o_ref, mid_ref, *, H, W):
    """y = relu(conv3x3(relu(conv3x3(x) + b1)) + b2) for one batch element.

    xp_ref : (1, H+2, W+2, Cin)  zero-padded input image (pad=1 in H and W)
    w1_ref : (9, Cin, Cmid)      conv1 weights, tap k = 3*ky + kx  (VMEM-resident)
    b1_ref : (1, Cmid)           f32
    w2_ref : (9, Cmid, Cout)     conv2 weights                      (VMEM-resident)
    b2_ref : (1, Cout)           f32
    o_ref  : (1, H, W, Cout)
    mid_ref: (H+2, W+2, Cmid)    VMEM scratch: conv1 output with a zero halo so
                                 conv2's padding=1 becomes plain static slicing.
    """
    Cin = xp_ref.shape[-1]
    Cmid = w1_ref.shape[-1]
    Cout = w2_ref.shape[-1]

    # ---- conv1 + bias + ReLU: 9 shifted (H*W, Cin) @ (Cin, Cmid) matmuls, f32 acc ----
    xp = xp_ref[0]                                  # (H+2, W+2, Cin), lives in VMEM
    acc1 = jnp.zeros((H * W, Cmid), jnp.float32)
    for dy in range(3):                             # static unroll: no tap grid axis
        for dx in range(3):
            tap = xp[dy:dy + H, dx:dx + W, :].reshape(H * W, Cin)
            acc1 = acc1 + jnp.dot(tap, w1_ref[3 * dy + dx],
                                  preferred_element_type=jnp.float32)
    h = jnp.maximum(acc1 + b1_ref[...], 0.0)        # (H*W, Cmid), f32

    # Stage conv1 result in a zero-haloed scratch (the halo IS conv2's zero padding);
    # the intermediate activation never touches HBM.
    mid_ref[...] = jnp.zeros_like(mid_ref)
    mid_ref[1:H + 1, 1:W + 1, :] = h.reshape(H, W, Cmid).astype(mid_ref.dtype)

    # ---- conv2 + bias + ReLU ----
    acc2 = jnp.zeros((H * W, Cout), jnp.float32)
    for dy in range(3):
        for dx in range(3):
            tap = mid_ref[dy:dy + H, dx:dx + W, :].reshape(H * W, Cmid)
            acc2 = acc2 + jnp.dot(tap, w2_ref[3 * dy + dx],
                                  preferred_element_type=jnp.float32)
    y = jnp.maximum(acc2 + b2_ref[...], 0.0)
    o_ref[0] = y.reshape(H, W, Cout).astype(o_ref.dtype)


# ----------------------------------------------------------------------------
# Wrappers
# ----------------------------------------------------------------------------
def double_conv(x, w1, b1, w2, b2, *, compute_dtype=None):
    """DoubleConv forward, NHWC.  x: (N, H, W, Cin) -> (N, H, W, Cout).

    compute_dtype: optional narrower matmul dtype (e.g. jnp.bfloat16 on v6e/v7x).
    Accumulation, bias add and ReLU stay in f32; the output keeps x.dtype.
    """
    N, H, W, Cin = x.shape
    Cmid = w1.shape[-1]
    Cout = w2.shape[-1]
    assert w1.shape == (9, Cin, Cmid) and w2.shape == (9, Cmid, Cout)

    mm_dtype = compute_dtype if compute_dtype is not None else x.dtype
    # Pad once (cheap glue); all halo/tap slicing happens in VMEM inside the kernel.
    xp = jnp.pad(x, ((0, 0), (1, 1), (1, 1), (0, 0))).astype(mm_dtype)
    w1c = w1.astype(mm_dtype)
    w2c = w2.astype(mm_dtype)
    b1c = b1.astype(jnp.float32).reshape(1, Cmid)
    b2c = b2.astype(jnp.float32).reshape(1, Cout)

    return pl.pallas_call(
        functools.partial(_double_conv_kernel, H=H, W=W),
        out_shape=jax.ShapeDtypeStruct((N, H, W, Cout), x.dtype),
        grid_spec=pltpu.PrefetchScalarGridSpec(
            num_scalar_prefetch=0,
            grid=(N,),  # one full image per grid step; batch shards across cores
            in_specs=[
                pl.BlockSpec((1, H + 2, W + 2, Cin), lambda n: (n, 0, 0, 0)),
                pl.BlockSpec((9, Cin, Cmid), lambda n: (0, 0, 0)),   # weights resident
                pl.BlockSpec((1, Cmid), lambda n: (0, 0)),
                pl.BlockSpec((9, Cmid, Cout), lambda n: (0, 0, 0)),  # weights resident
                pl.BlockSpec((1, Cout), lambda n: (0, 0)),
            ],
            out_specs=pl.BlockSpec((1, H, W, Cout), lambda n: (n, 0, 0, 0)),
            scratch_shapes=[pltpu.VMEM((H + 2, W + 2, Cmid), mm_dtype)],
        ),
        compiler_params=pltpu.CompilerParams(
            dimension_semantics=("parallel",),
        ),
    )(xp, w1c, b1c, w2c, b2c)


def double_conv_nchw(x_nchw, params, **kwargs):
    """PyTorch-interface wrapper: NCHW in / NCHW out (matches DoubleConv.forward)."""
    x = jnp.transpose(x_nchw, (0, 2, 3, 1))
    y = double_conv(x, params["w1"], params["b1"], params["w2"], params["b2"], **kwargs)
    return jnp.transpose(y, (0, 3, 1, 2))


def init_double_conv_params(key, in_channels, out_channels):
    k1, k2, k3, k4 = jax.random.split(key, 4)
    return {
        "w1": jax.random.normal(k1, (9, in_channels, out_channels), jnp.float32)
        / np.sqrt(9.0 * in_channels),
        "b1": 0.01 * jax.random.normal(k2, (out_channels,), jnp.float32),
        "w2": jax.random.normal(k3, (9, out_channels, out_channels), jnp.float32)
        / np.sqrt(9.0 * out_channels),
        "b2": 0.01 * jax.random.normal(k4, (out_channels,), jnp.float32),
    }


# ----------------------------------------------------------------------------
# Pure-XLA reference (used only for a correctness sanity check in __main__)
# ----------------------------------------------------------------------------
def _conv3x3_reference(x_nhwc, w9, b):
    w_hwio = w9.reshape(3, 3, w9.shape[1], w9.shape[2])  # (ky, kx, Cin, Cout)
    y = jax.lax.conv_general_dilated(
        x_nhwc, w_hwio, window_strides=(1, 1), padding=((1, 1), (1, 1)),
        dimension_numbers=("NHWC", "HWIO", "NHWC"))
    return y + b.reshape(1, 1, 1, -1)


def double_conv_reference(x_nhwc, params):
    h = jnp.maximum(_conv3x3_reference(x_nhwc, params["w1"], params["b1"]), 0.0)
    return jnp.maximum(_conv3x3_reference(h, params["w2"], params["b2"]), 0.0)


# ----------------------------------------------------------------------------
if __name__ == "__main__":
    N, in_channels, out_channels, H, W = 2, 4, 32, 16, 16
    key = jax.random.PRNGKey(0)
    kp, kx = jax.random.split(key)
    params = init_double_conv_params(kp, in_channels, out_channels)

    # NCHW input, exactly like the PyTorch module would receive.
    x_nchw = jax.random.normal(kx, (N, in_channels, H, W), jnp.float32)

    fwd = jax.jit(lambda inp: double_conv_nchw(inp, params))
    out = jax.block_until_ready(fwd(x_nchw))
    assert out.shape == (N, out_channels, H, W), out.shape
    assert bool(jnp.all(jnp.isfinite(out)))

    # Sanity check against the XLA convolution reference.
    ref_nhwc = double_conv_reference(jnp.transpose(x_nchw, (0, 2, 3, 1)), params)
    ref = jnp.transpose(ref_nhwc, (0, 3, 1, 2))
    err = float(jnp.max(jnp.abs(out - ref))) / (float(jnp.max(jnp.abs(ref))) + 1e-6)
    assert err < 2e-2, f"max relative error {err}"

    print("KERNEL_OK")
</pallas_src>

<mosaic_0001>
module attributes {stable_mosaic.version = 11 : i64} {
  func.func @_double_conv_kernel(%arg0: i32, %arg1: memref<1x18x18x4xf32, #tpu.memory_space<vmem>>, %arg2: memref<9x4x32xf32, #tpu.memory_space<vmem>>, %arg3: memref<1x32xf32, #tpu.memory_space<vmem>>, %arg4: memref<9x32x32xf32, #tpu.memory_space<vmem>>, %arg5: memref<1x32xf32, #tpu.memory_space<vmem>>, %arg6: memref<1x16x16x32xf32, #tpu.memory_space<vmem>>, %arg7: memref<18x18x32xf32, #tpu.memory_space<vmem>>) attributes {dimension_semantics = [#tpu.dimension_semantics<parallel>], iteration_bounds = array<i64: 2>, scalar_prefetch = 0 : i64, scratch_operands = 1 : i64, tpu.core_type = #tpu.core_type<tc>, window_params = [{transform_indices = @transform_0, window_bounds = array<i64: 1, 18, 18, 4>}, {pipeline_mode = #tpu.pipeline_mode<synchronous>, transform_indices = @transform_1, window_bounds = array<i64: 9, 4, 32>}, {pipeline_mode = #tpu.pipeline_mode<synchronous>, transform_indices = @transform_2, window_bounds = array<i64: 1, 32>}, {pipeline_mode = #tpu.pipeline_mode<synchronous>, transform_indices = @transform_3, window_bounds = array<i64: 9, 32, 32>}, {pipeline_mode = #tpu.pipeline_mode<synchronous>, transform_indices = @transform_4, window_bounds = array<i64: 1, 32>}, {transform_indices = @transform_5, window_bounds = array<i64: 1, 16, 16, 32>}]} {
    %c0 = arith.constant 0 : index
    %c0_0 = arith.constant 0 : index
    %c0_1 = arith.constant 0 : index
    %c0_2 = arith.constant 0 : index
    %0 = vector.load %arg1[%c0, %c0_0, %c0_1, %c0_2] : memref<1x18x18x4xf32, #tpu.memory_space<vmem>>, vector<1x18x18x4xf32>
    %1 = vector.shape_cast %0 : vector<1x18x18x4xf32> to vector<18x18x4xf32>
    %cst = arith.constant 0.000000e+00 : f32
    %2 = vector.broadcast %cst : f32 to vector<256x32xf32>
    %3 = vector.extract_strided_slice %1 {offsets = [0, 0, 0], sizes = [16, 16, 4], strides = [1, 1, 1]} : vector<18x18x4xf32> to vector<16x16x4xf32>
    %4 = vector.shape_cast %3 : vector<16x16x4xf32> to vector<256x4xf32>
    %c0_3 = arith.constant 0 : index
    %c0_4 = arith.constant 0 : index
    %c0_5 = arith.constant 0 : index
    %5 = vector.load %arg2[%c0_3, %c0_4, %c0_5] : memref<9x4x32xf32, #tpu.memory_space<vmem>>, vector<1x4x32xf32>
    %6 = vector.shape_cast %5 : vector<1x4x32xf32> to vector<4x32xf32>
    %cst_6 = arith.constant dense<0.000000e+00> : vector<256x32xf32>
    %7 = tpu.matmul %4, %6, %cst_6 {dimension_numbers = #tpu.dot_dimension_numbers<[1], [0], [0], [1], [0, 0, 1, 1], [], []>} : vector<256x4xf32>, vector<4x32xf32>, vector<256x32xf32> -> vector<256x32xf32>
    %8 = arith.addf %2, %7 : vector<256x32xf32>
    %9 = vector.extract_strided_slice %1 {offsets = [0, 1, 0], sizes = [16, 16, 4], strides = [1, 1, 1]} : vector<18x18x4xf32> to vector<16x16x4xf32>
    %10 = vector.shape_cast %9 : vector<16x16x4xf32> to vector<256x4xf32>
    %c1 = arith.constant 1 : index
    %c0_7 = arith.constant 0 : index
    %c0_8 = arith.constant 0 : index
    %11 = vector.load %arg2[%c1, %c0_7, %c0_8] : memref<9x4x32xf32, #tpu.memory_space<vmem>>, vector<1x4x32xf32>
    %12 = vector.shape_cast %11 : vector<1x4x32xf32> to vector<4x32xf32>
    %cst_9 = arith.constant dense<0.000000e+00> : vector<256x32xf32>
    %13 = tpu.matmul %10, %12, %cst_9 {dimension_numbers = #tpu.dot_dimension_numbers<[1], [0], [0], [1], [0, 0, 1, 1], [], []>} : vector<256x4xf32>, vector<4x32xf32>, vector<256x32xf32> -> vector<256x32xf32>
    %14 = arith.addf %8, %13 : vector<256x32xf32>
    %15 = vector.extract_strided_slice %1 {offsets = [0, 2, 0], sizes = [16, 16, 4], strides = [1, 1, 1]} : vector<18x18x4xf32> to vector<16x16x4xf32>
    %16 = vector.shape_cast %15 : vector<16x16x4xf32> to vector<256x4xf32>
    %c2 = arith.constant 2 : index
    %c0_10 = arith.constant 0 : index
    %c0_11 = arith.constant 0 : index
    %17 = vector.load %arg2[%c2, %c0_10, %c0_11] : memref<9x4x32xf32, #tpu.memory_space<vmem>>, vector<1x4x32xf32>
    %18 = vector.shape_cast %17 : vector<1x4x32xf32> to vector<4x32xf32>
    %cst_12 = arith.constant dense<0.000000e+00> : vector<256x32xf32>
    %19 = tpu.matmul %16, %18, %cst_12 {dimension_numbers = #tpu.dot_dimension_numbers<[1], [0], [0], [1], [0, 0, 1, 1], [], []>} : vector<256x4xf32>, vector<4x32xf32>, vector<256x32xf32> -> vector<256x32xf32>
    %20 = arith.addf %14, %19 : vector<256x32xf32>
    %21 = vector.extract_strided_slice %1 {offsets = [1, 0, 0], sizes = [16, 16, 4], strides = [1, 1, 1]} : vector<18x18x4xf32> to vector<16x16x4xf32>
    %22 = vector.shape_cast %21 : vector<16x16x4xf32> to vector<256x4xf32>
    %c3 = arith.constant 3 : index
    %c0_13 = arith.constant 0 : index
    %c0_14 = arith.constant 0 : index
    %23 = vector.load %arg2[%c3, %c0_13, %c0_14] : memref<9x4x32xf32, #tpu.memory_space<vmem>>, vector<1x4x32xf32>
    %24 = vector.shape_cast %23 : vector<1x4x32xf32> to vector<4x32xf32>
    %cst_15 = arith.constant dense<0.000000e+00> : vector<256x32xf32>
    %25 = tpu.matmul %22, %24, %cst_15 {dimension_numbers = #tpu.dot_dimension_numbers<[1], [0], [0], [1], [0, 0, 1, 1], [], []>} : vector<256x4xf32>, vector<4x32xf32>, vector<256x32xf32> -> vector<256x32xf32>
    %26 = arith.addf %20, %25 : vector<256x32xf32>
    %27 = vector.extract_strided_slice %1 {offsets = [1, 1, 0], sizes = [16, 16, 4], strides = [1, 1, 1]} : vector<18x18x4xf32> to vector<16x16x4xf32>
    %28 = vector.shape_cast %27 : vector<16x16x4xf32> to vector<256x4xf32>
    %c4 = arith.constant 4 : index
    %c0_16 = arith.constant 0 : index
    %c0_17 = arith.constant 0 : index
    %29 = vector.load %arg2[%c4, %c0_16, %c0_17] : memref<9x4x32xf32, #tpu.memory_space<vmem>>, vector<1x4x32xf32>
    %30 = vector.shape_cast %29 : vector<1x4x32xf32> to vector<4x32xf32>
    %cst_18 = arith.constant dense<0.000000e+00> : vector<256x32xf32>
    %31 = tpu.matmul %28, %30, %cst_18 {dimension_numbers = #tpu.dot_dimension_numbers<[1], [0], [0], [1], [0, 0, 1, 1], [], []>} : vector<256x4xf32>, vector<4x32xf32>, vector<256x32xf32> -> vector<256x32xf32>
    %32 = arith.addf %26, %31 : vector<256x32xf32>
    %33 = vector.extract_strided_slice %1 {offsets = [1, 2, 0], sizes = [16, 16, 4], strides = [1, 1, 1]} : vector<18x18x4xf32> to vector<16x16x4xf32>
    %34 = vector.shape_cast %33 : vector<16x16x4xf32> to vector<256x4xf32>
    %c5 = arith.constant 5 : index
    %c0_19 = arith.constant 0 : index
    %c0_20 = arith.constant 0 : index
    %35 = vector.load %arg2[%c5, %c0_19, %c0_20] : memref<9x4x32xf32, #tpu.memory_space<vmem>>, vector<1x4x32xf32>
    %36 = vector.shape_cast %35 : vector<1x4x32xf32> to vector<4x32xf32>
    %cst_21 = arith.constant dense<0.000000e+00> : vector<256x32xf32>
    %37 = tpu.matmul %34, %36, %cst_21 {dimension_numbers = #tpu.dot_dimension_numbers<[1], [0], [0], [1], [0, 0, 1, 1], [], []>} : vector<256x4xf32>, vector<4x32xf32>, vector<256x32xf32> -> vector<256x32xf32>
    %38 = arith.addf %32, %37 : vector<256x32xf32>
    %39 = vector.extract_strided_slice %1 {offsets = [2, 0, 0], sizes = [16, 16, 4], strides = [1, 1, 1]} : vector<18x18x4xf32> to vector<16x16x4xf32>
    %40 = vector.shape_cast %39 : vector<16x16x4xf32> to vector<256x4xf32>
    %c6 = arith.constant 6 : index
    %c0_22 = arith.constant 0 : index
    %c0_23 = arith.constant 0 : index
    %41 = vector.load %arg2[%c6, %c0_22, %c0_23] : memref<9x4x32xf32, #tpu.memory_space<vmem>>, vector<1x4x32xf32>
    %42 = vector.shape_cast %41 : vector<1x4x32xf32> to vector<4x32xf32>
    %cst_24 = arith.constant dense<0.000000e+00> : vector<256x32xf32>
    %43 = tpu.matmul %40, %42, %cst_24 {dimension_numbers = #tpu.dot_dimension_numbers<[1], [0], [0], [1], [0, 0, 1, 1], [], []>} : vector<256x4xf32>, vector<4x32xf32>, vector<256x32xf32> -> vector<256x32xf32>
    %44 = arith.addf %38, %43 : vector<256x32xf32>
    %45 = vector.extract_strided_slice %1 {offsets = [2, 1, 0], sizes = [16, 16, 4], strides = [1, 1, 1]} : vector<18x18x4xf32> to vector<16x16x4xf32>
    %46 = vector.shape_cast %45 : vector<16x16x4xf32> to vector<256x4xf32>
    %c7 = arith.constant 7 : index
    %c0_25 = arith.constant 0 : index
    %c0_26 = arith.constant 0 : index
    %47 = vector.load %arg2[%c7, %c0_25, %c0_26] : memref<9x4x32xf32, #tpu.memory_space<vmem>>, vector<1x4x32xf32>
    %48 = vector.shape_cast %47 : vector<1x4x32xf32> to vector<4x32xf32>
    %cst_27 = arith.constant dense<0.000000e+00> : vector<256x32xf32>
    %49 = tpu.matmul %46, %48, %cst_27 {dimension_numbers = #tpu.dot_dimension_numbers<[1], [0], [0], [1], [0, 0, 1, 1], [], []>} : vector<256x4xf32>, vector<4x32xf32>, vector<256x32xf32> -> vector<256x32xf32>
    %50 = arith.addf %44, %49 : vector<256x32xf32>
    %51 = vector.extract_strided_slice %1 {offsets = [2, 2, 0], sizes = [16, 16, 4], strides = [1, 1, 1]} : vector<18x18x4xf32> to vector<16x16x4xf32>
    %52 = vector.shape_cast %51 : vector<16x16x4xf32> to vector<256x4xf32>
    %c8 = arith.constant 8 : index
    %c0_28 = arith.constant 0 : index
    %c0_29 = arith.constant 0 : index
    %53 = vector.load %arg2[%c8, %c0_28, %c0_29] : memref<9x4x32xf32, #tpu.memory_space<vmem>>, vector<1x4x32xf32>
    %54 = vector.shape_cast %53 : vector<1x4x32xf32> to vector<4x32xf32>
    %cst_30 = arith.constant dense<0.000000e+00> : vector<256x32xf32>
    %55 = tpu.matmul %52, %54, %cst_30 {dimension_numbers = #tpu.dot_dimension_numbers<[1], [0], [0], [1], [0, 0, 1, 1], [], []>} : vector<256x4xf32>, vector<4x32xf32>, vector<256x32xf32> -> vector<256x32xf32>
    %56 = arith.addf %50, %55 : vector<256x32xf32>
    %c0_31 = arith.constant 0 : index
    %c0_32 = arith.constant 0 : index
    %57 = vector.load %arg3[%c0_31, %c0_32] : memref<1x32xf32, #tpu.memory_space<vmem>>, vector<1x32xf32>
    %58 = vector.broadcast %57 : vector<1x32xf32> to vector<256x32xf32>
    %59 = arith.addf %56, %58 : vector<256x32xf32>
    %cst_33 = arith.constant 0.000000e+00 : f32
    %60 = vector.broadcast %cst_33 : f32 to vector<256x32xf32>
    %61 = arith.maximumf %59, %60 : vector<256x32xf32>
    %cst_34 = arith.constant 0.000000e+00 : f32
    %62 = vector.broadcast %cst_34 : f32 to vector<18x18x32xf32>
    %c0_35 = arith.constant 0 : index
    %c0_36 = arith.constant 0 : index
    %c0_37 = arith.constant 0 : index
    %63 = vector.load %arg7[%c0_35, %c0_36, %c0_37] : memref<18x18x32xf32, #tpu.memory_space<vmem>>, vector<18x18x32xf32>
    tpu.vector_store %arg7[%c0_35, %c0_36, %c0_37], %62 {strides = array<i32>} : memref<18x18x32xf32, #tpu.memory_space<vmem>>, vector<18x18x32xf32>,
    %64 = vector.shape_cast %61 : vector<256x32xf32> to vector<16x16x32xf32>
    %c1_38 = arith.constant 1 : index
    %c1_39 = arith.constant 1 : index
    %c0_40 = arith.constant 0 : index
    %65 = vector.load %arg7[%c1_38, %c1_39, %c0_40] : memref<18x18x32xf32, #tpu.memory_space<vmem>>, vector<16x16x32xf32>
    tpu.vector_store %arg7[%c1_38, %c1_39, %c0_40], %64 {strides = array<i32>} : memref<18x18x32xf32, #tpu.memory_space<vmem>>, vector<16x16x32xf32>,
    %cst_41 = arith.constant 0.000000e+00 : f32
    %66 = vector.broadcast %cst_41 : f32 to vector<256x32xf32>
    %c0_42 = arith.constant 0 : index
    %c0_43 = arith.constant 0 : index
    %c0_44 = arith.constant 0 : index
    %67 = vector.load %arg7[%c0_42, %c0_43, %c0_44] : memref<18x18x32xf32, #tpu.memory_space<vmem>>, vector<16x16x32xf32>
    %68 = vector.shape_cast %67 : vector<16x16x32xf32> to vector<256x32xf32>
    %c0_45 = arith.constant 0 : index
    %c0_46 = arith.constant 0 : index
    %c0_47 = arith.constant 0 : index
    %69 = vector.load %arg4[%c0_45, %c0_46, %c0_47] : memref<9x32x32xf32, #tpu.memory_space<vmem>>, vector<1x32x32xf32>
    %70 = vector.shape_cast %69 : vector<1x32x32xf32> to vector<32x32xf32>
    %cst_48 = arith.constant dense<0.000000e+00> : vector<256x32xf32>
    %71 = tpu.matmul %68, %70, %cst_48 {dimension_numbers = #tpu.dot_dimension_numbers<[1], [0], [0], [1], [0, 0, 1, 1], [], []>} : vector<256x32xf32>, vector<32x32xf32>, vector<256x32xf32> -> vector<256x32xf32>
    %72 = arith.addf %66, %71 : vector<256x32xf32>
    %c0_49 = arith.constant 0 : index
    %c1_50 = arith.constant 1 : index
    %c0_51 = arith.constant 0 : index
    %73 = vector.load %arg7[%c0_49, %c1_50, %c0_51] : memref<18x18x32xf32, #tpu.memory_space<vmem>>, vector<16x16x32xf32>
    %74 = vector.shape_cast %73 : vector<16x16x32xf32> to vector<256x32xf32>
    %c1_52 = arith.constant 1 : index
    %c0_53 = arith.constant 0 : index
    %c0_54 = arith.constant 0 : index
    %75 = vector.load %arg4[%c1_52, %c0_53, %c0_54] : memref<9x32x32xf32, #tpu.memory_space<vmem>>, vector<1x32x32xf32>
    %76 = vector.shape_cast %75 : vector<1x32x32xf32> to vector<32x32xf32>
    %cst_55 = arith.constant dense<0.000000e+00> : vector<256x32xf32>
    %77 = tpu.matmul %74, %76, %cst_55 {dimension_numbers = #tpu.dot_dimension_numbers<[1], [0], [0], [1], [0, 0, 1, 1], [], []>} : vector<256x32xf32>, vector<32x32xf32>, vector<256x32xf32> -> vector<256x32xf32>
    %78 = arith.addf %72, %77 : vector<256x32xf32>
    %c0_56 = arith.constant 0 : index
    %c2_57 = arith.constant 2 : index
    %c0_58 = arith.constant 0 : index
    %79 = vector.load %arg7[%c0_56, %c2_57, %c0_58] : memref<18x18x32xf32, #tpu.memory_space<vmem>>, vector<16x16x32xf32>
    %80 = vector.shape_cast %79 : vector<16x16x32xf32> to vector<256x32xf32>
    %c2_59 = arith.constant 2 : index
    %c0_60 = arith.constant 0 : index
    %c0_61 = arith.constant 0 : index
    %81 = vector.load %arg4[%c2_59, %c0_60, %c0_61] : memref<9x32x32xf32, #tpu.memory_space<vmem>>, vector<1x32x32xf32>
    %82 = vector.shape_cast %81 : vector<1x32x32xf32> to vector<32x32xf32>
    %cst_62 = arith.constant dense<0.000000e+00> : vector<256x32xf32>
    %83 = tpu.matmul %80, %82, %cst_62 {dimension_numbers = #tpu.dot_dimension_numbers<[1], [0], [0], [1], [0, 0, 1, 1], [], []>} : vector<256x32xf32>, vector<32x32xf32>, vector<256x32xf32> -> vector<256x32xf32>
    %84 = arith.addf %78, %83 : vector<256x32xf32>
    %c1_63 = arith.constant 1 : index
    %c0_64 = arith.constant 0 : index
    %c0_65 = arith.constant 0 : index
    %85 = vector.load %arg7[%c1_63, %c0_64, %c0_65] : memref<18x18x32xf32, #tpu.memory_space<vmem>>, vector<16x16x32xf32>
    %86 = vector.shape_cast %85 : vector<16x16x32xf32> to vector<256x32xf32>
    %c3_66 = arith.constant 3 : index
    %c0_67 = arith.constant 0 : index
    %c0_68 = arith.constant 0 : index
    %87 = vector.load %arg4[%c3_66, %c0_67, %c0_68] : memref<9x32x32xf32, #tpu.memory_space<vmem>>, vector<1x32x32xf32>
    %88 = vector.shape_cast %87 : vector<1x32x32xf32> to vector<32x32xf32>
    %cst_69 = arith.constant dense<0.000000e+00> : vector<256x32xf32>
    %89 = tpu.matmul %86, %88, %cst_69 {dimension_numbers = #tpu.dot_dimension_numbers<[1], [0], [0], [1], [0, 0, 1, 1], [], []>} : vector<256x32xf32>, vector<32x32xf32>, vector<256x32xf32> -> vector<256x32xf32>
    %90 = arith.addf %84, %89 : vector<256x32xf32>
    %c1_70 = arith.constant 1 : index
    %c1_71 = arith.constant 1 : index
    %c0_72 = arith.constant 0 : index
    %91 = vector.load %arg7[%c1_70, %c1_71, %c0_72] : memref<18x18x32xf32, #tpu.memory_space<vmem>>, vector<16x16x32xf32>
    %92 = vector.shape_cast %91 : vector<16x16x32xf32> to vector<256x32xf32>
    %c4_73 = arith.constant 4 : index
    %c0_74 = arith.constant 0 : index
    %c0_75 = arith.constant 0 : index
    %93 = vector.load %arg4[%c4_73, %c0_74, %c0_75] : memref<9x32x32xf32, #tpu.memory_space<vmem>>, vector<1x32x32xf32>
    %94 = vector.shape_cast %93 : vector<1x32x32xf32> to vector<32x32xf32>
    %cst_76 = arith.constant dense<0.000000e+00> : vector<256x32xf32>
    %95 = tpu.matmul %92, %94, %cst_76 {dimension_numbers = #tpu.dot_dimension_numbers<[1], [0], [0], [1], [0, 0, 1, 1], [], []>} : vector<256x32xf32>, vector<32x32xf32>, vector<256x32xf32> -> vector<256x32xf32>
    %96 = arith.addf %90, %95 : vector<256x32xf32>
    %c1_77 = arith.constant 1 : index
    %c2_78 = arith.constant 2 : index
    %c0_79 = arith.constant 0 : index
    %97 = vector.load %arg7[%c1_77, %c2_78, %c0_79] : memref<18x18x32xf32, #tpu.memory_space<vmem>>, vector<16x16x32xf32>
    %98 = vector.shape_cast %97 : vector<16x16x32xf32> to vector<256x32xf32>
    %c5_80 = arith.constant 5 : index
    %c0_81 = arith.constant 0 : index
    %c0_82 = arith.constant 0 : index
    %99 = vector.load %arg4[%c5_80, %c0_81, %c0_82] : memref<9x32x32xf32, #tpu.memory_space<vmem>>, vector<1x32x32xf32>
    %100 = vector.shape_cast %99 : vector<1x32x32xf32> to vector<32x32xf32>
    %cst_83 = arith.constant dense<0.000000e+00> : vector<256x32xf32>
    %101 = tpu.matmul %98, %100, %cst_83 {dimension_numbers = #tpu.dot_dimension_numbers<[1], [0], [0], [1], [0, 0, 1, 1], [], []>} : vector<256x32xf32>, vector<32x32xf32>, vector<256x32xf32> -> vector<256x32xf32>
    %102 = arith.addf %96, %101 : vector<256x32xf32>
    %c2_84 = arith.constant 2 : index
    %c0_85 = arith.constant 0 : index
    %c0_86 = arith.constant 0 : index
    %103 = vector.load %arg7[%c2_84, %c0_85, %c0_86] : memref<18x18x32xf32, #tpu.memory_space<vmem>>, vector<16x16x32xf32>
    %104 = vector.shape_cast %103 : vector<16x16x32xf32> to vector<256x32xf32>
    %c6_87 = arith.constant 6 : index
    %c0_88 = arith.constant 0 : index
    %c0_89 = arith.constant 0 : index
    %105 = vector.load %arg4[%c6_87, %c0_88, %c0_89] : memref<9x32x32xf32, #tpu.memory_space<vmem>>, vector<1x32x32xf32>
    %106 = vector.shape_cast %105 : vector<1x32x32xf32> to vector<32x32xf32>
    %cst_90 = arith.constant dense<0.000000e+00> : vector<256x32xf32>
    %107 = tpu.matmul %104, %106, %cst_90 {dimension_numbers = #tpu.dot_dimension_numbers<[1], [0], [0], [1], [0, 0, 1, 1], [], []>} : vector<256x32xf32>, vector<32x32xf32>, vector<256x32xf32> -> vector<256x32xf32>
    %108 = arith.addf %102, %107 : vector<256x32xf32>
    %c2_91 = arith.constant 2 : index
    %c1_92 = arith.constant 1 : index
    %c0_93 = arith.constant 0 : index
    %109 = vector.load %arg7[%c2_91, %c1_92, %c0_93] : memref<18x18x32xf32, #tpu.memory_space<vmem>>, vector<16x16x32xf32>
    %110 = vector.shape_cast %109 : vector<16x16x32xf32> to vector<256x32xf32>
    %c7_94 = arith.constant 7 : index
    %c0_95 = arith.constant 0 : index
    %c0_96 = arith.constant 0 : index
    %111 = vector.load %arg4[%c7_94, %c0_95, %c0_96] : memref<9x32x32xf32, #tpu.memory_space<vmem>>, vector<1x32x32xf32>
    %112 = vector.shape_cast %111 : vector<1x32x32xf32> to vector<32x32xf32>
    %cst_97 = arith.constant dense<0.000000e+00> : vector<256x32xf32>
    %113 = tpu.matmul %110, %112, %cst_97 {dimension_numbers = #tpu.dot_dimension_numbers<[1], [0], [0], [1], [0, 0, 1, 1], [], []>} : vector<256x32xf32>, vector<32x32xf32>, vector<256x32xf32> -> vector<256x32xf32>
    %114 = arith.addf %108, %113 : vector<256x32xf32>
    %c2_98 = arith.constant 2 : index
    %c2_99 = arith.constant 2 : index
    %c0_100 = arith.constant 0 : index
    %115 = vector.load %arg7[%c2_98, %c2_99, %c0_100] : memref<18x18x32xf32, #tpu.memory_space<vmem>>, vector<16x16x32xf32>
    %116 = vector.shape_cast %115 : vector<16x16x32xf32> to vector<256x32xf32>
    %c8_101 = arith.constant 8 : index
    %c0_102 = arith.constant 0 : index
    %c0_103 = arith.constant 0 : index
    %117 = vector.load %arg4[%c8_101, %c0_102, %c0_103] : memref<9x32x32xf32, #tpu.memory_space<vmem>>, vector<1x32x32xf32>
    %118 = vector.shape_cast %117 : vector<1x32x32xf32> to vector<32x32xf32>
    %cst_104 = arith.constant dense<0.000000e+00> : vector<256x32xf32>
    %119 = tpu.matmul %116, %118, %cst_104 {dimension_numbers = #tpu.dot_dimension_numbers<[1], [0], [0], [1], [0, 0, 1, 1], [], []>} : vector<256x32xf32>, vector<32x32xf32>, vector<256x32xf32> -> vector<256x32xf32>
    %120 = arith.addf %114, %119 : vector<256x32xf32>
    %c0_105 = arith.constant 0 : index
    %c0_106 = arith.constant 0 : index
    %121 = vector.load %arg5[%c0_105, %c0_106] : memref<1x32xf32, #tpu.memory_space<vmem>>, vector<1x32xf32>
    %122 = vector.broadcast %121 : vector<1x32xf32> to vector<256x32xf32>
    %123 = arith.addf %120, %122 : vector<256x32xf32>
    %cst_107 = arith.constant 0.000000e+00 : f32
    %124 = vector.broadcast %cst_107 : f32 to vector<256x32xf32>
    %125 = arith.maximumf %123, %124 : vector<256x32xf32>
    %126 = vector.shape_cast %125 : vector<256x32xf32> to vector<16x16x32xf32>
    %c0_108 = arith.constant 0 : index
    %c0_109 = arith.constant 0 : index
    %c0_110 = arith.constant 0 : index
    %c0_111 = arith.constant 0 : index
    %127 = vector.load %arg6[%c0_108, %c0_109, %c0_110, %c0_111] : memref<1x16x16x32xf32, #tpu.memory_space<vmem>>, vector<1x16x16x32xf32>
    %128 = vector.shape_cast %127 : vector<1x16x16x32xf32> to vector<16x16x32xf32>
    %129 = vector.shape_cast %126 : vector<16x16x32xf32> to vector<1x16x16x32xf32>
    tpu.vector_store %arg6[%c0_108, %c0_109, %c0_110, %c0_111], %129 {strides = array<i32>} : memref<1x16x16x32xf32, #tpu.memory_space<vmem>>, vector<1x16x16x32xf32>,
    return
  }
  func.func @transform_0(%arg0: i32) -> (i32, i32, i32, i32) {
    %c0_i32 = arith.constant 0 : i32
    %c0_i32_0 = arith.constant 0 : i32
    %c0_i32_1 = arith.constant 0 : i32
    %c0_i32_2 = arith.constant 0 : i32
    return %arg0, %c0_i32, %c0_i32_0, %c0_i32_1 : i32, i32, i32, i32
  }
  func.func @transform_1(%arg0: i32) -> (i32, i32, i32) {
    %c0_i32 = arith.constant 0 : i32
    %c0_i32_0 = arith.constant 0 : i32
    %c0_i32_1 = arith.constant 0 : i32
    %c0_i32_2 = arith.constant 0 : i32
    return %c0_i32, %c0_i32_0, %c0_i32_1 : i32, i32, i32
  }
  func.func @transform_2(%arg0: i32) -> (i32, i32) {
    %c0_i32 = arith.constant 0 : i32
    %c0_i32_0 = arith.constant 0 : i32
    %c0_i32_1 = arith.constant 0 : i32
    return %c0_i32, %c0_i32_0 : i32, i32
  }
  func.func @transform_3(%arg0: i32) -> (i32, i32, i32) {
    %c0_i32 = arith.constant 0 : i32
    %c0_i32_0 = arith.constant 0 : i32
    %c0_i32_1 = arith.constant 0 : i32
    %c0_i32_2 = arith.constant 0 : i32
    return %c0_i32, %c0_i32_0, %c0_i32_1 : i32, i32, i32
  }
  func.func @transform_4(%arg0: i32) -> (i32, i32) {
    %c0_i32 = arith.constant 0 : i32
    %c0_i32_0 = arith.constant 0 : i32
    %c0_i32_1 = arith.constant 0 : i32
    return %c0_i32, %c0_i32_0 : i32, i32
  }
  func.func @transform_5(%arg0: i32) -> (i32, i32, i32, i32) {
    %c0_i32 = arith.constant 0 : i32
    %c0_i32_0 = arith.constant 0 : i32
    %c0_i32_1 = arith.constant 0 : i32
    %c0_i32_2 = arith.constant 0 : i32
    return %arg0, %c0_i32, %c0_i32_0, %c0_i32_1 : i32, i32, i32, i32
  }
}

</mosaic_0001>

<llo_original>
// kernel: _lambda_.1
$region0: #{_lambda_.1}
  #allocation0 [shape = 'u32[]', space=smem, size = 0x4, offset = 0x4, fixed_abs, tag = 'smem constant byte address 0x4 - core index']
  #allocation1 [shape = 'u32[144,128]{1,0:T(1,128)}', space=vmem, size = 0x12000, scoped, tag = 'internal scratch']
  #allocation2 [shape = 'f32[18,18,32]{2,1,0:T(8,128)}', space=vmem, size = 0x36000, scoped, tag = 'scratch operand']
  %s0 = inlined_call_operand.vmem [shape: f32[2,18,18,4], index: 0, kind: input, shape index: {}]
  %s1 = inlined_call_operand.vmem [shape: f32[9,4,32], index: 1, kind: input, shape index: {}]
  %s2 = inlined_call_operand.vmem [shape: f32[1,32], index: 2, kind: input, shape index: {}]
  %s3 = inlined_call_operand.vmem [shape: f32[9,32,32], index: 3, kind: input, shape index: {}]
  %s4 = inlined_call_operand.vmem [shape: f32[1,32], index: 4, kind: input, shape index: {}]
  %s5 = inlined_call_operand.hbm [shape: f32[2,16,16,32], index: 5, kind: output, shape index: {}]
  %s6 = sld [smem:[#allocation0]]
  $region53: #{_lambda_.1} parent=0
    _
  %s8 = ssub.s32 1, %s6
  %s9 = scalar_select 0, %s8, %s6
  $region1: #{_lambda_.1} parent=0
    #allocation3 [shape = 'u8[262144]{0}', space=vmem, size = 0x40000, scoped, tag = 'output window, operand 0']
    #allocation4 [shape = 's32[2]{0}', space=sflag, size = 0x8, scoped, tag = 'scoped memory for _lambda_.1']
    %10 = vsyncpa [#allocation4], 0
    %s11 = scalar_lea.sflag [#allocation4], 1
    %12 = vsyncpa %s11, 0
    loop: start=0, step=1, limit=4
    $region2: #{_lambda_.1} parent=1 // loop_pre_header
      _
    $region3: #{_lambda_.1} parent=1 // loop_header
      %s14 = sphi 0, %s18
      %p15 = scmp.ge.s32.totalorder %s14, 4
      %s24 = sphi 0, %s26
      %s27 = sphi 0, %s24
      %s28 = sphi 0, %s27
      %s44 = sphi 0, %s28
      %s48 = sphi 0, %s48
      %s50 = sphi 0, %s48
      %s51 = sphi 0, %s50
      %s65 = sphi 0, %s51
      %s69 = sphi 0, %s69
      %s71 = sphi 0, %s69
      %s72 = sphi 0, %s71
      %s86 = sphi 0, %s72
      %s90 = sphi 0, %s90
      %s92 = sphi 0, %s90
      %s93 = sphi 0, %s92
      %s107 = sphi 0, %s93
      %s111 = sphi 0, %s111
      %s113 = sphi 0, %s111
      %s114 = sphi 0, %s113
      %s128 = sphi 0, %s114
      %s134 = sphi 0, %s136
      %s137 = sphi 0, %s134
      %s138 = sphi 0, %s137
      %s154 = sphi 0, %s138
    $region4: #{_lambda_.1} parent=1 // loop_header_branch
      %17 = sbr.rel (%p15) target = $region8
    $region5: #{_lambda_.1} parent=1 // loop_body
      %s19 = ssub.s32 %s14, 1
      %s20 = ssub.s32 %s14, 2
      %s21 = sadd.s32 %s14, 1
      %s22 = ssub.s32 %s14, %s21
      %p23 = scmp.eq.s32.totalorder %s22, 0
      %s25 = sadd.s32 %s24, 1
      %s26 = scalar_select %p23, %s24, %s25
      %p29 = pneg %p23
      %p30 = scmp.eq.s32.totalorder %s14, 1
      %p31 = por %p29, %p30
      %p32 = scmp.ne.s32.totalorder %s24, %s27
      %p33 = scmp.eq.s32.totalorder %s14, 0
      %p34 = por %p32, %p33
      %p35 = scmp.ne.s32.totalorder %s24, %s27
      %p36 = scmp.eq.s32.totalorder %s19, 1
      %p37 = por %p35, %p36
      %p38 = scmp.ne.s32.totalorder %s27, %s28
      %p39 = scmp.eq.s32.totalorder %s19, 0
      %p40 = por %p38, %p39
      %p41 = scmp.ne.s32.totalorder %s27, %s28
      %p42 = scmp.eq.s32.totalorder %s20, 1
      %p43 = por %p41, %p42
      %p45 = scmp.ne.s32.totalorder %s28, %s44
      %p46 = scmp.eq.s32.totalorder %s20, 0
      %p47 = por %p45, %p46
      %s49 = sadd.s32 %s48, 1
      %p52 = scmp.eq.s32.totalorder %s14, 1
      %p53 = scmp.ne.s32.totalorder %s48, %s50
      %p54 = scmp.eq.s32.totalorder %s14, 0
      %p55 = por %p53, %p54
      %p56 = scmp.ne.s32.totalorder %s48, %s50
      %p57 = scmp.eq.s32.totalorder %s19, 1
      %p58 = por %p56, %p57
      %p59 = scmp.ne.s32.totalorder %s50, %s51
      %p60 = scmp.eq.s32.totalorder %s19, 0
      %p61 = por %p59, %p60
      %p62 = scmp.ne.s32.totalorder %s50, %s51
      %p63 = scmp.eq.s32.totalorder %s20, 1
      %p64 = por %p62, %p63
      %p66 = scmp.ne.s32.totalorder %s51, %s65
      %p67 = scmp.eq.s32.totalorder %s20, 0
      %p68 = por %p66, %p67
      %s70 = sadd.s32 %s69, 1
      %p73 = scmp.eq.s32.totalorder %s14, 1
      %p74 = scmp.ne.s32.totalorder %s69, %s71
      %p75 = scmp.eq.s32.totalorder %s14, 0
      %p76 = por %p74, %p75
      %p77 = scmp.ne.s32.totalorder %s69, %s71
      %p78 = scmp.eq.s32.totalorder %s19, 1
      %p79 = por %p77, %p78
      %p80 = scmp.ne.s32.totalorder %s71, %s72
      %p81 = scmp.eq.s32.totalorder %s19, 0
      %p82 = por %p80, %p81
      %p83 = scmp.ne.s32.totalorder %s71, %s72
      %p84 = scmp.eq.s32.totalorder %s20, 1
      %p85 = por %p83, %p84
      %p87 = scmp.ne.s32.totalorder %s72, %s86
      %p88 = scmp.eq.s32.totalorder %s20, 0
      %p89 = por %p87, %p88
      %s91 = sadd.s32 %s90, 1
      %p94 = scmp.eq.s32.totalorder %s14, 1
      %p95 = scmp.ne.s32.totalorder %s90, %s92
      %p96 = scmp.eq.s32.totalorder %s14, 0
      %p97 = por %p95, %p96
      %p98 = scmp.ne.s32.totalorder %s90, %s92
      %p99 = scmp.eq.s32.totalorder %s19, 1
      %p100 = por %p98, %p99
      %p101 = scmp.ne.s32.totalorder %s92, %s93
      %p102 = scmp.eq.s32.totalorder %s19, 0
      %p103 = por %p101, %p102
      %p104 = scmp.ne.s32.totalorder %s92, %s93
      %p105 = scmp.eq.s32.totalorder %s20, 1
      %p106 = por %p104, %p105
      %p108 = scmp.ne.s32.totalorder %s93, %s107
      %p109 = scmp.eq.s32.totalorder %s20, 0
      %p110 = por %p108, %p109
      %s112 = sadd.s32 %s111, 1
      %p115 = scmp.eq.s32.totalorder %s14, 1
      %p116 = scmp.ne.s32.totalorder %s111, %s113
      %p117 = scmp.eq.s32.totalorder %s14, 0
      %p118 = por %p116, %p117
      %p119 = scmp.ne.s32.totalorder %s111, %s113
      %p120 = scmp.eq.s32.totalorder %s19, 1
      %p121 = por %p119, %p120
      %p122 = scmp.ne.s32.totalorder %s113, %s114
      %p123 = scmp.eq.s32.totalorder %s19, 0
      %p124 = por %p122, %p123
      %p125 = scmp.ne.s32.totalorder %s113, %s114
      %p126 = scmp.eq.s32.totalorder %s20, 1
      %p127 = por %p125, %p126
      %p129 = scmp.ne.s32.totalorder %s114, %s128
      %p130 = scmp.eq.s32.totalorder %s20, 0
      %p131 = por %p129, %p130
      %s132 = ssub.s32 %s14, %s21
      %p133 = scmp.eq.s32.totalorder %s132, 0
      %s135 = sadd.s32 %s134, 1
      %s136 = scalar_select %p133, %s134, %s135
      %p139 = pneg %p133
      %p140 = scmp.eq.s32.totalorder %s14, 1
      %p141 = por %p139, %p140
      %p142 = scmp.ne.s32.totalorder %s134, %s137
      %p143 = scmp.eq.s32.totalorder %s14, 0
      %p144 = por %p142, %p143
      %p145 = scmp.ne.s32.totalorder %s134, %s137
      %p146 = scmp.eq.s32.totalorder %s19, 1
      %p147 = por %p145, %p146
      %p148 = scmp.ne.s32.totalorder %s137, %s138
      %p149 = scmp.eq.s32.totalorder %s19, 0
      %p150 = por %p148, %p149
      %p151 = scmp.ne.s32.totalorder %s137, %s138
      %p152 = scmp.eq.s32.totalorder %s20, 1
      %p153 = por %p151, %p152
      %p155 = scmp.ne.s32.totalorder %s138, %s154
      %p156 = scmp.eq.s32.totalorder %s20, 0
      %p157 = por %p155, %p156
      %p158 = scmp.le.s32.totalorder 1, %s14
      %p159 = scmp.lt.s32.totalorder %s14, 3
      %p160 = pnand %p158, %p159
      %p161 = pneg %p160
      // Predicated region
      $region9: #{_lambda_.1} parent=5 // pred_check
        _
      $region10: #{_lambda_.1} parent=5 // pred_check_branch
        %163 = sbr.rel (%p160) target = $region12
      $region11: #{_lambda_.1} parent=5 // pred_region
        %s164 = ssub.s32 %s14, 1
        // Predicated region
        $region13: #{_lambda_.1} parent=11 // pred_check
          %p165 = pneg %p61
        $region14: #{_lambda_.1} parent=11 // pred_check_branch
          %167 = sbr.rel (%p165) target = $region16
        $region15: #{_lambda_.1} parent=11 // pred_region
          _
        $region16: #{_lambda_.1} parent=11 // pred_fallthru
          _
        // Predicated region
        $region17: #{_lambda_.1} parent=11 // pred_check
          %p168 = pneg %p82
        $region18: #{_lambda_.1} parent=11 // pred_check_branch
          %170 = sbr.rel (%p168) target = $region20
        $region19: #{_lambda_.1} parent=11 // pred_region
          _
        $region20: #{_lambda_.1} parent=11 // pred_fallthru
          _
        // Predicated region
        $region21: #{_lambda_.1} parent=11 // pred_check
          %p171 = pneg %p103
        $region22: #{_lambda_.1} parent=11 // pred_check_branch
          %173 = sbr.rel (%p171) target = $region24
        $region23: #{_lambda_.1} parent=11 // pred_region
          _
        $region24: #{_lambda_.1} parent=11 // pred_fallthru
          _
        // Predicated region
        $region25: #{_lambda_.1} parent=11 // pred_check
          %p174 = pneg %p124
        $region26: #{_lambda_.1} parent=11 // pred_check_branch
          %176 = sbr.rel (%p174) target = $region28
        $region27: #{_lambda_.1} parent=11 // pred_region
          _
        $region28: #{_lambda_.1} parent=11 // pred_fallthru
          _
      $region12: #{_lambda_.1} parent=5 // pred_fallthru
        _
      %p177 = scmp.lt.s32.totalorder %s14, 2
      // Predicated region
      $region29: #{_lambda_.1} parent=5 // pred_check
        %p178 = pneg %p177
      $region30: #{_lambda_.1} parent=5 // pred_check_branch
        %180 = sbr.rel (%p178) target = $region32
      $region31: #{_lambda_.1} parent=5 // pred_region
        // Predicated region
        $region33: #{_lambda_.1} parent=31 // pred_check
          %p181 = pneg %p34
        $region34: #{_lambda_.1} parent=31 // pred_check_branch
          %183 = sbr.rel (%p181) target = $region36
        $region35: #{_lambda_.1} parent=31 // pred_region
          %p184 = scmp.lt.s32.totalorder %s14, 1
          %s185 = scalar_select %p184, %s14, 1
          %s186 = smul.addr %s185, 54
          %s187 = smul.addr %s186, 8
          %s188 = scalar_lea.vmem %s0, %s187
        $region36: #{_lambda_.1} parent=31 // pred_fallthru
          _
      $region32: #{_lambda_.1} parent=5 // pred_fallthru
        _
      %p189 = scmp.le.s32.totalorder 1, %s14
      %p190 = scmp.lt.s32.totalorder %s14, 3
      %p191 = pnand %p189, %p190
      %p192 = pneg %p191
      // Predicated region
      $region37: #{_lambda_.1} parent=5 // pred_check
        _
      $region38: #{_lambda_.1} parent=5 // pred_check_branch
        %194 = sbr.rel (%p191) target = $region40
      $region39: #{_lambda_.1} parent=5 // pred_region
        %s195 = ssub.s32 %s14, 1
        %p196 = scmp.lt.s32.totalorder %s19, 1
        %s197 = scalar_select %p196, %s19, 1
        %s198 = smul.addr %s197, 54
        %s199 = smul.addr %s198, 8
        %s200 = scalar_lea.vmem %s0, %s199
        %p201 = pneg %p40
        %p202 = pneg %p37
        %p203 = pneg %p61
        %p204 = pneg %p58
        %p205 = pneg %p82
        %p206 = pneg %p79
        %p207 = pneg %p103
        %p208 = pneg %p100
        %p209 = pneg %p124
        %p210 = pneg %p121
        %p211 = pneg %p150
        %p212 = pneg %p147
        %s213 = sand.u32 %s137, 1
        %s214 = scalar_lea.sflag [#allocation4], %s213
        %s215 = sand.u32 %s137, 1
        %s216 = smul.addr %s215, 256
        %s217 = scalar_lea.vmem [#allocation3], %s216
        %p218 = scmp.lt.s32.totalorder %s19, 1
        %s219 = scalar_select %p218, %s19, 1
        %s220 = smul.addr %s219, 54
        %s221 = smul.addr %s220, 8
        %s222 = scalar_lea.vmem %s0, %s221
        %v223 = vld [vmem:[%s222] sm:$0xff]
        %v224 = vld [vmem:[%s222 + $0x8] sm:$0xff]
        %v225 = vld [vmem:[%s222 + $0x10] sm:$0x3]
        %v226 = vld [vmem:[%s222 + $0x18] sm:$0xff]
        %v227 = vld [vmem:[%s222 + $0x20] sm:$0xff]
        %v228 = vld [vmem:[%s222 + $0x28] sm:$0x3]
        %v229 = vld [vmem:[%s222 + $0x30] sm:$0xff]
        %v230 = vld [vmem:[%s222 + $0x38] sm:$0xff]
        %v231 = vld [vmem:[%s222 + $0x40] sm:$0x3]
        %v232 = vld [vmem:[%s222 + $0x48] sm:$0xff]
        %v233 = vld [vmem:[%s222 + $0x50] sm:$0xff]
        %v234 = vld [vmem:[%s222 + $0x58] sm:$0x3]
        %v235 = vld [vmem:[%s222 + $0x60] sm:$0xff]
        %v236 = vld [vmem:[%s222 + $0x68] sm:$0xff]
        %v237 = vld [vmem:[%s222 + $0x70] sm:$0x3]
        %v238 = vld [vmem:[%s222 + $0x78] sm:$0xff]
        %v239 = vld [vmem:[%s222 + $0x80] sm:$0xff]
        %v240 = vld [vmem:[%s222 + $0x88] sm:$0x3]
        %v241 = vld [vmem:[%s222 + $0x90] sm:$0xff]
        %v242 = vld [vmem:[%s222 + $0x98] sm:$0xff]
        %v243 = vld [vmem:[%s222 + $0xa0] sm:$0x3]
        %v244 = vld [vmem:[%s222 + $0xa8] sm:$0xff]
        %v245 = vld [vmem:[%s222 + $0xb0] sm:$0xff]
        %v246 = vld [vmem:[%s222 + $0xb8] sm:$0x3]
        %v247 = vld [vmem:[%s222 + $0xc0] sm:$0xff]
        %v248 = vld [vmem:[%s222 + $0xc8] sm:$0xff]
        %v249 = vld [vmem:[%s222 + $0xd0] sm:$0x3]
        %v250 = vld [vmem:[%s222 + $0xd8] sm:$0xff]
        %v251 = vld [vmem:[%s222 + $0xe0] sm:$0xff]
        %v252 = vld [vmem:[%s222 + $0xe8] sm:$0x3]
        %v253 = vld [vmem:[%s222 + $0xf0] sm:$0xff]
        %v254 = vld [vmem:[%s222 + $0xf8] sm:$0xff]
        %v255 = vld [vmem:[%s222 + $0x100] sm:$0x3]
        %v256 = vld [vmem:[%s222 + $0x108] sm:$0xff]
        %v257 = vld [vmem:[%s222 + $0x110] sm:$0xff]
        %v258 = vld [vmem:[%s222 + $0x118] sm:$0x3]
        %v259 = vld [vmem:[%s222 + $0x120] sm:$0xff]
        %v260 = vld [vmem:[%s222 + $0x128] sm:$0xff]
        %v261 = vld [vmem:[%s222 + $0x130] sm:$0x3]
        %v262 = vld [vmem:[%s222 + $0x138] sm:$0xff]
        %v263 = vld [vmem:[%s222 + $0x140] sm:$0xff]
        %v264 = vld [vmem:[%s222 + $0x148] sm:$0x3]
        %v265 = vld [vmem:[%s222 + $0x150] sm:$0xff]
        %v266 = vld [vmem:[%s222 + $0x158] sm:$0xff]
        %v267 = vld [vmem:[%s222 + $0x160] sm:$0x3]
        %v268 = vld [vmem:[%s222 + $0x168] sm:$0xff]
        %v269 = vld [vmem:[%s222 + $0x170] sm:$0xff]
        %v270 = vld [vmem:[%s222 + $0x178] sm:$0x3]
        %v271 = vld [vmem:[%s222 + $0x180] sm:$0xff]
        %v272 = vld [vmem:[%s222 + $0x188] sm:$0xff]
        %v273 = vld [vmem:[%s222 + $0x190] sm:$0x3]
        %v274 = vld [vmem:[%s222 + $0x198] sm:$0xff]
        %v275 = vld [vmem:[%s222 + $0x1a0] sm:$0xff]
        %v276 = vld [vmem:[%s222 + $0x1a8] sm:$0x3]
        %v277 = vld [vmem:[%s1] sm:$0xf]
        %vm326 = vcmask 1046528
        %v327 = vrot.slane %v223, 1
        %v328 = vrot.slane %v224, 1
        %v329 = vsel %vm326, %v327, %v328
        %v330 = vrot.slane %v225, 1
        %v331 = vsel %vm326, %v328, %v330
        %v332 = vrot.slane %v226, 1
        %v333 = vrot.slane %v227, 1
        %v334 = vsel %vm326, %v332, %v333
        %v335 = vrot.slane %v228, 1
        %v336 = vsel %vm326, %v333, %v335
        %v337 = vrot.slane %v229, 1
        %v338 = vrot.slane %v230, 1
        %v339 = vsel %vm326, %v337, %v338
        %v340 = vrot.slane %v231, 1
        %v341 = vsel %vm326, %v338, %v340
        %v342 = vrot.slane %v232, 1
        %v343 = vrot.slane %v233, 1
        %v344 = vsel %vm326, %v342, %v343
        %v345 = vrot.slane %v234, 1
        %v346 = vsel %vm326, %v343, %v345
        %v347 = vrot.slane %v235, 1
        %v348 = vrot.slane %v236, 1
        %v349 = vsel %vm326, %v347, %v348
        %v350 = vrot.slane %v237, 1
        %v351 = vsel %vm326, %v348, %v350
        %v352 = vrot.slane %v238, 1
        %v353 = vrot.slane %v239, 1
        %v354 = vsel %vm326, %v352, %v353
        %v355 = vrot.slane %v240, 1
        %v356 = vsel %vm326, %v353, %v355
        %v357 = vrot.slane %v241, 1
        %v358 = vrot.slane %v242, 1
        %v359 = vsel %vm326, %v357, %v358
        %v360 = vrot.slane %v243, 1
        %v361 = vsel %vm326, %v358, %v360
        %v362 = vrot.slane %v244, 1
        %v363 = vrot.slane %v245, 1
        %v364 = vsel %vm326, %v362, %v363
        %v365 = vrot.slane %v246, 1
        %v366 = vsel %vm326, %v363, %v365
        %v367 = vrot.slane %v247, 1
        %v368 = vrot.slane %v248, 1
        %v369 = vsel %vm326, %v367, %v368
        %v370 = vrot.slane %v249, 1
        %v371 = vsel %vm326, %v368, %v370
        %v372 = vrot.slane %v250, 1
        %v373 = vrot.slane %v251, 1
        %v374 = vsel %vm326, %v372, %v373
        %v375 = vrot.slane %v252, 1
        %v376 = vsel %vm326, %v373, %v375
        %v377 = vrot.slane %v253, 1
        %v378 = vrot.slane %v254, 1
        %v379 = vsel %vm326, %v377, %v378
        %v380 = vrot.slane %v255, 1
        %v381 = vsel %vm326, %v378, %v380
        %v382 = vrot.slane %v256, 1
        %v383 = vrot.slane %v257, 1
        %v384 = vsel %vm326, %v382, %v383
        %v385 = vrot.slane %v258, 1
        %v386 = vsel %vm326, %v383, %v385
        %v387 = vrot.slane %v259, 1
        %v388 = vrot.slane %v260, 1
        %v389 = vsel %vm326, %v387, %v388
        %v390 = vrot.slane %v261, 1
        %v391 = vsel %vm326, %v388, %v390
        %v392 = vrot.slane %v262, 1
        %v393 = vrot.slane %v263, 1
        %v394 = vsel %vm326, %v392, %v393
        %v395 = vrot.slane %v264, 1
        %v396 = vsel %vm326, %v393, %v395
        %v397 = vrot.slane %v265, 1
        %v398 = vrot.slane %v266, 1
        %v399 = vsel %vm326, %v397, %v398
        %v400 = vrot.slane %v267, 1
        %v401 = vsel %vm326, %v398, %v400
        %v402 = vrot.slane %v268, 1
        %v403 = vrot.slane %v269, 1
        %v404 = vsel %vm326, %v402, %v403
        %v405 = vrot.slane %v270, 1
        %v406 = vsel %vm326, %v403, %v405
        %s407 = scalar_lea.vmem %s1, 4
        %v408 = vld [vmem:[%s407] sm:$0xf]
        %vm409 = vcmask 31744
        %v410 = vsel %vm409, %v329, 0
        %v412 = vsel %vm409, %v331, 0
        %v414 = vsel %vm409, %v334, 0
        %v416 = vsel %vm409, %v336, 0
        %v418 = vsel %vm409, %v339, 0
        %v420 = vsel %vm409, %v341, 0
        %v422 = vsel %vm409, %v344, 0
        %v424 = vsel %vm409, %v346, 0
        %v426 = vsel %vm409, %v349, 0
        %v428 = vsel %vm409, %v351, 0
        %v430 = vsel %vm409, %v354, 0
        %v432 = vsel %vm409, %v356, 0
        %v434 = vsel %vm409, %v359, 0
        %v436 = vsel %vm409, %v361, 0
        %v438 = vsel %vm409, %v364, 0
        %v440 = vsel %vm409, %v366, 0
        %v442 = vsel %vm409, %v369, 0
        %v444 = vsel %vm409, %v371, 0
        %v446 = vsel %vm409, %v374, 0
        %v448 = vsel %vm409, %v376, 0
        %v450 = vsel %vm409, %v379, 0
        %v452 = vsel %vm409, %v381, 0
        %v454 = vsel %vm409, %v384, 0
        %v456 = vsel %vm409, %v386, 0
        %v458 = vsel %vm409, %v389, 0
        %v460 = vsel %vm409, %v391, 0
        %v462 = vsel %vm409, %v394, 0
        %v464 = vsel %vm409, %v396, 0
        %v466 = vsel %vm409, %v399, 0
        %v468 = vsel %vm409, %v401, 0
        %v470 = vsel %vm409, %v404, 0
        %v472 = vsel %vm409, %v406, 0
        %vm474 = vcmask 1043456
        %v476 = vsel %vm474, %v408, 0
        %478 = vmatprep.subr.mxu0 0.0
        %479 = vmatpush1.msra.mxu0 0.0
        %480 = vmatprep.subr.mxu0 0.0
        %481 = vmatpush1.msra.mxu0 0.0
        %482 = vmatprep.subr.mxu0 0.0
        %483 = vmatpush1.msra.mxu0 0.0
        %484 = vmatprep.subr.mxu0 0.0
        %485 = vmatpush1.msra.mxu0 0.0
        %486 = vmatprep.subr.mxu0 0.0
        %487 = vmatpush1.msra.mxu0 0.0
        %488 = vmatprep.subr.mxu0 0.0
        %489 = vmatpush1.msra.mxu0 0.0
        %490 = vmatprep.subr.mxu0 0.0
        %491 = vmatpush1.msra.mxu0 0.0
        %492 = vmatprep.subr.mxu0 0.0
        %493 = vmatpush1.msra.mxu0 0.0
        %494 = vmatprep.subr.mxu0 0.0
        %495 = vmatpush1.msra.mxu0 0.0
        %496 = vmatprep.subr.mxu0 0.0
        %497 = vmatpush1.msra.mxu0 0.0
        %498 = vmatprep.subr.mxu0 0.0
        %499 = vmatpush1.msra.mxu0 0.0
        %500 = vmatprep.subr.mxu0 0.0
        %501 = vmatpush1.msra.mxu0 0.0
        %502 = vmatprep.subr.mxu0 0.0
        %503 = vmatpush1.msra.mxu0 0.0
        %504 = vmatprep.subr.mxu0 0.0
        %505 = vmatpush1.msra.mxu0 0.0
        %506 = vmatprep.subr.mxu0 0.0
        %507 = vmatpush1.msra.mxu0 0.0
        %508 = vmatprep.subr.mxu0 0.0
        %509 = vmatpush1.msra.mxu0 %v476
        %510 = vmatprep.subr.mxu0 0.0
        %511 = vmatpush2.msra.mxu0 0.0
        %512 = vmatprep.subr.mxu0 0.0
        %513 = vmatpush2.msra.mxu0 0.0
        %514 = vmatprep.subr.mxu0 0.0
        %515 = vmatpush2.msra.mxu0 0.0
        %516 = vmatprep.subr.mxu0 0.0
        %517 = vmatpush2.msra.mxu0 0.0
        %518 = vmatprep.subr.mxu0 0.0
        %519 = vmatpush2.msra.mxu0 0.0
        %520 = vmatprep.subr.mxu0 0.0
        %521 = vmatpush2.msra.mxu0 0.0
        %522 = vmatprep.subr.mxu0 0.0
        %523 = vmatpush2.msra.mxu0 0.0
        %524 = vmatprep.subr.mxu0 0.0
        %525 = vmatpush2.msra.mxu0 0.0
        %526 = vmatprep.subr.mxu0 0.0
        %527 = vmatpush2.msra.mxu0 0.0
        %528 = vmatprep.subr.mxu0 0.0
        %529 = vmatpush2.msra.mxu0 0.0
        %530 = vmatprep.subr.mxu0 0.0
        %531 = vmatpush2.msra.mxu0 0.0
        %532 = vmatprep.subr.mxu0 0.0
        %533 = vmatpush2.msra.mxu0 0.0
        %534 = vmatprep.subr.mxu0 0.0
        %535 = vmatpush2.msra.mxu0 0.0
        %536 = vmatprep.subr.mxu0 0.0
        %537 = vmatpush2.msra.mxu0 0.0
        %538 = vmatprep.subr.mxu0 0.0
        %539 = vmatpush2.msra.mxu0 0.0
        %540 = vmatprep.subr.mxu0 0.0
        %541 = vmatpush2.msra.mxu0 0.0
        %542 = vmatprep.mubr.f32.mxu0 0.0
        %543 = vmatmul.mubr.f32.gmra.mxu0 %v410
        %v544 = vpop.f32.mrf.mxu0
        %v545 = vadd.f32 0.0, %v544
        %v546 = vpop.f32.mrf.mxu0
        %547 = vmatprep.mubr.f32.mxu0 0.0
        %548 = vmatmul.mubr.f32.gmra.mxu0 %v412
        %v549 = vpop.f32.mrf.mxu0
        %v550 = vadd.f32 0.0, %v549
        %v551 = vpop.f32.mrf.mxu0
        %552 = vmatprep.mubr.f32.mxu0 0.0
        %553 = vmatmul.mubr.f32.gmra.mxu0 %v414
        %v554 = vpop.f32.mrf.mxu0
        %v555 = vadd.f32 0.0, %v554
        %v556 = vpop.f32.mrf.mxu0
        %557 = vmatprep.mubr.f32.mxu0 0.0
        %558 = vmatmul.mubr.f32.gmra.mxu0 %v416
        %v559 = vpop.f32.mrf.mxu0
        %v560 = vadd.f32 0.0, %v559
        %v561 = vpop.f32.mrf.mxu0
        %562 = vmatprep.mubr.f32.mxu0 0.0
        %563 = vmatmul.mubr.f32.gmra.mxu0 %v418
        %v564 = vpop.f32.mrf.mxu0
        %v565 = vadd.f32 0.0, %v564
        %v566 = vpop.f32.mrf.mxu0
        %567 = vmatprep.mubr.f32.mxu0 0.0
        %568 = vmatmul.mubr.f32.gmra.mxu0 %v420
        %v569 = vpop.f32.mrf.mxu0
        %v570 = vadd.f32 0.0, %v569
        %v571 = vpop.f32.mrf.mxu0
        %572 = vmatprep.mubr.f32.mxu0 0.0
        %573 = vmatmul.mubr.f32.gmra.mxu0 %v422
        %v574 = vpop.f32.mrf.mxu0
        %v575 = vadd.f32 0.0, %v574
        %v576 = vpop.f32.mrf.mxu0
        %577 = vmatprep.mubr.f32.mxu0 0.0
        %578 = vmatmul.mubr.f32.gmra.mxu0 %v424
        %v579 = vpop.f32.mrf.mxu0
        %v580 = vadd.f32 0.0, %v579
        %v581 = vpop.f32.mrf.mxu0
        %582 = vmatprep.mubr.f32.mxu0 0.0
        %583 = vmatmul.mubr.f32.gmra.mxu0 %v426
        %v584 = vpop.f32.mrf.mxu0
        %v585 = vadd.f32 0.0, %v584
        %v586 = vpop.f32.mrf.mxu0
        %587 = vmatprep.mubr.f32.mxu0 0.0
        %588 = vmatmul.mubr.f32.gmra.mxu0 %v428
        %v589 = vpop.f32.mrf.mxu0
        %v590 = vadd.f32 0.0, %v589
        %v591 = vpop.f32.mrf.mxu0
        %592 = vmatprep.mubr.f32.mxu0 0.0
        %593 = vmatmul.mubr.f32.gmra.mxu0 %v430
        %v594 = vpop.f32.mrf.mxu0
        %v595 = vadd.f32 0.0, %v594
        %v596 = vpop.f32.mrf.mxu0
        %597 = vmatprep.mubr.f32.mxu0 0.0
        %598 = vmatmul.mubr.f32.gmra.mxu0 %v432
        %v599 = vpop.f32.mrf.mxu0
        %v600 = vadd.f32 0.0, %v599
        %v601 = vpop.f32.mrf.mxu0
        %602 = vmatprep.mubr.f32.mxu0 0.0
        %603 = vmatmul.mubr.f32.gmra.mxu0 %v434
        %v604 = vpop.f32.mrf.mxu0
        %v605 = vadd.f32 0.0, %v604
        %v606 = vpop.f32.mrf.mxu0
        %607 = vmatprep.mubr.f32.mxu0 0.0
        %608 = vmatmul.mubr.f32.gmra.mxu0 %v436
        %v609 = vpop.f32.mrf.mxu0
        %v610 = vadd.f32 0.0, %v609
        %v611 = vpop.f32.mrf.mxu0
        %612 = vmatprep.mubr.f32.mxu0 0.0
        %613 = vmatmul.mubr.f32.gmra.mxu0 %v438
        %v614 = vpop.f32.mrf.mxu0
        %v615 = vadd.f32 0.0, %v614
        %v616 = vpop.f32.mrf.mxu0
        %617 = vmatprep.mubr.f32.mxu0 0.0
        %618 = vmatmul.mubr.f32.gmra.mxu0 %v440
        %v619 = vpop.f32.mrf.mxu0
        %v620 = vadd.f32 0.0, %v619
        %v621 = vpop.f32.mrf.mxu0
        %622 = vmatprep.mubr.f32.mxu0 0.0
        %623 = vmatmul.mubr.f32.gmra.mxu0 %v442
        %v624 = vpop.f32.mrf.mxu0
        %v625 = vadd.f32 0.0, %v624
        %v626 = vpop.f32.mrf.mxu0
        %627 = vmatprep.mubr.f32.mxu0 0.0
        %628 = vmatmul.mubr.f32.gmra.mxu0 %v444
        %v629 = vpop.f32.mrf.mxu0
        %v630 = vadd.f32 0.0, %v629
        %v631 = vpop.f32.mrf.mxu0
        %632 = vmatprep.mubr.f32.mxu0 0.0
        %633 = vmatmul.mubr.f32.gmra.mxu0 %v446
        %v634 = vpop.f32.mrf.mxu0
        %v635 = vadd.f32 0.0, %v634
        %v636 = vpop.f32.mrf.mxu0
        %637 = vmatprep.mubr.f32.mxu0 0.0
        %638 = vmatmul.mubr.f32.gmra.mxu0 %v448
        %v639 = vpop.f32.mrf.mxu0
        %v640 = vadd.f32 0.0, %v639
        %v641 = vpop.f32.mrf.mxu0
        %642 = vmatprep.mubr.f32.mxu0 0.0
        %643 = vmatmul.mubr.f32.gmra.mxu0 %v450
        %v644 = vpop.f32.mrf.mxu0
        %v645 = vadd.f32 0.0, %v644
        %v646 = vpop.f32.mrf.mxu0
        %647 = vmatprep.mubr.f32.mxu0 0.0
        %648 = vmatmul.mubr.f32.gmra.mxu0 %v452
        %v649 = vpop.f32.mrf.mxu0
        %v650 = vadd.f32 0.0, %v649
        %v651 = vpop.f32.mrf.mxu0
        %652 = vmatprep.mubr.f32.mxu0 0.0
        %653 = vmatmul.mubr.f32.gmra.mxu0 %v454
        %v654 = vpop.f32.mrf.mxu0
        %v655 = vadd.f32 0.0, %v654
        %v656 = vpop.f32.mrf.mxu0
        %657 = vmatprep.mubr.f32.mxu0 0.0
        %658 = vmatmul.mubr.f32.gmra.mxu0 %v456
        %v659 = vpop.f32.mrf.mxu0
        %v660 = vadd.f32 0.0, %v659
        %v661 = vpop.f32.mrf.mxu0
        %662 = vmatprep.mubr.f32.mxu0 0.0
        %663 = vmatmul.mubr.f32.gmra.mxu0 %v458
        %v664 = vpop.f32.mrf.mxu0
        %v665 = vadd.f32 0.0, %v664
        %v666 = vpop.f32.mrf.mxu0
        %667 = vmatprep.mubr.f32.mxu0 0.0
        %668 = vmatmul.mubr.f32.gmra.mxu0 %v460
        %v669 = vpop.f32.mrf.mxu0
        %v670 = vadd.f32 0.0, %v669
        %v671 = vpop.f32.mrf.mxu0
        %672 = vmatprep.mubr.f32.mxu0 0.0
        %673 = vmatmul.mubr.f32.gmra.mxu0 %v462
        %v674 = vpop.f32.mrf.mxu0
        %v675 = vadd.f32 0.0, %v674
        %v676 = vpop.f32.mrf.mxu0
        %677 = vmatprep.mubr.f32.mxu0 0.0
        %678 = vmatmul.mubr.f32.gmra.mxu0 %v464
        %v679 = vpop.f32.mrf.mxu0
        %v680 = vadd.f32 0.0, %v679
        %v681 = vpop.f32.mrf.mxu0
        %682 = vmatprep.mubr.f32.mxu0 0.0
        %683 = vmatmul.mubr.f32.gmra.mxu0 %v466
        %v684 = vpop.f32.mrf.mxu0
        %v685 = vadd.f32 0.0, %v684
        %v686 = vpop.f32.mrf.mxu0
        %687 = vmatprep.mubr.f32.mxu0 0.0
        %688 = vmatmul.mubr.f32.gmra.mxu0 %v468
        %v689 = vpop.f32.mrf.mxu0
        %v690 = vadd.f32 0.0, %v689
        %v691 = vpop.f32.mrf.mxu0
        %692 = vmatprep.mubr.f32.mxu0 0.0
        %693 = vmatmul.mubr.f32.gmra.mxu0 %v470
        %v694 = vpop.f32.mrf.mxu0
        %v695 = vadd.f32 0.0, %v694
        %v696 = vpop.f32.mrf.mxu0
        %697 = vmatprep.mubr.f32.mxu0 0.0
        %698 = vmatmul.mubr.f32.gmra.mxu0 %v472
        %v699 = vpop.f32.mrf.mxu0
        %v700 = vadd.f32 0.0, %v699
        %v701 = vpop.f32.mrf.mxu0
        %702 = vdwg.mxu0
        %v703 = vsel %vm409, %v223, 0
        %v705 = vsel %vm409, %v224, 0
        %v707 = vsel %vm409, %v226, 0
        %v709 = vsel %vm409, %v227, 0
        %v711 = vsel %vm409, %v229, 0
        %v713 = vsel %vm409, %v230, 0
        %v715 = vsel %vm409, %v232, 0
        %v717 = vsel %vm409, %v233, 0
        %v719 = vsel %vm409, %v235, 0
        %v721 = vsel %vm409, %v236, 0
        %v723 = vsel %vm409, %v238, 0
        %v725 = vsel %vm409, %v239, 0
        %v727 = vsel %vm409, %v241, 0
        %v729 = vsel %vm409, %v242, 0
        %v731 = vsel %vm409, %v244, 0
        %v733 = vsel %vm409, %v245, 0
        %v735 = vsel %vm409, %v247, 0
        %v737 = vsel %vm409, %v248, 0
        %v739 = vsel %vm409, %v250, 0
        %v741 = vsel %vm409, %v251, 0
        %v743 = vsel %vm409, %v253, 0
        %v745 = vsel %vm409, %v254, 0
        %v747 = vsel %vm409, %v256, 0
        %v749 = vsel %vm409, %v257, 0
        %v751 = vsel %vm409, %v259, 0
        %v753 = vsel %vm409, %v260, 0
        %v755 = vsel %vm409, %v262, 0
        %v757 = vsel %vm409, %v263, 0
        %v759 = vsel %vm409, %v265, 0
        %v761 = vsel %vm409, %v266, 0
        %v763 = vsel %vm409, %v268, 0
        %v765 = vsel %vm409, %v269, 0
        %v768 = vsel %vm474, %v277, 0
        %770 = vmatprep.subr.mxu0 0.0
        %771 = vmatpush1.msra.mxu0 0.0
        %772 = vmatprep.subr.mxu0 0.0
        %773 = vmatpush1.msra.mxu0 0.0
        %774 = vmatprep.subr.mxu0 0.0
        %775 = vmatpush1.msra.mxu0 0.0
        %776 = vmatprep.subr.mxu0 0.0
        %777 = vmatpush1.msra.mxu0 0.0
        %778 = vmatprep.subr.mxu0 0.0
        %779 = vmatpush1.msra.mxu0 0.0
        %780 = vmatprep.subr.mxu0 0.0
        %781 = vmatpush1.msra.mxu0 0.0
        %782 = vmatprep.subr.mxu0 0.0
        %783 = vmatpush1.msra.mxu0 0.0
        %784 = vmatprep.subr.mxu0 0.0
        %785 = vmatpush1.msra.mxu0 0.0
        %786 = vmatprep.subr.mxu0 0.0
        %787 = vmatpush1.msra.mxu0 0.0
        %788 = vmatprep.subr.mxu0 0.0
        %789 = vmatpush1.msra.mxu0 0.0
        %790 = vmatprep.subr.mxu0 0.0
        %791 = vmatpush1.msra.mxu0 0.0
        %792 = vmatprep.subr.mxu0 0.0
        %793 = vmatpush1.msra.mxu0 0.0
        %794 = vmatprep.subr.mxu0 0.0
        %795 = vmatpush1.msra.mxu0 0.0
        %796 = vmatprep.subr.mxu0 0.0
        %797 = vmatpush1.msra.mxu0 0.0
        %798 = vmatprep.subr.mxu0 0.0
        %799 = vmatpush1.msra.mxu0 0.0
        %800 = vmatprep.subr.mxu0 0.0
        %801 = vmatpush1.msra.mxu0 %v768
        %802 = vmatprep.subr.mxu0 0.0
        %803 = vmatpush2.msra.mxu0 0.0
        %804 = vmatprep.subr.mxu0 0.0
        %805 = vmatpush2.msra.mxu0 0.0
        %806 = vmatprep.subr.mxu0 0.0
        %807 = vmatpush2.msra.mxu0 0.0
        %808 = vmatprep.subr.mxu0 0.0
        %809 = vmatpush2.msra.mxu0 0.0
        %810 = vmatprep.subr.mxu0 0.0
        %811 = vmatpush2.msra.mxu0 0.0
        %812 = vmatprep.subr.mxu0 0.0
        %813 = vmatpush2.msra.mxu0 0.0
        %814 = vmatprep.subr.mxu0 0.0
        %815 = vmatpush2.msra.mxu0 0.0
        %816 = vmatprep.subr.mxu0 0.0
        %817 = vmatpush2.msra.mxu0 0.0
        %818 = vmatprep.subr.mxu0 0.0
        %819 = vmatpush2.msra.mxu0 0.0
        %820 = vmatprep.subr.mxu0 0.0
        %821 = vmatpush2.msra.mxu0 0.0
        %822 = vmatprep.subr.mxu0 0.0
        %823 = vmatpush2.msra.mxu0 0.0
        %824 = vmatprep.subr.mxu0 0.0
        %825 = vmatpush2.msra.mxu0 0.0
        %826 = vmatprep.subr.mxu0 0.0
        %827 = vmatpush2.msra.mxu0 0.0
        %828 = vmatprep.subr.mxu0 0.0
        %829 = vmatpush2.msra.mxu0 0.0
        %830 = vmatprep.subr.mxu0 0.0
        %831 = vmatpush2.msra.mxu0 0.0
        %832 = vmatprep.subr.mxu0 0.0
        %833 = vmatpush2.msra.mxu0 0.0
        %834 = vmatprep.mubr.f32.mxu0 0.0
        %835 = vmatmul.mubr.f32.gmra.mxu0 %v703
        %v836 = vpop.f32.mrf.mxu0
        %v837 = vadd.f32 %v545, %v836
        %v838 = vpop.f32.mrf.mxu0
        %839 = vmatprep.mubr.f32.mxu0 0.0
        %840 = vmatmul.mubr.f32.gmra.mxu0 %v705
        %v841 = vpop.f32.mrf.mxu0
        %v842 = vadd.f32 %v550, %v841
        %v843 = vpop.f32.mrf.mxu0
        %844 = vmatprep.mubr.f32.mxu0 0.0
        %845 = vmatmul.mubr.f32.gmra.mxu0 %v707
        %v846 = vpop.f32.mrf.mxu0
        %v847 = vadd.f32 %v555, %v846
        %v848 = vpop.f32.mrf.mxu0
        %849 = vmatprep.mubr.f32.mxu0 0.0
        %850 = vmatmul.mubr.f32.gmra.mxu0 %v709
        %v851 = vpop.f32.mrf.mxu0
        %v852 = vadd.f32 %v560, %v851
        %v853 = vpop.f32.mrf.mxu0
        %854 = vmatprep.mubr.f32.mxu0 0.0
        %855 = vmatmul.mubr.f32.gmra.mxu0 %v711
        %v856 = vpop.f32.mrf.mxu0
        %v857 = vadd.f32 %v565, %v856
        %v858 = vpop.f32.mrf.mxu0
        %859 = vmatprep.mubr.f32.mxu0 0.0
        %860 = vmatmul.mubr.f32.gmra.mxu0 %v713
        %v861 = vpop.f32.mrf.mxu0
        %v862 = vadd.f32 %v570, %v861
        %v863 = vpop.f32.mrf.mxu0
        %864 = vmatprep.mubr.f32.mxu0 0.0
        %865 = vmatmul.mubr.f32.gmra.mxu0 %v715
        %v866 = vpop.f32.mrf.mxu0
        %v867 = vadd.f32 %v575, %v866
        %v868 = vpop.f32.mrf.mxu0
        %869 = vmatprep.mubr.f32.mxu0 0.0
        %870 = vmatmul.mubr.f32.gmra.mxu0 %v717
        %v871 = vpop.f32.mrf.mxu0
        %v872 = vadd.f32 %v580, %v871
        %v873 = vpop.f32.mrf.mxu0
        %874 = vmatprep.mubr.f32.mxu0 0.0
        %875 = vmatmul.mubr.f32.gmra.mxu0 %v719
        %v876 = vpop.f32.mrf.mxu0
        %v877 = vadd.f32 %v585, %v876
        %v878 = vpop.f32.mrf.mxu0
        %879 = vmatprep.mubr.f32.mxu0 0.0
        %880 = vmatmul.mubr.f32.gmra.mxu0 %v721
        %v881 = vpop.f32.mrf.mxu0
        %v882 = vadd.f32 %v590, %v881
        %v883 = vpop.f32.mrf.mxu0
        %884 = vmatprep.mubr.f32.mxu0 0.0
        %885 = vmatmul.mubr.f32.gmra.mxu0 %v723
        %v886 = vpop.f32.mrf.mxu0
        %v887 = vadd.f32 %v595, %v886
        %v888 = vpop.f32.mrf.mxu0
        %889 = vmatprep.mubr.f32.mxu0 0.0
        %890 = vmatmul.mubr.f32.gmra.mxu0 %v725
        %v891 = vpop.f32.mrf.mxu0
        %v892 = vadd.f32 %v600, %v891
        %v893 = vpop.f32.mrf.mxu0
        %894 = vmatprep.mubr.f32.mxu0 0.0
        %895 = vmatmul.mubr.f32.gmra.mxu0 %v727
        %v896 = vpop.f32.mrf.mxu0
        %v897 = vadd.f32 %v605, %v896
        %v898 = vpop.f32.mrf.mxu0
        %899 = vmatprep.mubr.f32.mxu0 0.0
        %900 = vmatmul.mubr.f32.gmra.mxu0 %v729
        %v901 = vpop.f32.mrf.mxu0
        %v902 = vadd.f32 %v610, %v901
        %v903 = vpop.f32.mrf.mxu0
        %904 = vmatprep.mubr.f32.mxu0 0.0
        %905 = vmatmul.mubr.f32.gmra.mxu0 %v731
        %v906 = vpop.f32.mrf.mxu0
        %v907 = vadd.f32 %v615, %v906
        %v908 = vpop.f32.mrf.mxu0
        %909 = vmatprep.mubr.f32.mxu0 0.0
        %910 = vmatmul.mubr.f32.gmra.mxu0 %v733
        %v911 = vpop.f32.mrf.mxu0
        %v912 = vadd.f32 %v620, %v911
        %v913 = vpop.f32.mrf.mxu0
        %914 = vmatprep.mubr.f32.mxu0 0.0
        %915 = vmatmul.mubr.f32.gmra.mxu0 %v735
        %v916 = vpop.f32.mrf.mxu0
        %v917 = vadd.f32 %v625, %v916
        %v918 = vpop.f32.mrf.mxu0
        %919 = vmatprep.mubr.f32.mxu0 0.0
        %920 = vmatmul.mubr.f32.gmra.mxu0 %v737
        %v921 = vpop.f32.mrf.mxu0
        %v922 = vadd.f32 %v630, %v921
        %v923 = vpop.f32.mrf.mxu0
        %924 = vmatprep.mubr.f32.mxu0 0.0
        %925 = vmatmul.mubr.f32.gmra.mxu0 %v739
        %v926 = vpop.f32.mrf.mxu0
        %v927 = vadd.f32 %v635, %v926
        %v928 = vpop.f32.mrf.mxu0
        %929 = vmatprep.mubr.f32.mxu0 0.0
        %930 = vmatmul.mubr.f32.gmra.mxu0 %v741
        %v931 = vpop.f32.mrf.mxu0
        %v932 = vadd.f32 %v640, %v931
        %v933 = vpop.f32.mrf.mxu0
        %934 = vmatprep.mubr.f32.mxu0 0.0
        %935 = vmatmul.mubr.f32.gmra.mxu0 %v743
        %v936 = vpop.f32.mrf.mxu0
        %v937 = vadd.f32 %v645, %v936
        %v938 = vpop.f32.mrf.mxu0
        %939 = vmatprep.mubr.f32.mxu0 0.0
        %940 = vmatmul.mubr.f32.gmra.mxu0 %v745
        %v941 = vpop.f32.mrf.mxu0
        %v942 = vadd.f32 %v650, %v941
        %v943 = vpop.f32.mrf.mxu0
        %944 = vmatprep.mubr.f32.mxu0 0.0
        %945 = vmatmul.mubr.f32.gmra.mxu0 %v747
        %v946 = vpop.f32.mrf.mxu0
        %v947 = vadd.f32 %v655, %v946
        %v948 = vpop.f32.mrf.mxu0
        %949 = vmatprep.mubr.f32.mxu0 0.0
        %950 = vmatmul.mubr.f32.gmra.mxu0 %v749
        %v951 = vpop.f32.mrf.mxu0
        %v952 = vadd.f32 %v660, %v951
        %v953 = vpop.f32.mrf.mxu0
        %954 = vmatprep.mubr.f32.mxu0 0.0
        %955 = vmatmul.mubr.f32.gmra.mxu0 %v751
        %v956 = vpop.f32.mrf.mxu0
        %v957 = vadd.f32 %v665, %v956
        %v958 = vpop.f32.mrf.mxu0
        %959 = vmatprep.mubr.f32.mxu0 0.0
        %960 = vmatmul.mubr.f32.gmra.mxu0 %v753
        %v961 = vpop.f32.mrf.mxu0
        %v962 = vadd.f32 %v670, %v961
        %v963 = vpop.f32.mrf.mxu0
        %964 = vmatprep.mubr.f32.mxu0 0.0
        %965 = vmatmul.mubr.f32.gmra.mxu0 %v755
        %v966 = vpop.f32.mrf.mxu0
        %v967 = vadd.f32 %v675, %v966
        %v968 = vpop.f32.mrf.mxu0
        %969 = vmatprep.mubr.f32.mxu0 0.0
        %970 = vmatmul.mubr.f32.gmra.mxu0 %v757
        %v971 = vpop.f32.mrf.mxu0
        %v972 = vadd.f32 %v680, %v971
        %v973 = vpop.f32.mrf.mxu0
        %974 = vmatprep.mubr.f32.mxu0 0.0
        %975 = vmatmul.mubr.f32.gmra.mxu0 %v759
        %v976 = vpop.f32.mrf.mxu0
        %v977 = vadd.f32 %v685, %v976
        %v978 = vpop.f32.mrf.mxu0
        %979 = vmatprep.mubr.f32.mxu0 0.0
        %980 = vmatmul.mubr.f32.gmra.mxu0 %v761
        %v981 = vpop.f32.mrf.mxu0
        %v982 = vadd.f32 %v690, %v981
        %v983 = vpop.f32.mrf.mxu0
        %984 = vmatprep.mubr.f32.mxu0 0.0
        %985 = vmatmul.mubr.f32.gmra.mxu0 %v763
        %v986 = vpop.f32.mrf.mxu0
        %v987 = vadd.f32 %v695, %v986
        %v988 = vpop.f32.mrf.mxu0
        %989 = vmatprep.mubr.f32.mxu0 0.0
        %990 = vmatmul.mubr.f32.gmra.mxu0 %v765
        %v991 = vpop.f32.mrf.mxu0
        %v992 = vadd.f32 %v700, %v991
        %v993 = vpop.f32.mrf.mxu0
        %994 = vdwg.mxu0
        %vm995 = vcmask 1045504
        %v996 = vrot.slane %v223, 2
        %v997 = vrot.slane %v224, 2
        %v998 = vsel %vm995, %v996, %v997
        %v999 = vrot.slane %v225, 2
        %v1000 = vsel %vm995, %v997, %v999
        %v1001 = vrot.slane %v226, 2
        %v1002 = vrot.slane %v227, 2
        %v1003 = vsel %vm995, %v1001, %v1002
        %v1004 = vrot.slane %v228, 2
        %v1005 = vsel %vm995, %v1002, %v1004
        %v1006 = vrot.slane %v229, 2
        %v1007 = vrot.slane %v230, 2
        %v1008 = vsel %vm995, %v1006, %v1007
        %v1009 = vrot.slane %v231, 2
        %v1010 = vsel %vm995, %v1007, %v1009
        %v1011 = vrot.slane %v232, 2
        %v1012 = vrot.slane %v233, 2
        %v1013 = vsel %vm995, %v1011, %v1012
        %v1014 = vrot.slane %v234, 2
        %v1015 = vsel %vm995, %v1012, %v1014
        %v1016 = vrot.slane %v235, 2
        %v1017 = vrot.slane %v236, 2
        %v1018 = vsel %vm995, %v1016, %v1017
        %v1019 = vrot.slane %v237, 2
        %v1020 = vsel %vm995, %v1017, %v1019
        %v1021 = vrot.slane %v238, 2
        %v1022 = vrot.slane %v239, 2
        %v1023 = vsel %vm995, %v1021, %v1022
        %v1024 = vrot.slane %v240, 2
        %v1025 = vsel %vm995, %v1022, %v1024
        %v1026 = vrot.slane %v241, 2
        %v1027 = vrot.slane %v242, 2
        %v1028 = vsel %vm995, %v1026, %v1027
        %v1029 = vrot.slane %v243, 2
        %v1030 = vsel %vm995, %v1027, %v1029
        %v1031 = vrot.slane %v244, 2
        %v1032 = vrot.slane %v245, 2
        %v1033 = vsel %vm995, %v1031, %v1032
        %v1034 = vrot.slane %v246, 2
        %v1035 = vsel %vm995, %v1032, %v1034
        %v1036 = vrot.slane %v247, 2
        %v1037 = vrot.slane %v248, 2
        %v1038 = vsel %vm995, %v1036, %v1037
        %v1039 = vrot.slane %v249, 2
        %v1040 = vsel %vm995, %v1037, %v1039
        %v1041 = vrot.slane %v250, 2
        %v1042 = vrot.slane %v251, 2
        %v1043 = vsel %vm995, %v1041, %v1042
        %v1044 = vrot.slane %v252, 2
        %v1045 = vsel %vm995, %v1042, %v1044
        %v1046 = vrot.slane %v253, 2
        %v1047 = vrot.slane %v254, 2
        %v1048 = vsel %vm995, %v1046, %v1047
        %v1049 = vrot.slane %v255, 2
        %v1050 = vsel %vm995, %v1047, %v1049
        %v1051 = vrot.slane %v256, 2
        %v1052 = vrot.slane %v257, 2
        %v1053 = vsel %vm995, %v1051, %v1052
        %v1054 = vrot.slane %v258, 2
        %v1055 = vsel %vm995, %v1052, %v1054
        %v1056 = vrot.slane %v259, 2
        %v1057 = vrot.slane %v260, 2
        %v1058 = vsel %vm995, %v1056, %v1057
        %v1059 = vrot.slane %v261, 2
        %v1060 = vsel %vm995, %v1057, %v1059
        %v1061 = vrot.slane %v262, 2
        %v1062 = vrot.slane %v263, 2
        %v1063 = vsel %vm995, %v1061, %v1062
        %v1064 = vrot.slane %v264, 2
        %v1065 = vsel %vm995, %v1062, %v1064
        %v1066 = vrot.slane %v265, 2
        %v1067 = vrot.slane %v266, 2
        %v1068 = vsel %vm995, %v1066, %v1067
        %v1069 = vrot.slane %v267, 2
        %v1070 = vsel %vm995, %v1067, %v1069
        %v1071 = vrot.slane %v268, 2
        %v1072 = vrot.slane %v269, 2
        %v1073 = vsel %vm995, %v1071, %v1072
        %v1074 = vrot.slane %v270, 2
        %v1075 = vsel %vm995, %v1072, %v1074
        %s1076 = scalar_lea.vmem %s1, 8
        %v1077 = vld [vmem:[%s1076] sm:$0xf]
        %v1078 = vsel %vm409, %v998, 0
        %v1080 = vsel %vm409, %v1000, 0
        %v1082 = vsel %vm409, %v1003, 0
        %v1084 = vsel %vm409, %v1005, 0
        %v1086 = vsel %vm409, %v1008, 0
        %v1088 = vsel %vm409, %v1010, 0
        %v1090 = vsel %vm409, %v1013, 0
        %v1092 = vsel %vm409, %v1015, 0
        %v1094 = vsel %vm409, %v1018, 0
        %v1096 = vsel %vm409, %v1020, 0
        %v1098 = vsel %vm409, %v1023, 0
        %v1100 = vsel %vm409, %v1025, 0
        %v1102 = vsel %vm409, %v1028, 0
        %v1104 = vsel %vm409, %v1030, 0
        %v1106 = vsel %vm409, %v1033, 0
        %v1108 = vsel %vm409, %v1035, 0
        %v1110 = vsel %vm409, %v1038, 0
        %v1112 = vsel %vm409, %v1040, 0
        %v1114 = vsel %vm409, %v1043, 0
        %v1116 = vsel %vm409, %v1045, 0
        %v1118 = vsel %vm409, %v1048, 0
        %v1120 = vsel %vm409, %v1050, 0
        %v1122 = vsel %vm409, %v1053, 0
        %v1124 = vsel %vm409, %v1055, 0
        %v1126 = vsel %vm409, %v1058, 0
        %v1128 = vsel %vm409, %v1060, 0
        %v1130 = vsel %vm409, %v1063, 0
        %v1132 = vsel %vm409, %v1065, 0
        %v1134 = vsel %vm409, %v1068, 0
        %v1136 = vsel %vm409, %v1070, 0
        %v1138 = vsel %vm409, %v1073, 0
        %v1140 = vsel %vm409, %v1075, 0
        %v1143 = vsel %vm474, %v1077, 0
        %1145 = vmatprep.subr.mxu0 0.0
        %1146 = vmatpush1.msra.mxu0 0.0
        %1147 = vmatprep.subr.mxu0 0.0
        %1148 = vmatpush1.msra.mxu0 0.0
        %1149 = vmatprep.subr.mxu0 0.0
        %1150 = vmatpush1.msra.mxu0 0.0
        %1151 = vmatprep.subr.mxu0 0.0
        %1152 = vmatpush1.msra.mxu0 0.0
        %1153 = vmatprep.subr.mxu0 0.0
        %1154 = vmatpush1.msra.mxu0 0.0
        %1155 = vmatprep.subr.mxu0 0.0
        %1156 = vmatpush1.msra.mxu0 0.0
        %1157 = vmatprep.subr.mxu0 0.0
        %1158 = vmatpush1.msra.mxu0 0.0
        %1159 = vmatprep.subr.mxu0 0.0
        %1160 = vmatpush1.msra.mxu0 0.0
        %1161 = vmatprep.subr.mxu0 0.0
        %1162 = vmatpush1.msra.mxu0 0.0
        %1163 = vmatprep.subr.mxu0 0.0
        %1164 = vmatpush1.msra.mxu0 0.0
        %1165 = vmatprep.subr.mxu0 0.0
        %1166 = vmatpush1.msra.mxu0 0.0
        %1167 = vmatprep.subr.mxu0 0.0
        %1168 = vmatpush1.msra.mxu0 0.0
        %1169 = vmatprep.subr.mxu0 0.0
        %1170 = vmatpush1.msra.mxu0 0.0
        %1171 = vmatprep.subr.mxu0 0.0
        %1172 = vmatpush1.msra.mxu0 0.0
        %1173 = vmatprep.subr.mxu0 0.0
        %1174 = vmatpush1.msra.mxu0 0.0
        %1175 = vmatprep.subr.mxu0 0.0
        %1176 = vmatpush1.msra.mxu0 %v1143
        %1177 = vmatprep.subr.mxu0 0.0
        %1178 = vmatpush2.msra.mxu0 0.0
        %1179 = vmatprep.subr.mxu0 0.0
        %1180 = vmatpush2.msra.mxu0 0.0
        %1181 = vmatprep.subr.mxu0 0.0
        %1182 = vmatpush2.msra.mxu0 0.0
        %1183 = vmatprep.subr.mxu0 0.0
        %1184 = vmatpush2.msra.mxu0 0.0
        %1185 = vmatprep.subr.mxu0 0.0
        %1186 = vmatpush2.msra.mxu0 0.0
        %1187 = vmatprep.subr.mxu0 0.0
        %1188 = vmatpush2.msra.mxu0 0.0
        %1189 = vmatprep.subr.mxu0 0.0
        %1190 = vmatpush2.msra.mxu0 0.0
        %1191 = vmatprep.subr.mxu0 0.0
        %1192 = vmatpush2.msra.mxu0 0.0
        %1193 = vmatprep.subr.mxu0 0.0
        %1194 = vmatpush2.msra.mxu0 0.0
        %1195 = vmatprep.subr.mxu0 0.0
        %1196 = vmatpush2.msra.mxu0 0.0
        %1197 = vmatprep.subr.mxu0 0.0
        %1198 = vmatpush2.msra.mxu0 0.0
        %1199 = vmatprep.subr.mxu0 0.0
        %1200 = vmatpush2.msra.mxu0 0.0
        %1201 = vmatprep.subr.mxu0 0.0
        %1202 = vmatpush2.msra.mxu0 0.0
        %1203 = vmatprep.subr.mxu0 0.0
        %1204 = vmatpush2.msra.mxu0 0.0
        %1205 = vmatprep.subr.mxu0 0.0
        %1206 = vmatpush2.msra.mxu0 0.0
        %1207 = vmatprep.subr.mxu0 0.0
        %1208 = vmatpush2.msra.mxu0 0.0
        %1209 = vmatprep.mubr.f32.mxu0 0.0
        %1210 = vmatmul.mubr.f32.gmra.mxu0 %v1078
        %v1211 = vpop.f32.mrf.mxu0
        %v1212 = vadd.f32 0.0, %v1211
        %v1213 = vpop.f32.mrf.mxu0
        %1214 = vmatprep.mubr.f32.mxu0 0.0
        %1215 = vmatmul.mubr.f32.gmra.mxu0 %v1080
        %v1216 = vpop.f32.mrf.mxu0
        %v1217 = vadd.f32 0.0, %v1216
        %v1218 = vpop.f32.mrf.mxu0
        %1219 = vmatprep.mubr.f32.mxu0 0.0
        %1220 = vmatmul.mubr.f32.gmra.mxu0 %v1082
        %v1221 = vpop.f32.mrf.mxu0
        %v1222 = vadd.f32 0.0, %v1221
        %v1223 = vpop.f32.mrf.mxu0
        %1224 = vmatprep.mubr.f32.mxu0 0.0
        %1225 = vmatmul.mubr.f32.gmra.mxu0 %v1084
        %v1226 = vpop.f32.mrf.mxu0
        %v1227 = vadd.f32 0.0, %v1226
        %v1228 = vpop.f32.mrf.mxu0
        %1229 = vmatprep.mubr.f32.mxu0 0.0
        %1230 = vmatmul.mubr.f32.gmra.mxu0 %v1086
        %v1231 = vpop.f32.mrf.mxu0
        %v1232 = vadd.f32 0.0, %v1231
        %v1233 = vpop.f32.mrf.mxu0
        %1234 = vmatprep.mubr.f32.mxu0 0.0
        %1235 = vmatmul.mubr.f32.gmra.mxu0 %v1088
        %v1236 = vpop.f32.mrf.mxu0
        %v1237 = vadd.f32 0.0, %v1236
        %v1238 = vpop.f32.mrf.mxu0
        %1239 = vmatprep.mubr.f32.mxu0 0.0
        %1240 = vmatmul.mubr.f32.gmra.mxu0 %v1090
        %v1241 = vpop.f32.mrf.mxu0
        %v1242 = vadd.f32 0.0, %v1241
        %v1243 = vpop.f32.mrf.mxu0
        %1244 = vmatprep.mubr.f32.mxu0 0.0
        %1245 = vmatmul.mubr.f32.gmra.mxu0 %v1092
        %v1246 = vpop.f32.mrf.mxu0
        %v1247 = vadd.f32 0.0, %v1246
        %v1248 = vpop.f32.mrf.mxu0
        %1249 = vmatprep.mubr.f32.mxu0 0.0
        %1250 = vmatmul.mubr.f32.gmra.mxu0 %v1094
        %v1251 = vpop.f32.mrf.mxu0
        %v1252 = vadd.f32 0.0, %v1251
        %v1253 = vpop.f32.mrf.mxu0
        %1254 = vmatprep.mubr.f32.mxu0 0.0
        %1255 = vmatmul.mubr.f32.gmra.mxu0 %v1096
        %v1256 = vpop.f32.mrf.mxu0
        %v1257 = vadd.f32 0.0, %v1256
        %v1258 = vpop.f32.mrf.mxu0
        %1259 = vmatprep.mubr.f32.mxu0 0.0
        %1260 = vmatmul.mubr.f32.gmra.mxu0 %v1098
        %v1261 = vpop.f32.mrf.mxu0
        %v1262 = vadd.f32 0.0, %v1261
        %v1263 = vpop.f32.mrf.mxu0
        %1264 = vmatprep.mubr.f32.mxu0 0.0
        %1265 = vmatmul.mubr.f32.gmra.mxu0 %v1100
        %v1266 = vpop.f32.mrf.mxu0
        %v1267 = vadd.f32 0.0, %v1266
        %v1268 = vpop.f32.mrf.mxu0
        %1269 = vmatprep.mubr.f32.mxu0 0.0
        %1270 = vmatmul.mubr.f32.gmra.mxu0 %v1102
        %v1271 = vpop.f32.mrf.mxu0
        %v1272 = vadd.f32 0.0, %v1271
        %v1273 = vpop.f32.mrf.mxu0
        %1274 = vmatprep.mubr.f32.mxu0 0.0
        %1275 = vmatmul.mubr.f32.gmra.mxu0 %v1104
        %v1276 = vpop.f32.mrf.mxu0
        %v1277 = vadd.f32 0.0, %v1276
        %v1278 = vpop.f32.mrf.mxu0
        %1279 = vmatprep.mubr.f32.mxu0 0.0
        %1280 = vmatmul.mubr.f32.gmra.mxu0 %v1106
        %v1281 = vpop.f32.mrf.mxu0
        %v1282 = vadd.f32 0.0, %v1281
        %v1283 = vpop.f32.mrf.mxu0
        %1284 = vmatprep.mubr.f32.mxu0 0.0
        %1285 = vmatmul.mubr.f32.gmra.mxu0 %v1108
        %v1286 = vpop.f32.mrf.mxu0
        %v1287 = vadd.f32 0.0, %v1286
        %v1288 = vpop.f32.mrf.mxu0
        %1289 = vmatprep.mubr.f32.mxu0 0.0
        %1290 = vmatmul.mubr.f32.gmra.mxu0 %v1110
        %v1291 = vpop.f32.mrf.mxu0
        %v1292 = vadd.f32 0.0, %v1291
        %v1293 = vpop.f32.mrf.mxu0
        %1294 = vmatprep.mubr.f32.mxu0 0.0
        %1295 = vmatmul.mubr.f32.gmra.mxu0 %v1112
        %v1296 = vpop.f32.mrf.mxu0
        %v1297 = vadd.f32 0.0, %v1296
        %v1298 = vpop.f32.mrf.mxu0
        %1299 = vmatprep.mubr.f32.mxu0 0.0
        %1300 = vmatmul.mubr.f32.gmra.mxu0 %v1114
        %v1301 = vpop.f32.mrf.mxu0
        %v1302 = vadd.f32 0.0, %v1301
        %v1303 = vpop.f32.mrf.mxu0
        %1304 = vmatprep.mubr.f32.mxu0 0.0
        %1305 = vmatmul.mubr.f32.gmra.mxu0 %v1116
        %v1306 = vpop.f32.mrf.mxu0
        %v1307 = vadd.f32 0.0, %v1306
        %v1308 = vpop.f32.mrf.mxu0
        %1309 = vmatprep.mubr.f32.mxu0 0.0
        %1310 = vmatmul.mubr.f32.gmra.mxu0 %v1118
        %v1311 = vpop.f32.mrf.mxu0
        %v1312 = vadd.f32 0.0, %v1311
        %v1313 = vpop.f32.mrf.mxu0
        %1314 = vmatprep.mubr.f32.mxu0 0.0
        %1315 = vmatmul.mubr.f32.gmra.mxu0 %v1120
        %v1316 = vpop.f32.mrf.mxu0
        %v1317 = vadd.f32 0.0, %v1316
        %v1318 = vpop.f32.mrf.mxu0
        %1319 = vmatprep.mubr.f32.mxu0 0.0
        %1320 = vmatmul.mubr.f32.gmra.mxu0 %v1122
        %v1321 = vpop.f32.mrf.mxu0
        %v1322 = vadd.f32 0.0, %v1321
        %v1323 = vpop.f32.mrf.mxu0
        %1324 = vmatprep.mubr.f32.mxu0 0.0
        %1325 = vmatmul.mubr.f32.gmra.mxu0 %v1124
        %v1326 = vpop.f32.mrf.mxu0
        %v1327 = vadd.f32 0.0, %v1326
        %v1328 = vpop.f32.mrf.mxu0
        %1329 = vmatprep.mubr.f32.mxu0 0.0
        %1330 = vmatmul.mubr.f32.gmra.mxu0 %v1126
        %v1331 = vpop.f32.mrf.mxu0
        %v1332 = vadd.f32 0.0, %v1331
        %v1333 = vpop.f32.mrf.mxu0
        %1334 = vmatprep.mubr.f32.mxu0 0.0
        %1335 = vmatmul.mubr.f32.gmra.mxu0 %v1128
        %v1336 = vpop.f32.mrf.mxu0
        %v1337 = vadd.f32 0.0, %v1336
        %v1338 = vpop.f32.mrf.mxu0
        %1339 = vmatprep.mubr.f32.mxu0 0.0
        %1340 = vmatmul.mubr.f32.gmra.mxu0 %v1130
        %v1341 = vpop.f32.mrf.mxu0
        %v1342 = vadd.f32 0.0, %v1341
        %v1343 = vpop.f32.mrf.mxu0
        %1344 = vmatprep.mubr.f32.mxu0 0.0
        %1345 = vmatmul.mubr.f32.gmra.mxu0 %v1132
        %v1346 = vpop.f32.mrf.mxu0
        %v1347 = vadd.f32 0.0, %v1346
        %v1348 = vpop.f32.mrf.mxu0
        %1349 = vmatprep.mubr.f32.mxu0 0.0
        %1350 = vmatmul.mubr.f32.gmra.mxu0 %v1134
        %v1351 = vpop.f32.mrf.mxu0
        %v1352 = vadd.f32 0.0, %v1351
        %v1353 = vpop.f32.mrf.mxu0
        %1354 = vmatprep.mubr.f32.mxu0 0.0
        %1355 = vmatmul.mubr.f32.gmra.mxu0 %v1136
        %v1356 = vpop.f32.mrf.mxu0
        %v1357 = vadd.f32 0.0, %v1356
        %v1358 = vpop.f32.mrf.mxu0
        %1359 = vmatprep.mubr.f32.mxu0 0.0
        %1360 = vmatmul.mubr.f32.gmra.mxu0 %v1138
        %v1361 = vpop.f32.mrf.mxu0
        %v1362 = vadd.f32 0.0, %v1361
        %v1363 = vpop.f32.mrf.mxu0
        %1364 = vmatprep.mubr.f32.mxu0 0.0
        %1365 = vmatmul.mubr.f32.gmra.mxu0 %v1140
        %v1366 = vpop.f32.mrf.mxu0
        %v1367 = vadd.f32 0.0, %v1366
        %v1368 = vpop.f32.mrf.mxu0
        %1369 = vdwg.mxu0
        %v1370 = vadd.f32 %v837, %v1212
        %v1371 = vadd.f32 %v842, %v1217
        %v1372 = vadd.f32 %v847, %v1222
        %v1373 = vadd.f32 %v852, %v1227
        %v1374 = vadd.f32 %v857, %v1232
        %v1375 = vadd.f32 %v862, %v1237
        %v1376 = vadd.f32 %v867, %v1242
        %v1377 = vadd.f32 %v872, %v1247
        %v1378 = vadd.f32 %v877, %v1252
        %v1379 = vadd.f32 %v882, %v1257
        %v1380 = vadd.f32 %v887, %v1262
        %v1381 = vadd.f32 %v892, %v1267
        %v1382 = vadd.f32 %v897, %v1272
        %v1383 = vadd.f32 %v902, %v1277
        %v1384 = vadd.f32 %v907, %v1282
        %v1385 = vadd.f32 %v912, %v1287
        %v1386 = vadd.f32 %v917, %v1292
        %v1387 = vadd.f32 %v922, %v1297
        %v1388 = vadd.f32 %v927, %v1302
        %v1389 = vadd.f32 %v932, %v1307
        %v1390 = vadd.f32 %v937, %v1312
        %v1391 = vadd.f32 %v942, %v1317
        %v1392 = vadd.f32 %v947, %v1322
        %v1393 = vadd.f32 %v952, %v1327
        %v1394 = vadd.f32 %v957, %v1332
        %v1395 = vadd.f32 %v962, %v1337
        %v1396 = vadd.f32 %v967, %v1342
        %v1397 = vadd.f32 %v972, %v1347
        %v1398 = vadd.f32 %v977, %v1352
        %v1399 = vadd.f32 %v982, %v1357
        %v1400 = vadd.f32 %v987, %v1362
        %v1401 = vadd.f32 %v992, %v1367
        %s1402 = scalar_lea.vmem %s1, 12
        %v1403 = vld [vmem:[%s1402] sm:$0xf]
        %v1405 = vsel %vm409, %v271, 0
        %v1408 = vsel %vm409, %v272, 0
        %v1411 = vsel %vm474, %v1403, 0
        %1413 = vmatprep.subr.mxu0 0.0
        %1414 = vmatpush1.msra.mxu0 0.0
        %1415 = vmatprep.subr.mxu0 0.0
        %1416 = vmatpush1.msra.mxu0 0.0
        %1417 = vmatprep.subr.mxu0 0.0
        %1418 = vmatpush1.msra.mxu0 0.0
        %1419 = vmatprep.subr.mxu0 0.0
        %1420 = vmatpush1.msra.mxu0 0.0
        %1421 = vmatprep.subr.mxu0 0.0
        %1422 = vmatpush1.msra.mxu0 0.0
        %1423 = vmatprep.subr.mxu0 0.0
        %1424 = vmatpush1.msra.mxu0 0.0
        %1425 = vmatprep.subr.mxu0 0.0
        %1426 = vmatpush1.msra.mxu0 0.0
        %1427 = vmatprep.subr.mxu0 0.0
        %1428 = vmatpush1.msra.mxu0 0.0
        %1429 = vmatprep.subr.mxu0 0.0
        %1430 = vmatpush1.msra.mxu0 0.0
        %1431 = vmatprep.subr.mxu0 0.0
        %1432 = vmatpush1.msra.mxu0 0.0
        %1433 = vmatprep.subr.mxu0 0.0
        %1434 = vmatpush1.msra.mxu0 0.0
        %1435 = vmatprep.subr.mxu0 0.0
        %1436 = vmatpush1.msra.mxu0 0.0
        %1437 = vmatprep.subr.mxu0 0.0
        %1438 = vmatpush1.msra.mxu0 0.0
        %1439 = vmatprep.subr.mxu0 0.0
        %1440 = vmatpush1.msra.mxu0 0.0
        %1441 = vmatprep.subr.mxu0 0.0
        %1442 = vmatpush1.msra.mxu0 0.0
        %1443 = vmatprep.subr.mxu0 0.0
        %1444 = vmatpush1.msra.mxu0 %v1411
        %1445 = vmatprep.subr.mxu0 0.0
        %1446 = vmatpush2.msra.mxu0 0.0
        %1447 = vmatprep.subr.mxu0 0.0
        %1448 = vmatpush2.msra.mxu0 0.0
        %1449 = vmatprep.subr.mxu0 0.0
        %1450 = vmatpush2.msra.mxu0 0.0
        %1451 = vmatprep.subr.mxu0 0.0
        %1452 = vmatpush2.msra.mxu0 0.0
        %1453 = vmatprep.subr.mxu0 0.0
        %1454 = vmatpush2.msra.mxu0 0.0
        %1455 = vmatprep.subr.mxu0 0.0
        %1456 = vmatpush2.msra.mxu0 0.0
        %1457 = vmatprep.subr.mxu0 0.0
        %1458 = vmatpush2.msra.mxu0 0.0
        %1459 = vmatprep.subr.mxu0 0.0
        %1460 = vmatpush2.msra.mxu0 0.0
        %1461 = vmatprep.subr.mxu0 0.0
        %1462 = vmatpush2.msra.mxu0 0.0
        %1463 = vmatprep.subr.mxu0 0.0
        %1464 = vmatpush2.msra.mxu0 0.0
        %1465 = vmatprep.subr.mxu0 0.0
        %1466 = vmatpush2.msra.mxu0 0.0
        %1467 = vmatprep.subr.mxu0 0.0
        %1468 = vmatpush2.msra.mxu0 0.0
        %1469 = vmatprep.subr.mxu0 0.0
        %1470 = vmatpush2.msra.mxu0 0.0
        %1471 = vmatprep.subr.mxu0 0.0
        %1472 = vmatpush2.msra.mxu0 0.0
        %1473 = vmatprep.subr.mxu0 0.0
        %1474 = vmatpush2.msra.mxu0 0.0
        %1475 = vmatprep.subr.mxu0 0.0
        %1476 = vmatpush2.msra.mxu0 0.0
        %1477 = vmatprep.mubr.f32.mxu0 0.0
        %1478 = vmatmul.mubr.f32.gmra.mxu0 %v707
        %v1479 = vpop.f32.mrf.mxu0
        %v1480 = vadd.f32 0.0, %v1479
        %v1481 = vpop.f32.mrf.mxu0
        %1482 = vmatprep.mubr.f32.mxu0 0.0
        %1483 = vmatmul.mubr.f32.gmra.mxu0 %v709
        %v1484 = vpop.f32.mrf.mxu0
        %v1485 = vadd.f32 0.0, %v1484
        %v1486 = vpop.f32.mrf.mxu0
        %1487 = vmatprep.mubr.f32.mxu0 0.0
        %1488 = vmatmul.mubr.f32.gmra.mxu0 %v711
        %v1489 = vpop.f32.mrf.mxu0
        %v1490 = vadd.f32 0.0, %v1489
        %v1491 = vpop.f32.mrf.mxu0
        %1492 = vmatprep.mubr.f32.mxu0 0.0
        %1493 = vmatmul.mubr.f32.gmra.mxu0 %v713
        %v1494 = vpop.f32.mrf.mxu0
        %v1495 = vadd.f32 0.0, %v1494
        %v1496 = vpop.f32.mrf.mxu0
        %1497 = vmatprep.mubr.f32.mxu0 0.0
        %1498 = vmatmul.mubr.f32.gmra.mxu0 %v715
        %v1499 = vpop.f32.mrf.mxu0
        %v1500 = vadd.f32 0.0, %v1499
        %v1501 = vpop.f32.mrf.mxu0
        %1502 = vmatprep.mubr.f32.mxu0 0.0
        %1503 = vmatmul.mubr.f32.gmra.mxu0 %v717
        %v1504 = vpop.f32.mrf.mxu0
        %v1505 = vadd.f32 0.0, %v1504
        %v1506 = vpop.f32.mrf.mxu0
        %1507 = vmatprep.mubr.f32.mxu0 0.0
        %1508 = vmatmul.mubr.f32.gmra.mxu0 %v719
        %v1509 = vpop.f32.mrf.mxu0
        %v1510 = vadd.f32 0.0, %v1509
        %v1511 = vpop.f32.mrf.mxu0
        %1512 = vmatprep.mubr.f32.mxu0 0.0
        %1513 = vmatmul.mubr.f32.gmra.mxu0 %v721
        %v1514 = vpop.f32.mrf.mxu0
        %v1515 = vadd.f32 0.0, %v1514
        %v1516 = vpop.f32.mrf.mxu0
        %1517 = vmatprep.mubr.f32.mxu0 0.0
        %1518 = vmatmul.mubr.f32.gmra.mxu0 %v723
        %v1519 = vpop.f32.mrf.mxu0
        %v1520 = vadd.f32 0.0, %v1519
        %v1521 = vpop.f32.mrf.mxu0
        %1522 = vmatprep.mubr.f32.mxu0 0.0
        %1523 = vmatmul.mubr.f32.gmra.mxu0 %v725
        %v1524 = vpop.f32.mrf.mxu0
        %v1525 = vadd.f32 0.0, %v1524
        %v1526 = vpop.f32.mrf.mxu0
        %1527 = vmatprep.mubr.f32.mxu0 0.0
        %1528 = vmatmul.mubr.f32.gmra.mxu0 %v727
        %v1529 = vpop.f32.mrf.mxu0
        %v1530 = vadd.f32 0.0, %v1529
        %v1531 = vpop.f32.mrf.mxu0
        %1532 = vmatprep.mubr.f32.mxu0 0.0
        %1533 = vmatmul.mubr.f32.gmra.mxu0 %v729
        %v1534 = vpop.f32.mrf.mxu0
        %v1535 = vadd.f32 0.0, %v1534
        %v1536 = vpop.f32.mrf.mxu0
        %1537 = vmatprep.mubr.f32.mxu0 0.0
        %1538 = vmatmul.mubr.f32.gmra.mxu0 %v731
        %v1539 = vpop.f32.mrf.mxu0
        %v1540 = vadd.f32 0.0, %v1539
        %v1541 = vpop.f32.mrf.mxu0
        %1542 = vmatprep.mubr.f32.mxu0 0.0
        %1543 = vmatmul.mubr.f32.gmra.mxu0 %v733
        %v1544 = vpop.f32.mrf.mxu0
        %v1545 = vadd.f32 0.0, %v1544
        %v1546 = vpop.f32.mrf.mxu0
        %1547 = vmatprep.mubr.f32.mxu0 0.0
        %1548 = vmatmul.mubr.f32.gmra.mxu0 %v735
        %v1549 = vpop.f32.mrf.mxu0
        %v1550 = vadd.f32 0.0, %v1549
        %v1551 = vpop.f32.mrf.mxu0
        %1552 = vmatprep.mubr.f32.mxu0 0.0
        %1553 = vmatmul.mubr.f32.gmra.mxu0 %v737
        %v1554 = vpop.f32.mrf.mxu0
        %v1555 = vadd.f32 0.0, %v1554
        %v1556 = vpop.f32.mrf.mxu0
        %1557 = vmatprep.mubr.f32.mxu0 0.0
        %1558 = vmatmul.mubr.f32.gmra.mxu0 %v739
        %v1559 = vpop.f32.mrf.mxu0
        %v1560 = vadd.f32 0.0, %v1559
        %v1561 = vpop.f32.mrf.mxu0
        %1562 = vmatprep.mubr.f32.mxu0 0.0
        %1563 = vmatmul.mubr.f32.gmra.mxu0 %v741
        %v1564 = vpop.f32.mrf.mxu0
        %v1565 = vadd.f32 0.0, %v1564
        %v1566 = vpop.f32.mrf.mxu0
        %1567 = vmatprep.mubr.f32.mxu0 0.0
        %1568 = vmatmul.mubr.f32.gmra.mxu0 %v743
        %v1569 = vpop.f32.mrf.mxu0
        %v1570 = vadd.f32 0.0, %v1569
        %v1571 = vpop.f32.mrf.mxu0
        %1572 = vmatprep.mubr.f32.mxu0 0.0
        %1573 = vmatmul.mubr.f32.gmra.mxu0 %v745
        %v1574 = vpop.f32.mrf.mxu0
        %v1575 = vadd.f32 0.0, %v1574
        %v1576 = vpop.f32.mrf.mxu0
        %1577 = vmatprep.mubr.f32.mxu0 0.0
        %1578 = vmatmul.mubr.f32.gmra.mxu0 %v747
        %v1579 = vpop.f32.mrf.mxu0
        %v1580 = vadd.f32 0.0, %v1579
        %v1581 = vpop.f32.mrf.mxu0
        %1582 = vmatprep.mubr.f32.mxu0 0.0
        %1583 = vmatmul.mubr.f32.gmra.mxu0 %v749
        %v1584 = vpop.f32.mrf.mxu0
        %v1585 = vadd.f32 0.0, %v1584
        %v1586 = vpop.f32.mrf.mxu0
        %1587 = vmatprep.mubr.f32.mxu0 0.0
        %1588 = vmatmul.mubr.f32.gmra.mxu0 %v751
        %v1589 = vpop.f32.mrf.mxu0
        %v1590 = vadd.f32 0.0, %v1589
        %v1591 = vpop.f32.mrf.mxu0
        %1592 = vmatprep.mubr.f32.mxu0 0.0
        %1593 = vmatmul.mubr.f32.gmra.mxu0 %v753
        %v1594 = vpop.f32.mrf.mxu0
        %v1595 = vadd.f32 0.0, %v1594
        %v1596 = vpop.f32.mrf.mxu0
        %1597 = vmatprep.mubr.f32.mxu0 0.0
        %1598 = vmatmul.mubr.f32.gmra.mxu0 %v755
        %v1599 = vpop.f32.mrf.mxu0
        %v1600 = vadd.f32 0.0, %v1599
        %v1601 = vpop.f32.mrf.mxu0
        %1602 = vmatprep.mubr.f32.mxu0 0.0
        %1603 = vmatmul.mubr.f32.gmra.mxu0 %v757
        %v1604 = vpop.f32.mrf.mxu0
        %v1605 = vadd.f32 0.0, %v1604
        %v1606 = vpop.f32.mrf.mxu0
        %1607 = vmatprep.mubr.f32.mxu0 0.0
        %1608 = vmatmul.mubr.f32.gmra.mxu0 %v759
        %v1609 = vpop.f32.mrf.mxu0
        %v1610 = vadd.f32 0.0, %v1609
        %v1611 = vpop.f32.mrf.mxu0
        %1612 = vmatprep.mubr.f32.mxu0 0.0
        %1613 = vmatmul.mubr.f32.gmra.mxu0 %v761
        %v1614 = vpop.f32.mrf.mxu0
        %v1615 = vadd.f32 0.0, %v1614
        %v1616 = vpop.f32.mrf.mxu0
        %1617 = vmatprep.mubr.f32.mxu0 0.0
        %1618 = vmatmul.mubr.f32.gmra.mxu0 %v763
        %v1619 = vpop.f32.mrf.mxu0
        %v1620 = vadd.f32 0.0, %v1619
        %v1621 = vpop.f32.mrf.mxu0
        %1622 = vmatprep.mubr.f32.mxu0 0.0
        %1623 = vmatmul.mubr.f32.gmra.mxu0 %v765
        %v1624 = vpop.f32.mrf.mxu0
        %v1625 = vadd.f32 0.0, %v1624
        %v1626 = vpop.f32.mrf.mxu0
        %1627 = vmatprep.mubr.f32.mxu0 0.0
        %1628 = vmatmul.mubr.f32.gmra.mxu0 %v1405
        %v1629 = vpop.f32.mrf.mxu0
        %v1630 = vadd.f32 0.0, %v1629
        %v1631 = vpop.f32.mrf.mxu0
        %1632 = vmatprep.mubr.f32.mxu0 0.0
        %1633 = vmatmul.mubr.f32.gmra.mxu0 %v1408
        %v1634 = vpop.f32.mrf.mxu0
        %v1635 = vadd.f32 0.0, %v1634
        %v1636 = vpop.f32.mrf.mxu0
        %1637 = vdwg.mxu0
        %v1638 = vadd.f32 %v1370, %v1480
        %v1639 = vadd.f32 %v1371, %v1485
        %v1640 = vadd.f32 %v1372, %v1490
        %v1641 = vadd.f32 %v1373, %v1495
        %v1642 = vadd.f32 %v1374, %v1500
        %v1643 = vadd.f32 %v1375, %v1505
        %v1644 = vadd.f32 %v1376, %v1510
        %v1645 = vadd.f32 %v1377, %v1515
        %v1646 = vadd.f32 %v1378, %v1520
        %v1647 = vadd.f32 %v1379, %v1525
        %v1648 = vadd.f32 %v1380, %v1530
        %v1649 = vadd.f32 %v1381, %v1535
        %v1650 = vadd.f32 %v1382, %v1540
        %v1651 = vadd.f32 %v1383, %v1545
        %v1652 = vadd.f32 %v1384, %v1550
        %v1653 = vadd.f32 %v1385, %v1555
        %v1654 = vadd.f32 %v1386, %v1560
        %v1655 = vadd.f32 %v1387, %v1565
        %v1656 = vadd.f32 %v1388, %v1570
        %v1657 = vadd.f32 %v1389, %v1575
        %v1658 = vadd.f32 %v1390, %v1580
        %v1659 = vadd.f32 %v1391, %v1585
        %v1660 = vadd.f32 %v1392, %v1590
        %v1661 = vadd.f32 %v1393, %v1595
        %v1662 = vadd.f32 %v1394, %v1600
        %v1663 = vadd.f32 %v1395, %v1605
        %v1664 = vadd.f32 %v1396, %v1610
        %v1665 = vadd.f32 %v1397, %v1615
        %v1666 = vadd.f32 %v1398, %v1620
        %v1667 = vadd.f32 %v1399, %v1625
        %v1668 = vadd.f32 %v1400, %v1630
        %v1669 = vadd.f32 %v1401, %v1635
        %v1671 = vrot.slane %v271, 1
        %v1672 = vrot.slane %v272, 1
        %v1673 = vsel %vm326, %v1671, %v1672
        %v1674 = vrot.slane %v273, 1
        %v1675 = vsel %vm326, %v1672, %v1674
        %s1676 = scalar_lea.vmem %s1, 16
        %v1677 = vld [vmem:[%s1676] sm:$0xf]
        %v1678 = vsel %vm409, %v1673, 0
        %v1680 = vsel %vm409, %v1675, 0
        %v1683 = vsel %vm474, %v1677, 0
        %1685 = vmatprep.subr.mxu0 0.0
        %1686 = vmatpush1.msra.mxu0 0.0
        %1687 = vmatprep.subr.mxu0 0.0
        %1688 = vmatpush1.msra.mxu0 0.0
        %1689 = vmatprep.subr.mxu0 0.0
        %1690 = vmatpush1.msra.mxu0 0.0
        %1691 = vmatprep.subr.mxu0 0.0
        %1692 = vmatpush1.msra.mxu0 0.0
        %1693 = vmatprep.subr.mxu0 0.0
        %1694 = vmatpush1.msra.mxu0 0.0
        %1695 = vmatprep.subr.mxu0 0.0
        %1696 = vmatpush1.msra.mxu0 0.0
        %1697 = vmatprep.subr.mxu0 0.0
        %1698 = vmatpush1.msra.mxu0 0.0
        %1699 = vmatprep.subr.mxu0 0.0
        %1700 = vmatpush1.msra.mxu0 0.0
        %1701 = vmatprep.subr.mxu0 0.0
        %1702 = vmatpush1.msra.mxu0 0.0
        %1703 = vmatprep.subr.mxu0 0.0
        %1704 = vmatpush1.msra.mxu0 0.0
        %1705 = vmatprep.subr.mxu0 0.0
        %1706 = vmatpush1.msra.mxu0 0.0
        %1707 = vmatprep.subr.mxu0 0.0
        %1708 = vmatpush1.msra.mxu0 0.0
        %1709 = vmatprep.subr.mxu0 0.0
        %1710 = vmatpush1.msra.mxu0 0.0
        %1711 = vmatprep.subr.mxu0 0.0
        %1712 = vmatpush1.msra.mxu0 0.0
        %1713 = vmatprep.subr.mxu0 0.0
        %1714 = vmatpush1.msra.mxu0 0.0
        %1715 = vmatprep.subr.mxu0 0.0
        %1716 = vmatpush1.msra.mxu0 %v1683
        %1717 = vmatprep.subr.mxu0 0.0
        %1718 = vmatpush2.msra.mxu0 0.0
        %1719 = vmatprep.subr.mxu0 0.0
        %1720 = vmatpush2.msra.mxu0 0.0
        %1721 = vmatprep.subr.mxu0 0.0
        %1722 = vmatpush2.msra.mxu0 0.0
        %1723 = vmatprep.subr.mxu0 0.0
        %1724 = vmatpush2.msra.mxu0 0.0
        %1725 = vmatprep.subr.mxu0 0.0
        %1726 = vmatpush2.msra.mxu0 0.0
        %1727 = vmatprep.subr.mxu0 0.0
        %1728 = vmatpush2.msra.mxu0 0.0
        %1729 = vmatprep.subr.mxu0 0.0
        %1730 = vmatpush2.msra.mxu0 0.0
        %1731 = vmatprep.subr.mxu0 0.0
        %1732 = vmatpush2.msra.mxu0 0.0
        %1733 = vmatprep.subr.mxu0 0.0
        %1734 = vmatpush2.msra.mxu0 0.0
        %1735 = vmatprep.subr.mxu0 0.0
        %1736 = vmatpush2.msra.mxu0 0.0
        %1737 = vmatprep.subr.mxu0 0.0
        %1738 = vmatpush2.msra.mxu0 0.0
        %1739 = vmatprep.subr.mxu0 0.0
        %1740 = vmatpush2.msra.mxu0 0.0
        %1741 = vmatprep.subr.mxu0 0.0
        %1742 = vmatpush2.msra.mxu0 0.0
        %1743 = vmatprep.subr.mxu0 0.0
        %1744 = vmatpush2.msra.mxu0 0.0
        %1745 = vmatprep.subr.mxu0 0.0
        %1746 = vmatpush2.msra.mxu0 0.0
        %1747 = vmatprep.subr.mxu0 0.0
        %1748 = vmatpush2.msra.mxu0 0.0
        %1749 = vmatprep.mubr.f32.mxu0 0.0
        %1750 = vmatmul.mubr.f32.gmra.mxu0 %v414
        %v1751 = vpop.f32.mrf.mxu0
        %v1752 = vadd.f32 0.0, %v1751
        %v1753 = vpop.f32.mrf.mxu0
        %1754 = vmatprep.mubr.f32.mxu0 0.0
        %1755 = vmatmul.mubr.f32.gmra.mxu0 %v416
        %v1756 = vpop.f32.mrf.mxu0
        %v1757 = vadd.f32 0.0, %v1756
        %v1758 = vpop.f32.mrf.mxu0
        %1759 = vmatprep.mubr.f32.mxu0 0.0
        %1760 = vmatmul.mubr.f32.gmra.mxu0 %v418
        %v1761 = vpop.f32.mrf.mxu0
        %v1762 = vadd.f32 0.0, %v1761
        %v1763 = vpop.f32.mrf.mxu0
        %1764 = vmatprep.mubr.f32.mxu0 0.0
        %1765 = vmatmul.mubr.f32.gmra.mxu0 %v420
        %v1766 = vpop.f32.mrf.mxu0
        %v1767 = vadd.f32 0.0, %v1766
        %v1768 = vpop.f32.mrf.mxu0
        %1769 = vmatprep.mubr.f32.mxu0 0.0
        %1770 = vmatmul.mubr.f32.gmra.mxu0 %v422
        %v1771 = vpop.f32.mrf.mxu0
        %v1772 = vadd.f32 0.0, %v1771
        %v1773 = vpop.f32.mrf.mxu0
        %1774 = vmatprep.mubr.f32.mxu0 0.0
        %1775 = vmatmul.mubr.f32.gmra.mxu0 %v424
        %v1776 = vpop.f32.mrf.mxu0
        %v1777 = vadd.f32 0.0, %v1776
        %v1778 = vpop.f32.mrf.mxu0
        %1779 = vmatprep.mubr.f32.mxu0 0.0
        %1780 = vmatmul.mubr.f32.gmra.mxu0 %v426
        %v1781 = vpop.f32.mrf.mxu0
        %v1782 = vadd.f32 0.0, %v1781
        %v1783 = vpop.f32.mrf.mxu0
        %1784 = vmatprep.mubr.f32.mxu0 0.0
        %1785 = vmatmul.mubr.f32.gmra.mxu0 %v428
        %v1786 = vpop.f32.mrf.mxu0
        %v1787 = vadd.f32 0.0, %v1786
        %v1788 = vpop.f32.mrf.mxu0
        %1789 = vmatprep.mubr.f32.mxu0 0.0
        %1790 = vmatmul.mubr.f32.gmra.mxu0 %v430
        %v1791 = vpop.f32.mrf.mxu0
        %v1792 = vadd.f32 0.0, %v1791
        %v1793 = vpop.f32.mrf.mxu0
        %1794 = vmatprep.mubr.f32.mxu0 0.0
        %1795 = vmatmul.mubr.f32.gmra.mxu0 %v432
        %v1796 = vpop.f32.mrf.mxu0
        %v1797 = vadd.f32 0.0, %v1796
        %v1798 = vpop.f32.mrf.mxu0
        %1799 = vmatprep.mubr.f32.mxu0 0.0
        %1800 = vmatmul.mubr.f32.gmra.mxu0 %v434
        %v1801 = vpop.f32.mrf.mxu0
        %v1802 = vadd.f32 0.0, %v1801
        %v1803 = vpop.f32.mrf.mxu0
        %1804 = vmatprep.mubr.f32.mxu0 0.0
        %1805 = vmatmul.mubr.f32.gmra.mxu0 %v436
        %v1806 = vpop.f32.mrf.mxu0
        %v1807 = vadd.f32 0.0, %v1806
        %v1808 = vpop.f32.mrf.mxu0
        %1809 = vmatprep.mubr.f32.mxu0 0.0
        %1810 = vmatmul.mubr.f32.gmra.mxu0 %v438
        %v1811 = vpop.f32.mrf.mxu0
        %v1812 = vadd.f32 0.0, %v1811
        %v1813 = vpop.f32.mrf.mxu0
        %1814 = vmatprep.mubr.f32.mxu0 0.0
        %1815 = vmatmul.mubr.f32.gmra.mxu0 %v440
        %v1816 = vpop.f32.mrf.mxu0
        %v1817 = vadd.f32 0.0, %v1816
        %v1818 = vpop.f32.mrf.mxu0
        %1819 = vmatprep.mubr.f32.mxu0 0.0
        %1820 = vmatmul.mubr.f32.gmra.mxu0 %v442
        %v1821 = vpop.f32.mrf.mxu0
        %v1822 = vadd.f32 0.0, %v1821
        %v1823 = vpop.f32.mrf.mxu0
        %1824 = vmatprep.mubr.f32.mxu0 0.0
        %1825 = vmatmul.mubr.f32.gmra.mxu0 %v444
        %v1826 = vpop.f32.mrf.mxu0
        %v1827 = vadd.f32 0.0, %v1826
        %v1828 = vpop.f32.mrf.mxu0
        %1829 = vmatprep.mubr.f32.mxu0 0.0
        %1830 = vmatmul.mubr.f32.gmra.mxu0 %v446
        %v1831 = vpop.f32.mrf.mxu0
        %v1832 = vadd.f32 0.0, %v1831
        %v1833 = vpop.f32.mrf.mxu0
        %1834 = vmatprep.mubr.f32.mxu0 0.0
        %1835 = vmatmul.mubr.f32.gmra.mxu0 %v448
        %v1836 = vpop.f32.mrf.mxu0
        %v1837 = vadd.f32 0.0, %v1836
        %v1838 = vpop.f32.mrf.mxu0
        %1839 = vmatprep.mubr.f32.mxu0 0.0
        %1840 = vmatmul.mubr.f32.gmra.mxu0 %v450
        %v1841 = vpop.f32.mrf.mxu0
        %v1842 = vadd.f32 0.0, %v1841
        %v1843 = vpop.f32.mrf.mxu0
        %1844 = vmatprep.mubr.f32.mxu0 0.0
        %1845 = vmatmul.mubr.f32.gmra.mxu0 %v452
        %v1846 = vpop.f32.mrf.mxu0
        %v1847 = vadd.f32 0.0, %v1846
        %v1848 = vpop.f32.mrf.mxu0
        %1849 = vmatprep.mubr.f32.mxu0 0.0
        %1850 = vmatmul.mubr.f32.gmra.mxu0 %v454
        %v1851 = vpop.f32.mrf.mxu0
        %v1852 = vadd.f32 0.0, %v1851
        %v1853 = vpop.f32.mrf.mxu0
        %1854 = vmatprep.mubr.f32.mxu0 0.0
        %1855 = vmatmul.mubr.f32.gmra.mxu0 %v456
        %v1856 = vpop.f32.mrf.mxu0
        %v1857 = vadd.f32 0.0, %v1856
        %v1858 = vpop.f32.mrf.mxu0
        %1859 = vmatprep.mubr.f32.mxu0 0.0
        %1860 = vmatmul.mubr.f32.gmra.mxu0 %v458
        %v1861 = vpop.f32.mrf.mxu0
        %v1862 = vadd.f32 0.0, %v1861
        %v1863 = vpop.f32.mrf.mxu0
        %1864 = vmatprep.mubr.f32.mxu0 0.0
        %1865 = vmatmul.mubr.f32.gmra.mxu0 %v460
        %v1866 = vpop.f32.mrf.mxu0
        %v1867 = vadd.f32 0.0, %v1866
        %v1868 = vpop.f32.mrf.mxu0
        %1869 = vmatprep.mubr.f32.mxu0 0.0
        %1870 = vmatmul.mubr.f32.gmra.mxu0 %v462
        %v1871 = vpop.f32.mrf.mxu0
        %v1872 = vadd.f32 0.0, %v1871
        %v1873 = vpop.f32.mrf.mxu0
        %1874 = vmatprep.mubr.f32.mxu0 0.0
        %1875 = vmatmul.mubr.f32.gmra.mxu0 %v464
        %v1876 = vpop.f32.mrf.mxu0
        %v1877 = vadd.f32 0.0, %v1876
        %v1878 = vpop.f32.mrf.mxu0
        %1879 = vmatprep.mubr.f32.mxu0 0.0
        %1880 = vmatmul.mubr.f32.gmra.mxu0 %v466
        %v1881 = vpop.f32.mrf.mxu0
        %v1882 = vadd.f32 0.0, %v1881
        %v1883 = vpop.f32.mrf.mxu0
        %1884 = vmatprep.mubr.f32.mxu0 0.0
        %1885 = vmatmul.mubr.f32.gmra.mxu0 %v468
        %v1886 = vpop.f32.mrf.mxu0
        %v1887 = vadd.f32 0.0, %v1886
        %v1888 = vpop.f32.mrf.mxu0
        %1889 = vmatprep.mubr.f32.mxu0 0.0
        %1890 = vmatmul.mubr.f32.gmra.mxu0 %v470
        %v1891 = vpop.f32.mrf.mxu0
        %v1892 = vadd.f32 0.0, %v1891
        %v1893 = vpop.f32.mrf.mxu0
        %1894 = vmatprep.mubr.f32.mxu0 0.0
        %1895 = vmatmul.mubr.f32.gmra.mxu0 %v472
        %v1896 = vpop.f32.mrf.mxu0
        %v1897 = vadd.f32 0.0, %v1896
        %v1898 = vpop.f32.mrf.mxu0
        %1899 = vmatprep.mubr.f32.mxu0 0.0
        %1900 = vmatmul.mubr.f32.gmra.mxu0 %v1678
        %v1901 = vpop.f32.mrf.mxu0
        %v1902 = vadd.f32 0.0, %v1901
        %v1903 = vpop.f32.mrf.mxu0
        %1904 = vmatprep.mubr.f32.mxu0 0.0
        %1905 = vmatmul.mubr.f32.gmra.mxu0 %v1680
        %v1906 = vpop.f32.mrf.mxu0
        %v1907 = vadd.f32 0.0, %v1906
        %v1908 = vpop.f32.mrf.mxu0
        %1909 = vdwg.mxu0
        %v1910 = vadd.f32 %v1638, %v1752
        %v1911 = vadd.f32 %v1639, %v1757
        %v1912 = vadd.f32 %v1640, %v1762
        %v1913 = vadd.f32 %v1641, %v1767
        %v1914 = vadd.f32 %v1642, %v1772
        %v1915 = vadd.f32 %v1643, %v1777
        %v1916 = vadd.f32 %v1644, %v1782
        %v1917 = vadd.f32 %v1645, %v1787
        %v1918 = vadd.f32 %v1646, %v1792
        %v1919 = vadd.f32 %v1647, %v1797
        %v1920 = vadd.f32 %v1648, %v1802
        %v1921 = vadd.f32 %v1649, %v1807
        %v1922 = vadd.f32 %v1650, %v1812
        %v1923 = vadd.f32 %v1651, %v1817
        %v1924 = vadd.f32 %v1652, %v1822
        %v1925 = vadd.f32 %v1653, %v1827
        %v1926 = vadd.f32 %v1654, %v1832
        %v1927 = vadd.f32 %v1655, %v1837
        %v1928 = vadd.f32 %v1656, %v1842
        %v1929 = vadd.f32 %v1657, %v1847
        %v1930 = vadd.f32 %v1658, %v1852
        %v1931 = vadd.f32 %v1659, %v1857
        %v1932 = vadd.f32 %v1660, %v1862
        %v1933 = vadd.f32 %v1661, %v1867
        %v1934 = vadd.f32 %v1662, %v1872
        %v1935 = vadd.f32 %v1663, %v1877
        %v1936 = vadd.f32 %v1664, %v1882
        %v1937 = vadd.f32 %v1665, %v1887
        %v1938 = vadd.f32 %v1666, %v1892
        %v1939 = vadd.f32 %v1667, %v1897
        %v1940 = vadd.f32 %v1668, %v1902
        %v1941 = vadd.f32 %v1669, %v1907
        %v1942 = vrot.slane %v271, 2
        %v1943 = vrot.slane %v272, 2
        %v1944 = vsel %vm995, %v1942, %v1943
        %v1945 = vrot.slane %v273, 2
        %v1946 = vsel %vm995, %v1943, %v1945
        %s1947 = scalar_lea.vmem %s1, 20
        %v1948 = vld [vmem:[%s1947] sm:$0xf]
        %v1949 = vsel %vm409, %v1944, 0
        %v1951 = vsel %vm409, %v1946, 0
        %v1954 = vsel %vm474, %v1948, 0
        %1956 = vmatprep.subr.mxu0 0.0
        %1957 = vmatpush1.msra.mxu0 0.0
        %1958 = vmatprep.subr.mxu0 0.0
        %1959 = vmatpush1.msra.mxu0 0.0
        %1960 = vmatprep.subr.mxu0 0.0
        %1961 = vmatpush1.msra.mxu0 0.0
        %1962 = vmatprep.subr.mxu0 0.0
        %1963 = vmatpush1.msra.mxu0 0.0
        %1964 = vmatprep.subr.mxu0 0.0
        %1965 = vmatpush1.msra.mxu0 0.0
        %1966 = vmatprep.subr.mxu0 0.0
        %1967 = vmatpush1.msra.mxu0 0.0
        %1968 = vmatprep.subr.mxu0 0.0
        %1969 = vmatpush1.msra.mxu0 0.0
        %1970 = vmatprep.subr.mxu0 0.0
        %1971 = vmatpush1.msra.mxu0 0.0
        %1972 = vmatprep.subr.mxu0 0.0
        %1973 = vmatpush1.msra.mxu0 0.0
        %1974 = vmatprep.subr.mxu0 0.0
        %1975 = vmatpush1.msra.mxu0 0.0
        %1976 = vmatprep.subr.mxu0 0.0
        %1977 = vmatpush1.msra.mxu0 0.0
        %1978 = vmatprep.subr.mxu0 0.0
        %1979 = vmatpush1.msra.mxu0 0.0
        %1980 = vmatprep.subr.mxu0 0.0
        %1981 = vmatpush1.msra.mxu0 0.0
        %1982 = vmatprep.subr.mxu0 0.0
        %1983 = vmatpush1.msra.mxu0 0.0
        %1984 = vmatprep.subr.mxu0 0.0
        %1985 = vmatpush1.msra.mxu0 0.0
        %1986 = vmatprep.subr.mxu0 0.0
        %1987 = vmatpush1.msra.mxu0 %v1954
        %1988 = vmatprep.subr.mxu0 0.0
        %1989 = vmatpush2.msra.mxu0 0.0
        %1990 = vmatprep.subr.mxu0 0.0
        %1991 = vmatpush2.msra.mxu0 0.0
        %1992 = vmatprep.subr.mxu0 0.0
        %1993 = vmatpush2.msra.mxu0 0.0
        %1994 = vmatprep.subr.mxu0 0.0
        %1995 = vmatpush2.msra.mxu0 0.0
        %1996 = vmatprep.subr.mxu0 0.0
        %1997 = vmatpush2.msra.mxu0 0.0
        %1998 = vmatprep.subr.mxu0 0.0
        %1999 = vmatpush2.msra.mxu0 0.0
        %2000 = vmatprep.subr.mxu0 0.0
        %2001 = vmatpush2.msra.mxu0 0.0
        %2002 = vmatprep.subr.mxu0 0.0
        %2003 = vmatpush2.msra.mxu0 0.0
        %2004 = vmatprep.subr.mxu0 0.0
        %2005 = vmatpush2.msra.mxu0 0.0
        %2006 = vmatprep.subr.mxu0 0.0
        %2007 = vmatpush2.msra.mxu0 0.0
        %2008 = vmatprep.subr.mxu0 0.0
        %2009 = vmatpush2.msra.mxu0 0.0
        %2010 = vmatprep.subr.mxu0 0.0
        %2011 = vmatpush2.msra.mxu0 0.0
        %2012 = vmatprep.subr.mxu0 0.0
        %2013 = vmatpush2.msra.mxu0 0.0
        %2014 = vmatprep.subr.mxu0 0.0
        %2015 = vmatpush2.msra.mxu0 0.0
        %2016 = vmatprep.subr.mxu0 0.0
        %2017 = vmatpush2.msra.mxu0 0.0
        %2018 = vmatprep.subr.mxu0 0.0
        %2019 = vmatpush2.msra.mxu0 0.0
        %2020 = vmatprep.mubr.f32.mxu0 0.0
        %2021 = vmatmul.mubr.f32.gmra.mxu0 %v1082
        %v2022 = vpop.f32.mrf.mxu0
        %v2023 = vadd.f32 0.0, %v2022
        %v2024 = vpop.f32.mrf.mxu0
        %2025 = vmatprep.mubr.f32.mxu0 0.0
        %2026 = vmatmul.mubr.f32.gmra.mxu0 %v1084
        %v2027 = vpop.f32.mrf.mxu0
        %v2028 = vadd.f32 0.0, %v2027
        %v2029 = vpop.f32.mrf.mxu0
        %2030 = vmatprep.mubr.f32.mxu0 0.0
        %2031 = vmatmul.mubr.f32.gmra.mxu0 %v1086
        %v2032 = vpop.f32.mrf.mxu0
        %v2033 = vadd.f32 0.0, %v2032
        %v2034 = vpop.f32.mrf.mxu0
        %2035 = vmatprep.mubr.f32.mxu0 0.0
        %2036 = vmatmul.mubr.f32.gmra.mxu0 %v1088
        %v2037 = vpop.f32.mrf.mxu0
        %v2038 = vadd.f32 0.0, %v2037
        %v2039 = vpop.f32.mrf.mxu0
        %2040 = vmatprep.mubr.f32.mxu0 0.0
        %2041 = vmatmul.mubr.f32.gmra.mxu0 %v1090
        %v2042 = vpop.f32.mrf.mxu0
        %v2043 = vadd.f32 0.0, %v2042
        %v2044 = vpop.f32.mrf.mxu0
        %2045 = vmatprep.mubr.f32.mxu0 0.0
        %2046 = vmatmul.mubr.f32.gmra.mxu0 %v1092
        %v2047 = vpop.f32.mrf.mxu0
        %v2048 = vadd.f32 0.0, %v2047
        %v2049 = vpop.f32.mrf.mxu0
        %2050 = vmatprep.mubr.f32.mxu0 0.0
        %2051 = vmatmul.mubr.f32.gmra.mxu0 %v1094
        %v2052 = vpop.f32.mrf.mxu0
        %v2053 = vadd.f32 0.0, %v2052
        %v2054 = vpop.f32.mrf.mxu0
        %2055 = vmatprep.mubr.f32.mxu0 0.0
        %2056 = vmatmul.mubr.f32.gmra.mxu0 %v1096
        %v2057 = vpop.f32.mrf.mxu0
        %v2058 = vadd.f32 0.0, %v2057
        %v2059 = vpop.f32.mrf.mxu0
        %2060 = vmatprep.mubr.f32.mxu0 0.0
        %2061 = vmatmul.mubr.f32.gmra.mxu0 %v1098
        %v2062 = vpop.f32.mrf.mxu0
        %v2063 = vadd.f32 0.0, %v2062
        %v2064 = vpop.f32.mrf.mxu0
        %2065 = vmatprep.mubr.f32.mxu0 0.0
        %2066 = vmatmul.mubr.f32.gmra.mxu0 %v1100
        %v2067 = vpop.f32.mrf.mxu0
        %v2068 = vadd.f32 0.0, %v2067
        %v2069 = vpop.f32.mrf.mxu0
        %2070 = vmatprep.mubr.f32.mxu0 0.0
        %2071 = vmatmul.mubr.f32.gmra.mxu0 %v1102
        %v2072 = vpop.f32.mrf.mxu0
        %v2073 = vadd.f32 0.0, %v2072
        %v2074 = vpop.f32.mrf.mxu0
        %2075 = vmatprep.mubr.f32.mxu0 0.0
        %2076 = vmatmul.mubr.f32.gmra.mxu0 %v1104
        %v2077 = vpop.f32.mrf.mxu0
        %v2078 = vadd.f32 0.0, %v2077
        %v2079 = vpop.f32.mrf.mxu0
        %2080 = vmatprep.mubr.f32.mxu0 0.0
        %2081 = vmatmul.mubr.f32.gmra.mxu0 %v1106
        %v2082 = vpop.f32.mrf.mxu0
        %v2083 = vadd.f32 0.0, %v2082
        %v2084 = vpop.f32.mrf.mxu0
        %2085 = vmatprep.mubr.f32.mxu0 0.0
        %2086 = vmatmul.mubr.f32.gmra.mxu0 %v1108
        %v2087 = vpop.f32.mrf.mxu0
        %v2088 = vadd.f32 0.0, %v2087
        %v2089 = vpop.f32.mrf.mxu0
        %2090 = vmatprep.mubr.f32.mxu0 0.0
        %2091 = vmatmul.mubr.f32.gmra.mxu0 %v1110
        %v2092 = vpop.f32.mrf.mxu0
        %v2093 = vadd.f32 0.0, %v2092
        %v2094 = vpop.f32.mrf.mxu0
        %2095 = vmatprep.mubr.f32.mxu0 0.0
        %2096 = vmatmul.mubr.f32.gmra.mxu0 %v1112
        %v2097 = vpop.f32.mrf.mxu0
        %v2098 = vadd.f32 0.0, %v2097
        %v2099 = vpop.f32.mrf.mxu0
        %2100 = vmatprep.mubr.f32.mxu0 0.0
        %2101 = vmatmul.mubr.f32.gmra.mxu0 %v1114
        %v2102 = vpop.f32.mrf.mxu0
        %v2103 = vadd.f32 0.0, %v2102
        %v2104 = vpop.f32.mrf.mxu0
        %2105 = vmatprep.mubr.f32.mxu0 0.0
        %2106 = vmatmul.mubr.f32.gmra.mxu0 %v1116
        %v2107 = vpop.f32.mrf.mxu0
        %v2108 = vadd.f32 0.0, %v2107
        %v2109 = vpop.f32.mrf.mxu0
        %2110 = vmatprep.mubr.f32.mxu0 0.0
        %2111 = vmatmul.mubr.f32.gmra.mxu0 %v1118
        %v2112 = vpop.f32.mrf.mxu0
        %v2113 = vadd.f32 0.0, %v2112
        %v2114 = vpop.f32.mrf.mxu0
        %2115 = vmatprep.mubr.f32.mxu0 0.0
        %2116 = vmatmul.mubr.f32.gmra.mxu0 %v1120
        %v2117 = vpop.f32.mrf.mxu0
        %v2118 = vadd.f32 0.0, %v2117
        %v2119 = vpop.f32.mrf.mxu0
        %2120 = vmatprep.mubr.f32.mxu0 0.0
        %2121 = vmatmul.mubr.f32.gmra.mxu0 %v1122
        %v2122 = vpop.f32.mrf.mxu0
        %v2123 = vadd.f32 0.0, %v2122
        %v2124 = vpop.f32.mrf.mxu0
        %2125 = vmatprep.mubr.f32.mxu0 0.0
        %2126 = vmatmul.mubr.f32.gmra.mxu0 %v1124
        %v2127 = vpop.f32.mrf.mxu0
        %v2128 = vadd.f32 0.0, %v2127
        %v2129 = vpop.f32.mrf.mxu0
        %2130 = vmatprep.mubr.f32.mxu0 0.0
        %2131 = vmatmul.mubr.f32.gmra.mxu0 %v1126
        %v2132 = vpop.f32.mrf.mxu0
        %v2133 = vadd.f32 0.0, %v2132
        %v2134 = vpop.f32.mrf.mxu0
        %2135 = vmatprep.mubr.f32.mxu0 0.0
        %2136 = vmatmul.mubr.f32.gmra.mxu0 %v1128
        %v2137 = vpop.f32.mrf.mxu0
        %v2138 = vadd.f32 0.0, %v2137
        %v2139 = vpop.f32.mrf.mxu0
        %2140 = vmatprep.mubr.f32.mxu0 0.0
        %2141 = vmatmul.mubr.f32.gmra.mxu0 %v1130
        %v2142 = vpop.f32.mrf.mxu0
        %v2143 = vadd.f32 0.0, %v2142
        %v2144 = vpop.f32.mrf.mxu0
        %2145 = vmatprep.mubr.f32.mxu0 0.0
        %2146 = vmatmul.mubr.f32.gmra.mxu0 %v1132
        %v2147 = vpop.f32.mrf.mxu0
        %v2148 = vadd.f32 0.0, %v2147
        %v2149 = vpop.f32.mrf.mxu0
        %2150 = vmatprep.mubr.f32.mxu0 0.0
        %2151 = vmatmul.mubr.f32.gmra.mxu0 %v1134
        %v2152 = vpop.f32.mrf.mxu0
        %v2153 = vadd.f32 0.0, %v2152
        %v2154 = vpop.f32.mrf.mxu0
        %2155 = vmatprep.mubr.f32.mxu0 0.0
        %2156 = vmatmul.mubr.f32.gmra.mxu0 %v1136
        %v2157 = vpop.f32.mrf.mxu0
        %v2158 = vadd.f32 0.0, %v2157
        %v2159 = vpop.f32.mrf.mxu0
        %2160 = vmatprep.mubr.f32.mxu0 0.0
        %2161 = vmatmul.mubr.f32.gmra.mxu0 %v1138
        %v2162 = vpop.f32.mrf.mxu0
        %v2163 = vadd.f32 0.0, %v2162
        %v2164 = vpop.f32.mrf.mxu0
        %2165 = vmatprep.mubr.f32.mxu0 0.0
        %2166 = vmatmul.mubr.f32.gmra.mxu0 %v1140
        %v2167 = vpop.f32.mrf.mxu0
        %v2168 = vadd.f32 0.0, %v2167
        %v2169 = vpop.f32.mrf.mxu0
        %2170 = vmatprep.mubr.f32.mxu0 0.0
        %2171 = vmatmul.mubr.f32.gmra.mxu0 %v1949
        %v2172 = vpop.f32.mrf.mxu0
        %v2173 = vadd.f32 0.0, %v2172
        %v2174 = vpop.f32.mrf.mxu0
        %2175 = vmatprep.mubr.f32.mxu0 0.0
        %2176 = vmatmul.mubr.f32.gmra.mxu0 %v1951
        %v2177 = vpop.f32.mrf.mxu0
        %v2178 = vadd.f32 0.0, %v2177
        %v2179 = vpop.f32.mrf.mxu0
        %2180 = vdwg.mxu0
        %v2181 = vadd.f32 %v1910, %v2023
        %v2182 = vadd.f32 %v1911, %v2028
        %v2183 = vadd.f32 %v1912, %v2033
        %v2184 = vadd.f32 %v1913, %v2038
        %v2185 = vadd.f32 %v1914, %v2043
        %v2186 = vadd.f32 %v1915, %v2048
        %v2187 = vadd.f32 %v1916, %v2053
        %v2188 = vadd.f32 %v1917, %v2058
        %v2189 = vadd.f32 %v1918, %v2063
        %v2190 = vadd.f32 %v1919, %v2068
        %v2191 = vadd.f32 %v1920, %v2073
        %v2192 = vadd.f32 %v1921, %v2078
        %v2193 = vadd.f32 %v1922, %v2083
        %v2194 = vadd.f32 %v1923, %v2088
        %v2195 = vadd.f32 %v1924, %v2093
        %v2196 = vadd.f32 %v1925, %v2098
        %v2197 = vadd.f32 %v1926, %v2103
        %v2198 = vadd.f32 %v1927, %v2108
        %v2199 = vadd.f32 %v1928, %v2113
        %v2200 = vadd.f32 %v1929, %v2118
        %v2201 = vadd.f32 %v1930, %v2123
        %v2202 = vadd.f32 %v1931, %v2128
        %v2203 = vadd.f32 %v1932, %v2133
        %v2204 = vadd.f32 %v1933, %v2138
        %v2205 = vadd.f32 %v1934, %v2143
        %v2206 = vadd.f32 %v1935, %v2148
        %v2207 = vadd.f32 %v1936, %v2153
        %v2208 = vadd.f32 %v1937, %v2158
        %v2209 = vadd.f32 %v1938, %v2163
        %v2210 = vadd.f32 %v1939, %v2168
        %v2211 = vadd.f32 %v1940, %v2173
        %v2212 = vadd.f32 %v1941, %v2178
        %s2213 = scalar_lea.vmem %s1, 24
        %v2214 = vld [vmem:[%s2213] sm:$0xf]
        %v2216 = vsel %vm409, %v274, 0
        %v2219 = vsel %vm409, %v275, 0
        %v2222 = vsel %vm474, %v2214, 0
        %2224 = vmatprep.subr.mxu0 0.0
        %2225 = vmatpush1.msra.mxu0 0.0
        %2226 = vmatprep.subr.mxu0 0.0
        %2227 = vmatpush1.msra.mxu0 0.0
        %2228 = vmatprep.subr.mxu0 0.0
        %2229 = vmatpush1.msra.mxu0 0.0
        %2230 = vmatprep.subr.mxu0 0.0
        %2231 = vmatpush1.msra.mxu0 0.0
        %2232 = vmatprep.subr.mxu0 0.0
        %2233 = vmatpush1.msra.mxu0 0.0
        %2234 = vmatprep.subr.mxu0 0.0
        %2235 = vmatpush1.msra.mxu0 0.0
        %2236 = vmatprep.subr.mxu0 0.0
        %2237 = vmatpush1.msra.mxu0 0.0
        %2238 = vmatprep.subr.mxu0 0.0
        %2239 = vmatpush1.msra.mxu0 0.0
        %2240 = vmatprep.subr.mxu0 0.0
        %2241 = vmatpush1.msra.mxu0 0.0
        %2242 = vmatprep.subr.mxu0 0.0
        %2243 = vmatpush1.msra.mxu0 0.0
        %2244 = vmatprep.subr.mxu0 0.0
        %2245 = vmatpush1.msra.mxu0 0.0
        %2246 = vmatprep.subr.mxu0 0.0
        %2247 = vmatpush1.msra.mxu0 0.0
        %2248 = vmatprep.subr.mxu0 0.0
        %2249 = vmatpush1.msra.mxu0 0.0
        %2250 = vmatprep.subr.mxu0 0.0
        %2251 = vmatpush1.msra.mxu0 0.0
        %2252 = vmatprep.subr.mxu0 0.0
        %2253 = vmatpush1.msra.mxu0 0.0
        %2254 = vmatprep.subr.mxu0 0.0
        %2255 = vmatpush1.msra.mxu0 %v2222
        %2256 = vmatprep.subr.mxu0 0.0
        %2257 = vmatpush2.msra.mxu0 0.0
        %2258 = vmatprep.subr.mxu0 0.0
        %2259 = vmatpush2.msra.mxu0 0.0
        %2260 = vmatprep.subr.mxu0 0.0
        %2261 = vmatpush2.msra.mxu0 0.0
        %2262 = vmatprep.subr.mxu0 0.0
        %2263 = vmatpush2.msra.mxu0 0.0
        %2264 = vmatprep.subr.mxu0 0.0
        %2265 = vmatpush2.msra.mxu0 0.0
        %2266 = vmatprep.subr.mxu0 0.0
        %2267 = vmatpush2.msra.mxu0 0.0
        %2268 = vmatprep.subr.mxu0 0.0
        %2269 = vmatpush2.msra.mxu0 0.0
        %2270 = vmatprep.subr.mxu0 0.0
        %2271 = vmatpush2.msra.mxu0 0.0
        %2272 = vmatprep.subr.mxu0 0.0
        %2273 = vmatpush2.msra.mxu0 0.0
        %2274 = vmatprep.subr.mxu0 0.0
        %2275 = vmatpush2.msra.mxu0 0.0
        %2276 = vmatprep.subr.mxu0 0.0
        %2277 = vmatpush2.msra.mxu0 0.0
        %2278 = vmatprep.subr.mxu0 0.0
        %2279 = vmatpush2.msra.mxu0 0.0
        %2280 = vmatprep.subr.mxu0 0.0
        %2281 = vmatpush2.msra.mxu0 0.0
        %2282 = vmatprep.subr.mxu0 0.0
        %2283 = vmatpush2.msra.mxu0 0.0
        %2284 = vmatprep.subr.mxu0 0.0
        %2285 = vmatpush2.msra.mxu0 0.0
        %2286 = vmatprep.subr.mxu0 0.0
        %2287 = vmatpush2.msra.mxu0 0.0
        %2288 = vmatprep.mubr.f32.mxu0 0.0
        %2289 = vmatmul.mubr.f32.gmra.mxu0 %v711
        %v2290 = vpop.f32.mrf.mxu0
        %v2291 = vadd.f32 0.0, %v2290
        %v2292 = vpop.f32.mrf.mxu0
        %2293 = vmatprep.mubr.f32.mxu0 0.0
        %2294 = vmatmul.mubr.f32.gmra.mxu0 %v713
        %v2295 = vpop.f32.mrf.mxu0
        %v2296 = vadd.f32 0.0, %v2295
        %v2297 = vpop.f32.mrf.mxu0
        %2298 = vmatprep.mubr.f32.mxu0 0.0
        %2299 = vmatmul.mubr.f32.gmra.mxu0 %v715
        %v2300 = vpop.f32.mrf.mxu0
        %v2301 = vadd.f32 0.0, %v2300
        %v2302 = vpop.f32.mrf.mxu0
        %2303 = vmatprep.mubr.f32.mxu0 0.0
        %2304 = vmatmul.mubr.f32.gmra.mxu0 %v717
        %v2305 = vpop.f32.mrf.mxu0
        %v2306 = vadd.f32 0.0, %v2305
        %v2307 = vpop.f32.mrf.mxu0
        %2308 = vmatprep.mubr.f32.mxu0 0.0
        %2309 = vmatmul.mubr.f32.gmra.mxu0 %v719
        %v2310 = vpop.f32.mrf.mxu0
        %v2311 = vadd.f32 0.0, %v2310
        %v2312 = vpop.f32.mrf.mxu0
        %2313 = vmatprep.mubr.f32.mxu0 0.0
        %2314 = vmatmul.mubr.f32.gmra.mxu0 %v721
        %v2315 = vpop.f32.mrf.mxu0
        %v2316 = vadd.f32 0.0, %v2315
        %v2317 = vpop.f32.mrf.mxu0
        %2318 = vmatprep.mubr.f32.mxu0 0.0
        %2319 = vmatmul.mubr.f32.gmra.mxu0 %v723
        %v2320 = vpop.f32.mrf.mxu0
        %v2321 = vadd.f32 0.0, %v2320
        %v2322 = vpop.f32.mrf.mxu0
        %2323 = vmatprep.mubr.f32.mxu0 0.0
        %2324 = vmatmul.mubr.f32.gmra.mxu0 %v725
        %v2325 = vpop.f32.mrf.mxu0
        %v2326 = vadd.f32 0.0, %v2325
        %v2327 = vpop.f32.mrf.mxu0
        %2328 = vmatprep.mubr.f32.mxu0 0.0
        %2329 = vmatmul.mubr.f32.gmra.mxu0 %v727
        %v2330 = vpop.f32.mrf.mxu0
        %v2331 = vadd.f32 0.0, %v2330
        %v2332 = vpop.f32.mrf.mxu0
        %2333 = vmatprep.mubr.f32.mxu0 0.0
        %2334 = vmatmul.mubr.f32.gmra.mxu0 %v729
        %v2335 = vpop.f32.mrf.mxu0
        %v2336 = vadd.f32 0.0, %v2335
        %v2337 = vpop.f32.mrf.mxu0
        %2338 = vmatprep.mubr.f32.mxu0 0.0
        %2339 = vmatmul.mubr.f32.gmra.mxu0 %v731
        %v2340 = vpop.f32.mrf.mxu0
        %v2341 = vadd.f32 0.0, %v2340
        %v2342 = vpop.f32.mrf.mxu0
        %2343 = vmatprep.mubr.f32.mxu0 0.0
        %2344 = vmatmul.mubr.f32.gmra.mxu0 %v733
        %v2345 = vpop.f32.mrf.mxu0
        %v2346 = vadd.f32 0.0, %v2345
        %v2347 = vpop.f32.mrf.mxu0
        %2348 = vmatprep.mubr.f32.mxu0 0.0
        %2349 = vmatmul.mubr.f32.gmra.mxu0 %v735
        %v2350 = vpop.f32.mrf.mxu0
        %v2351 = vadd.f32 0.0, %v2350
        %v2352 = vpop.f32.mrf.mxu0
        %2353 = vmatprep.mubr.f32.mxu0 0.0
        %2354 = vmatmul.mubr.f32.gmra.mxu0 %v737
        %v2355 = vpop.f32.mrf.mxu0
        %v2356 = vadd.f32 0.0, %v2355
        %v2357 = vpop.f32.mrf.mxu0
        %2358 = vmatprep.mubr.f32.mxu0 0.0
        %2359 = vmatmul.mubr.f32.gmra.mxu0 %v739
        %v2360 = vpop.f32.mrf.mxu0
        %v2361 = vadd.f32 0.0, %v2360
        %v2362 = vpop.f32.mrf.mxu0
        %2363 = vmatprep.mubr.f32.mxu0 0.0
        %2364 = vmatmul.mubr.f32.gmra.mxu0 %v741
        %v2365 = vpop.f32.mrf.mxu0
        %v2366 = vadd.f32 0.0, %v2365
        %v2367 = vpop.f32.mrf.mxu0
        %2368 = vmatprep.mubr.f32.mxu0 0.0
        %2369 = vmatmul.mubr.f32.gmra.mxu0 %v743
        %v2370 = vpop.f32.mrf.mxu0
        %v2371 = vadd.f32 0.0, %v2370
        %v2372 = vpop.f32.mrf.mxu0
        %2373 = vmatprep.mubr.f32.mxu0 0.0
        %2374 = vmatmul.mubr.f32.gmra.mxu0 %v745
        %v2375 = vpop.f32.mrf.mxu0
        %v2376 = vadd.f32 0.0, %v2375
        %v2377 = vpop.f32.mrf.mxu0
        %2378 = vmatprep.mubr.f32.mxu0 0.0
        %2379 = vmatmul.mubr.f32.gmra.mxu0 %v747
        %v2380 = vpop.f32.mrf.mxu0
        %v2381 = vadd.f32 0.0, %v2380
        %v2382 = vpop.f32.mrf.mxu0
        %2383 = vmatprep.mubr.f32.mxu0 0.0
        %2384 = vmatmul.mubr.f32.gmra.mxu0 %v749
        %v2385 = vpop.f32.mrf.mxu0
        %v2386 = vadd.f32 0.0, %v2385
        %v2387 = vpop.f32.mrf.mxu0
        %2388 = vmatprep.mubr.f32.mxu0 0.0
        %2389 = vmatmul.mubr.f32.gmra.mxu0 %v751
        %v2390 = vpop.f32.mrf.mxu0
        %v2391 = vadd.f32 0.0, %v2390
        %v2392 = vpop.f32.mrf.mxu0
        %2393 = vmatprep.mubr.f32.mxu0 0.0
        %2394 = vmatmul.mubr.f32.gmra.mxu0 %v753
        %v2395 = vpop.f32.mrf.mxu0
        %v2396 = vadd.f32 0.0, %v2395
        %v2397 = vpop.f32.mrf.mxu0
        %2398 = vmatprep.mubr.f32.mxu0 0.0
        %2399 = vmatmul.mubr.f32.gmra.mxu0 %v755
        %v2400 = vpop.f32.mrf.mxu0
        %v2401 = vadd.f32 0.0, %v2400
        %v2402 = vpop.f32.mrf.mxu0
        %2403 = vmatprep.mubr.f32.mxu0 0.0
        %2404 = vmatmul.mubr.f32.gmra.mxu0 %v757
        %v2405 = vpop.f32.mrf.mxu0
        %v2406 = vadd.f32 0.0, %v2405
        %v2407 = vpop.f32.mrf.mxu0
        %2408 = vmatprep.mubr.f32.mxu0 0.0
        %2409 = vmatmul.mubr.f32.gmra.mxu0 %v759
        %v2410 = vpop.f32.mrf.mxu0
        %v2411 = vadd.f32 0.0, %v2410
        %v2412 = vpop.f32.mrf.mxu0
        %2413 = vmatprep.mubr.f32.mxu0 0.0
        %2414 = vmatmul.mubr.f32.gmra.mxu0 %v761
        %v2415 = vpop.f32.mrf.mxu0
        %v2416 = vadd.f32 0.0, %v2415
        %v2417 = vpop.f32.mrf.mxu0
        %2418 = vmatprep.mubr.f32.mxu0 0.0
        %2419 = vmatmul.mubr.f32.gmra.mxu0 %v763
        %v2420 = vpop.f32.mrf.mxu0
        %v2421 = vadd.f32 0.0, %v2420
        %v2422 = vpop.f32.mrf.mxu0
        %2423 = vmatprep.mubr.f32.mxu0 0.0
        %2424 = vmatmul.mubr.f32.gmra.mxu0 %v765
        %v2425 = vpop.f32.mrf.mxu0
        %v2426 = vadd.f32 0.0, %v2425
        %v2427 = vpop.f32.mrf.mxu0
        %2428 = vmatprep.mubr.f32.mxu0 0.0
        %2429 = vmatmul.mubr.f32.gmra.mxu0 %v1405
        %v2430 = vpop.f32.mrf.mxu0
        %v2431 = vadd.f32 0.0, %v2430
        %v2432 = vpop.f32.mrf.mxu0
        %2433 = vmatprep.mubr.f32.mxu0 0.0
        %2434 = vmatmul.mubr.f32.gmra.mxu0 %v1408
        %v2435 = vpop.f32.mrf.mxu0
        %v2436 = vadd.f32 0.0, %v2435
        %v2437 = vpop.f32.mrf.mxu0
        %2438 = vmatprep.mubr.f32.mxu0 0.0
        %2439 = vmatmul.mubr.f32.gmra.mxu0 %v2216
        %v2440 = vpop.f32.mrf.mxu0
        %v2441 = vadd.f32 0.0, %v2440
        %v2442 = vpop.f32.mrf.mxu0
        %2443 = vmatprep.mubr.f32.mxu0 0.0
        %2444 = vmatmul.mubr.f32.gmra.mxu0 %v2219
        %v2445 = vpop.f32.mrf.mxu0
        %v2446 = vadd.f32 0.0, %v2445
        %v2447 = vpop.f32.mrf.mxu0
        %2448 = vdwg.mxu0
        %v2449 = vadd.f32 %v2181, %v2291
        %v2450 = vadd.f32 %v2182, %v2296
        %v2451 = vadd.f32 %v2183, %v2301
        %v2452 = vadd.f32 %v2184, %v2306
        %v2453 = vadd.f32 %v2185, %v2311
        %v2454 = vadd.f32 %v2186, %v2316
        %v2455 = vadd.f32 %v2187, %v2321
        %v2456 = vadd.f32 %v2188, %v2326
        %v2457 = vadd.f32 %v2189, %v2331
        %v2458 = vadd.f32 %v2190, %v2336
        %v2459 = vadd.f32 %v2191, %v2341
        %v2460 = vadd.f32 %v2192, %v2346
        %v2461 = vadd.f32 %v2193, %v2351
        %v2462 = vadd.f32 %v2194, %v2356
        %v2463 = vadd.f32 %v2195, %v2361
        %v2464 = vadd.f32 %v2196, %v2366
        %v2465 = vadd.f32 %v2197, %v2371
        %v2466 = vadd.f32 %v2198, %v2376
        %v2467 = vadd.f32 %v2199, %v2381
        %v2468 = vadd.f32 %v2200, %v2386
        %v2469 = vadd.f32 %v2201, %v2391
        %v2470 = vadd.f32 %v2202, %v2396
        %v2471 = vadd.f32 %v2203, %v2401
        %v2472 = vadd.f32 %v2204, %v2406
        %v2473 = vadd.f32 %v2205, %v2411
        %v2474 = vadd.f32 %v2206, %v2416
        %v2475 = vadd.f32 %v2207, %v2421
        %v2476 = vadd.f32 %v2208, %v2426
        %v2477 = vadd.f32 %v2209, %v2431
        %v2478 = vadd.f32 %v2210, %v2436
        %v2479 = vadd.f32 %v2211, %v2441
        %v2480 = vadd.f32 %v2212, %v2446
        %v2482 = vrot.slane %v274, 1
        %v2483 = vrot.slane %v275, 1
        %v2484 = vsel %vm326, %v2482, %v2483
        %v2485 = vrot.slane %v276, 1
        %v2486 = vsel %vm326, %v2483, %v2485
        %s2487 = scalar_lea.vmem %s1, 28
        %v2488 = vld [vmem:[%s2487] sm:$0xf]
        %v2489 = vsel %vm409, %v2484, 0
        %v2491 = vsel %vm409, %v2486, 0
        %v2494 = vsel %vm474, %v2488, 0
        %2496 = vmatprep.subr.mxu0 0.0
        %2497 = vmatpush1.msra.mxu0 0.0
        %2498 = vmatprep.subr.mxu0 0.0
        %2499 = vmatpush1.msra.mxu0 0.0
        %2500 = vmatprep.subr.mxu0 0.0
        %2501 = vmatpush1.msra.mxu0 0.0
        %2502 = vmatprep.subr.mxu0 0.0
        %2503 = vmatpush1.msra.mxu0 0.0
        %2504 = vmatprep.subr.mxu0 0.0
        %2505 = vmatpush1.msra.mxu0 0.0
        %2506 = vmatprep.subr.mxu0 0.0
        %2507 = vmatpush1.msra.mxu0 0.0
        %2508 = vmatprep.subr.mxu0 0.0
        %2509 = vmatpush1.msra.mxu0 0.0
        %2510 = vmatprep.subr.mxu0 0.0
        %2511 = vmatpush1.msra.mxu0 0.0
        %2512 = vmatprep.subr.mxu0 0.0
        %2513 = vmatpush1.msra.mxu0 0.0
        %2514 = vmatprep.subr.mxu0 0.0
        %2515 = vmatpush1.msra.mxu0 0.0
        %2516 = vmatprep.subr.mxu0 0.0
        %2517 = vmatpush1.msra.mxu0 0.0
        %2518 = vmatprep.subr.mxu0 0.0
        %2519 = vmatpush1.msra.mxu0 0.0
        %2520 = vmatprep.subr.mxu0 0.0
        %2521 = vmatpush1.msra.mxu0 0.0
        %2522 = vmatprep.subr.mxu0 0.0
        %2523 = vmatpush1.msra.mxu0 0.0
        %2524 = vmatprep.subr.mxu0 0.0
        %2525 = vmatpush1.msra.mxu0 0.0
        %2526 = vmatprep.subr.mxu0 0.0
        %2527 = vmatpush1.msra.mxu0 %v2494
        %2528 = vmatprep.subr.mxu0 0.0
        %2529 = vmatpush2.msra.mxu0 0.0
        %2530 = vmatprep.subr.mxu0 0.0
        %2531 = vmatpush2.msra.mxu0 0.0
        %2532 = vmatprep.subr.mxu0 0.0
        %2533 = vmatpush2.msra.mxu0 0.0
        %2534 = vmatprep.subr.mxu0 0.0
        %2535 = vmatpush2.msra.mxu0 0.0
        %2536 = vmatprep.subr.mxu0 0.0
        %2537 = vmatpush2.msra.mxu0 0.0
        %2538 = vmatprep.subr.mxu0 0.0
        %2539 = vmatpush2.msra.mxu0 0.0
        %2540 = vmatprep.subr.mxu0 0.0
        %2541 = vmatpush2.msra.mxu0 0.0
        %2542 = vmatprep.subr.mxu0 0.0
        %2543 = vmatpush2.msra.mxu0 0.0
        %2544 = vmatprep.subr.mxu0 0.0
        %2545 = vmatpush2.msra.mxu0 0.0
        %2546 = vmatprep.subr.mxu0 0.0
        %2547 = vmatpush2.msra.mxu0 0.0
        %2548 = vmatprep.subr.mxu0 0.0
        %2549 = vmatpush2.msra.mxu0 0.0
        %2550 = vmatprep.subr.mxu0 0.0
        %2551 = vmatpush2.msra.mxu0 0.0
        %2552 = vmatprep.subr.mxu0 0.0
        %2553 = vmatpush2.msra.mxu0 0.0
        %2554 = vmatprep.subr.mxu0 0.0
        %2555 = vmatpush2.msra.mxu0 0.0
        %2556 = vmatprep.subr.mxu0 0.0
        %2557 = vmatpush2.msra.mxu0 0.0
        %2558 = vmatprep.subr.mxu0 0.0
        %2559 = vmatpush2.msra.mxu0 0.0
        %2560 = vmatprep.mubr.f32.mxu0 0.0
        %2561 = vmatmul.mubr.f32.gmra.mxu0 %v418
        %v2562 = vpop.f32.mrf.mxu0
        %v2563 = vadd.f32 0.0, %v2562
        %v2564 = vpop.f32.mrf.mxu0
        %2565 = vmatprep.mubr.f32.mxu0 0.0
        %2566 = vmatmul.mubr.f32.gmra.mxu0 %v420
        %v2567 = vpop.f32.mrf.mxu0
        %v2568 = vadd.f32 0.0, %v2567
        %v2569 = vpop.f32.mrf.mxu0
        %2570 = vmatprep.mubr.f32.mxu0 0.0
        %2571 = vmatmul.mubr.f32.gmra.mxu0 %v422
        %v2572 = vpop.f32.mrf.mxu0
        %v2573 = vadd.f32 0.0, %v2572
        %v2574 = vpop.f32.mrf.mxu0
        %2575 = vmatprep.mubr.f32.mxu0 0.0
        %2576 = vmatmul.mubr.f32.gmra.mxu0 %v424
        %v2577 = vpop.f32.mrf.mxu0
        %v2578 = vadd.f32 0.0, %v2577
        %v2579 = vpop.f32.mrf.mxu0
        %2580 = vmatprep.mubr.f32.mxu0 0.0
        %2581 = vmatmul.mubr.f32.gmra.mxu0 %v426
        %v2582 = vpop.f32.mrf.mxu0
        %v2583 = vadd.f32 0.0, %v2582
        %v2584 = vpop.f32.mrf.mxu0
        %2585 = vmatprep.mubr.f32.mxu0 0.0
        %2586 = vmatmul.mubr.f32.gmra.mxu0 %v428
        %v2587 = vpop.f32.mrf.mxu0
        %v2588 = vadd.f32 0.0, %v2587
        %v2589 = vpop.f32.mrf.mxu0
        %2590 = vmatprep.mubr.f32.mxu0 0.0
        %2591 = vmatmul.mubr.f32.gmra.mxu0 %v430
        %v2592 = vpop.f32.mrf.mxu0
        %v2593 = vadd.f32 0.0, %v2592
        %v2594 = vpop.f32.mrf.mxu0
        %2595 = vmatprep.mubr.f32.mxu0 0.0
        %2596 = vmatmul.mubr.f32.gmra.mxu0 %v432
        %v2597 = vpop.f32.mrf.mxu0
        %v2598 = vadd.f32 0.0, %v2597
        %v2599 = vpop.f32.mrf.mxu0
        %2600 = vmatprep.mubr.f32.mxu0 0.0
        %2601 = vmatmul.mubr.f32.gmra.mxu0 %v434
        %v2602 = vpop.f32.mrf.mxu0
        %v2603 = vadd.f32 0.0, %v2602
        %v2604 = vpop.f32.mrf.mxu0
        %2605 = vmatprep.mubr.f32.mxu0 0.0
        %2606 = vmatmul.mubr.f32.gmra.mxu0 %v436
        %v2607 = vpop.f32.mrf.mxu0
        %v2608 = vadd.f32 0.0, %v2607
        %v2609 = vpop.f32.mrf.mxu0
        %2610 = vmatprep.mubr.f32.mxu0 0.0
        %2611 = vmatmul.mubr.f32.gmra.mxu0 %v438
        %v2612 = vpop.f32.mrf.mxu0
        %v2613 = vadd.f32 0.0, %v2612
        %v2614 = vpop.f32.mrf.mxu0
        %2615 = vmatprep.mubr.f32.mxu0 0.0
        %2616 = vmatmul.mubr.f32.gmra.mxu0 %v440
        %v2617 = vpop.f32.mrf.mxu0
        %v2618 = vadd.f32 0.0, %v2617
        %v2619 = vpop.f32.mrf.mxu0
        %2620 = vmatprep.mubr.f32.mxu0 0.0
        %2621 = vmatmul.mubr.f32.gmra.mxu0 %v442
        %v2622 = vpop.f32.mrf.mxu0
        %v2623 = vadd.f32 0.0, %v2622
        %v2624 = vpop.f32.mrf.mxu0
        %2625 = vmatprep.mubr.f32.mxu0 0.0
        %2626 = vmatmul.mubr.f32.gmra.mxu0 %v444
        %v2627 = vpop.f32.mrf.mxu0
        %v2628 = vadd.f32 0.0, %v2627
        %v2629 = vpop.f32.mrf.mxu0
        %2630 = vmatprep.mubr.f32.mxu0 0.0
        %2631 = vmatmul.mubr.f32.gmra.mxu0 %v446
        %v2632 = vpop.f32.mrf.mxu0
        %v2633 = vadd.f32 0.0, %v2632
        %v2634 = vpop.f32.mrf.mxu0
        %2635 = vmatprep.mubr.f32.mxu0 0.0
        %2636 = vmatmul.mubr.f32.gmra.mxu0 %v448
        %v2637 = vpop.f32.mrf.mxu0
        %v2638 = vadd.f32 0.0, %v2637
        %v2639 = vpop.f32.mrf.mxu0
        %2640 = vmatprep.mubr.f32.mxu0 0.0
        %2641 = vmatmul.mubr.f32.gmra.mxu0 %v450
        %v2642 = vpop.f32.mrf.mxu0
        %v2643 = vadd.f32 0.0, %v2642
        %v2644 = vpop.f32.mrf.mxu0
        %2645 = vmatprep.mubr.f32.mxu0 0.0
        %2646 = vmatmul.mubr.f32.gmra.mxu0 %v452
        %v2647 = vpop.f32.mrf.mxu0
        %v2648 = vadd.f32 0.0, %v2647
        %v2649 = vpop.f32.mrf.mxu0
        %2650 = vmatprep.mubr.f32.mxu0 0.0
        %2651 = vmatmul.mubr.f32.gmra.mxu0 %v454
        %v2652 = vpop.f32.mrf.mxu0
        %v2653 = vadd.f32 0.0, %v2652
        %v2654 = vpop.f32.mrf.mxu0
        %2655 = vmatprep.mubr.f32.mxu0 0.0
        %2656 = vmatmul.mubr.f32.gmra.mxu0 %v456
        %v2657 = vpop.f32.mrf.mxu0
        %v2658 = vadd.f32 0.0, %v2657
        %v2659 = vpop.f32.mrf.mxu0
        %2660 = vmatprep.mubr.f32.mxu0 0.0
        %2661 = vmatmul.mubr.f32.gmra.mxu0 %v458
        %v2662 = vpop.f32.mrf.mxu0
        %v2663 = vadd.f32 0.0, %v2662
        %v2664 = vpop.f32.mrf.mxu0
        %2665 = vmatprep.mubr.f32.mxu0 0.0
        %2666 = vmatmul.mubr.f32.gmra.mxu0 %v460
        %v2667 = vpop.f32.mrf.mxu0
        %v2668 = vadd.f32 0.0, %v2667
        %v2669 = vpop.f32.mrf.mxu0
        %2670 = vmatprep.mubr.f32.mxu0 0.0
        %2671 = vmatmul.mubr.f32.gmra.mxu0 %v462
        %v2672 = vpop.f32.mrf.mxu0
        %v2673 = vadd.f32 0.0, %v2672
        %v2674 = vpop.f32.mrf.mxu0
        %2675 = vmatprep.mubr.f32.mxu0 0.0
        %2676 = vmatmul.mubr.f32.gmra.mxu0 %v464
        %v2677 = vpop.f32.mrf.mxu0
        %v2678 = vadd.f32 0.0, %v2677
        %v2679 = vpop.f32.mrf.mxu0
        %2680 = vmatprep.mubr.f32.mxu0 0.0
        %2681 = vmatmul.mubr.f32.gmra.mxu0 %v466
        %v2682 = vpop.f32.mrf.mxu0
        %v2683 = vadd.f32 0.0, %v2682
        %v2684 = vpop.f32.mrf.mxu0
        %2685 = vmatprep.mubr.f32.mxu0 0.0
        %2686 = vmatmul.mubr.f32.gmra.mxu0 %v468
        %v2687 = vpop.f32.mrf.mxu0
        %v2688 = vadd.f32 0.0, %v2687
        %v2689 = vpop.f32.mrf.mxu0
        %2690 = vmatprep.mubr.f32.mxu0 0.0
        %2691 = vmatmul.mubr.f32.gmra.mxu0 %v470
        %v2692 = vpop.f32.mrf.mxu0
        %v2693 = vadd.f32 0.0, %v2692
        %v2694 = vpop.f32.mrf.mxu0
        %2695 = vmatprep.mubr.f32.mxu0 0.0
        %2696 = vmatmul.mubr.f32.gmra.mxu0 %v472
        %v2697 = vpop.f32.mrf.mxu0
        %v2698 = vadd.f32 0.0, %v2697
        %v2699 = vpop.f32.mrf.mxu0
        %2700 = vmatprep.mubr.f32.mxu0 0.0
        %2701 = vmatmul.mubr.f32.gmra.mxu0 %v1678
        %v2702 = vpop.f32.mrf.mxu0
        %v2703 = vadd.f32 0.0, %v2702
        %v2704 = vpop.f32.mrf.mxu0
        %2705 = vmatprep.mubr.f32.mxu0 0.0
        %2706 = vmatmul.mubr.f32.gmra.mxu0 %v1680
        %v2707 = vpop.f32.mrf.mxu0
        %v2708 = vadd.f32 0.0, %v2707
        %v2709 = vpop.f32.mrf.mxu0
        %2710 = vmatprep.mubr.f32.mxu0 0.0
        %2711 = vmatmul.mubr.f32.gmra.mxu0 %v2489
        %v2712 = vpop.f32.mrf.mxu0
        %v2713 = vadd.f32 0.0, %v2712
        %v2714 = vpop.f32.mrf.mxu0
        %2715 = vmatprep.mubr.f32.mxu0 0.0
        %2716 = vmatmul.mubr.f32.gmra.mxu0 %v2491
        %v2717 = vpop.f32.mrf.mxu0
        %v2718 = vadd.f32 0.0, %v2717
        %v2719 = vpop.f32.mrf.mxu0
        %2720 = vdwg.mxu0
        %v2721 = vadd.f32 %v2449, %v2563
        %v2722 = vadd.f32 %v2450, %v2568
        %v2723 = vadd.f32 %v2451, %v2573
        %v2724 = vadd.f32 %v2452, %v2578
        %v2725 = vadd.f32 %v2453, %v2583
        %v2726 = vadd.f32 %v2454, %v2588
        %v2727 = vadd.f32 %v2455, %v2593
        %v2728 = vadd.f32 %v2456, %v2598
        %v2729 = vadd.f32 %v2457, %v2603
        %v2730 = vadd.f32 %v2458, %v2608
        %v2731 = vadd.f32 %v2459, %v2613
        %v2732 = vadd.f32 %v2460, %v2618
        %v2733 = vadd.f32 %v2461, %v2623
        %v2734 = vadd.f32 %v2462, %v2628
        %v2735 = vadd.f32 %v2463, %v2633
        %v2736 = vadd.f32 %v2464, %v2638
        %v2737 = vadd.f32 %v2465, %v2643
        %v2738 = vadd.f32 %v2466, %v2648
        %v2739 = vadd.f32 %v2467, %v2653
        %v2740 = vadd.f32 %v2468, %v2658
        %v2741 = vadd.f32 %v2469, %v2663
        %v2742 = vadd.f32 %v2470, %v2668
        %v2743 = vadd.f32 %v2471, %v2673
        %v2744 = vadd.f32 %v2472, %v2678
        %v2745 = vadd.f32 %v2473, %v2683
        %v2746 = vadd.f32 %v2474, %v2688
        %v2747 = vadd.f32 %v2475, %v2693
        %v2748 = vadd.f32 %v2476, %v2698
        %v2749 = vadd.f32 %v2477, %v2703
        %v2750 = vadd.f32 %v2478, %v2708
        %v2751 = vadd.f32 %v2479, %v2713
        %v2752 = vadd.f32 %v2480, %v2718
        %v2753 = vrot.slane %v274, 2
        %v2754 = vrot.slane %v275, 2
        %v2755 = vsel %vm995, %v2753, %v2754
        %v2756 = vrot.slane %v276, 2
        %v2757 = vsel %vm995, %v2754, %v2756
        %s2758 = scalar_lea.vmem %s1, 32
        %v2759 = vld [vmem:[%s2758] sm:$0xf]
        %v2760 = vsel %vm409, %v2755, 0
        %v2762 = vsel %vm409, %v2757, 0
        %v2765 = vsel %vm474, %v2759, 0
        %2767 = vmatprep.subr.mxu0 0.0
        %2768 = vmatpush1.msra.mxu0 0.0
        %2769 = vmatprep.subr.mxu0 0.0
        %2770 = vmatpush1.msra.mxu0 0.0
        %2771 = vmatprep.subr.mxu0 0.0
        %2772 = vmatpush1.msra.mxu0 0.0
        %2773 = vmatprep.subr.mxu0 0.0
        %2774 = vmatpush1.msra.mxu0 0.0
        %2775 = vmatprep.subr.mxu0 0.0
        %2776 = vmatpush1.msra.mxu0 0.0
        %2777 = vmatprep.subr.mxu0 0.0
        %2778 = vmatpush1.msra.mxu0 0.0
        %2779 = vmatprep.subr.mxu0 0.0
        %2780 = vmatpush1.msra.mxu0 0.0
        %2781 = vmatprep.subr.mxu0 0.0
        %2782 = vmatpush1.msra.mxu0 0.0
        %2783 = vmatprep.subr.mxu0 0.0
        %2784 = vmatpush1.msra.mxu0 0.0
        %2785 = vmatprep.subr.mxu0 0.0
        %2786 = vmatpush1.msra.mxu0 0.0
        %2787 = vmatprep.subr.mxu0 0.0
        %2788 = vmatpush1.msra.mxu0 0.0
        %2789 = vmatprep.subr.mxu0 0.0
        %2790 = vmatpush1.msra.mxu0 0.0
        %2791 = vmatprep.subr.mxu0 0.0
        %2792 = vmatpush1.msra.mxu0 0.0
        %2793 = vmatprep.subr.mxu0 0.0
        %2794 = vmatpush1.msra.mxu0 0.0
        %2795 = vmatprep.subr.mxu0 0.0
        %2796 = vmatpush1.msra.mxu0 0.0
        %2797 = vmatprep.subr.mxu0 0.0
        %2798 = vmatpush1.msra.mxu0 %v2765
        %2799 = vmatprep.subr.mxu0 0.0
        %2800 = vmatpush2.msra.mxu0 0.0
        %2801 = vmatprep.subr.mxu0 0.0
        %2802 = vmatpush2.msra.mxu0 0.0
        %2803 = vmatprep.subr.mxu0 0.0
        %2804 = vmatpush2.msra.mxu0 0.0
        %2805 = vmatprep.subr.mxu0 0.0
        %2806 = vmatpush2.msra.mxu0 0.0
        %2807 = vmatprep.subr.mxu0 0.0
        %2808 = vmatpush2.msra.mxu0 0.0
        %2809 = vmatprep.subr.mxu0 0.0
        %2810 = vmatpush2.msra.mxu0 0.0
        %2811 = vmatprep.subr.mxu0 0.0
        %2812 = vmatpush2.msra.mxu0 0.0
        %2813 = vmatprep.subr.mxu0 0.0
        %2814 = vmatpush2.msra.mxu0 0.0
        %2815 = vmatprep.subr.mxu0 0.0
        %2816 = vmatpush2.msra.mxu0 0.0
        %2817 = vmatprep.subr.mxu0 0.0
        %2818 = vmatpush2.msra.mxu0 0.0
        %2819 = vmatprep.subr.mxu0 0.0
        %2820 = vmatpush2.msra.mxu0 0.0
        %2821 = vmatprep.subr.mxu0 0.0
        %2822 = vmatpush2.msra.mxu0 0.0
        %2823 = vmatprep.subr.mxu0 0.0
        %2824 = vmatpush2.msra.mxu0 0.0
        %2825 = vmatprep.subr.mxu0 0.0
        %2826 = vmatpush2.msra.mxu0 0.0
        %2827 = vmatprep.subr.mxu0 0.0
        %2828 = vmatpush2.msra.mxu0 0.0
        %2829 = vmatprep.subr.mxu0 0.0
        %2830 = vmatpush2.msra.mxu0 0.0
        %2831 = vmatprep.mubr.f32.mxu0 0.0
        %2832 = vmatmul.mubr.f32.gmra.mxu0 %v1086
        %v2833 = vpop.f32.mrf.mxu0
        %v2834 = vadd.f32 0.0, %v2833
        %v2835 = vpop.f32.mrf.mxu0
        %2836 = vmatprep.mubr.f32.mxu0 0.0
        %2837 = vmatmul.mubr.f32.gmra.mxu0 %v1088
        %v2838 = vpop.f32.mrf.mxu0
        %v2839 = vadd.f32 0.0, %v2838
        %v2840 = vpop.f32.mrf.mxu0
        %2841 = vmatprep.mubr.f32.mxu0 0.0
        %2842 = vmatmul.mubr.f32.gmra.mxu0 %v1090
        %v2843 = vpop.f32.mrf.mxu0
        %v2844 = vadd.f32 0.0, %v2843
        %v2845 = vpop.f32.mrf.mxu0
        %2846 = vmatprep.mubr.f32.mxu0 0.0
        %2847 = vmatmul.mubr.f32.gmra.mxu0 %v1092
        %v2848 = vpop.f32.mrf.mxu0
        %v2849 = vadd.f32 0.0, %v2848
        %v2850 = vpop.f32.mrf.mxu0
        %2851 = vmatprep.mubr.f32.mxu0 0.0
        %2852 = vmatmul.mubr.f32.gmra.mxu0 %v1094
        %v2853 = vpop.f32.mrf.mxu0
        %v2854 = vadd.f32 0.0, %v2853
        %v2855 = vpop.f32.mrf.mxu0
        %2856 = vmatprep.mubr.f32.mxu0 0.0
        %2857 = vmatmul.mubr.f32.gmra.mxu0 %v1096
        %v2858 = vpop.f32.mrf.mxu0
        %v2859 = vadd.f32 0.0, %v2858
        %v2860 = vpop.f32.mrf.mxu0
        %2861 = vmatprep.mubr.f32.mxu0 0.0
        %2862 = vmatmul.mubr.f32.gmra.mxu0 %v1098
        %v2863 = vpop.f32.mrf.mxu0
        %v2864 = vadd.f32 0.0, %v2863
        %v2865 = vpop.f32.mrf.mxu0
        %2866 = vmatprep.mubr.f32.mxu0 0.0
        %2867 = vmatmul.mubr.f32.gmra.mxu0 %v1100
        %v2868 = vpop.f32.mrf.mxu0
        %v2869 = vadd.f32 0.0, %v2868
        %v2870 = vpop.f32.mrf.mxu0
        %2871 = vmatprep.mubr.f32.mxu0 0.0
        %2872 = vmatmul.mubr.f32.gmra.mxu0 %v1102
        %v2873 = vpop.f32.mrf.mxu0
        %v2874 = vadd.f32 0.0, %v2873
        %v2875 = vpop.f32.mrf.mxu0
        %2876 = vmatprep.mubr.f32.mxu0 0.0
        %2877 = vmatmul.mubr.f32.gmra.mxu0 %v1104
        %v2878 = vpop.f32.mrf.mxu0
        %v2879 = vadd.f32 0.0, %v2878
        %v2880 = vpop.f32.mrf.mxu0
        %2881 = vmatprep.mubr.f32.mxu0 0.0
        %2882 = vmatmul.mubr.f32.gmra.mxu0 %v1106
        %v2883 = vpop.f32.mrf.mxu0
        %v2884 = vadd.f32 0.0, %v2883
        %v2885 = vpop.f32.mrf.mxu0
        %2886 = vmatprep.mubr.f32.mxu0 0.0
        %2887 = vmatmul.mubr.f32.gmra.mxu0 %v1108
        %v2888 = vpop.f32.mrf.mxu0
        %v2889 = vadd.f32 0.0, %v2888
        %v2890 = vpop.f32.mrf.mxu0
        %2891 = vmatprep.mubr.f32.mxu0 0.0
        %2892 = vmatmul.mubr.f32.gmra.mxu0 %v1110
        %v2893 = vpop.f32.mrf.mxu0
        %v2894 = vadd.f32 0.0, %v2893
        %v2895 = vpop.f32.mrf.mxu0
        %2896 = vmatprep.mubr.f32.mxu0 0.0
        %2897 = vmatmul.mubr.f32.gmra.mxu0 %v1112
        %v2898 = vpop.f32.mrf.mxu0
        %v2899 = vadd.f32 0.0, %v2898
        %v2900 = vpop.f32.mrf.mxu0
        %2901 = vmatprep.mubr.f32.mxu0 0.0
        %2902 = vmatmul.mubr.f32.gmra.mxu0 %v1114
        %v2903 = vpop.f32.mrf.mxu0
        %v2904 = vadd.f32 0.0, %v2903
        %v2905 = vpop.f32.mrf.mxu0
        %2906 = vmatprep.mubr.f32.mxu0 0.0
        %2907 = vmatmul.mubr.f32.gmra.mxu0 %v1116
        %v2908 = vpop.f32.mrf.mxu0
        %v2909 = vadd.f32 0.0, %v2908
        %v2910 = vpop.f32.mrf.mxu0
        %2911 = vmatprep.mubr.f32.mxu0 0.0
        %2912 = vmatmul.mubr.f32.gmra.mxu0 %v1118
        %v2913 = vpop.f32.mrf.mxu0
        %v2914 = vadd.f32 0.0, %v2913
        %v2915 = vpop.f32.mrf.mxu0
        %2916 = vmatprep.mubr.f32.mxu0 0.0
        %2917 = vmatmul.mubr.f32.gmra.mxu0 %v1120
        %v2918 = vpop.f32.mrf.mxu0
        %v2919 = vadd.f32 0.0, %v2918
        %v2920 = vpop.f32.mrf.mxu0
        %2921 = vmatprep.mubr.f32.mxu0 0.0
        %2922 = vmatmul.mubr.f32.gmra.mxu0 %v1122
        %v2923 = vpop.f32.mrf.mxu0
        %v2924 = vadd.f32 0.0, %v2923
        %v2925 = vpop.f32.mrf.mxu0
        %2926 = vmatprep.mubr.f32.mxu0 0.0
        %2927 = vmatmul.mubr.f32.gmra.mxu0 %v1124
        %v2928 = vpop.f32.mrf.mxu0
        %v2929 = vadd.f32 0.0, %v2928
        %v2930 = vpop.f32.mrf.mxu0
        %2931 = vmatprep.mubr.f32.mxu0 0.0
        %2932 = vmatmul.mubr.f32.gmra.mxu0 %v1126
        %v2933 = vpop.f32.mrf.mxu0
        %v2934 = vadd.f32 0.0, %v2933
        %v2935 = vpop.f32.mrf.mxu0
        %2936 = vmatprep.mubr.f32.mxu0 0.0
        %2937 = vmatmul.mubr.f32.gmra.mxu0 %v1128
        %v2938 = vpop.f32.mrf.mxu0
        %v2939 = vadd.f32 0.0, %v2938
        %v2940 = vpop.f32.mrf.mxu0
        %2941 = vmatprep.mubr.f32.mxu0 0.0
        %2942 = vmatmul.mubr.f32.gmra.mxu0 %v1130
        %v2943 = vpop.f32.mrf.mxu0
        %v2944 = vadd.f32 0.0, %v2943
        %v2945 = vpop.f32.mrf.mxu0
        %2946 = vmatprep.mubr.f32.mxu0 0.0
        %2947 = vmatmul.mubr.f32.gmra.mxu0 %v1132
        %v2948 = vpop.f32.mrf.mxu0
        %v2949 = vadd.f32 0.0, %v2948
        %v2950 = vpop.f32.mrf.mxu0
        %2951 = vmatprep.mubr.f32.mxu0 0.0
        %2952 = vmatmul.mubr.f32.gmra.mxu0 %v1134
        %v2953 = vpop.f32.mrf.mxu0
        %v2954 = vadd.f32 0.0, %v2953
        %v2955 = vpop.f32.mrf.mxu0
        %2956 = vmatprep.mubr.f32.mxu0 0.0
        %2957 = vmatmul.mubr.f32.gmra.mxu0 %v1136
        %v2958 = vpop.f32.mrf.mxu0
        %v2959 = vadd.f32 0.0, %v2958
        %v2960 = vpop.f32.mrf.mxu0
        %2961 = vmatprep.mubr.f32.mxu0 0.0
        %2962 = vmatmul.mubr.f32.gmra.mxu0 %v1138
        %v2963 = vpop.f32.mrf.mxu0
        %v2964 = vadd.f32 0.0, %v2963
        %v2965 = vpop.f32.mrf.mxu0
        %2966 = vmatprep.mubr.f32.mxu0 0.0
        %2967 = vmatmul.mubr.f32.gmra.mxu0 %v1140
        %v2968 = vpop.f32.mrf.mxu0
        %v2969 = vadd.f32 0.0, %v2968
        %v2970 = vpop.f32.mrf.mxu0
        %2971 = vmatprep.mubr.f32.mxu0 0.0
        %2972 = vmatmul.mubr.f32.gmra.mxu0 %v1949
        %v2973 = vpop.f32.mrf.mxu0
        %v2974 = vadd.f32 0.0, %v2973
        %v2975 = vpop.f32.mrf.mxu0
        %2976 = vmatprep.mubr.f32.mxu0 0.0
        %2977 = vmatmul.mubr.f32.gmra.mxu0 %v1951
        %v2978 = vpop.f32.mrf.mxu0
        %v2979 = vadd.f32 0.0, %v2978
        %v2980 = vpop.f32.mrf.mxu0
        %2981 = vmatprep.mubr.f32.mxu0 0.0
        %2982 = vmatmul.mubr.f32.gmra.mxu0 %v2760
        %v2983 = vpop.f32.mrf.mxu0
        %v2984 = vadd.f32 0.0, %v2983
        %v2985 = vpop.f32.mrf.mxu0
        %2986 = vmatprep.mubr.f32.mxu0 0.0
        %2987 = vmatmul.mubr.f32.gmra.mxu0 %v2762
        %v2988 = vpop.f32.mrf.mxu0
        %v2989 = vadd.f32 0.0, %v2988
        %v2990 = vpop.f32.mrf.mxu0
        %2991 = vdwg.mxu0
        %v2992 = vadd.f32 %v2721, %v2834
        %v2993 = vadd.f32 %v2722, %v2839
        %v2994 = vadd.f32 %v2723, %v2844
        %v2995 = vadd.f32 %v2724, %v2849
        %v2996 = vadd.f32 %v2725, %v2854
        %v2997 = vadd.f32 %v2726, %v2859
        %v2998 = vadd.f32 %v2727, %v2864
        %v2999 = vadd.f32 %v2728, %v2869
        %v3000 = vadd.f32 %v2729, %v2874
        %v3001 = vadd.f32 %v2730, %v2879
        %v3002 = vadd.f32 %v2731, %v2884
        %v3003 = vadd.f32 %v2732, %v2889
        %v3004 = vadd.f32 %v2733, %v2894
        %v3005 = vadd.f32 %v2734, %v2899
        %v3006 = vadd.f32 %v2735, %v2904
        %v3007 = vadd.f32 %v2736, %v2909
        %v3008 = vadd.f32 %v2737, %v2914
        %v3009 = vadd.f32 %v2738, %v2919
        %v3010 = vadd.f32 %v2739, %v2924
        %v3011 = vadd.f32 %v2740, %v2929
        %v3012 = vadd.f32 %v2741, %v2934
        %v3013 = vadd.f32 %v2742, %v2939
        %v3014 = vadd.f32 %v2743, %v2944
        %v3015 = vadd.f32 %v2744, %v2949
        %v3016 = vadd.f32 %v2745, %v2954
        %v3017 = vadd.f32 %v2746, %v2959
        %v3018 = vadd.f32 %v2747, %v2964
        %v3019 = vadd.f32 %v2748, %v2969
        %v3020 = vadd.f32 %v2749, %v2974
        %v3021 = vadd.f32 %v2750, %v2979
        %v3022 = vadd.f32 %v2751, %v2984
        %v3023 = vadd.f32 %v2752, %v2989
        %v3024 = vld [vmem:[%s2] sm:$0x1]
        %v3026 = vlaneseq
        %v3027 = vshrl.u32 %v3026, 7
        %v3028 = vsub.s32 0, %v3027
        %v3029 = vrot.slane %v3024, %v3028
        %v3031 = vadd.f32 %v2992, %v3029
        %v3032 = vadd.f32 %v2993, %v3029
        %v3033 = vadd.f32 %v2994, %v3029
        %v3034 = vadd.f32 %v2995, %v3029
        %v3035 = vadd.f32 %v2996, %v3029
        %v3036 = vadd.f32 %v2997, %v3029
        %v3037 = vadd.f32 %v2998, %v3029
        %v3038 = vadd.f32 %v2999, %v3029
        %v3039 = vadd.f32 %v3000, %v3029
        %v3040 = vadd.f32 %v3001, %v3029
        %v3041 = vadd.f32 %v3002, %v3029
        %v3042 = vadd.f32 %v3003, %v3029
        %v3043 = vadd.f32 %v3004, %v3029
        %v3044 = vadd.f32 %v3005, %v3029
        %v3045 = vadd.f32 %v3006, %v3029
        %v3046 = vadd.f32 %v3007, %v3029
        %v3047 = vadd.f32 %v3008, %v3029
        %v3048 = vadd.f32 %v3009, %v3029
        %v3049 = vadd.f32 %v3010, %v3029
        %v3050 = vadd.f32 %v3011, %v3029
        %v3051 = vadd.f32 %v3012, %v3029
        %v3052 = vadd.f32 %v3013, %v3029
        %v3053 = vadd.f32 %v3014, %v3029
        %v3054 = vadd.f32 %v3015, %v3029
        %v3055 = vadd.f32 %v3016, %v3029
        %v3056 = vadd.f32 %v3017, %v3029
        %v3057 = vadd.f32 %v3018, %v3029
        %v3058 = vadd.f32 %v3019, %v3029
        %v3059 = vadd.f32 %v3020, %v3029
        %v3060 = vadd.f32 %v3021, %v3029
        %v3061 = vadd.f32 %v3022, %v3029
        %v3062 = vadd.f32 %v3023, %v3029
        %v3063 = vmax.f32 %v3031, 0.0
        %v3064 = vmax.f32 %v3032, 0.0
        %v3065 = vmax.f32 %v3033, 0.0
        %v3066 = vmax.f32 %v3034, 0.0
        %v3067 = vmax.f32 %v3035, 0.0
        %v3068 = vmax.f32 %v3036, 0.0
        %v3069 = vmax.f32 %v3037, 0.0
        %v3070 = vmax.f32 %v3038, 0.0
        %v3071 = vmax.f32 %v3039, 0.0
        %v3072 = vmax.f32 %v3040, 0.0
        %v3073 = vmax.f32 %v3041, 0.0
        %v3074 = vmax.f32 %v3042, 0.0
        %v3075 = vmax.f32 %v3043, 0.0
        %v3076 = vmax.f32 %v3044, 0.0
        %v3077 = vmax.f32 %v3045, 0.0
        %v3078 = vmax.f32 %v3046, 0.0
        %v3079 = vmax.f32 %v3047, 0.0
        %v3080 = vmax.f32 %v3048, 0.0
        %v3081 = vmax.f32 %v3049, 0.0
        %v3082 = vmax.f32 %v3050, 0.0
        %v3083 = vmax.f32 %v3051, 0.0
        %v3084 = vmax.f32 %v3052, 0.0
        %v3085 = vmax.f32 %v3053, 0.0
        %v3086 = vmax.f32 %v3054, 0.0
        %v3087 = vmax.f32 %v3055, 0.0
        %v3088 = vmax.f32 %v3056, 0.0
        %v3089 = vmax.f32 %v3057, 0.0
        %v3090 = vmax.f32 %v3058, 0.0
        %v3091 = vmax.f32 %v3059, 0.0
        %v3092 = vmax.f32 %v3060, 0.0
        %v3093 = vmax.f32 %v3061, 0.0
        %v3094 = vmax.f32 %v3062, 0.0
        %vm3095 = vcmask 261120
        %3096 = vst.msk [vmem:[#allocation2] sm:$0xff] %vm3095, 0.0
        %3097 = vst.msk [vmem:[#allocation2 + $0x8] sm:$0xff] %vm3095, 0.0
        %vm3098 = vcmask 254976
        %3099 = vst.msk [vmem:[#allocation2 + $0x10] sm:$0x3] %vm3098, 0.0
        %3100 = vst.msk [vmem:[#allocation2 + $0x18] sm:$0xff] %vm3095, 0.0
        %3101 = vst.msk [vmem:[#allocation2 + $0x20] sm:$0xff] %vm3095, 0.0
        %3102 = vst.msk [vmem:[#allocation2 + $0x28] sm:$0x3] %vm3098, 0.0
        %3103 = vst.msk [vmem:[#allocation2 + $0x30] sm:$0xff] %vm3095, 0.0
        %3104 = vst.msk [vmem:[#allocation2 + $0x38] sm:$0xff] %vm3095, 0.0
        %3105 = vst.msk [vmem:[#allocation2 + $0x40] sm:$0x3] %vm3098, 0.0
        %3106 = vst.msk [vmem:[#allocation2 + $0x48] sm:$0xff] %vm3095, 0.0
        %3107 = vst.msk [vmem:[#allocation2 + $0x50] sm:$0xff] %vm3095, 0.0
        %3108 = vst.msk [vmem:[#allocation2 + $0x58] sm:$0x3] %vm3098, 0.0
        %3109 = vst.msk [vmem:[#allocation2 + $0x60] sm:$0xff] %vm3095, 0.0
        %3110 = vst.msk [vmem:[#allocation2 + $0x68] sm:$0xff] %vm3095, 0.0
        %3111 = vst.msk [vmem:[#allocation2 + $0x70] sm:$0x3] %vm3098, 0.0
        %3112 = vst.msk [vmem:[#allocation2 + $0x78] sm:$0xff] %vm3095, 0.0
        %3113 = vst.msk [vmem:[#allocation2 + $0x80] sm:$0xff] %vm3095, 0.0
        %3114 = vst.msk [vmem:[#allocation2 + $0x88] sm:$0x3] %vm3098, 0.0
        %3115 = vst.msk [vmem:[#allocation2 + $0x90] sm:$0xff] %vm3095, 0.0
        %3116 = vst.msk [vmem:[#allocation2 + $0x98] sm:$0xff] %vm3095, 0.0
        %3117 = vst.msk [vmem:[#allocation2 + $0xa0] sm:$0x3] %vm3098, 0.0
        %3118 = vst.msk [vmem:[#allocation2 + $0xa8] sm:$0xff] %vm3095, 0.0
        %3119 = vst.msk [vmem:[#allocation2 + $0xb0] sm:$0xff] %vm3095, 0.0
        %3120 = vst.msk [vmem:[#allocation2 + $0xb8] sm:$0x3] %vm3098, 0.0
        %3121 = vst.msk [vmem:[#allocation2 + $0xc0] sm:$0xff] %vm3095, 0.0
        %3122 = vst.msk [vmem:[#allocation2 + $0xc8] sm:$0xff] %vm3095, 0.0
        %3123 = vst.msk [vmem:[#allocation2 + $0xd0] sm:$0x3] %vm3098, 0.0
        %3124 = vst.msk [vmem:[#allocation2 + $0xd8] sm:$0xff] %vm3095, 0.0
        %3125 = vst.msk [vmem:[#allocation2 + $0xe0] sm:$0xff] %vm3095, 0.0
        %3126 = vst.msk [vmem:[#allocation2 + $0xe8] sm:$0x3] %vm3098, 0.0
        %3127 = vst.msk [vmem:[#allocation2 + $0xf0] sm:$0xff] %vm3095, 0.0
        %3128 = vst.msk [vmem:[#allocation2 + $0xf8] sm:$0xff] %vm3095, 0.0
        %3129 = vst.msk [vmem:[#allocation2 + $0x100] sm:$0x3] %vm3098, 0.0
        %3130 = vst.msk [vmem:[#allocation2 + $0x108] sm:$0xff] %vm3095, 0.0
        %3131 = vst.msk [vmem:[#allocation2 + $0x110] sm:$0xff] %vm3095, 0.0
        %3132 = vst.msk [vmem:[#allocation2 + $0x118] sm:$0x3] %vm3098, 0.0
        %3133 = vst.msk [vmem:[#allocation2 + $0x120] sm:$0xff] %vm3095, 0.0
        %3134 = vst.msk [vmem:[#allocation2 + $0x128] sm:$0xff] %vm3095, 0.0
        %3135 = vst.msk [vmem:[#allocation2 + $0x130] sm:$0x3] %vm3098, 0.0
        %3136 = vst.msk [vmem:[#allocation2 + $0x138] sm:$0xff] %vm3095, 0.0
        %3137 = vst.msk [vmem:[#allocation2 + $0x140] sm:$0xff] %vm3095, 0.0
        %3138 = vst.msk [vmem:[#allocation2 + $0x148] sm:$0x3] %vm3098, 0.0
        %3139 = vst.msk [vmem:[#allocation2 + $0x150] sm:$0xff] %vm3095, 0.0
        %3140 = vst.msk [vmem:[#allocation2 + $0x158] sm:$0xff] %vm3095, 0.0
        %3141 = vst.msk [vmem:[#allocation2 + $0x160] sm:$0x3] %vm3098, 0.0
        %3142 = vst.msk [vmem:[#allocation2 + $0x168] sm:$0xff] %vm3095, 0.0
        %3143 = vst.msk [vmem:[#allocation2 + $0x170] sm:$0xff] %vm3095, 0.0
        %3144 = vst.msk [vmem:[#allocation2 + $0x178] sm:$0x3] %vm3098, 0.0
        %3145 = vst.msk [vmem:[#allocation2 + $0x180] sm:$0xff] %vm3095, 0.0
        %3146 = vst.msk [vmem:[#allocation2 + $0x188] sm:$0xff] %vm3095, 0.0
        %3147 = vst.msk [vmem:[#allocation2 + $0x190] sm:$0x3] %vm3098, 0.0
        %3148 = vst.msk [vmem:[#allocation2 + $0x198] sm:$0xff] %vm3095, 0.0
        %3149 = vst.msk [vmem:[#allocation2 + $0x1a0] sm:$0xff] %vm3095, 0.0
        %3150 = vst.msk [vmem:[#allocation2 + $0x1a8] sm:$0x3] %vm3098, 0.0
        %s3151 = scalar_lea.vmem [#allocation2], 24
        %3152 = vst.msk [vmem:[%s3151 + $0x1] sm:$0xff] %vm3095, %v3063
        %3153 = vst.msk [vmem:[%s3151 + $0x9] sm:$0xff] %vm3095, %v3064
        %3154 = vst.msk [vmem:[%s3151 + $0x19] sm:$0xff] %vm3095, %v3065
        %3155 = vst.msk [vmem:[%s3151 + $0x21] sm:$0xff] %vm3095, %v3066
        %3156 = vst.msk [vmem:[%s3151 + $0x31] sm:$0xff] %vm3095, %v3067
        %3157 = vst.msk [vmem:[%s3151 + $0x39] sm:$0xff] %vm3095, %v3068
        %3158 = vst.msk [vmem:[%s3151 + $0x49] sm:$0xff] %vm3095, %v3069
        %3159 = vst.msk [vmem:[%s3151 + $0x51] sm:$0xff] %vm3095, %v3070
        %3160 = vst.msk [vmem:[%s3151 + $0x61] sm:$0xff] %vm3095, %v3071
        %3161 = vst.msk [vmem:[%s3151 + $0x69] sm:$0xff] %vm3095, %v3072
        %3162 = vst.msk [vmem:[%s3151 + $0x79] sm:$0xff] %vm3095, %v3073
        %3163 = vst.msk [vmem:[%s3151 + $0x81] sm:$0xff] %vm3095, %v3074
        %3164 = vst.msk [vmem:[%s3151 + $0x91] sm:$0xff] %vm3095, %v3075
        %3165 = vst.msk [vmem:[%s3151 + $0x99] sm:$0xff] %vm3095, %v3076
        %3166 = vst.msk [vmem:[%s3151 + $0xa9] sm:$0xff] %vm3095, %v3077
        %3167 = vst.msk [vmem:[%s3151 + $0xb1] sm:$0xff] %vm3095, %v3078
        %3168 = vst.msk [vmem:[%s3151 + $0xc1] sm:$0xff] %vm3095, %v3079
        %3169 = vst.msk [vmem:[%s3151 + $0xc9] sm:$0xff] %vm3095, %v3080
        %3170 = vst.msk [vmem:[%s3151 + $0xd9] sm:$0xff] %vm3095, %v3081
        %3171 = vst.msk [vmem:[%s3151 + $0xe1] sm:$0xff] %vm3095, %v3082
        %3172 = vst.msk [vmem:[%s3151 + $0xf1] sm:$0xff] %vm3095, %v3083
        %3173 = vst.msk [vmem:[%s3151 + $0xf9] sm:$0xff] %vm3095, %v3084
        %3174 = vst.msk [vmem:[%s3151 + $0x109] sm:$0xff] %vm3095, %v3085
        %3175 = vst.msk [vmem:[%s3151 + $0x111] sm:$0xff] %vm3095, %v3086
        %3176 = vst.msk [vmem:[%s3151 + $0x121] sm:$0xff] %vm3095, %v3087
        %3177 = vst.msk [vmem:[%s3151 + $0x129] sm:$0xff] %vm3095, %v3088
        %3178 = vst.msk [vmem:[%s3151 + $0x139] sm:$0xff] %vm3095, %v3089
        %3179 = vst.msk [vmem:[%s3151 + $0x141] sm:$0xff] %vm3095, %v3090
        %3180 = vst.msk [vmem:[%s3151 + $0x151] sm:$0xff] %vm3095, %v3091
        %3181 = vst.msk [vmem:[%s3151 + $0x159] sm:$0xff] %vm3095, %v3092
        %3182 = vst.msk [vmem:[%s3151 + $0x169] sm:$0xff] %vm3095, %v3093
        %3183 = vst.msk [vmem:[%s3151 + $0x171] sm:$0xff] %vm3095, %v3094
        %v3184 = vld [vmem:[#allocation2] sm:$0xff]
        %v3185 = vld [vmem:[#allocation2 + $0x8] sm:$0xff]
        %v3186 = vld [vmem:[#allocation2 + $0x18] sm:$0xff]
        %v3187 = vld [vmem:[#allocation2 + $0x20] sm:$0xff]
        %v3188 = vld [vmem:[#allocation2 + $0x30] sm:$0xff]
        %v3189 = vld [vmem:[#allocation2 + $0x38] sm:$0xff]
        %v3190 = vld [vmem:[#allocation2 + $0x48] sm:$0xff]
        %v3191 = vld [vmem:[#allocation2 + $0x50] sm:$0xff]
        %v3192 = vld [vmem:[#allocation2 + $0x60] sm:$0xff]
        %v3193 = vld [vmem:[#allocation2 + $0x68] sm:$0xff]
        %v3194 = vld [vmem:[#allocation2 + $0x78] sm:$0xff]
        %v3195 = vld [vmem:[#allocation2 + $0x80] sm:$0xff]
        %v3196 = vld [vmem:[#allocation2 + $0x90] sm:$0xff]
        %v3197 = vld [vmem:[#allocation2 + $0x98] sm:$0xff]
        %v3198 = vld [vmem:[#allocation2 + $0xa8] sm:$0xff]
        %v3199 = vld [vmem:[#allocation2 + $0xb0] sm:$0xff]
        %v3200 = vld [vmem:[#allocation2 + $0xc0] sm:$0xff]
        %v3201 = vld [vmem:[#allocation2 + $0xc8] sm:$0xff]
        %v3202 = vld [vmem:[#allocation2 + $0xd8] sm:$0xff]
        %v3203 = vld [vmem:[#allocation2 + $0xe0] sm:$0xff]
        %v3204 = vld [vmem:[#allocation2 + $0xf0] sm:$0xff]
        %v3205 = vld [vmem:[#allocation2 + $0xf8] sm:$0xff]
        %v3206 = vld [vmem:[#allocation2 + $0x108] sm:$0xff]
        %v3207 = vld [vmem:[#allocation2 + $0x110] sm:$0xff]
        %v3208 = vld [vmem:[#allocation2 + $0x120] sm:$0xff]
        %v3209 = vld [vmem:[#allocation2 + $0x128] sm:$0xff]
        %v3210 = vld [vmem:[#allocation2 + $0x138] sm:$0xff]
        %v3211 = vld [vmem:[#allocation2 + $0x140] sm:$0xff]
        %v3212 = vld [vmem:[#allocation2 + $0x150] sm:$0xff]
        %v3213 = vld [vmem:[#allocation2 + $0x158] sm:$0xff]
        %v3214 = vld [vmem:[#allocation2 + $0x168] sm:$0xff]
        %v3215 = vld [vmem:[#allocation2 + $0x170] sm:$0xff]
        %v3216 = vld [vmem:[%s3] sm:$0xff]
        %v3217 = vld [vmem:[%s3 + $0x8] sm:$0xff]
        %v3218 = vld [vmem:[%s3 + $0x10] sm:$0xff]
        %v3219 = vld [vmem:[%s3 + $0x18] sm:$0xff]
        %v3220 = vld [vmem:[#allocation2 + $0x1] sm:$0xff]
        %v3221 = vld [vmem:[#allocation2 + $0x9] sm:$0xff]
        %v3222 = vld [vmem:[#allocation2 + $0x19] sm:$0xff]
        %v3223 = vld [vmem:[#allocation2 + $0x21] sm:$0xff]
        %v3224 = vld [vmem:[#allocation2 + $0x31] sm:$0xff]
        %v3225 = vld [vmem:[#allocation2 + $0x39] sm:$0xff]
        %v3226 = vld [vmem:[#allocation2 + $0x49] sm:$0xff]
        %v3227 = vld [vmem:[#allocation2 + $0x51] sm:$0xff]
        %v3228 = vld [vmem:[#allocation2 + $0x61] sm:$0xff]
        %v3229 = vld [vmem:[#allocation2 + $0x69] sm:$0xff]
        %v3230 = vld [vmem:[#allocation2 + $0x79] sm:$0xff]
        %v3231 = vld [vmem:[#allocation2 + $0x81] sm:$0xff]
        %v3232 = vld [vmem:[#allocation2 + $0x91] sm:$0xff]
        %v3233 = vld [vmem:[#allocation2 + $0x99] sm:$0xff]
        %v3234 = vld [vmem:[#allocation2 + $0xa9] sm:$0xff]
        %v3235 = vld [vmem:[#allocation2 + $0xb1] sm:$0xff]
        %v3236 = vld [vmem:[#allocation2 + $0xc1] sm:$0xff]
        %v3237 = vld [vmem:[#allocation2 + $0xc9] sm:$0xff]
        %v3238 = vld [vmem:[#allocation2 + $0xd9] sm:$0xff]
        %v3239 = vld [vmem:[#allocation2 + $0xe1] sm:$0xff]
        %v3240 = vld [vmem:[#allocation2 + $0xf1] sm:$0xff]
        %v3241 = vld [vmem:[#allocation2 + $0xf9] sm:$0xff]
        %v3242 = vld [vmem:[#allocation2 + $0x109] sm:$0xff]
        %v3243 = vld [vmem:[#allocation2 + $0x111] sm:$0xff]
        %v3244 = vld [vmem:[#allocation2 + $0x121] sm:$0xff]
        %v3245 = vld [vmem:[#allocation2 + $0x129] sm:$0xff]
        %v3246 = vld [vmem:[#allocation2 + $0x139] sm:$0xff]
        %v3247 = vld [vmem:[#allocation2 + $0x141] sm:$0xff]
        %v3248 = vld [vmem:[#allocation2 + $0x151] sm:$0xff]
        %v3249 = vld [vmem:[#allocation2 + $0x159] sm:$0xff]
        %v3250 = vld [vmem:[#allocation2 + $0x169] sm:$0xff]
        %v3251 = vld [vmem:[#allocation2 + $0x171] sm:$0xff]
        %s3252 = scalar_lea.vmem %s3, 32
        %v3253 = vld [vmem:[%s3252] sm:$0xff]
        %v3254 = vld [vmem:[%s3252 + $0x8] sm:$0xff]
        %v3255 = vld [vmem:[%s3252 + $0x10] sm:$0xff]
        %v3256 = vld [vmem:[%s3252 + $0x18] sm:$0xff]
        %v3258 = vsel %vm3095, %v3220, 0
        %v3261 = vsel %vm3095, %v3221, 0
        %v3264 = vsel %vm3095, %v3222, 0
        %v3267 = vsel %vm3095, %v3223, 0
        %v3270 = vsel %vm3095, %v3224, 0
        %v3273 = vsel %vm3095, %v3225, 0
        %v3276 = vsel %vm3095, %v3226, 0
        %v3279 = vsel %vm3095, %v3227, 0
        %v3282 = vsel %vm3095, %v3228, 0
        %v3285 = vsel %vm3095, %v3229, 0
        %v3288 = vsel %vm3095, %v3230, 0
        %v3291 = vsel %vm3095, %v3231, 0
        %v3294 = vsel %vm3095, %v3232, 0
        %v3297 = vsel %vm3095, %v3233, 0
        %v3300 = vsel %vm3095, %v3234, 0
        %v3303 = vsel %vm3095, %v3235, 0
        %v3306 = vsel %vm3095, %v3236, 0
        %v3309 = vsel %vm3095, %v3237, 0
        %v3312 = vsel %vm3095, %v3238, 0
        %v3315 = vsel %vm3095, %v3239, 0
        %v3318 = vsel %vm3095, %v3240, 0
        %v3321 = vsel %vm3095, %v3241, 0
        %v3324 = vsel %vm3095, %v3242, 0
        %v3327 = vsel %vm3095, %v3243, 0
        %v3330 = vsel %vm3095, %v3244, 0
        %v3333 = vsel %vm3095, %v3245, 0
        %v3336 = vsel %vm3095, %v3246, 0
        %v3339 = vsel %vm3095, %v3247, 0
        %v3342 = vsel %vm3095, %v3248, 0
        %v3345 = vsel %vm3095, %v3249, 0
        %v3348 = vsel %vm3095, %v3250, 0
        %v3351 = vsel %vm3095, %v3251, 0
        %3353 = vmatprep.subr.mxu0 0.0
        %3354 = vmatpush1.msra.mxu0 0.0
        %3355 = vmatprep.subr.mxu0 0.0
        %3356 = vmatpush1.msra.mxu0 0.0
        %3357 = vmatprep.subr.mxu0 0.0
        %3358 = vmatpush1.msra.mxu0 0.0
        %3359 = vmatprep.subr.mxu0 0.0
        %3360 = vmatpush1.msra.mxu0 0.0
        %3361 = vmatprep.subr.mxu0 0.0
        %3362 = vmatpush1.msra.mxu0 0.0
        %3363 = vmatprep.subr.mxu0 0.0
        %3364 = vmatpush1.msra.mxu0 0.0
        %3365 = vmatprep.subr.mxu0 0.0
        %3366 = vmatpush1.msra.mxu0 0.0
        %3367 = vmatprep.subr.mxu0 0.0
        %3368 = vmatpush1.msra.mxu0 0.0
        %3369 = vmatprep.subr.mxu0 0.0
        %3370 = vmatpush1.msra.mxu0 0.0
        %3371 = vmatprep.subr.mxu0 0.0
        %3372 = vmatpush1.msra.mxu0 0.0
        %3373 = vmatprep.subr.mxu0 0.0
        %3374 = vmatpush1.msra.mxu0 0.0
        %3375 = vmatprep.subr.mxu0 0.0
        %3376 = vmatpush1.msra.mxu0 0.0
        %3377 = vmatprep.subr.mxu0 0.0
        %3378 = vmatpush1.msra.mxu0 %v3256
        %3379 = vmatprep.subr.mxu0 0.0
        %3380 = vmatpush1.msra.mxu0 %v3255
        %3381 = vmatprep.subr.mxu0 0.0
        %3382 = vmatpush1.msra.mxu0 %v3254
        %3383 = vmatprep.subr.mxu0 0.0
        %3384 = vmatpush1.msra.mxu0 %v3253
        %3385 = vmatprep.subr.mxu0 0.0
        %3386 = vmatpush2.msra.mxu0 0.0
        %3387 = vmatprep.subr.mxu0 0.0
        %3388 = vmatpush2.msra.mxu0 0.0
        %3389 = vmatprep.subr.mxu0 0.0
        %3390 = vmatpush2.msra.mxu0 0.0
        %3391 = vmatprep.subr.mxu0 0.0
        %3392 = vmatpush2.msra.mxu0 0.0
        %3393 = vmatprep.subr.mxu0 0.0
        %3394 = vmatpush2.msra.mxu0 0.0
        %3395 = vmatprep.subr.mxu0 0.0
        %3396 = vmatpush2.msra.mxu0 0.0
        %3397 = vmatprep.subr.mxu0 0.0
        %3398 = vmatpush2.msra.mxu0 0.0
        %3399 = vmatprep.subr.mxu0 0.0
        %3400 = vmatpush2.msra.mxu0 0.0
        %3401 = vmatprep.subr.mxu0 0.0
        %3402 = vmatpush2.msra.mxu0 0.0
        %3403 = vmatprep.subr.mxu0 0.0
        %3404 = vmatpush2.msra.mxu0 0.0
        %3405 = vmatprep.subr.mxu0 0.0
        %3406 = vmatpush2.msra.mxu0 0.0
        %3407 = vmatprep.subr.mxu0 0.0
        %3408 = vmatpush2.msra.mxu0 0.0
        %3409 = vmatprep.subr.mxu0 0.0
        %3410 = vmatpush2.msra.mxu0 0.0
        %3411 = vmatprep.subr.mxu0 0.0
        %3412 = vmatpush2.msra.mxu0 0.0
        %3413 = vmatprep.subr.mxu0 0.0
        %3414 = vmatpush2.msra.mxu0 0.0
        %3415 = vmatprep.subr.mxu0 0.0
        %3416 = vmatpush2.msra.mxu0 0.0
        %3417 = vmatprep.mubr.f32.mxu0 0.0
        %3418 = vmatmul.mubr.f32.gmra.mxu0 %v3258
        %v3419 = vpop.f32.mrf.mxu0
        %v3420 = vadd.f32 0.0, %v3419
        %v3421 = vpop.f32.mrf.mxu0
        %3422 = vmatprep.mubr.f32.mxu0 0.0
        %3423 = vmatmul.mubr.f32.gmra.mxu0 %v3261
        %v3424 = vpop.f32.mrf.mxu0
        %v3425 = vadd.f32 0.0, %v3424
        %v3426 = vpop.f32.mrf.mxu0
        %3427 = vmatprep.mubr.f32.mxu0 0.0
        %3428 = vmatmul.mubr.f32.gmra.mxu0 %v3264
        %v3429 = vpop.f32.mrf.mxu0
        %v3430 = vadd.f32 0.0, %v3429
        %v3431 = vpop.f32.mrf.mxu0
        %3432 = vmatprep.mubr.f32.mxu0 0.0
        %3433 = vmatmul.mubr.f32.gmra.mxu0 %v3267
        %v3434 = vpop.f32.mrf.mxu0
        %v3435 = vadd.f32 0.0, %v3434
        %v3436 = vpop.f32.mrf.mxu0
        %3437 = vmatprep.mubr.f32.mxu0 0.0
        %3438 = vmatmul.mubr.f32.gmra.mxu0 %v3270
        %v3439 = vpop.f32.mrf.mxu0
        %v3440 = vadd.f32 0.0, %v3439
        %v3441 = vpop.f32.mrf.mxu0
        %3442 = vmatprep.mubr.f32.mxu0 0.0
        %3443 = vmatmul.mubr.f32.gmra.mxu0 %v3273
        %v3444 = vpop.f32.mrf.mxu0
        %v3445 = vadd.f32 0.0, %v3444
        %v3446 = vpop.f32.mrf.mxu0
        %3447 = vmatprep.mubr.f32.mxu0 0.0
        %3448 = vmatmul.mubr.f32.gmra.mxu0 %v3276
        %v3449 = vpop.f32.mrf.mxu0
        %v3450 = vadd.f32 0.0, %v3449
        %v3451 = vpop.f32.mrf.mxu0
        %3452 = vmatprep.mubr.f32.mxu0 0.0
        %3453 = vmatmul.mubr.f32.gmra.mxu0 %v3279
        %v3454 = vpop.f32.mrf.mxu0
        %v3455 = vadd.f32 0.0, %v3454
        %v3456 = vpop.f32.mrf.mxu0
        %3457 = vmatprep.mubr.f32.mxu0 0.0
        %3458 = vmatmul.mubr.f32.gmra.mxu0 %v3282
        %v3459 = vpop.f32.mrf.mxu0
        %v3460 = vadd.f32 0.0, %v3459
        %v3461 = vpop.f32.mrf.mxu0
        %3462 = vmatprep.mubr.f32.mxu0 0.0
        %3463 = vmatmul.mubr.f32.gmra.mxu0 %v3285
        %v3464 = vpop.f32.mrf.mxu0
        %v3465 = vadd.f32 0.0, %v3464
        %v3466 = vpop.f32.mrf.mxu0
        %3467 = vmatprep.mubr.f32.mxu0 0.0
        %3468 = vmatmul.mubr.f32.gmra.mxu0 %v3288
        %v3469 = vpop.f32.mrf.mxu0
        %v3470 = vadd.f32 0.0, %v3469
        %v3471 = vpop.f32.mrf.mxu0
        %3472 = vmatprep.mubr.f32.mxu0 0.0
        %3473 = vmatmul.mubr.f32.gmra.mxu0 %v3291
        %v3474 = vpop.f32.mrf.mxu0
        %v3475 = vadd.f32 0.0, %v3474
        %v3476 = vpop.f32.mrf.mxu0
        %3477 = vmatprep.mubr.f32.mxu0 0.0
        %3478 = vmatmul.mubr.f32.gmra.mxu0 %v3294
        %v3479 = vpop.f32.mrf.mxu0
        %v3480 = vadd.f32 0.0, %v3479
        %v3481 = vpop.f32.mrf.mxu0
        %3482 = vmatprep.mubr.f32.mxu0 0.0
        %3483 = vmatmul.mubr.f32.gmra.mxu0 %v3297
        %v3484 = vpop.f32.mrf.mxu0
        %v3485 = vadd.f32 0.0, %v3484
        %v3486 = vpop.f32.mrf.mxu0
        %3487 = vmatprep.mubr.f32.mxu0 0.0
        %3488 = vmatmul.mubr.f32.gmra.mxu0 %v3300
        %v3489 = vpop.f32.mrf.mxu0
        %v3490 = vadd.f32 0.0, %v3489
        %v3491 = vpop.f32.mrf.mxu0
        %3492 = vmatprep.mubr.f32.mxu0 0.0
        %3493 = vmatmul.mubr.f32.gmra.mxu0 %v3303
        %v3494 = vpop.f32.mrf.mxu0
        %v3495 = vadd.f32 0.0, %v3494
        %v3496 = vpop.f32.mrf.mxu0
        %3497 = vmatprep.mubr.f32.mxu0 0.0
        %3498 = vmatmul.mubr.f32.gmra.mxu0 %v3306
        %v3499 = vpop.f32.mrf.mxu0
        %v3500 = vadd.f32 0.0, %v3499
        %v3501 = vpop.f32.mrf.mxu0
        %3502 = vmatprep.mubr.f32.mxu0 0.0
        %3503 = vmatmul.mubr.f32.gmra.mxu0 %v3309
        %v3504 = vpop.f32.mrf.mxu0
        %v3505 = vadd.f32 0.0, %v3504
        %v3506 = vpop.f32.mrf.mxu0
        %3507 = vmatprep.mubr.f32.mxu0 0.0
        %3508 = vmatmul.mubr.f32.gmra.mxu0 %v3312
        %v3509 = vpop.f32.mrf.mxu0
        %v3510 = vadd.f32 0.0, %v3509
        %v3511 = vpop.f32.mrf.mxu0
        %3512 = vmatprep.mubr.f32.mxu0 0.0
        %3513 = vmatmul.mubr.f32.gmra.mxu0 %v3315
        %v3514 = vpop.f32.mrf.mxu0
        %v3515 = vadd.f32 0.0, %v3514
        %v3516 = vpop.f32.mrf.mxu0
        %3517 = vmatprep.mubr.f32.mxu0 0.0
        %3518 = vmatmul.mubr.f32.gmra.mxu0 %v3318
        %v3519 = vpop.f32.mrf.mxu0
        %v3520 = vadd.f32 0.0, %v3519
        %v3521 = vpop.f32.mrf.mxu0
        %3522 = vmatprep.mubr.f32.mxu0 0.0
        %3523 = vmatmul.mubr.f32.gmra.mxu0 %v3321
        %v3524 = vpop.f32.mrf.mxu0
        %v3525 = vadd.f32 0.0, %v3524
        %v3526 = vpop.f32.mrf.mxu0
        %3527 = vmatprep.mubr.f32.mxu0 0.0
        %3528 = vmatmul.mubr.f32.gmra.mxu0 %v3324
        %v3529 = vpop.f32.mrf.mxu0
        %v3530 = vadd.f32 0.0, %v3529
        %v3531 = vpop.f32.mrf.mxu0
        %3532 = vmatprep.mubr.f32.mxu0 0.0
        %3533 = vmatmul.mubr.f32.gmra.mxu0 %v3327
        %v3534 = vpop.f32.mrf.mxu0
        %v3535 = vadd.f32 0.0, %v3534
        %v3536 = vpop.f32.mrf.mxu0
        %3537 = vmatprep.mubr.f32.mxu0 0.0
        %3538 = vmatmul.mubr.f32.gmra.mxu0 %v3330
        %v3539 = vpop.f32.mrf.mxu0
        %v3540 = vadd.f32 0.0, %v3539
        %v3541 = vpop.f32.mrf.mxu0
        %3542 = vmatprep.mubr.f32.mxu0 0.0
        %3543 = vmatmul.mubr.f32.gmra.mxu0 %v3333
        %v3544 = vpop.f32.mrf.mxu0
        %v3545 = vadd.f32 0.0, %v3544
        %v3546 = vpop.f32.mrf.mxu0
        %3547 = vmatprep.mubr.f32.mxu0 0.0
        %3548 = vmatmul.mubr.f32.gmra.mxu0 %v3336
        %v3549 = vpop.f32.mrf.mxu0
        %v3550 = vadd.f32 0.0, %v3549
        %v3551 = vpop.f32.mrf.mxu0
        %3552 = vmatprep.mubr.f32.mxu0 0.0
        %3553 = vmatmul.mubr.f32.gmra.mxu0 %v3339
        %v3554 = vpop.f32.mrf.mxu0
        %v3555 = vadd.f32 0.0, %v3554
        %v3556 = vpop.f32.mrf.mxu0
        %3557 = vmatprep.mubr.f32.mxu0 0.0
        %3558 = vmatmul.mubr.f32.gmra.mxu0 %v3342
        %v3559 = vpop.f32.mrf.mxu0
        %v3560 = vadd.f32 0.0, %v3559
        %v3561 = vpop.f32.mrf.mxu0
        %3562 = vmatprep.mubr.f32.mxu0 0.0
        %3563 = vmatmul.mubr.f32.gmra.mxu0 %v3345
        %v3564 = vpop.f32.mrf.mxu0
        %v3565 = vadd.f32 0.0, %v3564
        %v3566 = vpop.f32.mrf.mxu0
        %3567 = vmatprep.mubr.f32.mxu0 0.0
        %3568 = vmatmul.mubr.f32.gmra.mxu0 %v3348
        %v3569 = vpop.f32.mrf.mxu0
        %v3570 = vadd.f32 0.0, %v3569
        %v3571 = vpop.f32.mrf.mxu0
        %3572 = vmatprep.mubr.f32.mxu0 0.0
        %3573 = vmatmul.mubr.f32.gmra.mxu0 %v3351
        %v3574 = vpop.f32.mrf.mxu0
        %v3575 = vadd.f32 0.0, %v3574
        %v3576 = vpop.f32.mrf.mxu0
        %3577 = vdwg.mxu0
        %v3579 = vsel %vm3095, %v3184, 0
        %v3582 = vsel %vm3095, %v3185, 0
        %v3585 = vsel %vm3095, %v3186, 0
        %v3588 = vsel %vm3095, %v3187, 0
        %v3591 = vsel %vm3095, %v3188, 0
        %v3594 = vsel %vm3095, %v3189, 0
        %v3597 = vsel %vm3095, %v3190, 0
        %v3600 = vsel %vm3095, %v3191, 0
        %v3603 = vsel %vm3095, %v3192, 0
        %v3606 = vsel %vm3095, %v3193, 0
        %v3609 = vsel %vm3095, %v3194, 0
        %v3612 = vsel %vm3095, %v3195, 0
        %v3615 = vsel %vm3095, %v3196, 0
        %v3618 = vsel %vm3095, %v3197, 0
        %v3621 = vsel %vm3095, %v3198, 0
        %v3624 = vsel %vm3095, %v3199, 0
        %v3627 = vsel %vm3095, %v3200, 0
        %v3630 = vsel %vm3095, %v3201, 0
        %v3633 = vsel %vm3095, %v3202, 0
        %v3636 = vsel %vm3095, %v3203, 0
        %v3639 = vsel %vm3095, %v3204, 0
        %v3642 = vsel %vm3095, %v3205, 0
        %v3645 = vsel %vm3095, %v3206, 0
        %v3648 = vsel %vm3095, %v3207, 0
        %v3651 = vsel %vm3095, %v3208, 0
        %v3654 = vsel %vm3095, %v3209, 0
        %v3657 = vsel %vm3095, %v3210, 0
        %v3660 = vsel %vm3095, %v3211, 0
        %v3663 = vsel %vm3095, %v3212, 0
        %v3666 = vsel %vm3095, %v3213, 0
        %v3669 = vsel %vm3095, %v3214, 0
        %v3672 = vsel %vm3095, %v3215, 0
        %3674 = vmatprep.subr.mxu0 0.0
        %3675 = vmatpush1.msra.mxu0 0.0
        %3676 = vmatprep.subr.mxu0 0.0
        %3677 = vmatpush1.msra.mxu0 0.0
        %3678 = vmatprep.subr.mxu0 0.0
        %3679 = vmatpush1.msra.mxu0 0.0
        %3680 = vmatprep.subr.mxu0 0.0
        %3681 = vmatpush1.msra.mxu0 0.0
        %3682 = vmatprep.subr.mxu0 0.0
        %3683 = vmatpush1.msra.mxu0 0.0
        %3684 = vmatprep.subr.mxu0 0.0
        %3685 = vmatpush1.msra.mxu0 0.0
        %3686 = vmatprep.subr.mxu0 0.0
        %3687 = vmatpush1.msra.mxu0 0.0
        %3688 = vmatprep.subr.mxu0 0.0
        %3689 = vmatpush1.msra.mxu0 0.0
        %3690 = vmatprep.subr.mxu0 0.0
        %3691 = vmatpush1.msra.mxu0 0.0
        %3692 = vmatprep.subr.mxu0 0.0
        %3693 = vmatpush1.msra.mxu0 0.0
        %3694 = vmatprep.subr.mxu0 0.0
        %3695 = vmatpush1.msra.mxu0 0.0
        %3696 = vmatprep.subr.mxu0 0.0
        %3697 = vmatpush1.msra.mxu0 0.0
        %3698 = vmatprep.subr.mxu0 0.0
        %3699 = vmatpush1.msra.mxu0 %v3219
        %3700 = vmatprep.subr.mxu0 0.0
        %3701 = vmatpush1.msra.mxu0 %v3218
        %3702 = vmatprep.subr.mxu0 0.0
        %3703 = vmatpush1.msra.mxu0 %v3217
        %3704 = vmatprep.subr.mxu0 0.0
        %3705 = vmatpush1.msra.mxu0 %v3216
        %3706 = vmatprep.subr.mxu0 0.0
        %3707 = vmatpush2.msra.mxu0 0.0
        %3708 = vmatprep.subr.mxu0 0.0
        %3709 = vmatpush2.msra.mxu0 0.0
        %3710 = vmatprep.subr.mxu0 0.0
        %3711 = vmatpush2.msra.mxu0 0.0
        %3712 = vmatprep.subr.mxu0 0.0
        %3713 = vmatpush2.msra.mxu0 0.0
        %3714 = vmatprep.subr.mxu0 0.0
        %3715 = vmatpush2.msra.mxu0 0.0
        %3716 = vmatprep.subr.mxu0 0.0
        %3717 = vmatpush2.msra.mxu0 0.0
        %3718 = vmatprep.subr.mxu0 0.0
        %3719 = vmatpush2.msra.mxu0 0.0
        %3720 = vmatprep.subr.mxu0 0.0
        %3721 = vmatpush2.msra.mxu0 0.0
        %3722 = vmatprep.subr.mxu0 0.0
        %3723 = vmatpush2.msra.mxu0 0.0
        %3724 = vmatprep.subr.mxu0 0.0
        %3725 = vmatpush2.msra.mxu0 0.0
        %3726 = vmatprep.subr.mxu0 0.0
        %3727 = vmatpush2.msra.mxu0 0.0
        %3728 = vmatprep.subr.mxu0 0.0
        %3729 = vmatpush2.msra.mxu0 0.0
        %3730 = vmatprep.subr.mxu0 0.0
        %3731 = vmatpush2.msra.mxu0 0.0
        %3732 = vmatprep.subr.mxu0 0.0
        %3733 = vmatpush2.msra.mxu0 0.0
        %3734 = vmatprep.subr.mxu0 0.0
        %3735 = vmatpush2.msra.mxu0 0.0
        %3736 = vmatprep.subr.mxu0 0.0
        %3737 = vmatpush2.msra.mxu0 0.0
        %3738 = vmatprep.mubr.f32.mxu0 0.0
        %3739 = vmatmul.mubr.f32.gmra.mxu0 %v3579
        %v3740 = vpop.f32.mrf.mxu0
        %v3741 = vadd.f32 %v3420, %v3740
        %v3742 = vpop.f32.mrf.mxu0
        %3743 = vmatprep.mubr.f32.mxu0 0.0
        %3744 = vmatmul.mubr.f32.gmra.mxu0 %v3582
        %v3745 = vpop.f32.mrf.mxu0
        %v3746 = vadd.f32 %v3425, %v3745
        %v3747 = vpop.f32.mrf.mxu0
        %3748 = vmatprep.mubr.f32.mxu0 0.0
        %3749 = vmatmul.mubr.f32.gmra.mxu0 %v3585
        %v3750 = vpop.f32.mrf.mxu0
        %v3751 = vadd.f32 %v3430, %v3750
        %v3752 = vpop.f32.mrf.mxu0
        %3753 = vmatprep.mubr.f32.mxu0 0.0
        %3754 = vmatmul.mubr.f32.gmra.mxu0 %v3588
        %v3755 = vpop.f32.mrf.mxu0
        %v3756 = vadd.f32 %v3435, %v3755
        %v3757 = vpop.f32.mrf.mxu0
        %3758 = vmatprep.mubr.f32.mxu0 0.0
        %3759 = vmatmul.mubr.f32.gmra.mxu0 %v3591
        %v3760 = vpop.f32.mrf.mxu0
        %v3761 = vadd.f32 %v3440, %v3760
        %v3762 = vpop.f32.mrf.mxu0
        %3763 = vmatprep.mubr.f32.mxu0 0.0
        %3764 = vmatmul.mubr.f32.gmra.mxu0 %v3594
        %v3765 = vpop.f32.mrf.mxu0
        %v3766 = vadd.f32 %v3445, %v3765
        %v3767 = vpop.f32.mrf.mxu0
        %3768 = vmatprep.mubr.f32.mxu0 0.0
        %3769 = vmatmul.mubr.f32.gmra.mxu0 %v3597
        %v3770 = vpop.f32.mrf.mxu0
        %v3771 = vadd.f32 %v3450, %v3770
        %v3772 = vpop.f32.mrf.mxu0
        %3773 = vmatprep.mubr.f32.mxu0 0.0
        %3774 = vmatmul.mubr.f32.gmra.mxu0 %v3600
        %v3775 = vpop.f32.mrf.mxu0
        %v3776 = vadd.f32 %v3455, %v3775
        %v3777 = vpop.f32.mrf.mxu0
        %3778 = vmatprep.mubr.f32.mxu0 0.0
        %3779 = vmatmul.mubr.f32.gmra.mxu0 %v3603
        %v3780 = vpop.f32.mrf.mxu0
        %v3781 = vadd.f32 %v3460, %v3780
        %v3782 = vpop.f32.mrf.mxu0
        %3783 = vmatprep.mubr.f32.mxu0 0.0
        %3784 = vmatmul.mubr.f32.gmra.mxu0 %v3606
        %v3785 = vpop.f32.mrf.mxu0
        %v3786 = vadd.f32 %v3465, %v3785
        %v3787 = vpop.f32.mrf.mxu0
        %3788 = vmatprep.mubr.f32.mxu0 0.0
        %3789 = vmatmul.mubr.f32.gmra.mxu0 %v3609
        %v3790 = vpop.f32.mrf.mxu0
        %v3791 = vadd.f32 %v3470, %v3790
        %v3792 = vpop.f32.mrf.mxu0
        %3793 = vmatprep.mubr.f32.mxu0 0.0
        %3794 = vmatmul.mubr.f32.gmra.mxu0 %v3612
        %v3795 = vpop.f32.mrf.mxu0
        %v3796 = vadd.f32 %v3475, %v3795
        %v3797 = vpop.f32.mrf.mxu0
        %3798 = vmatprep.mubr.f32.mxu0 0.0
        %3799 = vmatmul.mubr.f32.gmra.mxu0 %v3615
        %v3800 = vpop.f32.mrf.mxu0
        %v3801 = vadd.f32 %v3480, %v3800
        %v3802 = vpop.f32.mrf.mxu0
        %3803 = vmatprep.mubr.f32.mxu0 0.0
        %3804 = vmatmul.mubr.f32.gmra.mxu0 %v3618
        %v3805 = vpop.f32.mrf.mxu0
        %v3806 = vadd.f32 %v3485, %v3805
        %v3807 = vpop.f32.mrf.mxu0
        %3808 = vmatprep.mubr.f32.mxu0 0.0
        %3809 = vmatmul.mubr.f32.gmra.mxu0 %v3621
        %v3810 = vpop.f32.mrf.mxu0
        %v3811 = vadd.f32 %v3490, %v3810
        %v3812 = vpop.f32.mrf.mxu0
        %3813 = vmatprep.mubr.f32.mxu0 0.0
        %3814 = vmatmul.mubr.f32.gmra.mxu0 %v3624
        %v3815 = vpop.f32.mrf.mxu0
        %v3816 = vadd.f32 %v3495, %v3815
        %v3817 = vpop.f32.mrf.mxu0
        %3818 = vmatprep.mubr.f32.mxu0 0.0
        %3819 = vmatmul.mubr.f32.gmra.mxu0 %v3627
        %v3820 = vpop.f32.mrf.mxu0
        %v3821 = vadd.f32 %v3500, %v3820
        %v3822 = vpop.f32.mrf.mxu0
        %3823 = vmatprep.mubr.f32.mxu0 0.0
        %3824 = vmatmul.mubr.f32.gmra.mxu0 %v3630
        %v3825 = vpop.f32.mrf.mxu0
        %v3826 = vadd.f32 %v3505, %v3825
        %v3827 = vpop.f32.mrf.mxu0
        %3828 = vmatprep.mubr.f32.mxu0 0.0
        %3829 = vmatmul.mubr.f32.gmra.mxu0 %v3633
        %v3830 = vpop.f32.mrf.mxu0
        %v3831 = vadd.f32 %v3510, %v3830
        %v3832 = vpop.f32.mrf.mxu0
        %3833 = vmatprep.mubr.f32.mxu0 0.0
        %3834 = vmatmul.mubr.f32.gmra.mxu0 %v3636
        %v3835 = vpop.f32.mrf.mxu0
        %v3836 = vadd.f32 %v3515, %v3835
        %v3837 = vpop.f32.mrf.mxu0
        %3838 = vmatprep.mubr.f32.mxu0 0.0
        %3839 = vmatmul.mubr.f32.gmra.mxu0 %v3639
        %v3840 = vpop.f32.mrf.mxu0
        %v3841 = vadd.f32 %v3520, %v3840
        %v3842 = vpop.f32.mrf.mxu0
        %3843 = vmatprep.mubr.f32.mxu0 0.0
        %3844 = vmatmul.mubr.f32.gmra.mxu0 %v3642
        %v3845 = vpop.f32.mrf.mxu0
        %v3846 = vadd.f32 %v3525, %v3845
        %v3847 = vpop.f32.mrf.mxu0
        %3848 = vmatprep.mubr.f32.mxu0 0.0
        %3849 = vmatmul.mubr.f32.gmra.mxu0 %v3645
        %v3850 = vpop.f32.mrf.mxu0
        %v3851 = vadd.f32 %v3530, %v3850
        %v3852 = vpop.f32.mrf.mxu0
        %3853 = vmatprep.mubr.f32.mxu0 0.0
        %3854 = vmatmul.mubr.f32.gmra.mxu0 %v3648
        %v3855 = vpop.f32.mrf.mxu0
        %v3856 = vadd.f32 %v3535, %v3855
        %v3857 = vpop.f32.mrf.mxu0
        %3858 = vmatprep.mubr.f32.mxu0 0.0
        %3859 = vmatmul.mubr.f32.gmra.mxu0 %v3651
        %v3860 = vpop.f32.mrf.mxu0
        %v3861 = vadd.f32 %v3540, %v3860
        %v3862 = vpop.f32.mrf.mxu0
        %3863 = vmatprep.mubr.f32.mxu0 0.0
        %3864 = vmatmul.mubr.f32.gmra.mxu0 %v3654
        %v3865 = vpop.f32.mrf.mxu0
        %v3866 = vadd.f32 %v3545, %v3865
        %v3867 = vpop.f32.mrf.mxu0
        %3868 = vmatprep.mubr.f32.mxu0 0.0
        %3869 = vmatmul.mubr.f32.gmra.mxu0 %v3657
        %v3870 = vpop.f32.mrf.mxu0
        %v3871 = vadd.f32 %v3550, %v3870
        %v3872 = vpop.f32.mrf.mxu0
        %3873 = vmatprep.mubr.f32.mxu0 0.0
        %3874 = vmatmul.mubr.f32.gmra.mxu0 %v3660
        %v3875 = vpop.f32.mrf.mxu0
        %v3876 = vadd.f32 %v3555, %v3875
        %v3877 = vpop.f32.mrf.mxu0
        %3878 = vmatprep.mubr.f32.mxu0 0.0
        %3879 = vmatmul.mubr.f32.gmra.mxu0 %v3663
        %v3880 = vpop.f32.mrf.mxu0
        %v3881 = vadd.f32 %v3560, %v3880
        %v3882 = vpop.f32.mrf.mxu0
        %3883 = vmatprep.mubr.f32.mxu0 0.0
        %3884 = vmatmul.mubr.f32.gmra.mxu0 %v3666
        %v3885 = vpop.f32.mrf.mxu0
        %v3886 = vadd.f32 %v3565, %v3885
        %v3887 = vpop.f32.mrf.mxu0
        %3888 = vmatprep.mubr.f32.mxu0 0.0
        %3889 = vmatmul.mubr.f32.gmra.mxu0 %v3669
        %v3890 = vpop.f32.mrf.mxu0
        %v3891 = vadd.f32 %v3570, %v3890
        %v3892 = vpop.f32.mrf.mxu0
        %3893 = vmatprep.mubr.f32.mxu0 0.0
        %3894 = vmatmul.mubr.f32.gmra.mxu0 %v3672
        %v3895 = vpop.f32.mrf.mxu0
        %v3896 = vadd.f32 %v3575, %v3895
        %v3897 = vpop.f32.mrf.mxu0
        %3898 = vdwg.mxu0
        %v3899 = vld [vmem:[#allocation2 + $0x2] sm:$0xff]
        %v3900 = vld [vmem:[#allocation2 + $0xa] sm:$0xff]
        %v3901 = vld [vmem:[#allocation2 + $0x1a] sm:$0xff]
        %v3902 = vld [vmem:[#allocation2 + $0x22] sm:$0xff]
        %v3903 = vld [vmem:[#allocation2 + $0x32] sm:$0xff]
        %v3904 = vld [vmem:[#allocation2 + $0x3a] sm:$0xff]
        %v3905 = vld [vmem:[#allocation2 + $0x4a] sm:$0xff]
        %v3906 = vld [vmem:[#allocation2 + $0x52] sm:$0xff]
        %v3907 = vld [vmem:[#allocation2 + $0x62] sm:$0xff]
        %v3908 = vld [vmem:[#allocation2 + $0x6a] sm:$0xff]
        %v3909 = vld [vmem:[#allocation2 + $0x7a] sm:$0xff]
        %v3910 = vld [vmem:[#allocation2 + $0x82] sm:$0xff]
        %v3911 = vld [vmem:[#allocation2 + $0x92] sm:$0xff]
        %v3912 = vld [vmem:[#allocation2 + $0x9a] sm:$0xff]
        %v3913 = vld [vmem:[#allocation2 + $0xaa] sm:$0xff]
        %v3914 = vld [vmem:[#allocation2 + $0xb2] sm:$0xff]
        %v3915 = vld [vmem:[#allocation2 + $0xc2] sm:$0xff]
        %v3916 = vld [vmem:[#allocation2 + $0xca] sm:$0xff]
        %v3917 = vld [vmem:[#allocation2 + $0xda] sm:$0xff]
        %v3918 = vld [vmem:[#allocation2 + $0xe2] sm:$0xff]
        %v3919 = vld [vmem:[#allocation2 + $0xf2] sm:$0xff]
        %v3920 = vld [vmem:[#allocation2 + $0xfa] sm:$0xff]
        %v3921 = vld [vmem:[#allocation2 + $0x10a] sm:$0xff]
        %v3922 = vld [vmem:[#allocation2 + $0x112] sm:$0xff]
        %v3923 = vld [vmem:[#allocation2 + $0x122] sm:$0xff]
        %v3924 = vld [vmem:[#allocation2 + $0x12a] sm:$0xff]
        %v3925 = vld [vmem:[#allocation2 + $0x13a] sm:$0xff]
        %v3926 = vld [vmem:[#allocation2 + $0x142] sm:$0xff]
        %v3927 = vld [vmem:[#allocation2 + $0x152] sm:$0xff]
        %v3928 = vld [vmem:[#allocation2 + $0x15a] sm:$0xff]
        %v3929 = vld [vmem:[#allocation2 + $0x16a] sm:$0xff]
        %v3930 = vld [vmem:[#allocation2 + $0x172] sm:$0xff]
        %s3931 = scalar_lea.vmem %s3, 64
        %v3932 = vld [vmem:[%s3931] sm:$0xff]
        %v3933 = vld [vmem:[%s3931 + $0x8] sm:$0xff]
        %v3934 = vld [vmem:[%s3931 + $0x10] sm:$0xff]
        %v3935 = vld [vmem:[%s3931 + $0x18] sm:$0xff]
        %v3937 = vsel %vm3095, %v3899, 0
        %v3940 = vsel %vm3095, %v3900, 0
        %v3943 = vsel %vm3095, %v3901, 0
        %v3946 = vsel %vm3095, %v3902, 0
        %v3949 = vsel %vm3095, %v3903, 0
        %v3952 = vsel %vm3095, %v3904, 0
        %v3955 = vsel %vm3095, %v3905, 0
        %v3958 = vsel %vm3095, %v3906, 0
        %v3961 = vsel %vm3095, %v3907, 0
        %v3964 = vsel %vm3095, %v3908, 0
        %v3967 = vsel %vm3095, %v3909, 0
        %v3970 = vsel %vm3095, %v3910, 0
        %v3973 = vsel %vm3095, %v3911, 0
        %v3976 = vsel %vm3095, %v3912, 0
        %v3979 = vsel %vm3095, %v3913, 0
        %v3982 = vsel %vm3095, %v3914, 0
        %v3985 = vsel %vm3095, %v3915, 0
        %v3988 = vsel %vm3095, %v3916, 0
        %v3991 = vsel %vm3095, %v3917, 0
        %v3994 = vsel %vm3095, %v3918, 0
        %v3997 = vsel %vm3095, %v3919, 0
        %v4000 = vsel %vm3095, %v3920, 0
        %v4003 = vsel %vm3095, %v3921, 0
        %v4006 = vsel %vm3095, %v3922, 0
        %v4009 = vsel %vm3095, %v3923, 0
        %v4012 = vsel %vm3095, %v3924, 0
        %v4015 = vsel %vm3095, %v3925, 0
        %v4018 = vsel %vm3095, %v3926, 0
        %v4021 = vsel %vm3095, %v3927, 0
        %v4024 = vsel %vm3095, %v3928, 0
        %v4027 = vsel %vm3095, %v3929, 0
        %v4030 = vsel %vm3095, %v3930, 0
        %4032 = vmatprep.subr.mxu0 0.0
        %4033 = vmatpush1.msra.mxu0 0.0
        %4034 = vmatprep.subr.mxu0 0.0
        %4035 = vmatpush1.msra.mxu0 0.0
        %4036 = vmatprep.subr.mxu0 0.0
        %4037 = vmatpush1.msra.mxu0 0.0
        %4038 = vmatprep.subr.mxu0 0.0
        %4039 = vmatpush1.msra.mxu0 0.0
        %4040 = vmatprep.subr.mxu0 0.0
        %4041 = vmatpush1.msra.mxu0 0.0
        %4042 = vmatprep.subr.mxu0 0.0
        %4043 = vmatpush1.msra.mxu0 0.0
        %4044 = vmatprep.subr.mxu0 0.0
        %4045 = vmatpush1.msra.mxu0 0.0
        %4046 = vmatprep.subr.mxu0 0.0
        %4047 = vmatpush1.msra.mxu0 0.0
        %4048 = vmatprep.subr.mxu0 0.0
        %4049 = vmatpush1.msra.mxu0 0.0
        %4050 = vmatprep.subr.mxu0 0.0
        %4051 = vmatpush1.msra.mxu0 0.0
        %4052 = vmatprep.subr.mxu0 0.0
        %4053 = vmatpush1.msra.mxu0 0.0
        %4054 = vmatprep.subr.mxu0 0.0
        %4055 = vmatpush1.msra.mxu0 0.0
        %4056 = vmatprep.subr.mxu0 0.0
        %4057 = vmatpush1.msra.mxu0 %v3935
        %4058 = vmatprep.subr.mxu0 0.0
        %4059 = vmatpush1.msra.mxu0 %v3934
        %4060 = vmatprep.subr.mxu0 0.0
        %4061 = vmatpush1.msra.mxu0 %v3933
        %4062 = vmatprep.subr.mxu0 0.0
        %4063 = vmatpush1.msra.mxu0 %v3932
        %4064 = vmatprep.subr.mxu0 0.0
        %4065 = vmatpush2.msra.mxu0 0.0
        %4066 = vmatprep.subr.mxu0 0.0
        %4067 = vmatpush2.msra.mxu0 0.0
        %4068 = vmatprep.subr.mxu0 0.0
        %4069 = vmatpush2.msra.mxu0 0.0
        %4070 = vmatprep.subr.mxu0 0.0
        %4071 = vmatpush2.msra.mxu0 0.0
        %4072 = vmatprep.subr.mxu0 0.0
        %4073 = vmatpush2.msra.mxu0 0.0
        %4074 = vmatprep.subr.mxu0 0.0
        %4075 = vmatpush2.msra.mxu0 0.0
        %4076 = vmatprep.subr.mxu0 0.0
        %4077 = vmatpush2.msra.mxu0 0.0
        %4078 = vmatprep.subr.mxu0 0.0
        %4079 = vmatpush2.msra.mxu0 0.0
        %4080 = vmatprep.subr.mxu0 0.0
        %4081 = vmatpush2.msra.mxu0 0.0
        %4082 = vmatprep.subr.mxu0 0.0
        %4083 = vmatpush2.msra.mxu0 0.0
        %4084 = vmatprep.subr.mxu0 0.0
        %4085 = vmatpush2.msra.mxu0 0.0
        %4086 = vmatprep.subr.mxu0 0.0
        %4087 = vmatpush2.msra.mxu0 0.0
        %4088 = vmatprep.subr.mxu0 0.0
        %4089 = vmatpush2.msra.mxu0 0.0
        %4090 = vmatprep.subr.mxu0 0.0
        %4091 = vmatpush2.msra.mxu0 0.0
        %4092 = vmatprep.subr.mxu0 0.0
        %4093 = vmatpush2.msra.mxu0 0.0
        %4094 = vmatprep.subr.mxu0 0.0
        %4095 = vmatpush2.msra.mxu0 0.0
        %4096 = vmatprep.mubr.f32.mxu0 0.0
        %4097 = vmatmul.mubr.f32.gmra.mxu0 %v3937
        %v4098 = vpop.f32.mrf.mxu0
        %v4099 = vadd.f32 0.0, %v4098
        %v4100 = vpop.f32.mrf.mxu0
        %4101 = vmatprep.mubr.f32.mxu0 0.0
        %4102 = vmatmul.mubr.f32.gmra.mxu0 %v3940
        %v4103 = vpop.f32.mrf.mxu0
        %v4104 = vadd.f32 0.0, %v4103
        %v4105 = vpop.f32.mrf.mxu0
        %4106 = vmatprep.mubr.f32.mxu0 0.0
        %4107 = vmatmul.mubr.f32.gmra.mxu0 %v3943
        %v4108 = vpop.f32.mrf.mxu0
        %v4109 = vadd.f32 0.0, %v4108
        %v4110 = vpop.f32.mrf.mxu0
        %4111 = vmatprep.mubr.f32.mxu0 0.0
        %4112 = vmatmul.mubr.f32.gmra.mxu0 %v3946
        %v4113 = vpop.f32.mrf.mxu0
        %v4114 = vadd.f32 0.0, %v4113
        %v4115 = vpop.f32.mrf.mxu0
        %4116 = vmatprep.mubr.f32.mxu0 0.0
        %4117 = vmatmul.mubr.f32.gmra.mxu0 %v3949
        %v4118 = vpop.f32.mrf.mxu0
        %v4119 = vadd.f32 0.0, %v4118
        %v4120 = vpop.f32.mrf.mxu0
        %4121 = vmatprep.mubr.f32.mxu0 0.0
        %4122 = vmatmul.mubr.f32.gmra.mxu0 %v3952
        %v4123 = vpop.f32.mrf.mxu0
        %v4124 = vadd.f32 0.0, %v4123
        %v4125 = vpop.f32.mrf.mxu0
        %4126 = vmatprep.mubr.f32.mxu0 0.0
        %4127 = vmatmul.mubr.f32.gmra.mxu0 %v3955
        %v4128 = vpop.f32.mrf.mxu0
        %v4129 = vadd.f32 0.0, %v4128
        %v4130 = vpop.f32.mrf.mxu0
        %4131 = vmatprep.mubr.f32.mxu0 0.0
        %4132 = vmatmul.mubr.f32.gmra.mxu0 %v3958
        %v4133 = vpop.f32.mrf.mxu0
        %v4134 = vadd.f32 0.0, %v4133
        %v4135 = vpop.f32.mrf.mxu0
        %4136 = vmatprep.mubr.f32.mxu0 0.0
        %4137 = vmatmul.mubr.f32.gmra.mxu0 %v3961
        %v4138 = vpop.f32.mrf.mxu0
        %v4139 = vadd.f32 0.0, %v4138
        %v4140 = vpop.f32.mrf.mxu0
        %4141 = vmatprep.mubr.f32.mxu0 0.0
        %4142 = vmatmul.mubr.f32.gmra.mxu0 %v3964
        %v4143 = vpop.f32.mrf.mxu0
        %v4144 = vadd.f32 0.0, %v4143
        %v4145 = vpop.f32.mrf.mxu0
        %4146 = vmatprep.mubr.f32.mxu0 0.0
        %4147 = vmatmul.mubr.f32.gmra.mxu0 %v3967
        %v4148 = vpop.f32.mrf.mxu0
        %v4149 = vadd.f32 0.0, %v4148
        %v4150 = vpop.f32.mrf.mxu0
        %4151 = vmatprep.mubr.f32.mxu0 0.0
        %4152 = vmatmul.mubr.f32.gmra.mxu0 %v3970
        %v4153 = vpop.f32.mrf.mxu0
        %v4154 = vadd.f32 0.0, %v4153
        %v4155 = vpop.f32.mrf.mxu0
        %4156 = vmatprep.mubr.f32.mxu0 0.0
        %4157 = vmatmul.mubr.f32.gmra.mxu0 %v3973
        %v4158 = vpop.f32.mrf.mxu0
        %v4159 = vadd.f32 0.0, %v4158
        %v4160 = vpop.f32.mrf.mxu0
        %4161 = vmatprep.mubr.f32.mxu0 0.0
        %4162 = vmatmul.mubr.f32.gmra.mxu0 %v3976
        %v4163 = vpop.f32.mrf.mxu0
        %v4164 = vadd.f32 0.0, %v4163
        %v4165 = vpop.f32.mrf.mxu0
        %4166 = vmatprep.mubr.f32.mxu0 0.0
        %4167 = vmatmul.mubr.f32.gmra.mxu0 %v3979
        %v4168 = vpop.f32.mrf.mxu0
        %v4169 = vadd.f32 0.0, %v4168
        %v4170 = vpop.f32.mrf.mxu0
        %4171 = vmatprep.mubr.f32.mxu0 0.0
        %4172 = vmatmul.mubr.f32.gmra.mxu0 %v3982
        %v4173 = vpop.f32.mrf.mxu0
        %v4174 = vadd.f32 0.0, %v4173
        %v4175 = vpop.f32.mrf.mxu0
        %4176 = vmatprep.mubr.f32.mxu0 0.0
        %4177 = vmatmul.mubr.f32.gmra.mxu0 %v3985
        %v4178 = vpop.f32.mrf.mxu0
        %v4179 = vadd.f32 0.0, %v4178
        %v4180 = vpop.f32.mrf.mxu0
        %4181 = vmatprep.mubr.f32.mxu0 0.0
        %4182 = vmatmul.mubr.f32.gmra.mxu0 %v3988
        %v4183 = vpop.f32.mrf.mxu0
        %v4184 = vadd.f32 0.0, %v4183
        %v4185 = vpop.f32.mrf.mxu0
        %4186 = vmatprep.mubr.f32.mxu0 0.0
        %4187 = vmatmul.mubr.f32.gmra.mxu0 %v3991
        %v4188 = vpop.f32.mrf.mxu0
        %v4189 = vadd.f32 0.0, %v4188
        %v4190 = vpop.f32.mrf.mxu0
        %4191 = vmatprep.mubr.f32.mxu0 0.0
        %4192 = vmatmul.mubr.f32.gmra.mxu0 %v3994
        %v4193 = vpop.f32.mrf.mxu0
        %v4194 = vadd.f32 0.0, %v4193
        %v4195 = vpop.f32.mrf.mxu0
        %4196 = vmatprep.mubr.f32.mxu0 0.0
        %4197 = vmatmul.mubr.f32.gmra.mxu0 %v3997
        %v4198 = vpop.f32.mrf.mxu0
        %v4199 = vadd.f32 0.0, %v4198
        %v4200 = vpop.f32.mrf.mxu0
        %4201 = vmatprep.mubr.f32.mxu0 0.0
        %4202 = vmatmul.mubr.f32.gmra.mxu0 %v4000
        %v4203 = vpop.f32.mrf.mxu0
        %v4204 = vadd.f32 0.0, %v4203
        %v4205 = vpop.f32.mrf.mxu0
        %4206 = vmatprep.mubr.f32.mxu0 0.0
        %4207 = vmatmul.mubr.f32.gmra.mxu0 %v4003
        %v4208 = vpop.f32.mrf.mxu0
        %v4209 = vadd.f32 0.0, %v4208
        %v4210 = vpop.f32.mrf.mxu0
        %4211 = vmatprep.mubr.f32.mxu0 0.0
        %4212 = vmatmul.mubr.f32.gmra.mxu0 %v4006
        %v4213 = vpop.f32.mrf.mxu0
        %v4214 = vadd.f32 0.0, %v4213
        %v4215 = vpop.f32.mrf.mxu0
        %4216 = vmatprep.mubr.f32.mxu0 0.0
        %4217 = vmatmul.mubr.f32.gmra.mxu0 %v4009
        %v4218 = vpop.f32.mrf.mxu0
        %v4219 = vadd.f32 0.0, %v4218
        %v4220 = vpop.f32.mrf.mxu0
        %4221 = vmatprep.mubr.f32.mxu0 0.0
        %4222 = vmatmul.mubr.f32.gmra.mxu0 %v4012
        %v4223 = vpop.f32.mrf.mxu0
        %v4224 = vadd.f32 0.0, %v4223
        %v4225 = vpop.f32.mrf.mxu0
        %4226 = vmatprep.mubr.f32.mxu0 0.0
        %4227 = vmatmul.mubr.f32.gmra.mxu0 %v4015
        %v4228 = vpop.f32.mrf.mxu0
        %v4229 = vadd.f32 0.0, %v4228
        %v4230 = vpop.f32.mrf.mxu0
        %4231 = vmatprep.mubr.f32.mxu0 0.0
        %4232 = vmatmul.mubr.f32.gmra.mxu0 %v4018
        %v4233 = vpop.f32.mrf.mxu0
        %v4234 = vadd.f32 0.0, %v4233
        %v4235 = vpop.f32.mrf.mxu0
        %4236 = vmatprep.mubr.f32.mxu0 0.0
        %4237 = vmatmul.mubr.f32.gmra.mxu0 %v4021
        %v4238 = vpop.f32.mrf.mxu0
        %v4239 = vadd.f32 0.0, %v4238
        %v4240 = vpop.f32.mrf.mxu0
        %4241 = vmatprep.mubr.f32.mxu0 0.0
        %4242 = vmatmul.mubr.f32.gmra.mxu0 %v4024
        %v4243 = vpop.f32.mrf.mxu0
        %v4244 = vadd.f32 0.0, %v4243
        %v4245 = vpop.f32.mrf.mxu0
        %4246 = vmatprep.mubr.f32.mxu0 0.0
        %4247 = vmatmul.mubr.f32.gmra.mxu0 %v4027
        %v4248 = vpop.f32.mrf.mxu0
        %v4249 = vadd.f32 0.0, %v4248
        %v4250 = vpop.f32.mrf.mxu0
        %4251 = vmatprep.mubr.f32.mxu0 0.0
        %4252 = vmatmul.mubr.f32.gmra.mxu0 %v4030
        %v4253 = vpop.f32.mrf.mxu0
        %v4254 = vadd.f32 0.0, %v4253
        %v4255 = vpop.f32.mrf.mxu0
        %4256 = vdwg.mxu0
        %v4257 = vadd.f32 %v3741, %v4099
        %v4258 = vadd.f32 %v3746, %v4104
        %v4259 = vadd.f32 %v3751, %v4109
        %v4260 = vadd.f32 %v3756, %v4114
        %v4261 = vadd.f32 %v3761, %v4119
        %v4262 = vadd.f32 %v3766, %v4124
        %v4263 = vadd.f32 %v3771, %v4129
        %v4264 = vadd.f32 %v3776, %v4134
        %v4265 = vadd.f32 %v3781, %v4139
        %v4266 = vadd.f32 %v3786, %v4144
        %v4267 = vadd.f32 %v3791, %v4149
        %v4268 = vadd.f32 %v3796, %v4154
        %v4269 = vadd.f32 %v3801, %v4159
        %v4270 = vadd.f32 %v3806, %v4164
        %v4271 = vadd.f32 %v3811, %v4169
        %v4272 = vadd.f32 %v3816, %v4174
        %v4273 = vadd.f32 %v3821, %v4179
        %v4274 = vadd.f32 %v3826, %v4184
        %v4275 = vadd.f32 %v3831, %v4189
        %v4276 = vadd.f32 %v3836, %v4194
        %v4277 = vadd.f32 %v3841, %v4199
        %v4278 = vadd.f32 %v3846, %v4204
        %v4279 = vadd.f32 %v3851, %v4209
        %v4280 = vadd.f32 %v3856, %v4214
        %v4281 = vadd.f32 %v3861, %v4219
        %v4282 = vadd.f32 %v3866, %v4224
        %v4283 = vadd.f32 %v3871, %v4229
        %v4284 = vadd.f32 %v3876, %v4234
        %v4285 = vadd.f32 %v3881, %v4239
        %v4286 = vadd.f32 %v3886, %v4244
        %v4287 = vadd.f32 %v3891, %v4249
        %v4288 = vadd.f32 %v3896, %v4254
        %v4289 = vld [vmem:[%s3151] sm:$0xff]
        %v4290 = vld [vmem:[%s3151 + $0x8] sm:$0xff]
        %v4291 = vld [vmem:[%s3151 + $0x18] sm:$0xff]
        %v4292 = vld [vmem:[%s3151 + $0x20] sm:$0xff]
        %v4293 = vld [vmem:[%s3151 + $0x30] sm:$0xff]
        %v4294 = vld [vmem:[%s3151 + $0x38] sm:$0xff]
        %v4295 = vld [vmem:[%s3151 + $0x48] sm:$0xff]
        %v4296 = vld [vmem:[%s3151 + $0x50] sm:$0xff]
        %v4297 = vld [vmem:[%s3151 + $0x60] sm:$0xff]
        %v4298 = vld [vmem:[%s3151 + $0x68] sm:$0xff]
        %v4299 = vld [vmem:[%s3151 + $0x78] sm:$0xff]
        %v4300 = vld [vmem:[%s3151 + $0x80] sm:$0xff]
        %v4301 = vld [vmem:[%s3151 + $0x90] sm:$0xff]
        %v4302 = vld [vmem:[%s3151 + $0x98] sm:$0xff]
        %v4303 = vld [vmem:[%s3151 + $0xa8] sm:$0xff]
        %v4304 = vld [vmem:[%s3151 + $0xb0] sm:$0xff]
        %v4305 = vld [vmem:[%s3151 + $0xc0] sm:$0xff]
        %v4306 = vld [vmem:[%s3151 + $0xc8] sm:$0xff]
        %v4307 = vld [vmem:[%s3151 + $0xd8] sm:$0xff]
        %v4308 = vld [vmem:[%s3151 + $0xe0] sm:$0xff]
        %v4309 = vld [vmem:[%s3151 + $0xf0] sm:$0xff]
        %v4310 = vld [vmem:[%s3151 + $0xf8] sm:$0xff]
        %v4311 = vld [vmem:[%s3151 + $0x108] sm:$0xff]
        %v4312 = vld [vmem:[%s3151 + $0x110] sm:$0xff]
        %v4313 = vld [vmem:[%s3151 + $0x120] sm:$0xff]
        %v4314 = vld [vmem:[%s3151 + $0x128] sm:$0xff]
        %v4315 = vld [vmem:[%s3151 + $0x138] sm:$0xff]
        %v4316 = vld [vmem:[%s3151 + $0x140] sm:$0xff]
        %v4317 = vld [vmem:[%s3151 + $0x150] sm:$0xff]
        %v4318 = vld [vmem:[%s3151 + $0x158] sm:$0xff]
        %v4319 = vld [vmem:[%s3151 + $0x168] sm:$0xff]
        %v4320 = vld [vmem:[%s3151 + $0x170] sm:$0xff]
        %s4321 = scalar_lea.vmem %s3, 96
        %v4322 = vld [vmem:[%s4321] sm:$0xff]
        %v4323 = vld [vmem:[%s4321 + $0x8] sm:$0xff]
        %v4324 = vld [vmem:[%s4321 + $0x10] sm:$0xff]
        %v4325 = vld [vmem:[%s4321 + $0x18] sm:$0xff]
        %v4327 = vsel %vm3095, %v4289, 0
        %v4330 = vsel %vm3095, %v4290, 0
        %v4333 = vsel %vm3095, %v4291, 0
        %v4336 = vsel %vm3095, %v4292, 0
        %v4339 = vsel %vm3095, %v4293, 0
        %v4342 = vsel %vm3095, %v4294, 0
        %v4345 = vsel %vm3095, %v4295, 0
        %v4348 = vsel %vm3095, %v4296, 0
        %v4351 = vsel %vm3095, %v4297, 0
        %v4354 = vsel %vm3095, %v4298, 0
        %v4357 = vsel %vm3095, %v4299, 0
        %v4360 = vsel %vm3095, %v4300, 0
        %v4363 = vsel %vm3095, %v4301, 0
        %v4366 = vsel %vm3095, %v4302, 0
        %v4369 = vsel %vm3095, %v4303, 0
        %v4372 = vsel %vm3095, %v4304, 0
        %v4375 = vsel %vm3095, %v4305, 0
        %v4378 = vsel %vm3095, %v4306, 0
        %v4381 = vsel %vm3095, %v4307, 0
        %v4384 = vsel %vm3095, %v4308, 0
        %v4387 = vsel %vm3095, %v4309, 0
        %v4390 = vsel %vm3095, %v4310, 0
        %v4393 = vsel %vm3095, %v4311, 0
        %v4396 = vsel %vm3095, %v4312, 0
        %v4399 = vsel %vm3095, %v4313, 0
        %v4402 = vsel %vm3095, %v4314, 0
        %v4405 = vsel %vm3095, %v4315, 0
        %v4408 = vsel %vm3095, %v4316, 0
        %v4411 = vsel %vm3095, %v4317, 0
        %v4414 = vsel %vm3095, %v4318, 0
        %v4417 = vsel %vm3095, %v4319, 0
        %v4420 = vsel %vm3095, %v4320, 0
        %4422 = vmatprep.subr.mxu0 0.0
        %4423 = vmatpush1.msra.mxu0 0.0
        %4424 = vmatprep.subr.mxu0 0.0
        %4425 = vmatpush1.msra.mxu0 0.0
        %4426 = vmatprep.subr.mxu0 0.0
        %4427 = vmatpush1.msra.mxu0 0.0
        %4428 = vmatprep.subr.mxu0 0.0
        %4429 = vmatpush1.msra.mxu0 0.0
        %4430 = vmatprep.subr.mxu0 0.0
        %4431 = vmatpush1.msra.mxu0 0.0
        %4432 = vmatprep.subr.mxu0 0.0
        %4433 = vmatpush1.msra.mxu0 0.0
        %4434 = vmatprep.subr.mxu0 0.0
        %4435 = vmatpush1.msra.mxu0 0.0
        %4436 = vmatprep.subr.mxu0 0.0
        %4437 = vmatpush1.msra.mxu0 0.0
        %4438 = vmatprep.subr.mxu0 0.0
        %4439 = vmatpush1.msra.mxu0 0.0
        %4440 = vmatprep.subr.mxu0 0.0
        %4441 = vmatpush1.msra.mxu0 0.0
        %4442 = vmatprep.subr.mxu0 0.0
        %4443 = vmatpush1.msra.mxu0 0.0
        %4444 = vmatprep.subr.mxu0 0.0
        %4445 = vmatpush1.msra.mxu0 0.0
        %4446 = vmatprep.subr.mxu0 0.0
        %4447 = vmatpush1.msra.mxu0 %v4325
        %4448 = vmatprep.subr.mxu0 0.0
        %4449 = vmatpush1.msra.mxu0 %v4324
        %4450 = vmatprep.subr.mxu0 0.0
        %4451 = vmatpush1.msra.mxu0 %v4323
        %4452 = vmatprep.subr.mxu0 0.0
        %4453 = vmatpush1.msra.mxu0 %v4322
        %4454 = vmatprep.subr.mxu0 0.0
        %4455 = vmatpush2.msra.mxu0 0.0
        %4456 = vmatprep.subr.mxu0 0.0
        %4457 = vmatpush2.msra.mxu0 0.0
        %4458 = vmatprep.subr.mxu0 0.0
        %4459 = vmatpush2.msra.mxu0 0.0
        %4460 = vmatprep.subr.mxu0 0.0
        %4461 = vmatpush2.msra.mxu0 0.0
        %4462 = vmatprep.subr.mxu0 0.0
        %4463 = vmatpush2.msra.mxu0 0.0
        %4464 = vmatprep.subr.mxu0 0.0
        %4465 = vmatpush2.msra.mxu0 0.0
        %4466 = vmatprep.subr.mxu0 0.0
        %4467 = vmatpush2.msra.mxu0 0.0
        %4468 = vmatprep.subr.mxu0 0.0
        %4469 = vmatpush2.msra.mxu0 0.0
        %4470 = vmatprep.subr.mxu0 0.0
        %4471 = vmatpush2.msra.mxu0 0.0
        %4472 = vmatprep.subr.mxu0 0.0
        %4473 = vmatpush2.msra.mxu0 0.0
        %4474 = vmatprep.subr.mxu0 0.0
        %4475 = vmatpush2.msra.mxu0 0.0
        %4476 = vmatprep.subr.mxu0 0.0
        %4477 = vmatpush2.msra.mxu0 0.0
        %4478 = vmatprep.subr.mxu0 0.0
        %4479 = vmatpush2.msra.mxu0 0.0
        %4480 = vmatprep.subr.mxu0 0.0
        %4481 = vmatpush2.msra.mxu0 0.0
        %4482 = vmatprep.subr.mxu0 0.0
        %4483 = vmatpush2.msra.mxu0 0.0
        %4484 = vmatprep.subr.mxu0 0.0
        %4485 = vmatpush2.msra.mxu0 0.0
        %4486 = vmatprep.mubr.f32.mxu0 0.0
        %4487 = vmatmul.mubr.f32.gmra.mxu0 %v4327
        %v4488 = vpop.f32.mrf.mxu0
        %v4489 = vadd.f32 0.0, %v4488
        %v4490 = vpop.f32.mrf.mxu0
        %4491 = vmatprep.mubr.f32.mxu0 0.0
        %4492 = vmatmul.mubr.f32.gmra.mxu0 %v4330
        %v4493 = vpop.f32.mrf.mxu0
        %v4494 = vadd.f32 0.0, %v4493
        %v4495 = vpop.f32.mrf.mxu0
        %4496 = vmatprep.mubr.f32.mxu0 0.0
        %4497 = vmatmul.mubr.f32.gmra.mxu0 %v4333
        %v4498 = vpop.f32.mrf.mxu0
        %v4499 = vadd.f32 0.0, %v4498
        %v4500 = vpop.f32.mrf.mxu0
        %4501 = vmatprep.mubr.f32.mxu0 0.0
        %4502 = vmatmul.mubr.f32.gmra.mxu0 %v4336
        %v4503 = vpop.f32.mrf.mxu0
        %v4504 = vadd.f32 0.0, %v4503
        %v4505 = vpop.f32.mrf.mxu0
        %4506 = vmatprep.mubr.f32.mxu0 0.0
        %4507 = vmatmul.mubr.f32.gmra.mxu0 %v4339
        %v4508 = vpop.f32.mrf.mxu0
        %v4509 = vadd.f32 0.0, %v4508
        %v4510 = vpop.f32.mrf.mxu0
        %4511 = vmatprep.mubr.f32.mxu0 0.0
        %4512 = vmatmul.mubr.f32.gmra.mxu0 %v4342
        %v4513 = vpop.f32.mrf.mxu0
        %v4514 = vadd.f32 0.0, %v4513
        %v4515 = vpop.f32.mrf.mxu0
        %4516 = vmatprep.mubr.f32.mxu0 0.0
        %4517 = vmatmul.mubr.f32.gmra.mxu0 %v4345
        %v4518 = vpop.f32.mrf.mxu0
        %v4519 = vadd.f32 0.0, %v4518
        %v4520 = vpop.f32.mrf.mxu0
        %4521 = vmatprep.mubr.f32.mxu0 0.0
        %4522 = vmatmul.mubr.f32.gmra.mxu0 %v4348
        %v4523 = vpop.f32.mrf.mxu0
        %v4524 = vadd.f32 0.0, %v4523
        %v4525 = vpop.f32.mrf.mxu0
        %4526 = vmatprep.mubr.f32.mxu0 0.0
        %4527 = vmatmul.mubr.f32.gmra.mxu0 %v4351
        %v4528 = vpop.f32.mrf.mxu0
        %v4529 = vadd.f32 0.0, %v4528
        %v4530 = vpop.f32.mrf.mxu0
        %4531 = vmatprep.mubr.f32.mxu0 0.0
        %4532 = vmatmul.mubr.f32.gmra.mxu0 %v4354
        %v4533 = vpop.f32.mrf.mxu0
        %v4534 = vadd.f32 0.0, %v4533
        %v4535 = vpop.f32.mrf.mxu0
        %4536 = vmatprep.mubr.f32.mxu0 0.0
        %4537 = vmatmul.mubr.f32.gmra.mxu0 %v4357
        %v4538 = vpop.f32.mrf.mxu0
        %v4539 = vadd.f32 0.0, %v4538
        %v4540 = vpop.f32.mrf.mxu0
        %4541 = vmatprep.mubr.f32.mxu0 0.0
        %4542 = vmatmul.mubr.f32.gmra.mxu0 %v4360
        %v4543 = vpop.f32.mrf.mxu0
        %v4544 = vadd.f32 0.0, %v4543
        %v4545 = vpop.f32.mrf.mxu0
        %4546 = vmatprep.mubr.f32.mxu0 0.0
        %4547 = vmatmul.mubr.f32.gmra.mxu0 %v4363
        %v4548 = vpop.f32.mrf.mxu0
        %v4549 = vadd.f32 0.0, %v4548
        %v4550 = vpop.f32.mrf.mxu0
        %4551 = vmatprep.mubr.f32.mxu0 0.0
        %4552 = vmatmul.mubr.f32.gmra.mxu0 %v4366
        %v4553 = vpop.f32.mrf.mxu0
        %v4554 = vadd.f32 0.0, %v4553
        %v4555 = vpop.f32.mrf.mxu0
        %4556 = vmatprep.mubr.f32.mxu0 0.0
        %4557 = vmatmul.mubr.f32.gmra.mxu0 %v4369
        %v4558 = vpop.f32.mrf.mxu0
        %v4559 = vadd.f32 0.0, %v4558
        %v4560 = vpop.f32.mrf.mxu0
        %4561 = vmatprep.mubr.f32.mxu0 0.0
        %4562 = vmatmul.mubr.f32.gmra.mxu0 %v4372
        %v4563 = vpop.f32.mrf.mxu0
        %v4564 = vadd.f32 0.0, %v4563
        %v4565 = vpop.f32.mrf.mxu0
        %4566 = vmatprep.mubr.f32.mxu0 0.0
        %4567 = vmatmul.mubr.f32.gmra.mxu0 %v4375
        %v4568 = vpop.f32.mrf.mxu0
        %v4569 = vadd.f32 0.0, %v4568
        %v4570 = vpop.f32.mrf.mxu0
        %4571 = vmatprep.mubr.f32.mxu0 0.0
        %4572 = vmatmul.mubr.f32.gmra.mxu0 %v4378
        %v4573 = vpop.f32.mrf.mxu0
        %v4574 = vadd.f32 0.0, %v4573
        %v4575 = vpop.f32.mrf.mxu0
        %4576 = vmatprep.mubr.f32.mxu0 0.0
        %4577 = vmatmul.mubr.f32.gmra.mxu0 %v4381
        %v4578 = vpop.f32.mrf.mxu0
        %v4579 = vadd.f32 0.0, %v4578
        %v4580 = vpop.f32.mrf.mxu0
        %4581 = vmatprep.mubr.f32.mxu0 0.0
        %4582 = vmatmul.mubr.f32.gmra.mxu0 %v4384
        %v4583 = vpop.f32.mrf.mxu0
        %v4584 = vadd.f32 0.0, %v4583
        %v4585 = vpop.f32.mrf.mxu0
        %4586 = vmatprep.mubr.f32.mxu0 0.0
        %4587 = vmatmul.mubr.f32.gmra.mxu0 %v4387
        %v4588 = vpop.f32.mrf.mxu0
        %v4589 = vadd.f32 0.0, %v4588
        %v4590 = vpop.f32.mrf.mxu0
        %4591 = vmatprep.mubr.f32.mxu0 0.0
        %4592 = vmatmul.mubr.f32.gmra.mxu0 %v4390
        %v4593 = vpop.f32.mrf.mxu0
        %v4594 = vadd.f32 0.0, %v4593
        %v4595 = vpop.f32.mrf.mxu0
        %4596 = vmatprep.mubr.f32.mxu0 0.0
        %4597 = vmatmul.mubr.f32.gmra.mxu0 %v4393
        %v4598 = vpop.f32.mrf.mxu0
        %v4599 = vadd.f32 0.0, %v4598
        %v4600 = vpop.f32.mrf.mxu0
        %4601 = vmatprep.mubr.f32.mxu0 0.0
        %4602 = vmatmul.mubr.f32.gmra.mxu0 %v4396
        %v4603 = vpop.f32.mrf.mxu0
        %v4604 = vadd.f32 0.0, %v4603
        %v4605 = vpop.f32.mrf.mxu0
        %4606 = vmatprep.mubr.f32.mxu0 0.0
        %4607 = vmatmul.mubr.f32.gmra.mxu0 %v4399
        %v4608 = vpop.f32.mrf.mxu0
        %v4609 = vadd.f32 0.0, %v4608
        %v4610 = vpop.f32.mrf.mxu0
        %4611 = vmatprep.mubr.f32.mxu0 0.0
        %4612 = vmatmul.mubr.f32.gmra.mxu0 %v4402
        %v4613 = vpop.f32.mrf.mxu0
        %v4614 = vadd.f32 0.0, %v4613
        %v4615 = vpop.f32.mrf.mxu0
        %4616 = vmatprep.mubr.f32.mxu0 0.0
        %4617 = vmatmul.mubr.f32.gmra.mxu0 %v4405
        %v4618 = vpop.f32.mrf.mxu0
        %v4619 = vadd.f32 0.0, %v4618
        %v4620 = vpop.f32.mrf.mxu0
        %4621 = vmatprep.mubr.f32.mxu0 0.0
        %4622 = vmatmul.mubr.f32.gmra.mxu0 %v4408
        %v4623 = vpop.f32.mrf.mxu0
        %v4624 = vadd.f32 0.0, %v4623
        %v4625 = vpop.f32.mrf.mxu0
        %4626 = vmatprep.mubr.f32.mxu0 0.0
        %4627 = vmatmul.mubr.f32.gmra.mxu0 %v4411
        %v4628 = vpop.f32.mrf.mxu0
        %v4629 = vadd.f32 0.0, %v4628
        %v4630 = vpop.f32.mrf.mxu0
        %4631 = vmatprep.mubr.f32.mxu0 0.0
        %4632 = vmatmul.mubr.f32.gmra.mxu0 %v4414
        %v4633 = vpop.f32.mrf.mxu0
        %v4634 = vadd.f32 0.0, %v4633
        %v4635 = vpop.f32.mrf.mxu0
        %4636 = vmatprep.mubr.f32.mxu0 0.0
        %4637 = vmatmul.mubr.f32.gmra.mxu0 %v4417
        %v4638 = vpop.f32.mrf.mxu0
        %v4639 = vadd.f32 0.0, %v4638
        %v4640 = vpop.f32.mrf.mxu0
        %4641 = vmatprep.mubr.f32.mxu0 0.0
        %4642 = vmatmul.mubr.f32.gmra.mxu0 %v4420
        %v4643 = vpop.f32.mrf.mxu0
        %v4644 = vadd.f32 0.0, %v4643
        %v4645 = vpop.f32.mrf.mxu0
        %4646 = vdwg.mxu0
        %v4647 = vadd.f32 %v4257, %v4489
        %v4648 = vadd.f32 %v4258, %v4494
        %v4649 = vadd.f32 %v4259, %v4499
        %v4650 = vadd.f32 %v4260, %v4504
        %v4651 = vadd.f32 %v4261, %v4509
        %v4652 = vadd.f32 %v4262, %v4514
        %v4653 = vadd.f32 %v4263, %v4519
        %v4654 = vadd.f32 %v4264, %v4524
        %v4655 = vadd.f32 %v4265, %v4529
        %v4656 = vadd.f32 %v4266, %v4534
        %v4657 = vadd.f32 %v4267, %v4539
        %v4658 = vadd.f32 %v4268, %v4544
        %v4659 = vadd.f32 %v4269, %v4549
        %v4660 = vadd.f32 %v4270, %v4554
        %v4661 = vadd.f32 %v4271, %v4559
        %v4662 = vadd.f32 %v4272, %v4564
        %v4663 = vadd.f32 %v4273, %v4569
        %v4664 = vadd.f32 %v4274, %v4574
        %v4665 = vadd.f32 %v4275, %v4579
        %v4666 = vadd.f32 %v4276, %v4584
        %v4667 = vadd.f32 %v4277, %v4589
        %v4668 = vadd.f32 %v4278, %v4594
        %v4669 = vadd.f32 %v4279, %v4599
        %v4670 = vadd.f32 %v4280, %v4604
        %v4671 = vadd.f32 %v4281, %v4609
        %v4672 = vadd.f32 %v4282, %v4614
        %v4673 = vadd.f32 %v4283, %v4619
        %v4674 = vadd.f32 %v4284, %v4624
        %v4675 = vadd.f32 %v4285, %v4629
        %v4676 = vadd.f32 %v4286, %v4634
        %v4677 = vadd.f32 %v4287, %v4639
        %v4678 = vadd.f32 %v4288, %v4644
        %v4679 = vld [vmem:[%s3151 + $0x1] sm:$0xff]
        %v4680 = vld [vmem:[%s3151 + $0x9] sm:$0xff]
        %v4681 = vld [vmem:[%s3151 + $0x19] sm:$0xff]
        %v4682 = vld [vmem:[%s3151 + $0x21] sm:$0xff]
        %v4683 = vld [vmem:[%s3151 + $0x31] sm:$0xff]
        %v4684 = vld [vmem:[%s3151 + $0x39] sm:$0xff]
        %v4685 = vld [vmem:[%s3151 + $0x49] sm:$0xff]
        %v4686 = vld [vmem:[%s3151 + $0x51] sm:$0xff]
        %v4687 = vld [vmem:[%s3151 + $0x61] sm:$0xff]
        %v4688 = vld [vmem:[%s3151 + $0x69] sm:$0xff]
        %v4689 = vld [vmem:[%s3151 + $0x79] sm:$0xff]
        %v4690 = vld [vmem:[%s3151 + $0x81] sm:$0xff]
        %v4691 = vld [vmem:[%s3151 + $0x91] sm:$0xff]
        %v4692 = vld [vmem:[%s3151 + $0x99] sm:$0xff]
        %v4693 = vld [vmem:[%s3151 + $0xa9] sm:$0xff]
        %v4694 = vld [vmem:[%s3151 + $0xb1] sm:$0xff]
        %v4695 = vld [vmem:[%s3151 + $0xc1] sm:$0xff]
        %v4696 = vld [vmem:[%s3151 + $0xc9] sm:$0xff]
        %v4697 = vld [vmem:[%s3151 + $0xd9] sm:$0xff]
        %v4698 = vld [vmem:[%s3151 + $0xe1] sm:$0xff]
        %v4699 = vld [vmem:[%s3151 + $0xf1] sm:$0xff]
        %v4700 = vld [vmem:[%s3151 + $0xf9] sm:$0xff]
        %v4701 = vld [vmem:[%s3151 + $0x109] sm:$0xff]
        %v4702 = vld [vmem:[%s3151 + $0x111] sm:$0xff]
        %v4703 = vld [vmem:[%s3151 + $0x121] sm:$0xff]
        %v4704 = vld [vmem:[%s3151 + $0x129] sm:$0xff]
        %v4705 = vld [vmem:[%s3151 + $0x139] sm:$0xff]
        %v4706 = vld [vmem:[%s3151 + $0x141] sm:$0xff]
        %v4707 = vld [vmem:[%s3151 + $0x151] sm:$0xff]
        %v4708 = vld [vmem:[%s3151 + $0x159] sm:$0xff]
        %v4709 = vld [vmem:[%s3151 + $0x169] sm:$0xff]
        %v4710 = vld [vmem:[%s3151 + $0x171] sm:$0xff]
        %s4711 = scalar_lea.vmem %s3, 128
        %v4712 = vld [vmem:[%s4711] sm:$0xff]
        %v4713 = vld [vmem:[%s4711 + $0x8] sm:$0xff]
        %v4714 = vld [vmem:[%s4711 + $0x10] sm:$0xff]
        %v4715 = vld [vmem:[%s4711 + $0x18] sm:$0xff]
        %v4717 = vsel %vm3095, %v4679, 0
        %v4720 = vsel %vm3095, %v4680, 0
        %v4723 = vsel %vm3095, %v4681, 0
        %v4726 = vsel %vm3095, %v4682, 0
        %v4729 = vsel %vm3095, %v4683, 0
        %v4732 = vsel %vm3095, %v4684, 0
        %v4735 = vsel %vm3095, %v4685, 0
        %v4738 = vsel %vm3095, %v4686, 0
        %v4741 = vsel %vm3095, %v4687, 0
        %v4744 = vsel %vm3095, %v4688, 0
        %v4747 = vsel %vm3095, %v4689, 0
        %v4750 = vsel %vm3095, %v4690, 0
        %v4753 = vsel %vm3095, %v4691, 0
        %v4756 = vsel %vm3095, %v4692, 0
        %v4759 = vsel %vm3095, %v4693, 0
        %v4762 = vsel %vm3095, %v4694, 0
        %v4765 = vsel %vm3095, %v4695, 0
        %v4768 = vsel %vm3095, %v4696, 0
        %v4771 = vsel %vm3095, %v4697, 0
        %v4774 = vsel %vm3095, %v4698, 0
        %v4777 = vsel %vm3095, %v4699, 0
        %v4780 = vsel %vm3095, %v4700, 0
        %v4783 = vsel %vm3095, %v4701, 0
        %v4786 = vsel %vm3095, %v4702, 0
        %v4789 = vsel %vm3095, %v4703, 0
        %v4792 = vsel %vm3095, %v4704, 0
        %v4795 = vsel %vm3095, %v4705, 0
        %v4798 = vsel %vm3095, %v4706, 0
        %v4801 = vsel %vm3095, %v4707, 0
        %v4804 = vsel %vm3095, %v4708, 0
        %v4807 = vsel %vm3095, %v4709, 0
        %v4810 = vsel %vm3095, %v4710, 0
        %4812 = vmatprep.subr.mxu0 0.0
        %4813 = vmatpush1.msra.mxu0 0.0
        %4814 = vmatprep.subr.mxu0 0.0
        %4815 = vmatpush1.msra.mxu0 0.0
        %4816 = vmatprep.subr.mxu0 0.0
        %4817 = vmatpush1.msra.mxu0 0.0
        %4818 = vmatprep.subr.mxu0 0.0
        %4819 = vmatpush1.msra.mxu0 0.0
        %4820 = vmatprep.subr.mxu0 0.0
        %4821 = vmatpush1.msra.mxu0 0.0
        %4822 = vmatprep.subr.mxu0 0.0
        %4823 = vmatpush1.msra.mxu0 0.0
        %4824 = vmatprep.subr.mxu0 0.0
        %4825 = vmatpush1.msra.mxu0 0.0
        %4826 = vmatprep.subr.mxu0 0.0
        %4827 = vmatpush1.msra.mxu0 0.0
        %4828 = vmatprep.subr.mxu0 0.0
        %4829 = vmatpush1.msra.mxu0 0.0
        %4830 = vmatprep.subr.mxu0 0.0
        %4831 = vmatpush1.msra.mxu0 0.0
        %4832 = vmatprep.subr.mxu0 0.0
        %4833 = vmatpush1.msra.mxu0 0.0
        %4834 = vmatprep.subr.mxu0 0.0
        %4835 = vmatpush1.msra.mxu0 0.0
        %4836 = vmatprep.subr.mxu0 0.0
        %4837 = vmatpush1.msra.mxu0 %v4715
        %4838 = vmatprep.subr.mxu0 0.0
        %4839 = vmatpush1.msra.mxu0 %v4714
        %4840 = vmatprep.subr.mxu0 0.0
        %4841 = vmatpush1.msra.mxu0 %v4713
        %4842 = vmatprep.subr.mxu0 0.0
        %4843 = vmatpush1.msra.mxu0 %v4712
        %4844 = vmatprep.subr.mxu0 0.0
        %4845 = vmatpush2.msra.mxu0 0.0
        %4846 = vmatprep.subr.mxu0 0.0
        %4847 = vmatpush2.msra.mxu0 0.0
        %4848 = vmatprep.subr.mxu0 0.0
        %4849 = vmatpush2.msra.mxu0 0.0
        %4850 = vmatprep.subr.mxu0 0.0
        %4851 = vmatpush2.msra.mxu0 0.0
        %4852 = vmatprep.subr.mxu0 0.0
        %4853 = vmatpush2.msra.mxu0 0.0
        %4854 = vmatprep.subr.mxu0 0.0
        %4855 = vmatpush2.msra.mxu0 0.0
        %4856 = vmatprep.subr.mxu0 0.0
        %4857 = vmatpush2.msra.mxu0 0.0
        %4858 = vmatprep.subr.mxu0 0.0
        %4859 = vmatpush2.msra.mxu0 0.0
        %4860 = vmatprep.subr.mxu0 0.0
        %4861 = vmatpush2.msra.mxu0 0.0
        %4862 = vmatprep.subr.mxu0 0.0
        %4863 = vmatpush2.msra.mxu0 0.0
        %4864 = vmatprep.subr.mxu0 0.0
        %4865 = vmatpush2.msra.mxu0 0.0
        %4866 = vmatprep.subr.mxu0 0.0
        %4867 = vmatpush2.msra.mxu0 0.0
        %4868 = vmatprep.subr.mxu0 0.0
        %4869 = vmatpush2.msra.mxu0 0.0
        %4870 = vmatprep.subr.mxu0 0.0
        %4871 = vmatpush2.msra.mxu0 0.0
        %4872 = vmatprep.subr.mxu0 0.0
        %4873 = vmatpush2.msra.mxu0 0.0
        %4874 = vmatprep.subr.mxu0 0.0
        %4875 = vmatpush2.msra.mxu0 0.0
        %4876 = vmatprep.mubr.f32.mxu0 0.0
        %4877 = vmatmul.mubr.f32.gmra.mxu0 %v4717
        %v4878 = vpop.f32.mrf.mxu0
        %v4879 = vadd.f32 0.0, %v4878
        %v4880 = vpop.f32.mrf.mxu0
        %4881 = vmatprep.mubr.f32.mxu0 0.0
        %4882 = vmatmul.mubr.f32.gmra.mxu0 %v4720
        %v4883 = vpop.f32.mrf.mxu0
        %v4884 = vadd.f32 0.0, %v4883
        %v4885 = vpop.f32.mrf.mxu0
        %4886 = vmatprep.mubr.f32.mxu0 0.0
        %4887 = vmatmul.mubr.f32.gmra.mxu0 %v4723
        %v4888 = vpop.f32.mrf.mxu0
        %v4889 = vadd.f32 0.0, %v4888
        %v4890 = vpop.f32.mrf.mxu0
        %4891 = vmatprep.mubr.f32.mxu0 0.0
        %4892 = vmatmul.mubr.f32.gmra.mxu0 %v4726
        %v4893 = vpop.f32.mrf.mxu0
        %v4894 = vadd.f32 0.0, %v4893
        %v4895 = vpop.f32.mrf.mxu0
        %4896 = vmatprep.mubr.f32.mxu0 0.0
        %4897 = vmatmul.mubr.f32.gmra.mxu0 %v4729
        %v4898 = vpop.f32.mrf.mxu0
        %v4899 = vadd.f32 0.0, %v4898
        %v4900 = vpop.f32.mrf.mxu0
        %4901 = vmatprep.mubr.f32.mxu0 0.0
        %4902 = vmatmul.mubr.f32.gmra.mxu0 %v4732
        %v4903 = vpop.f32.mrf.mxu0
        %v4904 = vadd.f32 0.0, %v4903
        %v4905 = vpop.f32.mrf.mxu0
        %4906 = vmatprep.mubr.f32.mxu0 0.0
        %4907 = vmatmul.mubr.f32.gmra.mxu0 %v4735
        %v4908 = vpop.f32.mrf.mxu0
        %v4909 = vadd.f32 0.0, %v4908
        %v4910 = vpop.f32.mrf.mxu0
        %4911 = vmatprep.mubr.f32.mxu0 0.0
        %4912 = vmatmul.mubr.f32.gmra.mxu0 %v4738
        %v4913 = vpop.f32.mrf.mxu0
        %v4914 = vadd.f32 0.0, %v4913
        %v4915 = vpop.f32.mrf.mxu0
        %4916 = vmatprep.mubr.f32.mxu0 0.0
        %4917 = vmatmul.mubr.f32.gmra.mxu0 %v4741
        %v4918 = vpop.f32.mrf.mxu0
        %v4919 = vadd.f32 0.0, %v4918
        %v4920 = vpop.f32.mrf.mxu0
        %4921 = vmatprep.mubr.f32.mxu0 0.0
        %4922 = vmatmul.mubr.f32.gmra.mxu0 %v4744
        %v4923 = vpop.f32.mrf.mxu0
        %v4924 = vadd.f32 0.0, %v4923
        %v4925 = vpop.f32.mrf.mxu0
        %4926 = vmatprep.mubr.f32.mxu0 0.0
        %4927 = vmatmul.mubr.f32.gmra.mxu0 %v4747
        %v4928 = vpop.f32.mrf.mxu0
        %v4929 = vadd.f32 0.0, %v4928
        %v4930 = vpop.f32.mrf.mxu0
        %4931 = vmatprep.mubr.f32.mxu0 0.0
        %4932 = vmatmul.mubr.f32.gmra.mxu0 %v4750
        %v4933 = vpop.f32.mrf.mxu0
        %v4934 = vadd.f32 0.0, %v4933
        %v4935 = vpop.f32.mrf.mxu0
        %4936 = vmatprep.mubr.f32.mxu0 0.0
        %4937 = vmatmul.mubr.f32.gmra.mxu0 %v4753
        %v4938 = vpop.f32.mrf.mxu0
        %v4939 = vadd.f32 0.0, %v4938
        %v4940 = vpop.f32.mrf.mxu0
        %4941 = vmatprep.mubr.f32.mxu0 0.0
        %4942 = vmatmul.mubr.f32.gmra.mxu0 %v4756
        %v4943 = vpop.f32.mrf.mxu0
        %v4944 = vadd.f32 0.0, %v4943
        %v4945 = vpop.f32.mrf.mxu0
        %4946 = vmatprep.mubr.f32.mxu0 0.0
        %4947 = vmatmul.mubr.f32.gmra.mxu0 %v4759
        %v4948 = vpop.f32.mrf.mxu0
        %v4949 = vadd.f32 0.0, %v4948
        %v4950 = vpop.f32.mrf.mxu0
        %4951 = vmatprep.mubr.f32.mxu0 0.0
        %4952 = vmatmul.mubr.f32.gmra.mxu0 %v4762
        %v4953 = vpop.f32.mrf.mxu0
        %v4954 = vadd.f32 0.0, %v4953
        %v4955 = vpop.f32.mrf.mxu0
        %4956 = vmatprep.mubr.f32.mxu0 0.0
        %4957 = vmatmul.mubr.f32.gmra.mxu0 %v4765
        %v4958 = vpop.f32.mrf.mxu0
        %v4959 = vadd.f32 0.0, %v4958
        %v4960 = vpop.f32.mrf.mxu0
        %4961 = vmatprep.mubr.f32.mxu0 0.0
        %4962 = vmatmul.mubr.f32.gmra.mxu0 %v4768
        %v4963 = vpop.f32.mrf.mxu0
        %v4964 = vadd.f32 0.0, %v4963
        %v4965 = vpop.f32.mrf.mxu0
        %4966 = vmatprep.mubr.f32.mxu0 0.0
        %4967 = vmatmul.mubr.f32.gmra.mxu0 %v4771
        %v4968 = vpop.f32.mrf.mxu0
        %v4969 = vadd.f32 0.0, %v4968
        %v4970 = vpop.f32.mrf.mxu0
        %4971 = vmatprep.mubr.f32.mxu0 0.0
        %4972 = vmatmul.mubr.f32.gmra.mxu0 %v4774
        %v4973 = vpop.f32.mrf.mxu0
        %v4974 = vadd.f32 0.0, %v4973
        %v4975 = vpop.f32.mrf.mxu0
        %4976 = vmatprep.mubr.f32.mxu0 0.0
        %4977 = vmatmul.mubr.f32.gmra.mxu0 %v4777
        %v4978 = vpop.f32.mrf.mxu0
        %v4979 = vadd.f32 0.0, %v4978
        %v4980 = vpop.f32.mrf.mxu0
        %4981 = vmatprep.mubr.f32.mxu0 0.0
        %4982 = vmatmul.mubr.f32.gmra.mxu0 %v4780
        %v4983 = vpop.f32.mrf.mxu0
        %v4984 = vadd.f32 0.0, %v4983
        %v4985 = vpop.f32.mrf.mxu0
        %4986 = vmatprep.mubr.f32.mxu0 0.0
        %4987 = vmatmul.mubr.f32.gmra.mxu0 %v4783
        %v4988 = vpop.f32.mrf.mxu0
        %v4989 = vadd.f32 0.0, %v4988
        %v4990 = vpop.f32.mrf.mxu0
        %4991 = vmatprep.mubr.f32.mxu0 0.0
        %4992 = vmatmul.mubr.f32.gmra.mxu0 %v4786
        %v4993 = vpop.f32.mrf.mxu0
        %v4994 = vadd.f32 0.0, %v4993
        %v4995 = vpop.f32.mrf.mxu0
        %4996 = vmatprep.mubr.f32.mxu0 0.0
        %4997 = vmatmul.mubr.f32.gmra.mxu0 %v4789
        %v4998 = vpop.f32.mrf.mxu0
        %v4999 = vadd.f32 0.0, %v4998
        %v5000 = vpop.f32.mrf.mxu0
        %5001 = vmatprep.mubr.f32.mxu0 0.0
        %5002 = vmatmul.mubr.f32.gmra.mxu0 %v4792
        %v5003 = vpop.f32.mrf.mxu0
        %v5004 = vadd.f32 0.0, %v5003
        %v5005 = vpop.f32.mrf.mxu0
        %5006 = vmatprep.mubr.f32.mxu0 0.0
        %5007 = vmatmul.mubr.f32.gmra.mxu0 %v4795
        %v5008 = vpop.f32.mrf.mxu0
        %v5009 = vadd.f32 0.0, %v5008
        %v5010 = vpop.f32.mrf.mxu0
        %5011 = vmatprep.mubr.f32.mxu0 0.0
        %5012 = vmatmul.mubr.f32.gmra.mxu0 %v4798
        %v5013 = vpop.f32.mrf.mxu0
        %v5014 = vadd.f32 0.0, %v5013
        %v5015 = vpop.f32.mrf.mxu0
        %5016 = vmatprep.mubr.f32.mxu0 0.0
        %5017 = vmatmul.mubr.f32.gmra.mxu0 %v4801
        %v5018 = vpop.f32.mrf.mxu0
        %v5019 = vadd.f32 0.0, %v5018
        %v5020 = vpop.f32.mrf.mxu0
        %5021 = vmatprep.mubr.f32.mxu0 0.0
        %5022 = vmatmul.mubr.f32.gmra.mxu0 %v4804
        %v5023 = vpop.f32.mrf.mxu0
        %v5024 = vadd.f32 0.0, %v5023
        %v5025 = vpop.f32.mrf.mxu0
        %5026 = vmatprep.mubr.f32.mxu0 0.0
        %5027 = vmatmul.mubr.f32.gmra.mxu0 %v4807
        %v5028 = vpop.f32.mrf.mxu0
        %v5029 = vadd.f32 0.0, %v5028
        %v5030 = vpop.f32.mrf.mxu0
        %5031 = vmatprep.mubr.f32.mxu0 0.0
        %5032 = vmatmul.mubr.f32.gmra.mxu0 %v4810
        %v5033 = vpop.f32.mrf.mxu0
        %v5034 = vadd.f32 0.0, %v5033
        %v5035 = vpop.f32.mrf.mxu0
        %5036 = vdwg.mxu0
        %v5037 = vadd.f32 %v4647, %v4879
        %v5038 = vadd.f32 %v4648, %v4884
        %v5039 = vadd.f32 %v4649, %v4889
        %v5040 = vadd.f32 %v4650, %v4894
        %v5041 = vadd.f32 %v4651, %v4899
        %v5042 = vadd.f32 %v4652, %v4904
        %v5043 = vadd.f32 %v4653, %v4909
        %v5044 = vadd.f32 %v4654, %v4914
        %v5045 = vadd.f32 %v4655, %v4919
        %v5046 = vadd.f32 %v4656, %v4924
        %v5047 = vadd.f32 %v4657, %v4929
        %v5048 = vadd.f32 %v4658, %v4934
        %v5049 = vadd.f32 %v4659, %v4939
        %v5050 = vadd.f32 %v4660, %v4944
        %v5051 = vadd.f32 %v4661, %v4949
        %v5052 = vadd.f32 %v4662, %v4954
        %v5053 = vadd.f32 %v4663, %v4959
        %v5054 = vadd.f32 %v4664, %v4964
        %v5055 = vadd.f32 %v4665, %v4969
        %v5056 = vadd.f32 %v4666, %v4974
        %v5057 = vadd.f32 %v4667, %v4979
        %v5058 = vadd.f32 %v4668, %v4984
        %v5059 = vadd.f32 %v4669, %v4989
        %v5060 = vadd.f32 %v4670, %v4994
        %v5061 = vadd.f32 %v4671, %v4999
        %v5062 = vadd.f32 %v4672, %v5004
        %v5063 = vadd.f32 %v4673, %v5009
        %v5064 = vadd.f32 %v4674, %v5014
        %v5065 = vadd.f32 %v4675, %v5019
        %v5066 = vadd.f32 %v4676, %v5024
        %v5067 = vadd.f32 %v4677, %v5029
        %v5068 = vadd.f32 %v4678, %v5034
        %v5069 = vld [vmem:[%s3151 + $0x2] sm:$0xff]
        %v5070 = vld [vmem:[%s3151 + $0xa] sm:$0xff]
        %v5071 = vld [vmem:[%s3151 + $0x1a] sm:$0xff]
        %v5072 = vld [vmem:[%s3151 + $0x22] sm:$0xff]
        %v5073 = vld [vmem:[%s3151 + $0x32] sm:$0xff]
        %v5074 = vld [vmem:[%s3151 + $0x3a] sm:$0xff]
        %v5075 = vld [vmem:[%s3151 + $0x4a] sm:$0xff]
        %v5076 = vld [vmem:[%s3151 + $0x52] sm:$0xff]
        %v5077 = vld [vmem:[%s3151 + $0x62] sm:$0xff]
        %v5078 = vld [vmem:[%s3151 + $0x6a] sm:$0xff]
        %v5079 = vld [vmem:[%s3151 + $0x7a] sm:$0xff]
        %v5080 = vld [vmem:[%s3151 + $0x82] sm:$0xff]
        %v5081 = vld [vmem:[%s3151 + $0x92] sm:$0xff]
        %v5082 = vld [vmem:[%s3151 + $0x9a] sm:$0xff]
        %v5083 = vld [vmem:[%s3151 + $0xaa] sm:$0xff]
        %v5084 = vld [vmem:[%s3151 + $0xb2] sm:$0xff]
        %v5085 = vld [vmem:[%s3151 + $0xc2] sm:$0xff]
        %v5086 = vld [vmem:[%s3151 + $0xca] sm:$0xff]
        %v5087 = vld [vmem:[%s3151 + $0xda] sm:$0xff]
        %v5088 = vld [vmem:[%s3151 + $0xe2] sm:$0xff]
        %v5089 = vld [vmem:[%s3151 + $0xf2] sm:$0xff]
        %v5090 = vld [vmem:[%s3151 + $0xfa] sm:$0xff]
        %v5091 = vld [vmem:[%s3151 + $0x10a] sm:$0xff]
        %v5092 = vld [vmem:[%s3151 + $0x112] sm:$0xff]
        %v5093 = vld [vmem:[%s3151 + $0x122] sm:$0xff]
        %v5094 = vld [vmem:[%s3151 + $0x12a] sm:$0xff]
        %v5095 = vld [vmem:[%s3151 + $0x13a] sm:$0xff]
        %v5096 = vld [vmem:[%s3151 + $0x142] sm:$0xff]
        %v5097 = vld [vmem:[%s3151 + $0x152] sm:$0xff]
        %v5098 = vld [vmem:[%s3151 + $0x15a] sm:$0xff]
        %v5099 = vld [vmem:[%s3151 + $0x16a] sm:$0xff]
        %v5100 = vld [vmem:[%s3151 + $0x172] sm:$0xff]
        %s5101 = scalar_lea.vmem %s3, 160
        %v5102 = vld [vmem:[%s5101] sm:$0xff]
        %v5103 = vld [vmem:[%s5101 + $0x8] sm:$0xff]
        %v5104 = vld [vmem:[%s5101 + $0x10] sm:$0xff]
        %v5105 = vld [vmem:[%s5101 + $0x18] sm:$0xff]
        %v5107 = vsel %vm3095, %v5069, 0
        %v5110 = vsel %vm3095, %v5070, 0
        %v5113 = vsel %vm3095, %v5071, 0
        %v5116 = vsel %vm3095, %v5072, 0
        %v5119 = vsel %vm3095, %v5073, 0
        %v5122 = vsel %vm3095, %v5074, 0
        %v5125 = vsel %vm3095, %v5075, 0
        %v5128 = vsel %vm3095, %v5076, 0
        %v5131 = vsel %vm3095, %v5077, 0
        %v5134 = vsel %vm3095, %v5078, 0
        %v5137 = vsel %vm3095, %v5079, 0
        %v5140 = vsel %vm3095, %v5080, 0
        %v5143 = vsel %vm3095, %v5081, 0
        %v5146 = vsel %vm3095, %v5082, 0
        %v5149 = vsel %vm3095, %v5083, 0
        %v5152 = vsel %vm3095, %v5084, 0
        %v5155 = vsel %vm3095, %v5085, 0
        %v5158 = vsel %vm3095, %v5086, 0
        %v5161 = vsel %vm3095, %v5087, 0
        %v5164 = vsel %vm3095, %v5088, 0
        %v5167 = vsel %vm3095, %v5089, 0
        %v5170 = vsel %vm3095, %v5090, 0
        %v5173 = vsel %vm3095, %v5091, 0
        %v5176 = vsel %vm3095, %v5092, 0
        %v5179 = vsel %vm3095, %v5093, 0
        %v5182 = vsel %vm3095, %v5094, 0
        %v5185 = vsel %vm3095, %v5095, 0
        %v5188 = vsel %vm3095, %v5096, 0
        %v5191 = vsel %vm3095, %v5097, 0
        %v5194 = vsel %vm3095, %v5098, 0
        %v5197 = vsel %vm3095, %v5099, 0
        %v5200 = vsel %vm3095, %v5100, 0
        %5202 = vmatprep.subr.mxu0 0.0
        %5203 = vmatpush1.msra.mxu0 0.0
        %5204 = vmatprep.subr.mxu0 0.0
        %5205 = vmatpush1.msra.mxu0 0.0
        %5206 = vmatprep.subr.mxu0 0.0
        %5207 = vmatpush1.msra.mxu0 0.0
        %5208 = vmatprep.subr.mxu0 0.0
        %5209 = vmatpush1.msra.mxu0 0.0
        %5210 = vmatprep.subr.mxu0 0.0
        %5211 = vmatpush1.msra.mxu0 0.0
        %5212 = vmatprep.subr.mxu0 0.0
        %5213 = vmatpush1.msra.mxu0 0.0
        %5214 = vmatprep.subr.mxu0 0.0
        %5215 = vmatpush1.msra.mxu0 0.0
        %5216 = vmatprep.subr.mxu0 0.0
        %5217 = vmatpush1.msra.mxu0 0.0
        %5218 = vmatprep.subr.mxu0 0.0
        %5219 = vmatpush1.msra.mxu0 0.0
        %5220 = vmatprep.subr.mxu0 0.0
        %5221 = vmatpush1.msra.mxu0 0.0
        %5222 = vmatprep.subr.mxu0 0.0
        %5223 = vmatpush1.msra.mxu0 0.0
        %5224 = vmatprep.subr.mxu0 0.0
        %5225 = vmatpush1.msra.mxu0 0.0
        %5226 = vmatprep.subr.mxu0 0.0
        %5227 = vmatpush1.msra.mxu0 %v5105
        %5228 = vmatprep.subr.mxu0 0.0
        %5229 = vmatpush1.msra.mxu0 %v5104
        %5230 = vmatprep.subr.mxu0 0.0
        %5231 = vmatpush1.msra.mxu0 %v5103
        %5232 = vmatprep.subr.mxu0 0.0
        %5233 = vmatpush1.msra.mxu0 %v5102
        %5234 = vmatprep.subr.mxu0 0.0
        %5235 = vmatpush2.msra.mxu0 0.0
        %5236 = vmatprep.subr.mxu0 0.0
        %5237 = vmatpush2.msra.mxu0 0.0
        %5238 = vmatprep.subr.mxu0 0.0
        %5239 = vmatpush2.msra.mxu0 0.0
        %5240 = vmatprep.subr.mxu0 0.0
        %5241 = vmatpush2.msra.mxu0 0.0
        %5242 = vmatprep.subr.mxu0 0.0
        %5243 = vmatpush2.msra.mxu0 0.0
        %5244 = vmatprep.subr.mxu0 0.0
        %5245 = vmatpush2.msra.mxu0 0.0
        %5246 = vmatprep.subr.mxu0 0.0
        %5247 = vmatpush2.msra.mxu0 0.0
        %5248 = vmatprep.subr.mxu0 0.0
        %5249 = vmatpush2.msra.mxu0 0.0
        %5250 = vmatprep.subr.mxu0 0.0
        %5251 = vmatpush2.msra.mxu0 0.0
        %5252 = vmatprep.subr.mxu0 0.0
        %5253 = vmatpush2.msra.mxu0 0.0
        %5254 = vmatprep.subr.mxu0 0.0
        %5255 = vmatpush2.msra.mxu0 0.0
        %5256 = vmatprep.subr.mxu0 0.0
        %5257 = vmatpush2.msra.mxu0 0.0
        %5258 = vmatprep.subr.mxu0 0.0
        %5259 = vmatpush2.msra.mxu0 0.0
        %5260 = vmatprep.subr.mxu0 0.0
        %5261 = vmatpush2.msra.mxu0 0.0
        %5262 = vmatprep.subr.mxu0 0.0
        %5263 = vmatpush2.msra.mxu0 0.0
        %5264 = vmatprep.subr.mxu0 0.0
        %5265 = vmatpush2.msra.mxu0 0.0
        %5266 = vmatprep.mubr.f32.mxu0 0.0
        %5267 = vmatmul.mubr.f32.gmra.mxu0 %v5107
        %v5268 = vpop.f32.mrf.mxu0
        %v5269 = vadd.f32 0.0, %v5268
        %v5270 = vpop.f32.mrf.mxu0
        %5271 = vmatprep.mubr.f32.mxu0 0.0
        %5272 = vmatmul.mubr.f32.gmra.mxu0 %v5110
        %v5273 = vpop.f32.mrf.mxu0
        %v5274 = vadd.f32 0.0, %v5273
        %v5275 = vpop.f32.mrf.mxu0
        %5276 = vmatprep.mubr.f32.mxu0 0.0
        %5277 = vmatmul.mubr.f32.gmra.mxu0 %v5113
        %v5278 = vpop.f32.mrf.mxu0
        %v5279 = vadd.f32 0.0, %v5278
        %v5280 = vpop.f32.mrf.mxu0
        %5281 = vmatprep.mubr.f32.mxu0 0.0
        %5282 = vmatmul.mubr.f32.gmra.mxu0 %v5116
        %v5283 = vpop.f32.mrf.mxu0
        %v5284 = vadd.f32 0.0, %v5283
        %v5285 = vpop.f32.mrf.mxu0
        %5286 = vmatprep.mubr.f32.mxu0 0.0
        %5287 = vmatmul.mubr.f32.gmra.mxu0 %v5119
        %v5288 = vpop.f32.mrf.mxu0
        %v5289 = vadd.f32 0.0, %v5288
        %v5290 = vpop.f32.mrf.mxu0
        %5291 = vmatprep.mubr.f32.mxu0 0.0
        %5292 = vmatmul.mubr.f32.gmra.mxu0 %v5122
        %v5293 = vpop.f32.mrf.mxu0
        %v5294 = vadd.f32 0.0, %v5293
        %v5295 = vpop.f32.mrf.mxu0
        %5296 = vmatprep.mubr.f32.mxu0 0.0
        %5297 = vmatmul.mubr.f32.gmra.mxu0 %v5125
        %v5298 = vpop.f32.mrf.mxu0
        %v5299 = vadd.f32 0.0, %v5298
        %v5300 = vpop.f32.mrf.mxu0
        %5301 = vmatprep.mubr.f32.mxu0 0.0
        %5302 = vmatmul.mubr.f32.gmra.mxu0 %v5128
        %v5303 = vpop.f32.mrf.mxu0
        %v5304 = vadd.f32 0.0, %v5303
        %v5305 = vpop.f32.mrf.mxu0
        %5306 = vmatprep.mubr.f32.mxu0 0.0
        %5307 = vmatmul.mubr.f32.gmra.mxu0 %v5131
        %v5308 = vpop.f32.mrf.mxu0
        %v5309 = vadd.f32 0.0, %v5308
        %v5310 = vpop.f32.mrf.mxu0
        %5311 = vmatprep.mubr.f32.mxu0 0.0
        %5312 = vmatmul.mubr.f32.gmra.mxu0 %v5134
        %v5313 = vpop.f32.mrf.mxu0
        %v5314 = vadd.f32 0.0, %v5313
        %v5315 = vpop.f32.mrf.mxu0
        %5316 = vmatprep.mubr.f32.mxu0 0.0
        %5317 = vmatmul.mubr.f32.gmra.mxu0 %v5137
        %v5318 = vpop.f32.mrf.mxu0
        %v5319 = vadd.f32 0.0, %v5318
        %v5320 = vpop.f32.mrf.mxu0
        %5321 = vmatprep.mubr.f32.mxu0 0.0
        %5322 = vmatmul.mubr.f32.gmra.mxu0 %v5140
        %v5323 = vpop.f32.mrf.mxu0
        %v5324 = vadd.f32 0.0, %v5323
        %v5325 = vpop.f32.mrf.mxu0
        %5326 = vmatprep.mubr.f32.mxu0 0.0
        %5327 = vmatmul.mubr.f32.gmra.mxu0 %v5143
        %v5328 = vpop.f32.mrf.mxu0
        %v5329 = vadd.f32 0.0, %v5328
        %v5330 = vpop.f32.mrf.mxu0
        %5331 = vmatprep.mubr.f32.mxu0 0.0
        %5332 = vmatmul.mubr.f32.gmra.mxu0 %v5146
        %v5333 = vpop.f32.mrf.mxu0
        %v5334 = vadd.f32 0.0, %v5333
        %v5335 = vpop.f32.mrf.mxu0
        %5336 = vmatprep.mubr.f32.mxu0 0.0
        %5337 = vmatmul.mubr.f32.gmra.mxu0 %v5149
        %v5338 = vpop.f32.mrf.mxu0
        %v5339 = vadd.f32 0.0, %v5338
        %v5340 = vpop.f32.mrf.mxu0
        %5341 = vmatprep.mubr.f32.mxu0 0.0
        %5342 = vmatmul.mubr.f32.gmra.mxu0 %v5152
        %v5343 = vpop.f32.mrf.mxu0
        %v5344 = vadd.f32 0.0, %v5343
        %v5345 = vpop.f32.mrf.mxu0
        %5346 = vmatprep.mubr.f32.mxu0 0.0
        %5347 = vmatmul.mubr.f32.gmra.mxu0 %v5155
        %v5348 = vpop.f32.mrf.mxu0
        %v5349 = vadd.f32 0.0, %v5348
        %v5350 = vpop.f32.mrf.mxu0
        %5351 = vmatprep.mubr.f32.mxu0 0.0
        %5352 = vmatmul.mubr.f32.gmra.mxu0 %v5158
        %v5353 = vpop.f32.mrf.mxu0
        %v5354 = vadd.f32 0.0, %v5353
        %v5355 = vpop.f32.mrf.mxu0
        %5356 = vmatprep.mubr.f32.mxu0 0.0
        %5357 = vmatmul.mubr.f32.gmra.mxu0 %v5161
        %v5358 = vpop.f32.mrf.mxu0
        %v5359 = vadd.f32 0.0, %v5358
        %v5360 = vpop.f32.mrf.mxu0
        %5361 = vmatprep.mubr.f32.mxu0 0.0
        %5362 = vmatmul.mubr.f32.gmra.mxu0 %v5164
        %v5363 = vpop.f32.mrf.mxu0
        %v5364 = vadd.f32 0.0, %v5363
        %v5365 = vpop.f32.mrf.mxu0
        %5366 = vmatprep.mubr.f32.mxu0 0.0
        %5367 = vmatmul.mubr.f32.gmra.mxu0 %v5167
        %v5368 = vpop.f32.mrf.mxu0
        %v5369 = vadd.f32 0.0, %v5368
        %v5370 = vpop.f32.mrf.mxu0
        %5371 = vmatprep.mubr.f32.mxu0 0.0
        %5372 = vmatmul.mubr.f32.gmra.mxu0 %v5170
        %v5373 = vpop.f32.mrf.mxu0
        %v5374 = vadd.f32 0.0, %v5373
        %v5375 = vpop.f32.mrf.mxu0
        %5376 = vmatprep.mubr.f32.mxu0 0.0
        %5377 = vmatmul.mubr.f32.gmra.mxu0 %v5173
        %v5378 = vpop.f32.mrf.mxu0
        %v5379 = vadd.f32 0.0, %v5378
        %v5380 = vpop.f32.mrf.mxu0
        %5381 = vmatprep.mubr.f32.mxu0 0.0
        %5382 = vmatmul.mubr.f32.gmra.mxu0 %v5176
        %v5383 = vpop.f32.mrf.mxu0
        %v5384 = vadd.f32 0.0, %v5383
        %v5385 = vpop.f32.mrf.mxu0
        %5386 = vmatprep.mubr.f32.mxu0 0.0
        %5387 = vmatmul.mubr.f32.gmra.mxu0 %v5179
        %v5388 = vpop.f32.mrf.mxu0
        %v5389 = vadd.f32 0.0, %v5388
        %v5390 = vpop.f32.mrf.mxu0
        %5391 = vmatprep.mubr.f32.mxu0 0.0
        %5392 = vmatmul.mubr.f32.gmra.mxu0 %v5182
        %v5393 = vpop.f32.mrf.mxu0
        %v5394 = vadd.f32 0.0, %v5393
        %v5395 = vpop.f32.mrf.mxu0
        %5396 = vmatprep.mubr.f32.mxu0 0.0
        %5397 = vmatmul.mubr.f32.gmra.mxu0 %v5185
        %v5398 = vpop.f32.mrf.mxu0
        %v5399 = vadd.f32 0.0, %v5398
        %v5400 = vpop.f32.mrf.mxu0
        %5401 = vmatprep.mubr.f32.mxu0 0.0
        %5402 = vmatmul.mubr.f32.gmra.mxu0 %v5188
        %v5403 = vpop.f32.mrf.mxu0
        %v5404 = vadd.f32 0.0, %v5403
        %v5405 = vpop.f32.mrf.mxu0
        %5406 = vmatprep.mubr.f32.mxu0 0.0
        %5407 = vmatmul.mubr.f32.gmra.mxu0 %v5191
        %v5408 = vpop.f32.mrf.mxu0
        %v5409 = vadd.f32 0.0, %v5408
        %v5410 = vpop.f32.mrf.mxu0
        %5411 = vmatprep.mubr.f32.mxu0 0.0
        %5412 = vmatmul.mubr.f32.gmra.mxu0 %v5194
        %v5413 = vpop.f32.mrf.mxu0
        %v5414 = vadd.f32 0.0, %v5413
        %v5415 = vpop.f32.mrf.mxu0
        %5416 = vmatprep.mubr.f32.mxu0 0.0
        %5417 = vmatmul.mubr.f32.gmra.mxu0 %v5197
        %v5418 = vpop.f32.mrf.mxu0
        %v5419 = vadd.f32 0.0, %v5418
        %v5420 = vpop.f32.mrf.mxu0
        %5421 = vmatprep.mubr.f32.mxu0 0.0
        %5422 = vmatmul.mubr.f32.gmra.mxu0 %v5200
        %v5423 = vpop.f32.mrf.mxu0
        %v5424 = vadd.f32 0.0, %v5423
        %v5425 = vpop.f32.mrf.mxu0
        %5426 = vdwg.mxu0
        %v5427 = vadd.f32 %v5037, %v5269
        %v5428 = vadd.f32 %v5038, %v5274
        %v5429 = vadd.f32 %v5039, %v5279
        %v5430 = vadd.f32 %v5040, %v5284
        %v5431 = vadd.f32 %v5041, %v5289
        %v5432 = vadd.f32 %v5042, %v5294
        %v5433 = vadd.f32 %v5043, %v5299
        %v5434 = vadd.f32 %v5044, %v5304
        %v5435 = vadd.f32 %v5045, %v5309
        %v5436 = vadd.f32 %v5046, %v5314
        %v5437 = vadd.f32 %v5047, %v5319
        %v5438 = vadd.f32 %v5048, %v5324
        %v5439 = vadd.f32 %v5049, %v5329
        %v5440 = vadd.f32 %v5050, %v5334
        %v5441 = vadd.f32 %v5051, %v5339
        %v5442 = vadd.f32 %v5052, %v5344
        %v5443 = vadd.f32 %v5053, %v5349
        %v5444 = vadd.f32 %v5054, %v5354
        %v5445 = vadd.f32 %v5055, %v5359
        %v5446 = vadd.f32 %v5056, %v5364
        %v5447 = vadd.f32 %v5057, %v5369
        %v5448 = vadd.f32 %v5058, %v5374
        %v5449 = vadd.f32 %v5059, %v5379
        %v5450 = vadd.f32 %v5060, %v5384
        %v5451 = vadd.f32 %v5061, %v5389
        %v5452 = vadd.f32 %v5062, %v5394
        %v5453 = vadd.f32 %v5063, %v5399
        %v5454 = vadd.f32 %v5064, %v5404
        %v5455 = vadd.f32 %v5065, %v5409
        %v5456 = vadd.f32 %v5066, %v5414
        %v5457 = vadd.f32 %v5067, %v5419
        %v5458 = vadd.f32 %v5068, %v5424
        %s5459 = scalar_lea.vmem [#allocation2], 48
        %v5460 = vld [vmem:[%s5459] sm:$0xff]
        %v5461 = vld [vmem:[%s5459 + $0x8] sm:$0xff]
        %v5462 = vld [vmem:[%s5459 + $0x18] sm:$0xff]
        %v5463 = vld [vmem:[%s5459 + $0x20] sm:$0xff]
        %v5464 = vld [vmem:[%s5459 + $0x30] sm:$0xff]
        %v5465 = vld [vmem:[%s5459 + $0x38] sm:$0xff]
        %v5466 = vld [vmem:[%s5459 + $0x48] sm:$0xff]
        %v5467 = vld [vmem:[%s5459 + $0x50] sm:$0xff]
        %v5468 = vld [vmem:[%s5459 + $0x60] sm:$0xff]
        %v5469 = vld [vmem:[%s5459 + $0x68] sm:$0xff]
        %v5470 = vld [vmem:[%s5459 + $0x78] sm:$0xff]
        %v5471 = vld [vmem:[%s5459 + $0x80] sm:$0xff]
        %v5472 = vld [vmem:[%s5459 + $0x90] sm:$0xff]
        %v5473 = vld [vmem:[%s5459 + $0x98] sm:$0xff]
        %v5474 = vld [vmem:[%s5459 + $0xa8] sm:$0xff]
        %v5475 = vld [vmem:[%s5459 + $0xb0] sm:$0xff]
        %v5476 = vld [vmem:[%s5459 + $0xc0] sm:$0xff]
        %v5477 = vld [vmem:[%s5459 + $0xc8] sm:$0xff]
        %v5478 = vld [vmem:[%s5459 + $0xd8] sm:$0xff]
        %v5479 = vld [vmem:[%s5459 + $0xe0] sm:$0xff]
        %v5480 = vld [vmem:[%s5459 + $0xf0] sm:$0xff]
        %v5481 = vld [vmem:[%s5459 + $0xf8] sm:$0xff]
        %v5482 = vld [vmem:[%s5459 + $0x108] sm:$0xff]
        %v5483 = vld [vmem:[%s5459 + $0x110] sm:$0xff]
        %v5484 = vld [vmem:[%s5459 + $0x120] sm:$0xff]
        %v5485 = vld [vmem:[%s5459 + $0x128] sm:$0xff]
        %v5486 = vld [vmem:[%s5459 + $0x138] sm:$0xff]
        %v5487 = vld [vmem:[%s5459 + $0x140] sm:$0xff]
        %v5488 = vld [vmem:[%s5459 + $0x150] sm:$0xff]
        %v5489 = vld [vmem:[%s5459 + $0x158] sm:$0xff]
        %v5490 = vld [vmem:[%s5459 + $0x168] sm:$0xff]
        %v5491 = vld [vmem:[%s5459 + $0x170] sm:$0xff]
        %s5492 = scalar_lea.vmem %s3, 192
        %v5493 = vld [vmem:[%s5492] sm:$0xff]
        %v5494 = vld [vmem:[%s5492 + $0x8] sm:$0xff]
        %v5495 = vld [vmem:[%s5492 + $0x10] sm:$0xff]
        %v5496 = vld [vmem:[%s5492 + $0x18] sm:$0xff]
        %v5498 = vsel %vm3095, %v5460, 0
        %v5501 = vsel %vm3095, %v5461, 0
        %v5504 = vsel %vm3095, %v5462, 0
        %v5507 = vsel %vm3095, %v5463, 0
        %v5510 = vsel %vm3095, %v5464, 0
        %v5513 = vsel %vm3095, %v5465, 0
        %v5516 = vsel %vm3095, %v5466, 0
        %v5519 = vsel %vm3095, %v5467, 0
        %v5522 = vsel %vm3095, %v5468, 0
        %v5525 = vsel %vm3095, %v5469, 0
        %v5528 = vsel %vm3095, %v5470, 0
        %v5531 = vsel %vm3095, %v5471, 0
        %v5534 = vsel %vm3095, %v5472, 0
        %v5537 = vsel %vm3095, %v5473, 0
        %v5540 = vsel %vm3095, %v5474, 0
        %v5543 = vsel %vm3095, %v5475, 0
        %v5546 = vsel %vm3095, %v5476, 0
        %v5549 = vsel %vm3095, %v5477, 0
        %v5552 = vsel %vm3095, %v5478, 0
        %v5555 = vsel %vm3095, %v5479, 0
        %v5558 = vsel %vm3095, %v5480, 0
        %v5561 = vsel %vm3095, %v5481, 0
        %v5564 = vsel %vm3095, %v5482, 0
        %v5567 = vsel %vm3095, %v5483, 0
        %v5570 = vsel %vm3095, %v5484, 0
        %v5573 = vsel %vm3095, %v5485, 0
        %v5576 = vsel %vm3095, %v5486, 0
        %v5579 = vsel %vm3095, %v5487, 0
        %v5582 = vsel %vm3095, %v5488, 0
        %v5585 = vsel %vm3095, %v5489, 0
        %v5588 = vsel %vm3095, %v5490, 0
        %v5591 = vsel %vm3095, %v5491, 0
        %5593 = vmatprep.subr.mxu0 0.0
        %5594 = vmatpush1.msra.mxu0 0.0
        %5595 = vmatprep.subr.mxu0 0.0
        %5596 = vmatpush1.msra.mxu0 0.0
        %5597 = vmatprep.subr.mxu0 0.0
        %5598 = vmatpush1.msra.mxu0 0.0
        %5599 = vmatprep.subr.mxu0 0.0
        %5600 = vmatpush1.msra.mxu0 0.0
        %5601 = vmatprep.subr.mxu0 0.0
        %5602 = vmatpush1.msra.mxu0 0.0
        %5603 = vmatprep.subr.mxu0 0.0
        %5604 = vmatpush1.msra.mxu0 0.0
        %5605 = vmatprep.subr.mxu0 0.0
        %5606 = vmatpush1.msra.mxu0 0.0
        %5607 = vmatprep.subr.mxu0 0.0
        %5608 = vmatpush1.msra.mxu0 0.0
        %5609 = vmatprep.subr.mxu0 0.0
        %5610 = vmatpush1.msra.mxu0 0.0
        %5611 = vmatprep.subr.mxu0 0.0
        %5612 = vmatpush1.msra.mxu0 0.0
        %5613 = vmatprep.subr.mxu0 0.0
        %5614 = vmatpush1.msra.mxu0 0.0
        %5615 = vmatprep.subr.mxu0 0.0
        %5616 = vmatpush1.msra.mxu0 0.0
        %5617 = vmatprep.subr.mxu0 0.0
        %5618 = vmatpush1.msra.mxu0 %v5496
        %5619 = vmatprep.subr.mxu0 0.0
        %5620 = vmatpush1.msra.mxu0 %v5495
        %5621 = vmatprep.subr.mxu0 0.0
        %5622 = vmatpush1.msra.mxu0 %v5494
        %5623 = vmatprep.subr.mxu0 0.0
        %5624 = vmatpush1.msra.mxu0 %v5493
        %5625 = vmatprep.subr.mxu0 0.0
        %5626 = vmatpush2.msra.mxu0 0.0
        %5627 = vmatprep.subr.mxu0 0.0
        %5628 = vmatpush2.msra.mxu0 0.0
        %5629 = vmatprep.subr.mxu0 0.0
        %5630 = vmatpush2.msra.mxu0 0.0
        %5631 = vmatprep.subr.mxu0 0.0
        %5632 = vmatpush2.msra.mxu0 0.0
        %5633 = vmatprep.subr.mxu0 0.0
        %5634 = vmatpush2.msra.mxu0 0.0
        %5635 = vmatprep.subr.mxu0 0.0
        %5636 = vmatpush2.msra.mxu0 0.0
        %5637 = vmatprep.subr.mxu0 0.0
        %5638 = vmatpush2.msra.mxu0 0.0
        %5639 = vmatprep.subr.mxu0 0.0
        %5640 = vmatpush2.msra.mxu0 0.0
        %5641 = vmatprep.subr.mxu0 0.0
        %5642 = vmatpush2.msra.mxu0 0.0
        %5643 = vmatprep.subr.mxu0 0.0
        %5644 = vmatpush2.msra.mxu0 0.0
        %5645 = vmatprep.subr.mxu0 0.0
        %5646 = vmatpush2.msra.mxu0 0.0
        %5647 = vmatprep.subr.mxu0 0.0
        %5648 = vmatpush2.msra.mxu0 0.0
        %5649 = vmatprep.subr.mxu0 0.0
        %5650 = vmatpush2.msra.mxu0 0.0
        %5651 = vmatprep.subr.mxu0 0.0
        %5652 = vmatpush2.msra.mxu0 0.0
        %5653 = vmatprep.subr.mxu0 0.0
        %5654 = vmatpush2.msra.mxu0 0.0
        %5655 = vmatprep.subr.mxu0 0.0
        %5656 = vmatpush2.msra.mxu0 0.0
        %5657 = vmatprep.mubr.f32.mxu0 0.0
        %5658 = vmatmul.mubr.f32.gmra.mxu0 %v5498
        %v5659 = vpop.f32.mrf.mxu0
        %v5660 = vadd.f32 0.0, %v5659
        %v5661 = vpop.f32.mrf.mxu0
        %5662 = vmatprep.mubr.f32.mxu0 0.0
        %5663 = vmatmul.mubr.f32.gmra.mxu0 %v5501
        %v5664 = vpop.f32.mrf.mxu0
        %v5665 = vadd.f32 0.0, %v5664
        %v5666 = vpop.f32.mrf.mxu0
        %5667 = vmatprep.mubr.f32.mxu0 0.0
        %5668 = vmatmul.mubr.f32.gmra.mxu0 %v5504
        %v5669 = vpop.f32.mrf.mxu0
        %v5670 = vadd.f32 0.0, %v5669
        %v5671 = vpop.f32.mrf.mxu0
        %5672 = vmatprep.mubr.f32.mxu0 0.0
        %5673 = vmatmul.mubr.f32.gmra.mxu0 %v5507
        %v5674 = vpop.f32.mrf.mxu0
        %v5675 = vadd.f32 0.0, %v5674
        %v5676 = vpop.f32.mrf.mxu0
        %5677 = vmatprep.mubr.f32.mxu0 0.0
        %5678 = vmatmul.mubr.f32.gmra.mxu0 %v5510
        %v5679 = vpop.f32.mrf.mxu0
        %v5680 = vadd.f32 0.0, %v5679
        %v5681 = vpop.f32.mrf.mxu0
        %5682 = vmatprep.mubr.f32.mxu0 0.0
        %5683 = vmatmul.mubr.f32.gmra.mxu0 %v5513
        %v5684 = vpop.f32.mrf.mxu0
        %v5685 = vadd.f32 0.0, %v5684
        %v5686 = vpop.f32.mrf.mxu0
        %5687 = vmatprep.mubr.f32.mxu0 0.0
        %5688 = vmatmul.mubr.f32.gmra.mxu0 %v5516
        %v5689 = vpop.f32.mrf.mxu0
        %v5690 = vadd.f32 0.0, %v5689
        %v5691 = vpop.f32.mrf.mxu0
        %5692 = vmatprep.mubr.f32.mxu0 0.0
        %5693 = vmatmul.mubr.f32.gmra.mxu0 %v5519
        %v5694 = vpop.f32.mrf.mxu0
        %v5695 = vadd.f32 0.0, %v5694
        %v5696 = vpop.f32.mrf.mxu0
        %5697 = vmatprep.mubr.f32.mxu0 0.0
        %5698 = vmatmul.mubr.f32.gmra.mxu0 %v5522
        %v5699 = vpop.f32.mrf.mxu0
        %v5700 = vadd.f32 0.0, %v5699
        %v5701 = vpop.f32.mrf.mxu0
        %5702 = vmatprep.mubr.f32.mxu0 0.0
        %5703 = vmatmul.mubr.f32.gmra.mxu0 %v5525
        %v5704 = vpop.f32.mrf.mxu0
        %v5705 = vadd.f32 0.0, %v5704
        %v5706 = vpop.f32.mrf.mxu0
        %5707 = vmatprep.mubr.f32.mxu0 0.0
        %5708 = vmatmul.mubr.f32.gmra.mxu0 %v5528
        %v5709 = vpop.f32.mrf.mxu0
        %v5710 = vadd.f32 0.0, %v5709
        %v5711 = vpop.f32.mrf.mxu0
        %5712 = vmatprep.mubr.f32.mxu0 0.0
        %5713 = vmatmul.mubr.f32.gmra.mxu0 %v5531
        %v5714 = vpop.f32.mrf.mxu0
        %v5715 = vadd.f32 0.0, %v5714
        %v5716 = vpop.f32.mrf.mxu0
        %5717 = vmatprep.mubr.f32.mxu0 0.0
        %5718 = vmatmul.mubr.f32.gmra.mxu0 %v5534
        %v5719 = vpop.f32.mrf.mxu0
        %v5720 = vadd.f32 0.0, %v5719
        %v5721 = vpop.f32.mrf.mxu0
        %5722 = vmatprep.mubr.f32.mxu0 0.0
        %5723 = vmatmul.mubr.f32.gmra.mxu0 %v5537
        %v5724 = vpop.f32.mrf.mxu0
        %v5725 = vadd.f32 0.0, %v5724
        %v5726 = vpop.f32.mrf.mxu0
        %5727 = vmatprep.mubr.f32.mxu0 0.0
        %5728 = vmatmul.mubr.f32.gmra.mxu0 %v5540
        %v5729 = vpop.f32.mrf.mxu0
        %v5730 = vadd.f32 0.0, %v5729
        %v5731 = vpop.f32.mrf.mxu0
        %5732 = vmatprep.mubr.f32.mxu0 0.0
        %5733 = vmatmul.mubr.f32.gmra.mxu0 %v5543
        %v5734 = vpop.f32.mrf.mxu0
        %v5735 = vadd.f32 0.0, %v5734
        %v5736 = vpop.f32.mrf.mxu0
        %5737 = vmatprep.mubr.f32.mxu0 0.0
        %5738 = vmatmul.mubr.f32.gmra.mxu0 %v5546
        %v5739 = vpop.f32.mrf.mxu0
        %v5740 = vadd.f32 0.0, %v5739
        %v5741 = vpop.f32.mrf.mxu0
        %5742 = vmatprep.mubr.f32.mxu0 0.0
        %5743 = vmatmul.mubr.f32.gmra.mxu0 %v5549
        %v5744 = vpop.f32.mrf.mxu0
        %v5745 = vadd.f32 0.0, %v5744
        %v5746 = vpop.f32.mrf.mxu0
        %5747 = vmatprep.mubr.f32.mxu0 0.0
        %5748 = vmatmul.mubr.f32.gmra.mxu0 %v5552
        %v5749 = vpop.f32.mrf.mxu0
        %v5750 = vadd.f32 0.0, %v5749
        %v5751 = vpop.f32.mrf.mxu0
        %5752 = vmatprep.mubr.f32.mxu0 0.0
        %5753 = vmatmul.mubr.f32.gmra.mxu0 %v5555
        %v5754 = vpop.f32.mrf.mxu0
        %v5755 = vadd.f32 0.0, %v5754
        %v5756 = vpop.f32.mrf.mxu0
        %5757 = vmatprep.mubr.f32.mxu0 0.0
        %5758 = vmatmul.mubr.f32.gmra.mxu0 %v5558
        %v5759 = vpop.f32.mrf.mxu0
        %v5760 = vadd.f32 0.0, %v5759
        %v5761 = vpop.f32.mrf.mxu0
        %5762 = vmatprep.mubr.f32.mxu0 0.0
        %5763 = vmatmul.mubr.f32.gmra.mxu0 %v5561
        %v5764 = vpop.f32.mrf.mxu0
        %v5765 = vadd.f32 0.0, %v5764
        %v5766 = vpop.f32.mrf.mxu0
        %5767 = vmatprep.mubr.f32.mxu0 0.0
        %5768 = vmatmul.mubr.f32.gmra.mxu0 %v5564
        %v5769 = vpop.f32.mrf.mxu0
        %v5770 = vadd.f32 0.0, %v5769
        %v5771 = vpop.f32.mrf.mxu0
        %5772 = vmatprep.mubr.f32.mxu0 0.0
        %5773 = vmatmul.mubr.f32.gmra.mxu0 %v5567
        %v5774 = vpop.f32.mrf.mxu0
        %v5775 = vadd.f32 0.0, %v5774
        %v5776 = vpop.f32.mrf.mxu0
        %5777 = vmatprep.mubr.f32.mxu0 0.0
        %5778 = vmatmul.mubr.f32.gmra.mxu0 %v5570
        %v5779 = vpop.f32.mrf.mxu0
        %v5780 = vadd.f32 0.0, %v5779
        %v5781 = vpop.f32.mrf.mxu0
        %5782 = vmatprep.mubr.f32.mxu0 0.0
        %5783 = vmatmul.mubr.f32.gmra.mxu0 %v5573
        %v5784 = vpop.f32.mrf.mxu0
        %v5785 = vadd.f32 0.0, %v5784
        %v5786 = vpop.f32.mrf.mxu0
        %5787 = vmatprep.mubr.f32.mxu0 0.0
        %5788 = vmatmul.mubr.f32.gmra.mxu0 %v5576
        %v5789 = vpop.f32.mrf.mxu0
        %v5790 = vadd.f32 0.0, %v5789
        %v5791 = vpop.f32.mrf.mxu0
        %5792 = vmatprep.mubr.f32.mxu0 0.0
        %5793 = vmatmul.mubr.f32.gmra.mxu0 %v5579
        %v5794 = vpop.f32.mrf.mxu0
        %v5795 = vadd.f32 0.0, %v5794
        %v5796 = vpop.f32.mrf.mxu0
        %5797 = vmatprep.mubr.f32.mxu0 0.0
        %5798 = vmatmul.mubr.f32.gmra.mxu0 %v5582
        %v5799 = vpop.f32.mrf.mxu0
        %v5800 = vadd.f32 0.0, %v5799
        %v5801 = vpop.f32.mrf.mxu0
        %5802 = vmatprep.mubr.f32.mxu0 0.0
        %5803 = vmatmul.mubr.f32.gmra.mxu0 %v5585
        %v5804 = vpop.f32.mrf.mxu0
        %v5805 = vadd.f32 0.0, %v5804
        %v5806 = vpop.f32.mrf.mxu0
        %5807 = vmatprep.mubr.f32.mxu0 0.0
        %5808 = vmatmul.mubr.f32.gmra.mxu0 %v5588
        %v5809 = vpop.f32.mrf.mxu0
        %v5810 = vadd.f32 0.0, %v5809
        %v5811 = vpop.f32.mrf.mxu0
        %5812 = vmatprep.mubr.f32.mxu0 0.0
        %5813 = vmatmul.mubr.f32.gmra.mxu0 %v5591
        %v5814 = vpop.f32.mrf.mxu0
        %v5815 = vadd.f32 0.0, %v5814
        %v5816 = vpop.f32.mrf.mxu0
        %5817 = vdwg.mxu0
        %v5818 = vadd.f32 %v5427, %v5660
        %v5819 = vadd.f32 %v5428, %v5665
        %v5820 = vadd.f32 %v5429, %v5670
        %v5821 = vadd.f32 %v5430, %v5675
        %v5822 = vadd.f32 %v5431, %v5680
        %v5823 = vadd.f32 %v5432, %v5685
        %v5824 = vadd.f32 %v5433, %v5690
        %v5825 = vadd.f32 %v5434, %v5695
        %v5826 = vadd.f32 %v5435, %v5700
        %v5827 = vadd.f32 %v5436, %v5705
        %v5828 = vadd.f32 %v5437, %v5710
        %v5829 = vadd.f32 %v5438, %v5715
        %v5830 = vadd.f32 %v5439, %v5720
        %v5831 = vadd.f32 %v5440, %v5725
        %v5832 = vadd.f32 %v5441, %v5730
        %v5833 = vadd.f32 %v5442, %v5735
        %v5834 = vadd.f32 %v5443, %v5740
        %v5835 = vadd.f32 %v5444, %v5745
        %v5836 = vadd.f32 %v5445, %v5750
        %v5837 = vadd.f32 %v5446, %v5755
        %v5838 = vadd.f32 %v5447, %v5760
        %v5839 = vadd.f32 %v5448, %v5765
        %v5840 = vadd.f32 %v5449, %v5770
        %v5841 = vadd.f32 %v5450, %v5775
        %v5842 = vadd.f32 %v5451, %v5780
        %v5843 = vadd.f32 %v5452, %v5785
        %v5844 = vadd.f32 %v5453, %v5790
        %v5845 = vadd.f32 %v5454, %v5795
        %v5846 = vadd.f32 %v5455, %v5800
        %v5847 = vadd.f32 %v5456, %v5805
        %v5848 = vadd.f32 %v5457, %v5810
        %v5849 = vadd.f32 %v5458, %v5815
        %v5850 = vld [vmem:[%s5459 + $0x1] sm:$0xff]
        %v5851 = vld [vmem:[%s5459 + $0x9] sm:$0xff]
        %v5852 = vld [vmem:[%s5459 + $0x19] sm:$0xff]
        %v5853 = vld [vmem:[%s5459 + $0x21] sm:$0xff]
        %v5854 = vld [vmem:[%s5459 + $0x31] sm:$0xff]
        %v5855 = vld [vmem:[%s5459 + $0x39] sm:$0xff]
        %v5856 = vld [vmem:[%s5459 + $0x49] sm:$0xff]
        %v5857 = vld [vmem:[%s5459 + $0x51] sm:$0xff]
        %v5858 = vld [vmem:[%s5459 + $0x61] sm:$0xff]
        %v5859 = vld [vmem:[%s5459 + $0x69] sm:$0xff]
        %v5860 = vld [vmem:[%s5459 + $0x79] sm:$0xff]
        %v5861 = vld [vmem:[%s5459 + $0x81] sm:$0xff]
        %v5862 = vld [vmem:[%s5459 + $0x91] sm:$0xff]
        %v5863 = vld [vmem:[%s5459 + $0x99] sm:$0xff]
        %v5864 = vld [vmem:[%s5459 + $0xa9] sm:$0xff]
        %v5865 = vld [vmem:[%s5459 + $0xb1] sm:$0xff]
        %v5866 = vld [vmem:[%s5459 + $0xc1] sm:$0xff]
        %v5867 = vld [vmem:[%s5459 + $0xc9] sm:$0xff]
        %v5868 = vld [vmem:[%s5459 + $0xd9] sm:$0xff]
        %v5869 = vld [vmem:[%s5459 + $0xe1] sm:$0xff]
        %v5870 = vld [vmem:[%s5459 + $0xf1] sm:$0xff]
        %v5871 = vld [vmem:[%s5459 + $0xf9] sm:$0xff]
        %v5872 = vld [vmem:[%s5459 + $0x109] sm:$0xff]
        %v5873 = vld [vmem:[%s5459 + $0x111] sm:$0xff]
        %v5874 = vld [vmem:[%s5459 + $0x121] sm:$0xff]
        %v5875 = vld [vmem:[%s5459 + $0x129] sm:$0xff]
        %v5876 = vld [vmem:[%s5459 + $0x139] sm:$0xff]
        %v5877 = vld [vmem:[%s5459 + $0x141] sm:$0xff]
        %v5878 = vld [vmem:[%s5459 + $0x151] sm:$0xff]
        %v5879 = vld [vmem:[%s5459 + $0x159] sm:$0xff]
        %v5880 = vld [vmem:[%s5459 + $0x169] sm:$0xff]
        %v5881 = vld [vmem:[%s5459 + $0x171] sm:$0xff]
        %s5882 = scalar_lea.vmem %s3, 224
        %v5883 = vld [vmem:[%s5882] sm:$0xff]
        %v5884 = vld [vmem:[%s5882 + $0x8] sm:$0xff]
        %v5885 = vld [vmem:[%s5882 + $0x10] sm:$0xff]
        %v5886 = vld [vmem:[%s5882 + $0x18] sm:$0xff]
        %v5888 = vsel %vm3095, %v5850, 0
        %v5891 = vsel %vm3095, %v5851, 0
        %v5894 = vsel %vm3095, %v5852, 0
        %v5897 = vsel %vm3095, %v5853, 0
        %v5900 = vsel %vm3095, %v5854, 0
        %v5903 = vsel %vm3095, %v5855, 0
        %v5906 = vsel %vm3095, %v5856, 0
        %v5909 = vsel %vm3095, %v5857, 0
        %v5912 = vsel %vm3095, %v5858, 0
        %v5915 = vsel %vm3095, %v5859, 0
        %v5918 = vsel %vm3095, %v5860, 0
        %v5921 = vsel %vm3095, %v5861, 0
        %v5924 = vsel %vm3095, %v5862, 0
        %v5927 = vsel %vm3095, %v5863, 0
        %v5930 = vsel %vm3095, %v5864, 0
        %v5933 = vsel %vm3095, %v5865, 0
        %v5936 = vsel %vm3095, %v5866, 0
        %v5939 = vsel %vm3095, %v5867, 0
        %v5942 = vsel %vm3095, %v5868, 0
        %v5945 = vsel %vm3095, %v5869, 0
        %v5948 = vsel %vm3095, %v5870, 0
        %v5951 = vsel %vm3095, %v5871, 0
        %v5954 = vsel %vm3095, %v5872, 0
        %v5957 = vsel %vm3095, %v5873, 0
        %v5960 = vsel %vm3095, %v5874, 0
        %v5963 = vsel %vm3095, %v5875, 0
        %v5966 = vsel %vm3095, %v5876, 0
        %v5969 = vsel %vm3095, %v5877, 0
        %v5972 = vsel %vm3095, %v5878, 0
        %v5975 = vsel %vm3095, %v5879, 0
        %v5978 = vsel %vm3095, %v5880, 0
        %v5981 = vsel %vm3095, %v5881, 0
        %5983 = vmatprep.subr.mxu0 0.0
        %5984 = vmatpush1.msra.mxu0 0.0
        %5985 = vmatprep.subr.mxu0 0.0
        %5986 = vmatpush1.msra.mxu0 0.0
        %5987 = vmatprep.subr.mxu0 0.0
        %5988 = vmatpush1.msra.mxu0 0.0
        %5989 = vmatprep.subr.mxu0 0.0
        %5990 = vmatpush1.msra.mxu0 0.0
        %5991 = vmatprep.subr.mxu0 0.0
        %5992 = vmatpush1.msra.mxu0 0.0
        %5993 = vmatprep.subr.mxu0 0.0
        %5994 = vmatpush1.msra.mxu0 0.0
        %5995 = vmatprep.subr.mxu0 0.0
        %5996 = vmatpush1.msra.mxu0 0.0
        %5997 = vmatprep.subr.mxu0 0.0
        %5998 = vmatpush1.msra.mxu0 0.0
        %5999 = vmatprep.subr.mxu0 0.0
        %6000 = vmatpush1.msra.mxu0 0.0
        %6001 = vmatprep.subr.mxu0 0.0
        %6002 = vmatpush1.msra.mxu0 0.0
        %6003 = vmatprep.subr.mxu0 0.0
        %6004 = vmatpush1.msra.mxu0 0.0
        %6005 = vmatprep.subr.mxu0 0.0
        %6006 = vmatpush1.msra.mxu0 0.0
        %6007 = vmatprep.subr.mxu0 0.0
        %6008 = vmatpush1.msra.mxu0 %v5886
        %6009 = vmatprep.subr.mxu0 0.0
        %6010 = vmatpush1.msra.mxu0 %v5885
        %6011 = vmatprep.subr.mxu0 0.0
        %6012 = vmatpush1.msra.mxu0 %v5884
        %6013 = vmatprep.subr.mxu0 0.0
        %6014 = vmatpush1.msra.mxu0 %v5883
        %6015 = vmatprep.subr.mxu0 0.0
        %6016 = vmatpush2.msra.mxu0 0.0
        %6017 = vmatprep.subr.mxu0 0.0
        %6018 = vmatpush2.msra.mxu0 0.0
        %6019 = vmatprep.subr.mxu0 0.0
        %6020 = vmatpush2.msra.mxu0 0.0
        %6021 = vmatprep.subr.mxu0 0.0
        %6022 = vmatpush2.msra.mxu0 0.0
        %6023 = vmatprep.subr.mxu0 0.0
        %6024 = vmatpush2.msra.mxu0 0.0
        %6025 = vmatprep.subr.mxu0 0.0
        %6026 = vmatpush2.msra.mxu0 0.0
        %6027 = vmatprep.subr.mxu0 0.0
        %6028 = vmatpush2.msra.mxu0 0.0
        %6029 = vmatprep.subr.mxu0 0.0
        %6030 = vmatpush2.msra.mxu0 0.0
        %6031 = vmatprep.subr.mxu0 0.0
        %6032 = vmatpush2.msra.mxu0 0.0
        %6033 = vmatprep.subr.mxu0 0.0
        %6034 = vmatpush2.msra.mxu0 0.0
        %6035 = vmatprep.subr.mxu0 0.0
        %6036 = vmatpush2.msra.mxu0 0.0
        %6037 = vmatprep.subr.mxu0 0.0
        %6038 = vmatpush2.msra.mxu0 0.0
        %6039 = vmatprep.subr.mxu0 0.0
        %6040 = vmatpush2.msra.mxu0 0.0
        %6041 = vmatprep.subr.mxu0 0.0
        %6042 = vmatpush2.msra.mxu0 0.0
        %6043 = vmatprep.subr.mxu0 0.0
        %6044 = vmatpush2.msra.mxu0 0.0
        %6045 = vmatprep.subr.mxu0 0.0
        %6046 = vmatpush2.msra.mxu0 0.0
        %6047 = vmatprep.mubr.f32.mxu0 0.0
        %6048 = vmatmul.mubr.f32.gmra.mxu0 %v5888
        %v6049 = vpop.f32.mrf.mxu0
        %v6050 = vadd.f32 0.0, %v6049
        %v6051 = vpop.f32.mrf.mxu0
        %6052 = vmatprep.mubr.f32.mxu0 0.0
        %6053 = vmatmul.mubr.f32.gmra.mxu0 %v5891
        %v6054 = vpop.f32.mrf.mxu0
        %v6055 = vadd.f32 0.0, %v6054
        %v6056 = vpop.f32.mrf.mxu0
        %6057 = vmatprep.mubr.f32.mxu0 0.0
        %6058 = vmatmul.mubr.f32.gmra.mxu0 %v5894
        %v6059 = vpop.f32.mrf.mxu0
        %v6060 = vadd.f32 0.0, %v6059
        %v6061 = vpop.f32.mrf.mxu0
        %6062 = vmatprep.mubr.f32.mxu0 0.0
        %6063 = vmatmul.mubr.f32.gmra.mxu0 %v5897
        %v6064 = vpop.f32.mrf.mxu0
        %v6065 = vadd.f32 0.0, %v6064
        %v6066 = vpop.f32.mrf.mxu0
        %6067 = vmatprep.mubr.f32.mxu0 0.0
        %6068 = vmatmul.mubr.f32.gmra.mxu0 %v5900
        %v6069 = vpop.f32.mrf.mxu0
        %v6070 = vadd.f32 0.0, %v6069
        %v6071 = vpop.f32.mrf.mxu0
        %6072 = vmatprep.mubr.f32.mxu0 0.0
        %6073 = vmatmul.mubr.f32.gmra.mxu0 %v5903
        %v6074 = vpop.f32.mrf.mxu0
        %v6075 = vadd.f32 0.0, %v6074
        %v6076 = vpop.f32.mrf.mxu0
        %6077 = vmatprep.mubr.f32.mxu0 0.0
        %6078 = vmatmul.mubr.f32.gmra.mxu0 %v5906
        %v6079 = vpop.f32.mrf.mxu0
        %v6080 = vadd.f32 0.0, %v6079
        %v6081 = vpop.f32.mrf.mxu0
        %6082 = vmatprep.mubr.f32.mxu0 0.0
        %6083 = vmatmul.mubr.f32.gmra.mxu0 %v5909
        %v6084 = vpop.f32.mrf.mxu0
        %v6085 = vadd.f32 0.0, %v6084
        %v6086 = vpop.f32.mrf.mxu0
        %6087 = vmatprep.mubr.f32.mxu0 0.0
        %6088 = vmatmul.mubr.f32.gmra.mxu0 %v5912
        %v6089 = vpop.f32.mrf.mxu0
        %v6090 = vadd.f32 0.0, %v6089
        %v6091 = vpop.f32.mrf.mxu0
        %6092 = vmatprep.mubr.f32.mxu0 0.0
        %6093 = vmatmul.mubr.f32.gmra.mxu0 %v5915
        %v6094 = vpop.f32.mrf.mxu0
        %v6095 = vadd.f32 0.0, %v6094
        %v6096 = vpop.f32.mrf.mxu0
        %6097 = vmatprep.mubr.f32.mxu0 0.0
        %6098 = vmatmul.mubr.f32.gmra.mxu0 %v5918
        %v6099 = vpop.f32.mrf.mxu0
        %v6100 = vadd.f32 0.0, %v6099
        %v6101 = vpop.f32.mrf.mxu0
        %6102 = vmatprep.mubr.f32.mxu0 0.0
        %6103 = vmatmul.mubr.f32.gmra.mxu0 %v5921
        %v6104 = vpop.f32.mrf.mxu0
        %v6105 = vadd.f32 0.0, %v6104
        %v6106 = vpop.f32.mrf.mxu0
        %6107 = vmatprep.mubr.f32.mxu0 0.0
        %6108 = vmatmul.mubr.f32.gmra.mxu0 %v5924
        %v6109 = vpop.f32.mrf.mxu0
        %v6110 = vadd.f32 0.0, %v6109
        %v6111 = vpop.f32.mrf.mxu0
        %6112 = vmatprep.mubr.f32.mxu0 0.0
        %6113 = vmatmul.mubr.f32.gmra.mxu0 %v5927
        %v6114 = vpop.f32.mrf.mxu0
        %v6115 = vadd.f32 0.0, %v6114
        %v6116 = vpop.f32.mrf.mxu0
        %6117 = vmatprep.mubr.f32.mxu0 0.0
        %6118 = vmatmul.mubr.f32.gmra.mxu0 %v5930
        %v6119 = vpop.f32.mrf.mxu0
        %v6120 = vadd.f32 0.0, %v6119
        %v6121 = vpop.f32.mrf.mxu0
        %6122 = vmatprep.mubr.f32.mxu0 0.0
        %6123 = vmatmul.mubr.f32.gmra.mxu0 %v5933
        %v6124 = vpop.f32.mrf.mxu0
        %v6125 = vadd.f32 0.0, %v6124
        %v6126 = vpop.f32.mrf.mxu0
        %6127 = vmatprep.mubr.f32.mxu0 0.0
        %6128 = vmatmul.mubr.f32.gmra.mxu0 %v5936
        %v6129 = vpop.f32.mrf.mxu0
        %v6130 = vadd.f32 0.0, %v6129
        %v6131 = vpop.f32.mrf.mxu0
        %6132 = vmatprep.mubr.f32.mxu0 0.0
        %6133 = vmatmul.mubr.f32.gmra.mxu0 %v5939
        %v6134 = vpop.f32.mrf.mxu0
        %v6135 = vadd.f32 0.0, %v6134
        %v6136 = vpop.f32.mrf.mxu0
        %6137 = vmatprep.mubr.f32.mxu0 0.0
        %6138 = vmatmul.mubr.f32.gmra.mxu0 %v5942
        %v6139 = vpop.f32.mrf.mxu0
        %v6140 = vadd.f32 0.0, %v6139
        %v6141 = vpop.f32.mrf.mxu0
        %6142 = vmatprep.mubr.f32.mxu0 0.0
        %6143 = vmatmul.mubr.f32.gmra.mxu0 %v5945
        %v6144 = vpop.f32.mrf.mxu0
        %v6145 = vadd.f32 0.0, %v6144
        %v6146 = vpop.f32.mrf.mxu0
        %6147 = vmatprep.mubr.f32.mxu0 0.0
        %6148 = vmatmul.mubr.f32.gmra.mxu0 %v5948
        %v6149 = vpop.f32.mrf.mxu0
        %v6150 = vadd.f32 0.0, %v6149
        %v6151 = vpop.f32.mrf.mxu0
        %6152 = vmatprep.mubr.f32.mxu0 0.0
        %6153 = vmatmul.mubr.f32.gmra.mxu0 %v5951
        %v6154 = vpop.f32.mrf.mxu0
        %v6155 = vadd.f32 0.0, %v6154
        %v6156 = vpop.f32.mrf.mxu0
        %6157 = vmatprep.mubr.f32.mxu0 0.0
        %6158 = vmatmul.mubr.f32.gmra.mxu0 %v5954
        %v6159 = vpop.f32.mrf.mxu0
        %v6160 = vadd.f32 0.0, %v6159
        %v6161 = vpop.f32.mrf.mxu0
        %6162 = vmatprep.mubr.f32.mxu0 0.0
        %6163 = vmatmul.mubr.f32.gmra.mxu0 %v5957
        %v6164 = vpop.f32.mrf.mxu0
        %v6165 = vadd.f32 0.0, %v6164
        %v6166 = vpop.f32.mrf.mxu0
        %6167 = vmatprep.mubr.f32.mxu0 0.0
        %6168 = vmatmul.mubr.f32.gmra.mxu0 %v5960
        %v6169 = vpop.f32.mrf.mxu0
        %v6170 = vadd.f32 0.0, %v6169
        %v6171 = vpop.f32.mrf.mxu0
        %6172 = vmatprep.mubr.f32.mxu0 0.0
        %6173 = vmatmul.mubr.f32.gmra.mxu0 %v5963
        %v6174 = vpop.f32.mrf.mxu0
        %v6175 = vadd.f32 0.0, %v6174
        %v6176 = vpop.f32.mrf.mxu0
        %6177 = vmatprep.mubr.f32.mxu0 0.0
        %6178 = vmatmul.mubr.f32.gmra.mxu0 %v5966
        %v6179 = vpop.f32.mrf.mxu0
        %v6180 = vadd.f32 0.0, %v6179
        %v6181 = vpop.f32.mrf.mxu0
        %6182 = vmatprep.mubr.f32.mxu0 0.0
        %6183 = vmatmul.mubr.f32.gmra.mxu0 %v5969
        %v6184 = vpop.f32.mrf.mxu0
        %v6185 = vadd.f32 0.0, %v6184
        %v6186 = vpop.f32.mrf.mxu0
        %6187 = vmatprep.mubr.f32.mxu0 0.0
        %6188 = vmatmul.mubr.f32.gmra.mxu0 %v5972
        %v6189 = vpop.f32.mrf.mxu0
        %v6190 = vadd.f32 0.0, %v6189
        %v6191 = vpop.f32.mrf.mxu0
        %6192 = vmatprep.mubr.f32.mxu0 0.0
        %6193 = vmatmul.mubr.f32.gmra.mxu0 %v5975
        %v6194 = vpop.f32.mrf.mxu0
        %v6195 = vadd.f32 0.0, %v6194
        %v6196 = vpop.f32.mrf.mxu0
        %6197 = vmatprep.mubr.f32.mxu0 0.0
        %6198 = vmatmul.mubr.f32.gmra.mxu0 %v5978
        %v6199 = vpop.f32.mrf.mxu0
        %v6200 = vadd.f32 0.0, %v6199
        %v6201 = vpop.f32.mrf.mxu0
        %6202 = vmatprep.mubr.f32.mxu0 0.0
        %6203 = vmatmul.mubr.f32.gmra.mxu0 %v5981
        %v6204 = vpop.f32.mrf.mxu0
        %v6205 = vadd.f32 0.0, %v6204
        %v6206 = vpop.f32.mrf.mxu0
        %6207 = vdwg.mxu0
        %v6208 = vadd.f32 %v5818, %v6050
        %v6209 = vadd.f32 %v5819, %v6055
        %v6210 = vadd.f32 %v5820, %v6060
        %v6211 = vadd.f32 %v5821, %v6065
        %v6212 = vadd.f32 %v5822, %v6070
        %v6213 = vadd.f32 %v5823, %v6075
        %v6214 = vadd.f32 %v5824, %v6080
        %v6215 = vadd.f32 %v5825, %v6085
        %v6216 = vadd.f32 %v5826, %v6090
        %v6217 = vadd.f32 %v5827, %v6095
        %v6218 = vadd.f32 %v5828, %v6100
        %v6219 = vadd.f32 %v5829, %v6105
        %v6220 = vadd.f32 %v5830, %v6110
        %v6221 = vadd.f32 %v5831, %v6115
        %v6222 = vadd.f32 %v5832, %v6120
        %v6223 = vadd.f32 %v5833, %v6125
        %v6224 = vadd.f32 %v5834, %v6130
        %v6225 = vadd.f32 %v5835, %v6135
        %v6226 = vadd.f32 %v5836, %v6140
        %v6227 = vadd.f32 %v5837, %v6145
        %v6228 = vadd.f32 %v5838, %v6150
        %v6229 = vadd.f32 %v5839, %v6155
        %v6230 = vadd.f32 %v5840, %v6160
        %v6231 = vadd.f32 %v5841, %v6165
        %v6232 = vadd.f32 %v5842, %v6170
        %v6233 = vadd.f32 %v5843, %v6175
        %v6234 = vadd.f32 %v5844, %v6180
        %v6235 = vadd.f32 %v5845, %v6185
        %v6236 = vadd.f32 %v5846, %v6190
        %v6237 = vadd.f32 %v5847, %v6195
        %v6238 = vadd.f32 %v5848, %v6200
        %v6239 = vadd.f32 %v5849, %v6205
        %v6240 = vld [vmem:[%s5459 + $0x2] sm:$0xff]
        %v6241 = vld [vmem:[%s5459 + $0xa] sm:$0xff]
        %v6242 = vld [vmem:[%s5459 + $0x1a] sm:$0xff]
        %v6243 = vld [vmem:[%s5459 + $0x22] sm:$0xff]
        %v6244 = vld [vmem:[%s5459 + $0x32] sm:$0xff]
        %v6245 = vld [vmem:[%s5459 + $0x3a] sm:$0xff]
        %v6246 = vld [vmem:[%s5459 + $0x4a] sm:$0xff]
        %v6247 = vld [vmem:[%s5459 + $0x52] sm:$0xff]
        %v6248 = vld [vmem:[%s5459 + $0x62] sm:$0xff]
        %v6249 = vld [vmem:[%s5459 + $0x6a] sm:$0xff]
        %v6250 = vld [vmem:[%s5459 + $0x7a] sm:$0xff]
        %v6251 = vld [vmem:[%s5459 + $0x82] sm:$0xff]
        %v6252 = vld [vmem:[%s5459 + $0x92] sm:$0xff]
        %v6253 = vld [vmem:[%s5459 + $0x9a] sm:$0xff]
        %v6254 = vld [vmem:[%s5459 + $0xaa] sm:$0xff]
        %v6255 = vld [vmem:[%s5459 + $0xb2] sm:$0xff]
        %v6256 = vld [vmem:[%s5459 + $0xc2] sm:$0xff]
        %v6257 = vld [vmem:[%s5459 + $0xca] sm:$0xff]
        %v6258 = vld [vmem:[%s5459 + $0xda] sm:$0xff]
        %v6259 = vld [vmem:[%s5459 + $0xe2] sm:$0xff]
        %v6260 = vld [vmem:[%s5459 + $0xf2] sm:$0xff]
        %v6261 = vld [vmem:[%s5459 + $0xfa] sm:$0xff]
        %v6262 = vld [vmem:[%s5459 + $0x10a] sm:$0xff]
        %v6263 = vld [vmem:[%s5459 + $0x112] sm:$0xff]
        %v6264 = vld [vmem:[%s5459 + $0x122] sm:$0xff]
        %v6265 = vld [vmem:[%s5459 + $0x12a] sm:$0xff]
        %v6266 = vld [vmem:[%s5459 + $0x13a] sm:$0xff]
        %v6267 = vld [vmem:[%s5459 + $0x142] sm:$0xff]
        %v6268 = vld [vmem:[%s5459 + $0x152] sm:$0xff]
        %v6269 = vld [vmem:[%s5459 + $0x15a] sm:$0xff]
        %v6270 = vld [vmem:[%s5459 + $0x16a] sm:$0xff]
        %v6271 = vld [vmem:[%s5459 + $0x172] sm:$0xff]
        %s6272 = scalar_lea.vmem %s3, 256
        %v6273 = vld [vmem:[%s6272] sm:$0xff]
        %v6274 = vld [vmem:[%s6272 + $0x8] sm:$0xff]
        %v6275 = vld [vmem:[%s6272 + $0x10] sm:$0xff]
        %v6276 = vld [vmem:[%s6272 + $0x18] sm:$0xff]
        %v6278 = vsel %vm3095, %v6240, 0
        %v6281 = vsel %vm3095, %v6241, 0
        %v6284 = vsel %vm3095, %v6242, 0
        %v6287 = vsel %vm3095, %v6243, 0
        %v6290 = vsel %vm3095, %v6244, 0
        %v6293 = vsel %vm3095, %v6245, 0
        %v6296 = vsel %vm3095, %v6246, 0
        %v6299 = vsel %vm3095, %v6247, 0
        %v6302 = vsel %vm3095, %v6248, 0
        %v6305 = vsel %vm3095, %v6249, 0
        %v6308 = vsel %vm3095, %v6250, 0
        %v6311 = vsel %vm3095, %v6251, 0
        %v6314 = vsel %vm3095, %v6252, 0
        %v6317 = vsel %vm3095, %v6253, 0
        %v6320 = vsel %vm3095, %v6254, 0
        %v6323 = vsel %vm3095, %v6255, 0
        %v6326 = vsel %vm3095, %v6256, 0
        %v6329 = vsel %vm3095, %v6257, 0
        %v6332 = vsel %vm3095, %v6258, 0
        %v6335 = vsel %vm3095, %v6259, 0
        %v6338 = vsel %vm3095, %v6260, 0
        %v6341 = vsel %vm3095, %v6261, 0
        %v6344 = vsel %vm3095, %v6262, 0
        %v6347 = vsel %vm3095, %v6263, 0
        %v6350 = vsel %vm3095, %v6264, 0
        %v6353 = vsel %vm3095, %v6265, 0
        %v6356 = vsel %vm3095, %v6266, 0
        %v6359 = vsel %vm3095, %v6267, 0
        %v6362 = vsel %vm3095, %v6268, 0
        %v6365 = vsel %vm3095, %v6269, 0
        %v6368 = vsel %vm3095, %v6270, 0
        %v6371 = vsel %vm3095, %v6271, 0
        %6373 = vmatprep.subr.mxu0 0.0
        %6374 = vmatpush1.msra.mxu0 0.0
        %6375 = vmatprep.subr.mxu0 0.0
        %6376 = vmatpush1.msra.mxu0 0.0
        %6377 = vmatprep.subr.mxu0 0.0
        %6378 = vmatpush1.msra.mxu0 0.0
        %6379 = vmatprep.subr.mxu0 0.0
        %6380 = vmatpush1.msra.mxu0 0.0
        %6381 = vmatprep.subr.mxu0 0.0
        %6382 = vmatpush1.msra.mxu0 0.0
        %6383 = vmatprep.subr.mxu0 0.0
        %6384 = vmatpush1.msra.mxu0 0.0
        %6385 = vmatprep.subr.mxu0 0.0
        %6386 = vmatpush1.msra.mxu0 0.0
        %6387 = vmatprep.subr.mxu0 0.0
        %6388 = vmatpush1.msra.mxu0 0.0
        %6389 = vmatprep.subr.mxu0 0.0
        %6390 = vmatpush1.msra.mxu0 0.0
        %6391 = vmatprep.subr.mxu0 0.0
        %6392 = vmatpush1.msra.mxu0 0.0
        %6393 = vmatprep.subr.mxu0 0.0
        %6394 = vmatpush1.msra.mxu0 0.0
        %6395 = vmatprep.subr.mxu0 0.0
        %6396 = vmatpush1.msra.mxu0 0.0
        %6397 = vmatprep.subr.mxu0 0.0
        %6398 = vmatpush1.msra.mxu0 %v6276
        %6399 = vmatprep.subr.mxu0 0.0
        %6400 = vmatpush1.msra.mxu0 %v6275
        %6401 = vmatprep.subr.mxu0 0.0
        %6402 = vmatpush1.msra.mxu0 %v6274
        %6403 = vmatprep.subr.mxu0 0.0
        %6404 = vmatpush1.msra.mxu0 %v6273
        %6405 = vmatprep.subr.mxu0 0.0
        %6406 = vmatpush2.msra.mxu0 0.0
        %6407 = vmatprep.subr.mxu0 0.0
        %6408 = vmatpush2.msra.mxu0 0.0
        %6409 = vmatprep.subr.mxu0 0.0
        %6410 = vmatpush2.msra.mxu0 0.0
        %6411 = vmatprep.subr.mxu0 0.0
        %6412 = vmatpush2.msra.mxu0 0.0
        %6413 = vmatprep.subr.mxu0 0.0
        %6414 = vmatpush2.msra.mxu0 0.0
        %6415 = vmatprep.subr.mxu0 0.0
        %6416 = vmatpush2.msra.mxu0 0.0
        %6417 = vmatprep.subr.mxu0 0.0
        %6418 = vmatpush2.msra.mxu0 0.0
        %6419 = vmatprep.subr.mxu0 0.0
        %6420 = vmatpush2.msra.mxu0 0.0
        %6421 = vmatprep.subr.mxu0 0.0
        %6422 = vmatpush2.msra.mxu0 0.0
        %6423 = vmatprep.subr.mxu0 0.0
        %6424 = vmatpush2.msra.mxu0 0.0
        %6425 = vmatprep.subr.mxu0 0.0
        %6426 = vmatpush2.msra.mxu0 0.0
        %6427 = vmatprep.subr.mxu0 0.0
        %6428 = vmatpush2.msra.mxu0 0.0
        %6429 = vmatprep.subr.mxu0 0.0
        %6430 = vmatpush2.msra.mxu0 0.0
        %6431 = vmatprep.subr.mxu0 0.0
        %6432 = vmatpush2.msra.mxu0 0.0
        %6433 = vmatprep.subr.mxu0 0.0
        %6434 = vmatpush2.msra.mxu0 0.0
        %6435 = vmatprep.subr.mxu0 0.0
        %6436 = vmatpush2.msra.mxu0 0.0
        %6437 = vmatprep.mubr.f32.mxu0 0.0
        %6438 = vmatmul.mubr.f32.gmra.mxu0 %v6278
        %v6439 = vpop.f32.mrf.mxu0
        %v6440 = vadd.f32 0.0, %v6439
        %v6441 = vpop.f32.mrf.mxu0
        %6442 = vmatprep.mubr.f32.mxu0 0.0
        %6443 = vmatmul.mubr.f32.gmra.mxu0 %v6281
        %v6444 = vpop.f32.mrf.mxu0
        %v6445 = vadd.f32 0.0, %v6444
        %v6446 = vpop.f32.mrf.mxu0
        %6447 = vmatprep.mubr.f32.mxu0 0.0
        %6448 = vmatmul.mubr.f32.gmra.mxu0 %v6284
        %v6449 = vpop.f32.mrf.mxu0
        %v6450 = vadd.f32 0.0, %v6449
        %v6451 = vpop.f32.mrf.mxu0
        %6452 = vmatprep.mubr.f32.mxu0 0.0
        %6453 = vmatmul.mubr.f32.gmra.mxu0 %v6287
        %v6454 = vpop.f32.mrf.mxu0
        %v6455 = vadd.f32 0.0, %v6454
        %v6456 = vpop.f32.mrf.mxu0
        %6457 = vmatprep.mubr.f32.mxu0 0.0
        %6458 = vmatmul.mubr.f32.gmra.mxu0 %v6290
        %v6459 = vpop.f32.mrf.mxu0
        %v6460 = vadd.f32 0.0, %v6459
        %v6461 = vpop.f32.mrf.mxu0
        %6462 = vmatprep.mubr.f32.mxu0 0.0
        %6463 = vmatmul.mubr.f32.gmra.mxu0 %v6293
        %v6464 = vpop.f32.mrf.mxu0
        %v6465 = vadd.f32 0.0, %v6464
        %v6466 = vpop.f32.mrf.mxu0
        %6467 = vmatprep.mubr.f32.mxu0 0.0
        %6468 = vmatmul.mubr.f32.gmra.mxu0 %v6296
        %v6469 = vpop.f32.mrf.mxu0
        %v6470 = vadd.f32 0.0, %v6469
        %v6471 = vpop.f32.mrf.mxu0
        %6472 = vmatprep.mubr.f32.mxu0 0.0
        %6473 = vmatmul.mubr.f32.gmra.mxu0 %v6299
        %v6474 = vpop.f32.mrf.mxu0
        %v6475 = vadd.f32 0.0, %v6474
        %v6476 = vpop.f32.mrf.mxu0
        %6477 = vmatprep.mubr.f32.mxu0 0.0
        %6478 = vmatmul.mubr.f32.gmra.mxu0 %v6302
        %v6479 = vpop.f32.mrf.mxu0
        %v6480 = vadd.f32 0.0, %v6479
        %v6481 = vpop.f32.mrf.mxu0
        %6482 = vmatprep.mubr.f32.mxu0 0.0
        %6483 = vmatmul.mubr.f32.gmra.mxu0 %v6305
        %v6484 = vpop.f32.mrf.mxu0
        %v6485 = vadd.f32 0.0, %v6484
        %v6486 = vpop.f32.mrf.mxu0
        %6487 = vmatprep.mubr.f32.mxu0 0.0
        %6488 = vmatmul.mubr.f32.gmra.mxu0 %v6308
        %v6489 = vpop.f32.mrf.mxu0
        %v6490 = vadd.f32 0.0, %v6489
        %v6491 = vpop.f32.mrf.mxu0
        %6492 = vmatprep.mubr.f32.mxu0 0.0
        %6493 = vmatmul.mubr.f32.gmra.mxu0 %v6311
        %v6494 = vpop.f32.mrf.mxu0
        %v6495 = vadd.f32 0.0, %v6494
        %v6496 = vpop.f32.mrf.mxu0
        %6497 = vmatprep.mubr.f32.mxu0 0.0
        %6498 = vmatmul.mubr.f32.gmra.mxu0 %v6314
        %v6499 = vpop.f32.mrf.mxu0
        %v6500 = vadd.f32 0.0, %v6499
        %v6501 = vpop.f32.mrf.mxu0
        %6502 = vmatprep.mubr.f32.mxu0 0.0
        %6503 = vmatmul.mubr.f32.gmra.mxu0 %v6317
        %v6504 = vpop.f32.mrf.mxu0
        %v6505 = vadd.f32 0.0, %v6504
        %v6506 = vpop.f32.mrf.mxu0
        %6507 = vmatprep.mubr.f32.mxu0 0.0
        %6508 = vmatmul.mubr.f32.gmra.mxu0 %v6320
        %v6509 = vpop.f32.mrf.mxu0
        %v6510 = vadd.f32 0.0, %v6509
        %v6511 = vpop.f32.mrf.mxu0
        %6512 = vmatprep.mubr.f32.mxu0 0.0
        %6513 = vmatmul.mubr.f32.gmra.mxu0 %v6323
        %v6514 = vpop.f32.mrf.mxu0
        %v6515 = vadd.f32 0.0, %v6514
        %v6516 = vpop.f32.mrf.mxu0
        %6517 = vmatprep.mubr.f32.mxu0 0.0
        %6518 = vmatmul.mubr.f32.gmra.mxu0 %v6326
        %v6519 = vpop.f32.mrf.mxu0
        %v6520 = vadd.f32 0.0, %v6519
        %v6521 = vpop.f32.mrf.mxu0
        %6522 = vmatprep.mubr.f32.mxu0 0.0
        %6523 = vmatmul.mubr.f32.gmra.mxu0 %v6329
        %v6524 = vpop.f32.mrf.mxu0
        %v6525 = vadd.f32 0.0, %v6524
        %v6526 = vpop.f32.mrf.mxu0
        %6527 = vmatprep.mubr.f32.mxu0 0.0
        %6528 = vmatmul.mubr.f32.gmra.mxu0 %v6332
        %v6529 = vpop.f32.mrf.mxu0
        %v6530 = vadd.f32 0.0, %v6529
        %v6531 = vpop.f32.mrf.mxu0
        %6532 = vmatprep.mubr.f32.mxu0 0.0
        %6533 = vmatmul.mubr.f32.gmra.mxu0 %v6335
        %v6534 = vpop.f32.mrf.mxu0
        %v6535 = vadd.f32 0.0, %v6534
        %v6536 = vpop.f32.mrf.mxu0
        %6537 = vmatprep.mubr.f32.mxu0 0.0
        %6538 = vmatmul.mubr.f32.gmra.mxu0 %v6338
        %v6539 = vpop.f32.mrf.mxu0
        %v6540 = vadd.f32 0.0, %v6539
        %v6541 = vpop.f32.mrf.mxu0
        %6542 = vmatprep.mubr.f32.mxu0 0.0
        %6543 = vmatmul.mubr.f32.gmra.mxu0 %v6341
        %v6544 = vpop.f32.mrf.mxu0
        %v6545 = vadd.f32 0.0, %v6544
        %v6546 = vpop.f32.mrf.mxu0
        %6547 = vmatprep.mubr.f32.mxu0 0.0
        %6548 = vmatmul.mubr.f32.gmra.mxu0 %v6344
        %v6549 = vpop.f32.mrf.mxu0
        %v6550 = vadd.f32 0.0, %v6549
        %v6551 = vpop.f32.mrf.mxu0
        %6552 = vmatprep.mubr.f32.mxu0 0.0
        %6553 = vmatmul.mubr.f32.gmra.mxu0 %v6347
        %v6554 = vpop.f32.mrf.mxu0
        %v6555 = vadd.f32 0.0, %v6554
        %v6556 = vpop.f32.mrf.mxu0
        %6557 = vmatprep.mubr.f32.mxu0 0.0
        %6558 = vmatmul.mubr.f32.gmra.mxu0 %v6350
        %v6559 = vpop.f32.mrf.mxu0
        %v6560 = vadd.f32 0.0, %v6559
        %v6561 = vpop.f32.mrf.mxu0
        %6562 = vmatprep.mubr.f32.mxu0 0.0
        %6563 = vmatmul.mubr.f32.gmra.mxu0 %v6353
        %v6564 = vpop.f32.mrf.mxu0
        %v6565 = vadd.f32 0.0, %v6564
        %v6566 = vpop.f32.mrf.mxu0
        %6567 = vmatprep.mubr.f32.mxu0 0.0
        %6568 = vmatmul.mubr.f32.gmra.mxu0 %v6356
        %v6569 = vpop.f32.mrf.mxu0
        %v6570 = vadd.f32 0.0, %v6569
        %v6571 = vpop.f32.mrf.mxu0
        %6572 = vmatprep.mubr.f32.mxu0 0.0
        %6573 = vmatmul.mubr.f32.gmra.mxu0 %v6359
        %v6574 = vpop.f32.mrf.mxu0
        %v6575 = vadd.f32 0.0, %v6574
        %v6576 = vpop.f32.mrf.mxu0
        %6577 = vmatprep.mubr.f32.mxu0 0.0
        %6578 = vmatmul.mubr.f32.gmra.mxu0 %v6362
        %v6579 = vpop.f32.mrf.mxu0
        %v6580 = vadd.f32 0.0, %v6579
        %v6581 = vpop.f32.mrf.mxu0
        %6582 = vmatprep.mubr.f32.mxu0 0.0
        %6583 = vmatmul.mubr.f32.gmra.mxu0 %v6365
        %v6584 = vpop.f32.mrf.mxu0
        %v6585 = vadd.f32 0.0, %v6584
        %v6586 = vpop.f32.mrf.mxu0
        %6587 = vmatprep.mubr.f32.mxu0 0.0
        %6588 = vmatmul.mubr.f32.gmra.mxu0 %v6368
        %v6589 = vpop.f32.mrf.mxu0
        %v6590 = vadd.f32 0.0, %v6589
        %v6591 = vpop.f32.mrf.mxu0
        %6592 = vmatprep.mubr.f32.mxu0 0.0
        %6593 = vmatmul.mubr.f32.gmra.mxu0 %v6371
        %v6594 = vpop.f32.mrf.mxu0
        %v6595 = vadd.f32 0.0, %v6594
        %v6596 = vpop.f32.mrf.mxu0
        %6597 = vdwg.mxu0
        %v6598 = vadd.f32 %v6208, %v6440
        %v6599 = vadd.f32 %v6209, %v6445
        %v6600 = vadd.f32 %v6210, %v6450
        %v6601 = vadd.f32 %v6211, %v6455
        %v6602 = vadd.f32 %v6212, %v6460
        %v6603 = vadd.f32 %v6213, %v6465
        %v6604 = vadd.f32 %v6214, %v6470
        %v6605 = vadd.f32 %v6215, %v6475
        %v6606 = vadd.f32 %v6216, %v6480
        %v6607 = vadd.f32 %v6217, %v6485
        %v6608 = vadd.f32 %v6218, %v6490
        %v6609 = vadd.f32 %v6219, %v6495
        %v6610 = vadd.f32 %v6220, %v6500
        %v6611 = vadd.f32 %v6221, %v6505
        %v6612 = vadd.f32 %v6222, %v6510
        %v6613 = vadd.f32 %v6223, %v6515
        %v6614 = vadd.f32 %v6224, %v6520
        %v6615 = vadd.f32 %v6225, %v6525
        %v6616 = vadd.f32 %v6226, %v6530
        %v6617 = vadd.f32 %v6227, %v6535
        %v6618 = vadd.f32 %v6228, %v6540
        %v6619 = vadd.f32 %v6229, %v6545
        %v6620 = vadd.f32 %v6230, %v6550
        %v6621 = vadd.f32 %v6231, %v6555
        %v6622 = vadd.f32 %v6232, %v6560
        %v6623 = vadd.f32 %v6233, %v6565
        %v6624 = vadd.f32 %v6234, %v6570
        %v6625 = vadd.f32 %v6235, %v6575
        %v6626 = vadd.f32 %v6236, %v6580
        %v6627 = vadd.f32 %v6237, %v6585
        %v6628 = vadd.f32 %v6238, %v6590
        %v6629 = vadd.f32 %v6239, %v6595
        %v6630 = vld [vmem:[%s4] sm:$0x1]
        %v6632 = vlaneseq
        %v6633 = vshrl.u32 %v6632, 7
        %v6634 = vsub.s32 0, %v6633
        %v6635 = vrot.slane %v6630, %v6634
        %v6637 = vadd.f32 %v6598, %v6635
        %v6638 = vadd.f32 %v6599, %v6635
        %v6639 = vadd.f32 %v6600, %v6635
        %v6640 = vadd.f32 %v6601, %v6635
        %v6641 = vadd.f32 %v6602, %v6635
        %v6642 = vadd.f32 %v6603, %v6635
        %v6643 = vadd.f32 %v6604, %v6635
        %v6644 = vadd.f32 %v6605, %v6635
        %v6645 = vadd.f32 %v6606, %v6635
        %v6646 = vadd.f32 %v6607, %v6635
        %v6647 = vadd.f32 %v6608, %v6635
        %v6648 = vadd.f32 %v6609, %v6635
        %v6649 = vadd.f32 %v6610, %v6635
        %v6650 = vadd.f32 %v6611, %v6635
        %v6651 = vadd.f32 %v6612, %v6635
        %v6652 = vadd.f32 %v6613, %v6635
        %v6653 = vadd.f32 %v6614, %v6635
        %v6654 = vadd.f32 %v6615, %v6635
        %v6655 = vadd.f32 %v6616, %v6635
        %v6656 = vadd.f32 %v6617, %v6635
        %v6657 = vadd.f32 %v6618, %v6635
        %v6658 = vadd.f32 %v6619, %v6635
        %v6659 = vadd.f32 %v6620, %v6635
        %v6660 = vadd.f32 %v6621, %v6635
        %v6661 = vadd.f32 %v6622, %v6635
        %v6662 = vadd.f32 %v6623, %v6635
        %v6663 = vadd.f32 %v6624, %v6635
        %v6664 = vadd.f32 %v6625, %v6635
        %v6665 = vadd.f32 %v6626, %v6635
        %v6666 = vadd.f32 %v6627, %v6635
        %v6667 = vadd.f32 %v6628, %v6635
        %v6668 = vadd.f32 %v6629, %v6635
        %v6669 = vmax.f32 %v6637, 0.0
        %v6670 = vmax.f32 %v6638, 0.0
        %v6671 = vmax.f32 %v6639, 0.0
        %v6672 = vmax.f32 %v6640, 0.0
        %v6673 = vmax.f32 %v6641, 0.0
        %v6674 = vmax.f32 %v6642, 0.0
        %v6675 = vmax.f32 %v6643, 0.0
        %v6676 = vmax.f32 %v6644, 0.0
        %v6677 = vmax.f32 %v6645, 0.0
        %v6678 = vmax.f32 %v6646, 0.0
        %v6679 = vmax.f32 %v6647, 0.0
        %v6680 = vmax.f32 %v6648, 0.0
        %v6681 = vmax.f32 %v6649, 0.0
        %v6682 = vmax.f32 %v6650, 0.0
        %v6683 = vmax.f32 %v6651, 0.0
        %v6684 = vmax.f32 %v6652, 0.0
        %v6685 = vmax.f32 %v6653, 0.0
        %v6686 = vmax.f32 %v6654, 0.0
        %v6687 = vmax.f32 %v6655, 0.0
        %v6688 = vmax.f32 %v6656, 0.0
        %v6689 = vmax.f32 %v6657, 0.0
        %v6690 = vmax.f32 %v6658, 0.0
        %v6691 = vmax.f32 %v6659, 0.0
        %v6692 = vmax.f32 %v6660, 0.0
        %v6693 = vmax.f32 %v6661, 0.0
        %v6694 = vmax.f32 %v6662, 0.0
        %v6695 = vmax.f32 %v6663, 0.0
        %v6696 = vmax.f32 %v6664, 0.0
        %v6697 = vmax.f32 %v6665, 0.0
        %v6698 = vmax.f32 %v6666, 0.0
        %v6699 = vmax.f32 %v6667, 0.0
        %v6700 = vmax.f32 %v6668, 0.0
        %6701 = vst.msk [vmem:[%s217] sm:$0xff] %vm3095, %v6669
        %6702 = vst.msk [vmem:[%s217 + $0x8] sm:$0xff] %vm3095, %v6670
        %6703 = vst.msk [vmem:[%s217 + $0x10] sm:$0xff] %vm3095, %v6671
        %6704 = vst.msk [vmem:[%s217 + $0x18] sm:$0xff] %vm3095, %v6672
        %6705 = vst.msk [vmem:[%s217 + $0x20] sm:$0xff] %vm3095, %v6673
        %6706 = vst.msk [vmem:[%s217 + $0x28] sm:$0xff] %vm3095, %v6674
        %6707 = vst.msk [vmem:[%s217 + $0x30] sm:$0xff] %vm3095, %v6675
        %6708 = vst.msk [vmem:[%s217 + $0x38] sm:$0xff] %vm3095, %v6676
        %6709 = vst.msk [vmem:[%s217 + $0x40] sm:$0xff] %vm3095, %v6677
        %6710 = vst.msk [vmem:[%s217 + $0x48] sm:$0xff] %vm3095, %v6678
        %6711 = vst.msk [vmem:[%s217 + $0x50] sm:$0xff] %vm3095, %v6679
        %6712 = vst.msk [vmem:[%s217 + $0x58] sm:$0xff] %vm3095, %v6680
        %6713 = vst.msk [vmem:[%s217 + $0x60] sm:$0xff] %vm3095, %v6681
        %6714 = vst.msk [vmem:[%s217 + $0x68] sm:$0xff] %vm3095, %v6682
        %6715 = vst.msk [vmem:[%s217 + $0x70] sm:$0xff] %vm3095, %v6683
        %6716 = vst.msk [vmem:[%s217 + $0x78] sm:$0xff] %vm3095, %v6684
        %6717 = vst.msk [vmem:[%s217 + $0x80] sm:$0xff] %vm3095, %v6685
        %6718 = vst.msk [vmem:[%s217 + $0x88] sm:$0xff] %vm3095, %v6686
        %6719 = vst.msk [vmem:[%s217 + $0x90] sm:$0xff] %vm3095, %v6687
        %6720 = vst.msk [vmem:[%s217 + $0x98] sm:$0xff] %vm3095, %v6688
        %6721 = vst.msk [vmem:[%s217 + $0xa0] sm:$0xff] %vm3095, %v6689
        %6722 = vst.msk [vmem:[%s217 + $0xa8] sm:$0xff] %vm3095, %v6690
        %6723 = vst.msk [vmem:[%s217 + $0xb0] sm:$0xff] %vm3095, %v6691
        %6724 = vst.msk [vmem:[%s217 + $0xb8] sm:$0xff] %vm3095, %v6692
        %6725 = vst.msk [vmem:[%s217 + $0xc0] sm:$0xff] %vm3095, %v6693
        %6726 = vst.msk [vmem:[%s217 + $0xc8] sm:$0xff] %vm3095, %v6694
        %6727 = vst.msk [vmem:[%s217 + $0xd0] sm:$0xff] %vm3095, %v6695
        %6728 = vst.msk [vmem:[%s217 + $0xd8] sm:$0xff] %vm3095, %v6696
        %6729 = vst.msk [vmem:[%s217 + $0xe0] sm:$0xff] %vm3095, %v6697
        %6730 = vst.msk [vmem:[%s217 + $0xe8] sm:$0xff] %vm3095, %v6698
        %6731 = vst.msk [vmem:[%s217 + $0xf0] sm:$0xff] %vm3095, %v6699
        %6732 = vst.msk [vmem:[%s217 + $0xf8] sm:$0xff] %vm3095, %v6700
        %s6733 = sand.u32 %s137, 1
        %s6734 = scalar_lea.sflag [#allocation4], %s6733
        %s6735 = sand.u32 %s137, 1
        %s6736 = smul.addr %s6735, 256
        %s6737 = scalar_lea.vmem [#allocation3], %s6736
        // Predicated region
        $region41: #{_lambda_.1} parent=39 // pred_check
          %p6738 = pneg %p147
        $region42: #{_lambda_.1} parent=39 // pred_check_branch
          %6740 = sbr.rel (%p6738) target = $region44
        $region43: #{_lambda_.1} parent=39 // pred_region
          %s6742 = ssub.s32 4096, 4096
          %6743 = vsyncadd %s6734, %s6742
          %s6744 = smul.addr %s19, 32
          %s6745 = smul.addr %s6744, 128
          %s6746 = scalar_lea.hbm %s5, %s6745
          %s6747 = sshll.u32 %s6737, 4
          %s6748 = int_to_ptr.vmem [resolvable:$true] %s6747
          %6753 = dma.vmem_to_hbm [thread:$0]  %s6748, 4096, %s6746, %s6734, 128, 128, 8
        $region44: #{_lambda_.1} parent=39 // pred_fallthru
          _
      $region40: #{_lambda_.1} parent=5 // pred_fallthru
        _
      %p6754 = scmp.le.s32.totalorder 2, %s14
      // Predicated region
      $region45: #{_lambda_.1} parent=5 // pred_check
        %p6755 = pneg %p6754
      $region46: #{_lambda_.1} parent=5 // pred_check_branch
        %6757 = sbr.rel (%p6755) target = $region48
      $region47: #{_lambda_.1} parent=5 // pred_region
        %s6758 = ssub.s32 %s14, 2
        // Predicated region
        $region49: #{_lambda_.1} parent=47 // pred_check
          %p6759 = pneg %p153
        $region50: #{_lambda_.1} parent=47 // pred_check_branch
          %6761 = sbr.rel (%p6759) target = $region52
        $region51: #{_lambda_.1} parent=47 // pred_region
          %s6762 = sand.u32 %s138, 1
          %s6763 = scalar_lea.sflag [#allocation4], %s6762
          %s6764 = sand.u32 %s138, 1
          %s6765 = smul.addr %s6764, 256
          %s6766 = scalar_lea.vmem [#allocation3], %s6765
          %6767 = dma.done %s6763, 4096
        $region52: #{_lambda_.1} parent=47 // pred_fallthru
          _
      $region48: #{_lambda_.1} parent=5 // pred_fallthru
        _
    $region6: #{_lambda_.1} parent=1 // loop_footer
      %s18 = sadd.s32 1, %s14
    $region7: #{_lambda_.1} parent=1 // loop_footer_branch
      %13 = sbr.rel target = $region3
    $region8: #{_lambda_.1} parent=1 // loop_exit
      _
    %6768 = vsyncpa [#allocation4], 1
    %s6769 = scalar_lea.sflag [#allocation4], 1
    %6770 = vsyncpa %s6769, 1

</llo_original>
